<compile_context>
chip_gen: v7x
topology: tpu7x:2x2x1
jax: 0.10.0
libtpu: 0.0.40
codegen_flags: <defaults>
</compile_context>

<pallas_src>
import functools

import jax
import jax.numpy as jnp
from jax.experimental import pallas as pl
from jax.experimental.pallas import tpu as pltpu


CONV_K, CONV_S, CONV_P = 4, 2, 1


def _vmem_spec(arr):
    """Full-array VMEM block (no grid)."""
    shp = tuple(arr.shape)
    return pl.BlockSpec(shp, lambda *_: (0,) * len(shp))


# ----------------------------------------------------------------------------
# Kernel 1: conv1 = im2col-matmul + bias + ReLU, scattered into a zero-padded
#           NHWC activation buffer (pad for conv2 folded into the epilogue).
# ----------------------------------------------------------------------------
def _conv1_kernel(cols_ref, w_ref, b_ref, o_ref, *, B, Ho, Wo):
    acc = jnp.dot(cols_ref[...], w_ref[...], preferred_element_type=jnp.float32)
    acc = jnp.maximum(acc + b_ref[...], 0.0)          # (B*Ho*Wo, Cout)
    o_ref[...] = jnp.zeros_like(o_ref)                # zero border = conv2 padding
    for b in range(B):
        for i in range(Ho):
            r0 = b * Ho * Wo + i * Wo
            o_ref[b, 1 + i, 1:1 + Wo, :] = acc[r0:r0 + Wo, :]


def _conv1_call(cols1, w1f, b1, B, Ho, Wo):
    cout = w1f.shape[1]
    return pl.pallas_call(
        functools.partial(_conv1_kernel, B=B, Ho=Ho, Wo=Wo),
        out_shape=jax.ShapeDtypeStruct((B, Ho + 2, Wo + 2, cout), jnp.float32),
        in_specs=[_vmem_spec(cols1), _vmem_spec(w1f), _vmem_spec(b1)],
        out_specs=pl.BlockSpec((B, Ho + 2, Wo + 2, cout), lambda *_: (0, 0, 0, 0)),
    )(cols1, w1f, b1)


# ----------------------------------------------------------------------------
# Kernel 2 (fused tail): conv2 matmul -> conv3 -> conv4 -> fc1 -> fc2, all in VMEM.
# conv3/conv4 are computed per output position as a sum of 16 kernel-tap matmuls
# (pure 2-D MXU dots, contiguous scratch slices, no reshapes / strided reads).
# ----------------------------------------------------------------------------
def _tail_kernel(cols2_ref, w2_ref, b2_ref, w3_ref, b3_ref, w4_ref, b4_ref,
                 fc1w_ref, fc1b_ref, fc2w_ref, fc2b_ref, o_ref,
                 pad3_ref, pad4_ref, vec_ref, *, B, H2, W2):
    H3, W3 = H2 // 2, W2 // 2
    H4, W4 = H3 // 2, W3 // 2
    C3 = w3_ref.shape[3]
    C4 = w4_ref.shape[3]

    # ---- conv2: single matmul + bias + ReLU ----
    h2 = jnp.dot(cols2_ref[...], w2_ref[...], preferred_element_type=jnp.float32)
    h2 = jnp.maximum(h2 + b2_ref[...], 0.0)           # (B*H2*W2, C2)

    # scatter conv2 activation into a zero-padded NHWC scratch (padding for conv3)
    pad3_ref[...] = jnp.zeros_like(pad3_ref)
    for b in range(B):
        for i in range(H2):
            r0 = b * H2 * W2 + i * W2
            pad3_ref[b, 1 + i, 1:1 + W2, :] = h2[r0:r0 + W2, :]

    # ---- conv3: per output position, accumulate the 16 kernel taps on the MXU ----
    pad4_ref[...] = jnp.zeros_like(pad4_ref)          # zero border = conv4 padding
    for i in range(H3):
        for j in range(W3):
            acc = jnp.zeros((B, C3), jnp.float32)
            for ki in range(CONV_K):
                for kj in range(CONV_K):
                    acc = acc + jnp.dot(pad3_ref[:, 2 * i + ki, 2 * j + kj, :],
                                        w3_ref[ki, kj],
                                        preferred_element_type=jnp.float32)
            pad4_ref[:, 1 + i, 1 + j, :] = jnp.maximum(acc + b3_ref[...], 0.0)

    # ---- conv4: same scheme; write NHWC-flattened features into the vec scratch ----
    for i in range(H4):
        for j in range(W4):
            acc = jnp.zeros((B, C4), jnp.float32)
            for ki in range(CONV_K):
                for kj in range(CONV_K):
                    acc = acc + jnp.dot(pad4_ref[:, 2 * i + ki, 2 * j + kj, :],
                                        w4_ref[ki, kj],
                                        preferred_element_type=jnp.float32)
            h4 = jnp.maximum(acc + b4_ref[...], 0.0)
            c0 = (i * W4 + j) * C4
            vec_ref[:, c0:c0 + C4] = h4

    # ---- fc1 -> fc2 (no activation between, matching nn.Sequential(Linear, Linear)) ----
    hfc = jnp.dot(vec_ref[...], fc1w_ref[...], preferred_element_type=jnp.float32) + fc1b_ref[...]
    emb = jnp.dot(hfc, fc2w_ref[...], preferred_element_type=jnp.float32) + fc2b_ref[...]
    o_ref[...] = emb.astype(o_ref.dtype)


def _tail_call(cols2, kp, B, H2, W2):
    C2 = kp["w2f"].shape[1]
    C3 = kp["w3"].shape[3]
    C4 = kp["w4"].shape[3]
    H3, W3 = H2 // 2, W2 // 2
    H4, W4 = H3 // 2, W3 // 2
    embed_len = kp["fc2w"].shape[1]
    enc_out = H4 * W4 * C4

    operands = (cols2, kp["w2f"], kp["b2"], kp["w3"], kp["b3"], kp["w4"], kp["b4"],
                kp["fc1w"], kp["fc1b"], kp["fc2w"], kp["fc2b"])
    return pl.pallas_call(
        functools.partial(_tail_kernel, B=B, H2=H2, W2=W2),
        out_shape=jax.ShapeDtypeStruct((B, embed_len), jnp.float32),
        in_specs=[_vmem_spec(op) for op in operands],
        out_specs=pl.BlockSpec((B, embed_len), lambda *_: (0, 0)),
        scratch_shapes=[
            pltpu.VMEM((B, H2 + 2, W2 + 2, C2), jnp.float32),   # padded conv2 activation
            pltpu.VMEM((B, H3 + 2, W3 + 2, C3), jnp.float32),   # padded conv3 activation
            pltpu.VMEM((B, enc_out), jnp.float32),              # flattened conv4 features
        ],
    )(*operands)


# ----------------------------------------------------------------------------
# JAX glue: patch extraction (data movement only, fused by XLA under jit)
# ----------------------------------------------------------------------------
def _im2col(xp, k, stride):
    """xp is an already-padded NHWC tensor. K-ordering is (kh, kw, cin)."""
    B, Hp, Wp, C = xp.shape
    Ho = (Hp - k) // stride + 1
    Wo = (Wp - k) // stride + 1
    cols = [xp[:, ki:ki + stride * Ho:stride, kj:kj + stride * Wo:stride, :]
            for ki in range(k) for kj in range(k)]
    patches = jnp.stack(cols, axis=3)                 # (B, Ho, Wo, k*k, C)
    return patches.reshape(B * Ho * Wo, k * k * C)


@jax.jit
def encoder_forward(x_nchw, kp):
    x = jnp.transpose(x_nchw, (0, 2, 3, 1))           # NCHW -> NHWC
    B, H, W, _ = x.shape
    H1, W1 = H // 2, W // 2
    # conv1: patches of the raw input in JAX; matmul+bias+ReLU+zero-pad in Pallas
    cols1 = _im2col(jnp.pad(x, ((0, 0), (CONV_P, CONV_P), (CONV_P, CONV_P), (0, 0))),
                    CONV_K, CONV_S)
    h1p = _conv1_call(cols1, kp["w1f"], kp["b1"], B, H1, W1)   # (B, H1+2, W1+2, 32), zero border
    # conv2 patches straight from the padded activation (no extra pad op)
    cols2 = _im2col(h1p, CONV_K, CONV_S)
    H2, W2 = H1 // 2, W1 // 2
    return _tail_call(cols2, kp, B, H2, W2)           # conv2..conv4 + fc1 + fc2 fused


# ----------------------------------------------------------------------------
# Pure-JAX reference (independent path, PyTorch semantics)
# ----------------------------------------------------------------------------
def encoder_reference(x_nchw, params):
    h = jnp.transpose(x_nchw, (0, 2, 3, 1))
    for (w4d, b) in params["convs"]:
        h = jax.lax.conv_general_dilated(
            h, w4d, window_strides=(CONV_S, CONV_S),
            padding=((CONV_P, CONV_P), (CONV_P, CONV_P)),
            dimension_numbers=("NHWC", "HWIO", "NHWC"),
            precision=jax.lax.Precision.HIGHEST)
        h = jnp.maximum(h + b, 0.0)
    B = h.shape[0]
    vec = jnp.transpose(h, (0, 3, 1, 2)).reshape(B, -1)        # PyTorch NCHW flatten
    h1 = jnp.dot(vec, params["fc1_w"], precision=jax.lax.Precision.HIGHEST) + params["fc1_b"]
    return jnp.dot(h1, params["fc2_w"], precision=jax.lax.Precision.HIGHEST) + params["fc2_b"]


# ----------------------------------------------------------------------------
# Parameter construction (ground truth) + one-time prep for the kernel path
# ----------------------------------------------------------------------------
def init_params(key, in_ch, im_wh, fc_width, embed_len):
    chans = [in_ch, 32, 64, 128, 256]
    keys = jax.random.split(key, 2 * 4 + 4)
    convs = []
    for li, (cin, cout) in enumerate(zip(chans[:-1], chans[1:])):
        w = 0.05 * jax.random.normal(keys[2 * li], (CONV_K, CONV_K, cin, cout), jnp.float32)
        b = 0.01 * jax.random.normal(keys[2 * li + 1], (cout,), jnp.float32)
        convs.append((w, b))
    H4, W4 = im_wh[0] // 16, im_wh[1] // 16
    enc_out = 256 * H4 * W4
    fc1_w = 0.05 * jax.random.normal(keys[8], (enc_out, fc_width), jnp.float32)
    fc1_b = 0.01 * jax.random.normal(keys[9], (fc_width,), jnp.float32)
    fc2_w = 0.05 * jax.random.normal(keys[10], (fc_width, embed_len), jnp.float32)
    fc2_b = 0.01 * jax.random.normal(keys[11], (embed_len,), jnp.float32)
    return {"convs": convs, "fc1_w": fc1_w, "fc1_b": fc1_b,
            "fc2_w": fc2_w, "fc2_b": fc2_b}


def prepare_params(params, im_wh):
    """One-time offline prep: flatten conv1/conv2 weights (kh,kw,cin ordering), reshape
    biases to (1,N), and permute fc1 rows from NCHW-flatten to NHWC-flatten order."""
    (w1, b1), (w2, b2), (w3, b3), (w4, b4) = params["convs"]
    H4, W4 = im_wh[0] // 16, im_wh[1] // 16
    C4 = w4.shape[3]
    fc1_w = params["fc1_w"]
    fc_width = fc1_w.shape[1]
    fc1_w_k = (fc1_w.reshape(C4, H4, W4, fc_width)
               .transpose(1, 2, 0, 3)
               .reshape(H4 * W4 * C4, fc_width))
    return {
        "w1f": w1.reshape(-1, w1.shape[3]), "b1": b1.reshape(1, -1),
        "w2f": w2.reshape(-1, w2.shape[3]), "b2": b2.reshape(1, -1),
        "w3": w3, "b3": b3.reshape(1, -1),
        "w4": w4, "b4": b4.reshape(1, -1),
        "fc1w": fc1_w_k, "fc1b": params["fc1_b"].reshape(1, -1),
        "fc2w": params["fc2_w"], "fc2b": params["fc2_b"].reshape(1, -1),
    }


if __name__ == "__main__":
    # Small shapes consistent with the module: batch=2, in_ch=3, im_wh=(16,16),
    # fc_width=128, embed_len=32.  Spatial chain 16 -> 8 -> 4 -> 2 -> 1; enc_out = 256.
    B, in_ch = 2, 3
    im_wh = (16, 16)
    fc_width, embed_len = 128, 32

    root = jax.random.PRNGKey(0)
    k_x, k_p = jax.random.split(root)
    x = jax.random.normal(k_x, (B, in_ch, im_wh[0], im_wh[1]), jnp.float32)  # NCHW like PyTorch
    params = init_params(k_p, in_ch, im_wh, fc_width, embed_len)
    kp = prepare_params(params, im_wh)

    emb = jax.block_until_ready(encoder_forward(x, kp))
    assert emb.shape == (B, embed_len), emb.shape

    ref = jax.block_until_ready(encoder_reference(x, params))
    assert bool(jnp.all(jnp.isfinite(emb)))
    assert jnp.allclose(emb, ref, rtol=2e-2, atol=2e-2), float(jnp.max(jnp.abs(emb - ref)))

    print("KERNEL_OK")
</pallas_src>

<mosaic_0001>
module attributes {stable_mosaic.version = 11 : i64} {
  func.func @_conv1_kernel(%arg0: memref<128x48xf32, #tpu.memory_space<vmem>>, %arg1: memref<48x32xf32, #tpu.memory_space<vmem>>, %arg2: memref<1x32xf32, #tpu.memory_space<vmem>>, %arg3: memref<2x10x10x32xf32, #tpu.memory_space<vmem>>) attributes {dimension_semantics = [], scalar_prefetch = 0 : i64, scratch_operands = 0 : i64, tpu.core_type = #tpu.core_type<tc>} {
    %c0 = arith.constant 0 : index
    %c0_0 = arith.constant 0 : index
    %0 = vector.load %arg0[%c0, %c0_0] : memref<128x48xf32, #tpu.memory_space<vmem>>, vector<128x48xf32>
    %c0_1 = arith.constant 0 : index
    %c0_2 = arith.constant 0 : index
    %1 = vector.load %arg1[%c0_1, %c0_2] : memref<48x32xf32, #tpu.memory_space<vmem>>, vector<48x32xf32>
    %cst = arith.constant dense<0.000000e+00> : vector<128x32xf32>
    %2 = tpu.matmul %0, %1, %cst {dimension_numbers = #tpu.dot_dimension_numbers<[1], [0], [0], [1], [0, 0, 1, 1], [], []>} : vector<128x48xf32>, vector<48x32xf32>, vector<128x32xf32> -> vector<128x32xf32>
    %c0_3 = arith.constant 0 : index
    %c0_4 = arith.constant 0 : index
    %3 = vector.load %arg2[%c0_3, %c0_4] : memref<1x32xf32, #tpu.memory_space<vmem>>, vector<1x32xf32>
    %4 = vector.broadcast %3 : vector<1x32xf32> to vector<128x32xf32>
    %5 = arith.addf %2, %4 : vector<128x32xf32>
    %cst_5 = arith.constant 0.000000e+00 : f32
    %6 = vector.broadcast %cst_5 : f32 to vector<128x32xf32>
    %7 = arith.maximumf %5, %6 : vector<128x32xf32>
    %cst_6 = arith.constant 0.000000e+00 : f32
    %8 = vector.broadcast %cst_6 : f32 to vector<2x10x10x32xf32>
    %c0_7 = arith.constant 0 : index
    %c0_8 = arith.constant 0 : index
    %c0_9 = arith.constant 0 : index
    %c0_10 = arith.constant 0 : index
    %9 = vector.load %arg3[%c0_7, %c0_8, %c0_9, %c0_10] : memref<2x10x10x32xf32, #tpu.memory_space<vmem>>, vector<2x10x10x32xf32>
    tpu.vector_store %arg3[%c0_7, %c0_8, %c0_9, %c0_10], %8 {strides = array<i32>} : memref<2x10x10x32xf32, #tpu.memory_space<vmem>>, vector<2x10x10x32xf32>,
    %10 = vector.extract_strided_slice %7 {offsets = [0, 0], sizes = [8, 32], strides = [1, 1]} : vector<128x32xf32> to vector<8x32xf32>
    %c0_11 = arith.constant 0 : index
    %c1 = arith.constant 1 : index
    %c1_12 = arith.constant 1 : index
    %c0_13 = arith.constant 0 : index
    %11 = vector.load %arg3[%c0_11, %c1, %c1_12, %c0_13] : memref<2x10x10x32xf32, #tpu.memory_space<vmem>>, vector<1x1x8x32xf32>
    %12 = vector.shape_cast %11 : vector<1x1x8x32xf32> to vector<8x32xf32>
    %13 = vector.shape_cast %10 : vector<8x32xf32> to vector<1x1x8x32xf32>
    tpu.vector_store %arg3[%c0_11, %c1, %c1_12, %c0_13], %13 {strides = array<i32>} : memref<2x10x10x32xf32, #tpu.memory_space<vmem>>, vector<1x1x8x32xf32>,
    %14 = vector.extract_strided_slice %7 {offsets = [8, 0], sizes = [8, 32], strides = [1, 1]} : vector<128x32xf32> to vector<8x32xf32>
    %c0_14 = arith.constant 0 : index
    %c2 = arith.constant 2 : index
    %c1_15 = arith.constant 1 : index
    %c0_16 = arith.constant 0 : index
    %15 = vector.load %arg3[%c0_14, %c2, %c1_15, %c0_16] : memref<2x10x10x32xf32, #tpu.memory_space<vmem>>, vector<1x1x8x32xf32>
    %16 = vector.shape_cast %15 : vector<1x1x8x32xf32> to vector<8x32xf32>
    %17 = vector.shape_cast %14 : vector<8x32xf32> to vector<1x1x8x32xf32>
    tpu.vector_store %arg3[%c0_14, %c2, %c1_15, %c0_16], %17 {strides = array<i32>} : memref<2x10x10x32xf32, #tpu.memory_space<vmem>>, vector<1x1x8x32xf32>,
    %18 = vector.extract_strided_slice %7 {offsets = [16, 0], sizes = [8, 32], strides = [1, 1]} : vector<128x32xf32> to vector<8x32xf32>
    %c0_17 = arith.constant 0 : index
    %c3 = arith.constant 3 : index
    %c1_18 = arith.constant 1 : index
    %c0_19 = arith.constant 0 : index
    %19 = vector.load %arg3[%c0_17, %c3, %c1_18, %c0_19] : memref<2x10x10x32xf32, #tpu.memory_space<vmem>>, vector<1x1x8x32xf32>
    %20 = vector.shape_cast %19 : vector<1x1x8x32xf32> to vector<8x32xf32>
    %21 = vector.shape_cast %18 : vector<8x32xf32> to vector<1x1x8x32xf32>
    tpu.vector_store %arg3[%c0_17, %c3, %c1_18, %c0_19], %21 {strides = array<i32>} : memref<2x10x10x32xf32, #tpu.memory_space<vmem>>, vector<1x1x8x32xf32>,
    %22 = vector.extract_strided_slice %7 {offsets = [24, 0], sizes = [8, 32], strides = [1, 1]} : vector<128x32xf32> to vector<8x32xf32>
    %c0_20 = arith.constant 0 : index
    %c4 = arith.constant 4 : index
    %c1_21 = arith.constant 1 : index
    %c0_22 = arith.constant 0 : index
    %23 = vector.load %arg3[%c0_20, %c4, %c1_21, %c0_22] : memref<2x10x10x32xf32, #tpu.memory_space<vmem>>, vector<1x1x8x32xf32>
    %24 = vector.shape_cast %23 : vector<1x1x8x32xf32> to vector<8x32xf32>
    %25 = vector.shape_cast %22 : vector<8x32xf32> to vector<1x1x8x32xf32>
    tpu.vector_store %arg3[%c0_20, %c4, %c1_21, %c0_22], %25 {strides = array<i32>} : memref<2x10x10x32xf32, #tpu.memory_space<vmem>>, vector<1x1x8x32xf32>,
    %26 = vector.extract_strided_slice %7 {offsets = [32, 0], sizes = [8, 32], strides = [1, 1]} : vector<128x32xf32> to vector<8x32xf32>
    %c0_23 = arith.constant 0 : index
    %c5 = arith.constant 5 : index
    %c1_24 = arith.constant 1 : index
    %c0_25 = arith.constant 0 : index
    %27 = vector.load %arg3[%c0_23, %c5, %c1_24, %c0_25] : memref<2x10x10x32xf32, #tpu.memory_space<vmem>>, vector<1x1x8x32xf32>
    %28 = vector.shape_cast %27 : vector<1x1x8x32xf32> to vector<8x32xf32>
    %29 = vector.shape_cast %26 : vector<8x32xf32> to vector<1x1x8x32xf32>
    tpu.vector_store %arg3[%c0_23, %c5, %c1_24, %c0_25], %29 {strides = array<i32>} : memref<2x10x10x32xf32, #tpu.memory_space<vmem>>, vector<1x1x8x32xf32>,
    %30 = vector.extract_strided_slice %7 {offsets = [40, 0], sizes = [8, 32], strides = [1, 1]} : vector<128x32xf32> to vector<8x32xf32>
    %c0_26 = arith.constant 0 : index
    %c6 = arith.constant 6 : index
    %c1_27 = arith.constant 1 : index
    %c0_28 = arith.constant 0 : index
    %31 = vector.load %arg3[%c0_26, %c6, %c1_27, %c0_28] : memref<2x10x10x32xf32, #tpu.memory_space<vmem>>, vector<1x1x8x32xf32>
    %32 = vector.shape_cast %31 : vector<1x1x8x32xf32> to vector<8x32xf32>
    %33 = vector.shape_cast %30 : vector<8x32xf32> to vector<1x1x8x32xf32>
    tpu.vector_store %arg3[%c0_26, %c6, %c1_27, %c0_28], %33 {strides = array<i32>} : memref<2x10x10x32xf32, #tpu.memory_space<vmem>>, vector<1x1x8x32xf32>,
    %34 = vector.extract_strided_slice %7 {offsets = [48, 0], sizes = [8, 32], strides = [1, 1]} : vector<128x32xf32> to vector<8x32xf32>
    %c0_29 = arith.constant 0 : index
    %c7 = arith.constant 7 : index
    %c1_30 = arith.constant 1 : index
    %c0_31 = arith.constant 0 : index
    %35 = vector.load %arg3[%c0_29, %c7, %c1_30, %c0_31] : memref<2x10x10x32xf32, #tpu.memory_space<vmem>>, vector<1x1x8x32xf32>
    %36 = vector.shape_cast %35 : vector<1x1x8x32xf32> to vector<8x32xf32>
    %37 = vector.shape_cast %34 : vector<8x32xf32> to vector<1x1x8x32xf32>
    tpu.vector_store %arg3[%c0_29, %c7, %c1_30, %c0_31], %37 {strides = array<i32>} : memref<2x10x10x32xf32, #tpu.memory_space<vmem>>, vector<1x1x8x32xf32>,
    %38 = vector.extract_strided_slice %7 {offsets = [56, 0], sizes = [8, 32], strides = [1, 1]} : vector<128x32xf32> to vector<8x32xf32>
    %c0_32 = arith.constant 0 : index
    %c8 = arith.constant 8 : index
    %c1_33 = arith.constant 1 : index
    %c0_34 = arith.constant 0 : index
    %39 = vector.load %arg3[%c0_32, %c8, %c1_33, %c0_34] : memref<2x10x10x32xf32, #tpu.memory_space<vmem>>, vector<1x1x8x32xf32>
    %40 = vector.shape_cast %39 : vector<1x1x8x32xf32> to vector<8x32xf32>
    %41 = vector.shape_cast %38 : vector<8x32xf32> to vector<1x1x8x32xf32>
    tpu.vector_store %arg3[%c0_32, %c8, %c1_33, %c0_34], %41 {strides = array<i32>} : memref<2x10x10x32xf32, #tpu.memory_space<vmem>>, vector<1x1x8x32xf32>,
    %42 = vector.extract_strided_slice %7 {offsets = [64, 0], sizes = [8, 32], strides = [1, 1]} : vector<128x32xf32> to vector<8x32xf32>
    %c1_35 = arith.constant 1 : index
    %c1_36 = arith.constant 1 : index
    %c1_37 = arith.constant 1 : index
    %c0_38 = arith.constant 0 : index
    %43 = vector.load %arg3[%c1_35, %c1_36, %c1_37, %c0_38] : memref<2x10x10x32xf32, #tpu.memory_space<vmem>>, vector<1x1x8x32xf32>
    %44 = vector.shape_cast %43 : vector<1x1x8x32xf32> to vector<8x32xf32>
    %45 = vector.shape_cast %42 : vector<8x32xf32> to vector<1x1x8x32xf32>
    tpu.vector_store %arg3[%c1_35, %c1_36, %c1_37, %c0_38], %45 {strides = array<i32>} : memref<2x10x10x32xf32, #tpu.memory_space<vmem>>, vector<1x1x8x32xf32>,
    %46 = vector.extract_strided_slice %7 {offsets = [72, 0], sizes = [8, 32], strides = [1, 1]} : vector<128x32xf32> to vector<8x32xf32>
    %c1_39 = arith.constant 1 : index
    %c2_40 = arith.constant 2 : index
    %c1_41 = arith.constant 1 : index
    %c0_42 = arith.constant 0 : index
    %47 = vector.load %arg3[%c1_39, %c2_40, %c1_41, %c0_42] : memref<2x10x10x32xf32, #tpu.memory_space<vmem>>, vector<1x1x8x32xf32>
    %48 = vector.shape_cast %47 : vector<1x1x8x32xf32> to vector<8x32xf32>
    %49 = vector.shape_cast %46 : vector<8x32xf32> to vector<1x1x8x32xf32>
    tpu.vector_store %arg3[%c1_39, %c2_40, %c1_41, %c0_42], %49 {strides = array<i32>} : memref<2x10x10x32xf32, #tpu.memory_space<vmem>>, vector<1x1x8x32xf32>,
    %50 = vector.extract_strided_slice %7 {offsets = [80, 0], sizes = [8, 32], strides = [1, 1]} : vector<128x32xf32> to vector<8x32xf32>
    %c1_43 = arith.constant 1 : index
    %c3_44 = arith.constant 3 : index
    %c1_45 = arith.constant 1 : index
    %c0_46 = arith.constant 0 : index
    %51 = vector.load %arg3[%c1_43, %c3_44, %c1_45, %c0_46] : memref<2x10x10x32xf32, #tpu.memory_space<vmem>>, vector<1x1x8x32xf32>
    %52 = vector.shape_cast %51 : vector<1x1x8x32xf32> to vector<8x32xf32>
    %53 = vector.shape_cast %50 : vector<8x32xf32> to vector<1x1x8x32xf32>
    tpu.vector_store %arg3[%c1_43, %c3_44, %c1_45, %c0_46], %53 {strides = array<i32>} : memref<2x10x10x32xf32, #tpu.memory_space<vmem>>, vector<1x1x8x32xf32>,
    %54 = vector.extract_strided_slice %7 {offsets = [88, 0], sizes = [8, 32], strides = [1, 1]} : vector<128x32xf32> to vector<8x32xf32>
    %c1_47 = arith.constant 1 : index
    %c4_48 = arith.constant 4 : index
    %c1_49 = arith.constant 1 : index
    %c0_50 = arith.constant 0 : index
    %55 = vector.load %arg3[%c1_47, %c4_48, %c1_49, %c0_50] : memref<2x10x10x32xf32, #tpu.memory_space<vmem>>, vector<1x1x8x32xf32>
    %56 = vector.shape_cast %55 : vector<1x1x8x32xf32> to vector<8x32xf32>
    %57 = vector.shape_cast %54 : vector<8x32xf32> to vector<1x1x8x32xf32>
    tpu.vector_store %arg3[%c1_47, %c4_48, %c1_49, %c0_50], %57 {strides = array<i32>} : memref<2x10x10x32xf32, #tpu.memory_space<vmem>>, vector<1x1x8x32xf32>,
    %58 = vector.extract_strided_slice %7 {offsets = [96, 0], sizes = [8, 32], strides = [1, 1]} : vector<128x32xf32> to vector<8x32xf32>
    %c1_51 = arith.constant 1 : index
    %c5_52 = arith.constant 5 : index
    %c1_53 = arith.constant 1 : index
    %c0_54 = arith.constant 0 : index
    %59 = vector.load %arg3[%c1_51, %c5_52, %c1_53, %c0_54] : memref<2x10x10x32xf32, #tpu.memory_space<vmem>>, vector<1x1x8x32xf32>
    %60 = vector.shape_cast %59 : vector<1x1x8x32xf32> to vector<8x32xf32>
    %61 = vector.shape_cast %58 : vector<8x32xf32> to vector<1x1x8x32xf32>
    tpu.vector_store %arg3[%c1_51, %c5_52, %c1_53, %c0_54], %61 {strides = array<i32>} : memref<2x10x10x32xf32, #tpu.memory_space<vmem>>, vector<1x1x8x32xf32>,
    %62 = vector.extract_strided_slice %7 {offsets = [104, 0], sizes = [8, 32], strides = [1, 1]} : vector<128x32xf32> to vector<8x32xf32>
    %c1_55 = arith.constant 1 : index
    %c6_56 = arith.constant 6 : index
    %c1_57 = arith.constant 1 : index
    %c0_58 = arith.constant 0 : index
    %63 = vector.load %arg3[%c1_55, %c6_56, %c1_57, %c0_58] : memref<2x10x10x32xf32, #tpu.memory_space<vmem>>, vector<1x1x8x32xf32>
    %64 = vector.shape_cast %63 : vector<1x1x8x32xf32> to vector<8x32xf32>
    %65 = vector.shape_cast %62 : vector<8x32xf32> to vector<1x1x8x32xf32>
    tpu.vector_store %arg3[%c1_55, %c6_56, %c1_57, %c0_58], %65 {strides = array<i32>} : memref<2x10x10x32xf32, #tpu.memory_space<vmem>>, vector<1x1x8x32xf32>,
    %66 = vector.extract_strided_slice %7 {offsets = [112, 0], sizes = [8, 32], strides = [1, 1]} : vector<128x32xf32> to vector<8x32xf32>
    %c1_59 = arith.constant 1 : index
    %c7_60 = arith.constant 7 : index
    %c1_61 = arith.constant 1 : index
    %c0_62 = arith.constant 0 : index
    %67 = vector.load %arg3[%c1_59, %c7_60, %c1_61, %c0_62] : memref<2x10x10x32xf32, #tpu.memory_space<vmem>>, vector<1x1x8x32xf32>
    %68 = vector.shape_cast %67 : vector<1x1x8x32xf32> to vector<8x32xf32>
    %69 = vector.shape_cast %66 : vector<8x32xf32> to vector<1x1x8x32xf32>
    tpu.vector_store %arg3[%c1_59, %c7_60, %c1_61, %c0_62], %69 {strides = array<i32>} : memref<2x10x10x32xf32, #tpu.memory_space<vmem>>, vector<1x1x8x32xf32>,
    %70 = vector.extract_strided_slice %7 {offsets = [120, 0], sizes = [8, 32], strides = [1, 1]} : vector<128x32xf32> to vector<8x32xf32>
    %c1_63 = arith.constant 1 : index
    %c8_64 = arith.constant 8 : index
    %c1_65 = arith.constant 1 : index
    %c0_66 = arith.constant 0 : index
    %71 = vector.load %arg3[%c1_63, %c8_64, %c1_65, %c0_66] : memref<2x10x10x32xf32, #tpu.memory_space<vmem>>, vector<1x1x8x32xf32>
    %72 = vector.shape_cast %71 : vector<1x1x8x32xf32> to vector<8x32xf32>
    %73 = vector.shape_cast %70 : vector<8x32xf32> to vector<1x1x8x32xf32>
    tpu.vector_store %arg3[%c1_63, %c8_64, %c1_65, %c0_66], %73 {strides = array<i32>} : memref<2x10x10x32xf32, #tpu.memory_space<vmem>>, vector<1x1x8x32xf32>,
    return
  }
}

module attributes {stable_mosaic.version = 11 : i64} {
  func.func @_tail_kernel(%arg0: memref<32x512xf32, #tpu.memory_space<vmem>>, %arg1: memref<512x64xf32, #tpu.memory_space<vmem>>, %arg2: memref<1x64xf32, #tpu.memory_space<vmem>>, %arg3: memref<4x4x64x128xf32, #tpu.memory_space<vmem>>, %arg4: memref<1x128xf32, #tpu.memory_space<vmem>>, %arg5: memref<4x4x128x256xf32, #tpu.memory_space<vmem>>, %arg6: memref<1x256xf32, #tpu.memory_space<vmem>>, %arg7: memref<256x128xf32, #tpu.memory_space<vmem>>, %arg8: memref<1x128xf32, #tpu.memory_space<vmem>>, %arg9: memref<128x32xf32, #tpu.memory_space<vmem>>, %arg10: memref<1x32xf32, #tpu.memory_space<vmem>>, %arg11: memref<2x32xf32, #tpu.memory_space<vmem>>, %arg12: memref<2x6x6x64xf32, #tpu.memory_space<vmem>>, %arg13: memref<2x4x4x128xf32, #tpu.memory_space<vmem>>, %arg14: memref<2x256xf32, #tpu.memory_space<vmem>>) attributes {dimension_semantics = [], scalar_prefetch = 0 : i64, scratch_operands = 3 : i64, tpu.core_type = #tpu.core_type<tc>} {
    %c0 = arith.constant 0 : index
    %c0_0 = arith.constant 0 : index
    %0 = vector.load %arg0[%c0, %c0_0] : memref<32x512xf32, #tpu.memory_space<vmem>>, vector<32x512xf32>
    %c0_1 = arith.constant 0 : index
    %c0_2 = arith.constant 0 : index
    %1 = vector.load %arg1[%c0_1, %c0_2] : memref<512x64xf32, #tpu.memory_space<vmem>>, vector<512x64xf32>
    %cst = arith.constant dense<0.000000e+00> : vector<32x64xf32>
    %2 = tpu.matmul %0, %1, %cst {dimension_numbers = #tpu.dot_dimension_numbers<[1], [0], [0], [1], [0, 0, 1, 1], [], []>} : vector<32x512xf32>, vector<512x64xf32>, vector<32x64xf32> -> vector<32x64xf32>
    %c0_3 = arith.constant 0 : index
    %c0_4 = arith.constant 0 : index
    %3 = vector.load %arg2[%c0_3, %c0_4] : memref<1x64xf32, #tpu.memory_space<vmem>>, vector<1x64xf32>
    %4 = vector.broadcast %3 : vector<1x64xf32> to vector<32x64xf32>
    %5 = arith.addf %2, %4 : vector<32x64xf32>
    %cst_5 = arith.constant 0.000000e+00 : f32
    %6 = vector.broadcast %cst_5 : f32 to vector<32x64xf32>
    %7 = arith.maximumf %5, %6 : vector<32x64xf32>
    %cst_6 = arith.constant 0.000000e+00 : f32
    %8 = vector.broadcast %cst_6 : f32 to vector<2x6x6x64xf32>
    %c0_7 = arith.constant 0 : index
    %c0_8 = arith.constant 0 : index
    %c0_9 = arith.constant 0 : index
    %c0_10 = arith.constant 0 : index
    %9 = vector.load %arg12[%c0_7, %c0_8, %c0_9, %c0_10] : memref<2x6x6x64xf32, #tpu.memory_space<vmem>>, vector<2x6x6x64xf32>
    tpu.vector_store %arg12[%c0_7, %c0_8, %c0_9, %c0_10], %8 {strides = array<i32>} : memref<2x6x6x64xf32, #tpu.memory_space<vmem>>, vector<2x6x6x64xf32>,
    %10 = vector.extract_strided_slice %7 {offsets = [0, 0], sizes = [4, 64], strides = [1, 1]} : vector<32x64xf32> to vector<4x64xf32>
    %c0_11 = arith.constant 0 : index
    %c1 = arith.constant 1 : index
    %c1_12 = arith.constant 1 : index
    %c0_13 = arith.constant 0 : index
    %11 = vector.load %arg12[%c0_11, %c1, %c1_12, %c0_13] : memref<2x6x6x64xf32, #tpu.memory_space<vmem>>, vector<1x1x4x64xf32>
    %12 = vector.shape_cast %11 : vector<1x1x4x64xf32> to vector<4x64xf32>
    %13 = vector.shape_cast %10 : vector<4x64xf32> to vector<1x1x4x64xf32>
    tpu.vector_store %arg12[%c0_11, %c1, %c1_12, %c0_13], %13 {strides = array<i32>} : memref<2x6x6x64xf32, #tpu.memory_space<vmem>>, vector<1x1x4x64xf32>,
    %14 = vector.extract_strided_slice %7 {offsets = [4, 0], sizes = [4, 64], strides = [1, 1]} : vector<32x64xf32> to vector<4x64xf32>
    %c0_14 = arith.constant 0 : index
    %c2 = arith.constant 2 : index
    %c1_15 = arith.constant 1 : index
    %c0_16 = arith.constant 0 : index
    %15 = vector.load %arg12[%c0_14, %c2, %c1_15, %c0_16] : memref<2x6x6x64xf32, #tpu.memory_space<vmem>>, vector<1x1x4x64xf32>
    %16 = vector.shape_cast %15 : vector<1x1x4x64xf32> to vector<4x64xf32>
    %17 = vector.shape_cast %14 : vector<4x64xf32> to vector<1x1x4x64xf32>
    tpu.vector_store %arg12[%c0_14, %c2, %c1_15, %c0_16], %17 {strides = array<i32>} : memref<2x6x6x64xf32, #tpu.memory_space<vmem>>, vector<1x1x4x64xf32>,
    %18 = vector.extract_strided_slice %7 {offsets = [8, 0], sizes = [4, 64], strides = [1, 1]} : vector<32x64xf32> to vector<4x64xf32>
    %c0_17 = arith.constant 0 : index
    %c3 = arith.constant 3 : index
    %c1_18 = arith.constant 1 : index
    %c0_19 = arith.constant 0 : index
    %19 = vector.load %arg12[%c0_17, %c3, %c1_18, %c0_19] : memref<2x6x6x64xf32, #tpu.memory_space<vmem>>, vector<1x1x4x64xf32>
    %20 = vector.shape_cast %19 : vector<1x1x4x64xf32> to vector<4x64xf32>
    %21 = vector.shape_cast %18 : vector<4x64xf32> to vector<1x1x4x64xf32>
    tpu.vector_store %arg12[%c0_17, %c3, %c1_18, %c0_19], %21 {strides = array<i32>} : memref<2x6x6x64xf32, #tpu.memory_space<vmem>>, vector<1x1x4x64xf32>,
    %22 = vector.extract_strided_slice %7 {offsets = [12, 0], sizes = [4, 64], strides = [1, 1]} : vector<32x64xf32> to vector<4x64xf32>
    %c0_20 = arith.constant 0 : index
    %c4 = arith.constant 4 : index
    %c1_21 = arith.constant 1 : index
    %c0_22 = arith.constant 0 : index
    %23 = vector.load %arg12[%c0_20, %c4, %c1_21, %c0_22] : memref<2x6x6x64xf32, #tpu.memory_space<vmem>>, vector<1x1x4x64xf32>
    %24 = vector.shape_cast %23 : vector<1x1x4x64xf32> to vector<4x64xf32>
    %25 = vector.shape_cast %22 : vector<4x64xf32> to vector<1x1x4x64xf32>
    tpu.vector_store %arg12[%c0_20, %c4, %c1_21, %c0_22], %25 {strides = array<i32>} : memref<2x6x6x64xf32, #tpu.memory_space<vmem>>, vector<1x1x4x64xf32>,
    %26 = vector.extract_strided_slice %7 {offsets = [16, 0], sizes = [4, 64], strides = [1, 1]} : vector<32x64xf32> to vector<4x64xf32>
    %c1_23 = arith.constant 1 : index
    %c1_24 = arith.constant 1 : index
    %c1_25 = arith.constant 1 : index
    %c0_26 = arith.constant 0 : index
    %27 = vector.load %arg12[%c1_23, %c1_24, %c1_25, %c0_26] : memref<2x6x6x64xf32, #tpu.memory_space<vmem>>, vector<1x1x4x64xf32>
    %28 = vector.shape_cast %27 : vector<1x1x4x64xf32> to vector<4x64xf32>
    %29 = vector.shape_cast %26 : vector<4x64xf32> to vector<1x1x4x64xf32>
    tpu.vector_store %arg12[%c1_23, %c1_24, %c1_25, %c0_26], %29 {strides = array<i32>} : memref<2x6x6x64xf32, #tpu.memory_space<vmem>>, vector<1x1x4x64xf32>,
    %30 = vector.extract_strided_slice %7 {offsets = [20, 0], sizes = [4, 64], strides = [1, 1]} : vector<32x64xf32> to vector<4x64xf32>
    %c1_27 = arith.constant 1 : index
    %c2_28 = arith.constant 2 : index
    %c1_29 = arith.constant 1 : index
    %c0_30 = arith.constant 0 : index
    %31 = vector.load %arg12[%c1_27, %c2_28, %c1_29, %c0_30] : memref<2x6x6x64xf32, #tpu.memory_space<vmem>>, vector<1x1x4x64xf32>
    %32 = vector.shape_cast %31 : vector<1x1x4x64xf32> to vector<4x64xf32>
    %33 = vector.shape_cast %30 : vector<4x64xf32> to vector<1x1x4x64xf32>
    tpu.vector_store %arg12[%c1_27, %c2_28, %c1_29, %c0_30], %33 {strides = array<i32>} : memref<2x6x6x64xf32, #tpu.memory_space<vmem>>, vector<1x1x4x64xf32>,
    %34 = vector.extract_strided_slice %7 {offsets = [24, 0], sizes = [4, 64], strides = [1, 1]} : vector<32x64xf32> to vector<4x64xf32>
    %c1_31 = arith.constant 1 : index
    %c3_32 = arith.constant 3 : index
    %c1_33 = arith.constant 1 : index
    %c0_34 = arith.constant 0 : index
    %35 = vector.load %arg12[%c1_31, %c3_32, %c1_33, %c0_34] : memref<2x6x6x64xf32, #tpu.memory_space<vmem>>, vector<1x1x4x64xf32>
    %36 = vector.shape_cast %35 : vector<1x1x4x64xf32> to vector<4x64xf32>
    %37 = vector.shape_cast %34 : vector<4x64xf32> to vector<1x1x4x64xf32>
    tpu.vector_store %arg12[%c1_31, %c3_32, %c1_33, %c0_34], %37 {strides = array<i32>} : memref<2x6x6x64xf32, #tpu.memory_space<vmem>>, vector<1x1x4x64xf32>,
    %38 = vector.extract_strided_slice %7 {offsets = [28, 0], sizes = [4, 64], strides = [1, 1]} : vector<32x64xf32> to vector<4x64xf32>
    %c1_35 = arith.constant 1 : index
    %c4_36 = arith.constant 4 : index
    %c1_37 = arith.constant 1 : index
    %c0_38 = arith.constant 0 : index
    %39 = vector.load %arg12[%c1_35, %c4_36, %c1_37, %c0_38] : memref<2x6x6x64xf32, #tpu.memory_space<vmem>>, vector<1x1x4x64xf32>
    %40 = vector.shape_cast %39 : vector<1x1x4x64xf32> to vector<4x64xf32>
    %41 = vector.shape_cast %38 : vector<4x64xf32> to vector<1x1x4x64xf32>
    tpu.vector_store %arg12[%c1_35, %c4_36, %c1_37, %c0_38], %41 {strides = array<i32>} : memref<2x6x6x64xf32, #tpu.memory_space<vmem>>, vector<1x1x4x64xf32>,
    %cst_39 = arith.constant 0.000000e+00 : f32
    %42 = vector.broadcast %cst_39 : f32 to vector<2x4x4x128xf32>
    %c0_40 = arith.constant 0 : index
    %c0_41 = arith.constant 0 : index
    %c0_42 = arith.constant 0 : index
    %c0_43 = arith.constant 0 : index
    %43 = vector.load %arg13[%c0_40, %c0_41, %c0_42, %c0_43] : memref<2x4x4x128xf32, #tpu.memory_space<vmem>>, vector<2x4x4x128xf32>
    tpu.vector_store %arg13[%c0_40, %c0_41, %c0_42, %c0_43], %42 {strides = array<i32>} : memref<2x4x4x128xf32, #tpu.memory_space<vmem>>, vector<2x4x4x128xf32>,
    %cst_44 = arith.constant 0.000000e+00 : f32
    %44 = vector.broadcast %cst_44 : f32 to vector<2x128xf32>
    %c0_45 = arith.constant 0 : index
    %c0_46 = arith.constant 0 : index
    %c0_47 = arith.constant 0 : index
    %c0_48 = arith.constant 0 : index
    %45 = vector.load %arg12[%c0_45, %c0_46, %c0_47, %c0_48] : memref<2x6x6x64xf32, #tpu.memory_space<vmem>>, vector<2x1x1x64xf32>
    %46 = vector.shape_cast %45 : vector<2x1x1x64xf32> to vector<2x64xf32>
    %c0_49 = arith.constant 0 : index
    %c0_50 = arith.constant 0 : index
    %c0_51 = arith.constant 0 : index
    %c0_52 = arith.constant 0 : index
    %47 = vector.load %arg3[%c0_49, %c0_50, %c0_51, %c0_52] : memref<4x4x64x128xf32, #tpu.memory_space<vmem>>, vector<1x1x64x128xf32>
    %48 = vector.shape_cast %47 : vector<1x1x64x128xf32> to vector<64x128xf32>
    %cst_53 = arith.constant dense<0.000000e+00> : vector<2x128xf32>
    %49 = tpu.matmul %46, %48, %cst_53 {dimension_numbers = #tpu.dot_dimension_numbers<[1], [0], [0], [1], [0, 0, 1, 1], [], []>} : vector<2x64xf32>, vector<64x128xf32>, vector<2x128xf32> -> vector<2x128xf32>
    %50 = arith.addf %44, %49 : vector<2x128xf32>
    %c0_54 = arith.constant 0 : index
    %c0_55 = arith.constant 0 : index
    %c1_56 = arith.constant 1 : index
    %c0_57 = arith.constant 0 : index
    %51 = vector.load %arg12[%c0_54, %c0_55, %c1_56, %c0_57] : memref<2x6x6x64xf32, #tpu.memory_space<vmem>>, vector<2x1x1x64xf32>
    %52 = vector.shape_cast %51 : vector<2x1x1x64xf32> to vector<2x64xf32>
    %c0_58 = arith.constant 0 : index
    %c1_59 = arith.constant 1 : index
    %c0_60 = arith.constant 0 : index
    %c0_61 = arith.constant 0 : index
    %53 = vector.load %arg3[%c0_58, %c1_59, %c0_60, %c0_61] : memref<4x4x64x128xf32, #tpu.memory_space<vmem>>, vector<1x1x64x128xf32>
    %54 = vector.shape_cast %53 : vector<1x1x64x128xf32> to vector<64x128xf32>
    %cst_62 = arith.constant dense<0.000000e+00> : vector<2x128xf32>
    %55 = tpu.matmul %52, %54, %cst_62 {dimension_numbers = #tpu.dot_dimension_numbers<[1], [0], [0], [1], [0, 0, 1, 1], [], []>} : vector<2x64xf32>, vector<64x128xf32>, vector<2x128xf32> -> vector<2x128xf32>
    %56 = arith.addf %50, %55 : vector<2x128xf32>
    %c0_63 = arith.constant 0 : index
    %c0_64 = arith.constant 0 : index
    %c2_65 = arith.constant 2 : index
    %c0_66 = arith.constant 0 : index
    %57 = vector.load %arg12[%c0_63, %c0_64, %c2_65, %c0_66] : memref<2x6x6x64xf32, #tpu.memory_space<vmem>>, vector<2x1x1x64xf32>
    %58 = vector.shape_cast %57 : vector<2x1x1x64xf32> to vector<2x64xf32>
    %c0_67 = arith.constant 0 : index
    %c2_68 = arith.constant 2 : index
    %c0_69 = arith.constant 0 : index
    %c0_70 = arith.constant 0 : index
    %59 = vector.load %arg3[%c0_67, %c2_68, %c0_69, %c0_70] : memref<4x4x64x128xf32, #tpu.memory_space<vmem>>, vector<1x1x64x128xf32>
    %60 = vector.shape_cast %59 : vector<1x1x64x128xf32> to vector<64x128xf32>
    %cst_71 = arith.constant dense<0.000000e+00> : vector<2x128xf32>
    %61 = tpu.matmul %58, %60, %cst_71 {dimension_numbers = #tpu.dot_dimension_numbers<[1], [0], [0], [1], [0, 0, 1, 1], [], []>} : vector<2x64xf32>, vector<64x128xf32>, vector<2x128xf32> -> vector<2x128xf32>
    %62 = arith.addf %56, %61 : vector<2x128xf32>
    %c0_72 = arith.constant 0 : index
    %c0_73 = arith.constant 0 : index
    %c3_74 = arith.constant 3 : index
    %c0_75 = arith.constant 0 : index
    %63 = vector.load %arg12[%c0_72, %c0_73, %c3_74, %c0_75] : memref<2x6x6x64xf32, #tpu.memory_space<vmem>>, vector<2x1x1x64xf32>
    %64 = vector.shape_cast %63 : vector<2x1x1x64xf32> to vector<2x64xf32>
    %c0_76 = arith.constant 0 : index
    %c3_77 = arith.constant 3 : index
    %c0_78 = arith.constant 0 : index
    %c0_79 = arith.constant 0 : index
    %65 = vector.load %arg3[%c0_76, %c3_77, %c0_78, %c0_79] : memref<4x4x64x128xf32, #tpu.memory_space<vmem>>, vector<1x1x64x128xf32>
    %66 = vector.shape_cast %65 : vector<1x1x64x128xf32> to vector<64x128xf32>
    %cst_80 = arith.constant dense<0.000000e+00> : vector<2x128xf32>
    %67 = tpu.matmul %64, %66, %cst_80 {dimension_numbers = #tpu.dot_dimension_numbers<[1], [0], [0], [1], [0, 0, 1, 1], [], []>} : vector<2x64xf32>, vector<64x128xf32>, vector<2x128xf32> -> vector<2x128xf32>
    %68 = arith.addf %62, %67 : vector<2x128xf32>
    %c0_81 = arith.constant 0 : index
    %c1_82 = arith.constant 1 : index
    %c0_83 = arith.constant 0 : index
    %c0_84 = arith.constant 0 : index
    %69 = vector.load %arg12[%c0_81, %c1_82, %c0_83, %c0_84] : memref<2x6x6x64xf32, #tpu.memory_space<vmem>>, vector<2x1x1x64xf32>
    %70 = vector.shape_cast %69 : vector<2x1x1x64xf32> to vector<2x64xf32>
    %c1_85 = arith.constant 1 : index
    %c0_86 = arith.constant 0 : index
    %c0_87 = arith.constant 0 : index
    %c0_88 = arith.constant 0 : index
    %71 = vector.load %arg3[%c1_85, %c0_86, %c0_87, %c0_88] : memref<4x4x64x128xf32, #tpu.memory_space<vmem>>, vector<1x1x64x128xf32>
    %72 = vector.shape_cast %71 : vector<1x1x64x128xf32> to vector<64x128xf32>
    %cst_89 = arith.constant dense<0.000000e+00> : vector<2x128xf32>
    %73 = tpu.matmul %70, %72, %cst_89 {dimension_numbers = #tpu.dot_dimension_numbers<[1], [0], [0], [1], [0, 0, 1, 1], [], []>} : vector<2x64xf32>, vector<64x128xf32>, vector<2x128xf32> -> vector<2x128xf32>
    %74 = arith.addf %68, %73 : vector<2x128xf32>
    %c0_90 = arith.constant 0 : index
    %c1_91 = arith.constant 1 : index
    %c1_92 = arith.constant 1 : index
    %c0_93 = arith.constant 0 : index
    %75 = vector.load %arg12[%c0_90, %c1_91, %c1_92, %c0_93] : memref<2x6x6x64xf32, #tpu.memory_space<vmem>>, vector<2x1x1x64xf32>
    %76 = vector.shape_cast %75 : vector<2x1x1x64xf32> to vector<2x64xf32>
    %c1_94 = arith.constant 1 : index
    %c1_95 = arith.constant 1 : index
    %c0_96 = arith.constant 0 : index
    %c0_97 = arith.constant 0 : index
    %77 = vector.load %arg3[%c1_94, %c1_95, %c0_96, %c0_97] : memref<4x4x64x128xf32, #tpu.memory_space<vmem>>, vector<1x1x64x128xf32>
    %78 = vector.shape_cast %77 : vector<1x1x64x128xf32> to vector<64x128xf32>
    %cst_98 = arith.constant dense<0.000000e+00> : vector<2x128xf32>
    %79 = tpu.matmul %76, %78, %cst_98 {dimension_numbers = #tpu.dot_dimension_numbers<[1], [0], [0], [1], [0, 0, 1, 1], [], []>} : vector<2x64xf32>, vector<64x128xf32>, vector<2x128xf32> -> vector<2x128xf32>
    %80 = arith.addf %74, %79 : vector<2x128xf32>
    %c0_99 = arith.constant 0 : index
    %c1_100 = arith.constant 1 : index
    %c2_101 = arith.constant 2 : index
    %c0_102 = arith.constant 0 : index
    %81 = vector.load %arg12[%c0_99, %c1_100, %c2_101, %c0_102] : memref<2x6x6x64xf32, #tpu.memory_space<vmem>>, vector<2x1x1x64xf32>
    %82 = vector.shape_cast %81 : vector<2x1x1x64xf32> to vector<2x64xf32>
    %c1_103 = arith.constant 1 : index
    %c2_104 = arith.constant 2 : index
    %c0_105 = arith.constant 0 : index
    %c0_106 = arith.constant 0 : index
    %83 = vector.load %arg3[%c1_103, %c2_104, %c0_105, %c0_106] : memref<4x4x64x128xf32, #tpu.memory_space<vmem>>, vector<1x1x64x128xf32>
    %84 = vector.shape_cast %83 : vector<1x1x64x128xf32> to vector<64x128xf32>
    %cst_107 = arith.constant dense<0.000000e+00> : vector<2x128xf32>
    %85 = tpu.matmul %82, %84, %cst_107 {dimension_numbers = #tpu.dot_dimension_numbers<[1], [0], [0], [1], [0, 0, 1, 1], [], []>} : vector<2x64xf32>, vector<64x128xf32>, vector<2x128xf32> -> vector<2x128xf32>
    %86 = arith.addf %80, %85 : vector<2x128xf32>
    %c0_108 = arith.constant 0 : index
    %c1_109 = arith.constant 1 : index
    %c3_110 = arith.constant 3 : index
    %c0_111 = arith.constant 0 : index
    %87 = vector.load %arg12[%c0_108, %c1_109, %c3_110, %c0_111] : memref<2x6x6x64xf32, #tpu.memory_space<vmem>>, vector<2x1x1x64xf32>
    %88 = vector.shape_cast %87 : vector<2x1x1x64xf32> to vector<2x64xf32>
    %c1_112 = arith.constant 1 : index
    %c3_113 = arith.constant 3 : index
    %c0_114 = arith.constant 0 : index
    %c0_115 = arith.constant 0 : index
    %89 = vector.load %arg3[%c1_112, %c3_113, %c0_114, %c0_115] : memref<4x4x64x128xf32, #tpu.memory_space<vmem>>, vector<1x1x64x128xf32>
    %90 = vector.shape_cast %89 : vector<1x1x64x128xf32> to vector<64x128xf32>
    %cst_116 = arith.constant dense<0.000000e+00> : vector<2x128xf32>
    %91 = tpu.matmul %88, %90, %cst_116 {dimension_numbers = #tpu.dot_dimension_numbers<[1], [0], [0], [1], [0, 0, 1, 1], [], []>} : vector<2x64xf32>, vector<64x128xf32>, vector<2x128xf32> -> vector<2x128xf32>
    %92 = arith.addf %86, %91 : vector<2x128xf32>
    %c0_117 = arith.constant 0 : index
    %c2_118 = arith.constant 2 : index
    %c0_119 = arith.constant 0 : index
    %c0_120 = arith.constant 0 : index
    %93 = vector.load %arg12[%c0_117, %c2_118, %c0_119, %c0_120] : memref<2x6x6x64xf32, #tpu.memory_space<vmem>>, vector<2x1x1x64xf32>
    %94 = vector.shape_cast %93 : vector<2x1x1x64xf32> to vector<2x64xf32>
    %c2_121 = arith.constant 2 : index
    %c0_122 = arith.constant 0 : index
    %c0_123 = arith.constant 0 : index
    %c0_124 = arith.constant 0 : index
    %95 = vector.load %arg3[%c2_121, %c0_122, %c0_123, %c0_124] : memref<4x4x64x128xf32, #tpu.memory_space<vmem>>, vector<1x1x64x128xf32>
    %96 = vector.shape_cast %95 : vector<1x1x64x128xf32> to vector<64x128xf32>
    %cst_125 = arith.constant dense<0.000000e+00> : vector<2x128xf32>
    %97 = tpu.matmul %94, %96, %cst_125 {dimension_numbers = #tpu.dot_dimension_numbers<[1], [0], [0], [1], [0, 0, 1, 1], [], []>} : vector<2x64xf32>, vector<64x128xf32>, vector<2x128xf32> -> vector<2x128xf32>
    %98 = arith.addf %92, %97 : vector<2x128xf32>
    %c0_126 = arith.constant 0 : index
    %c2_127 = arith.constant 2 : index
    %c1_128 = arith.constant 1 : index
    %c0_129 = arith.constant 0 : index
    %99 = vector.load %arg12[%c0_126, %c2_127, %c1_128, %c0_129] : memref<2x6x6x64xf32, #tpu.memory_space<vmem>>, vector<2x1x1x64xf32>
    %100 = vector.shape_cast %99 : vector<2x1x1x64xf32> to vector<2x64xf32>
    %c2_130 = arith.constant 2 : index
    %c1_131 = arith.constant 1 : index
    %c0_132 = arith.constant 0 : index
    %c0_133 = arith.constant 0 : index
    %101 = vector.load %arg3[%c2_130, %c1_131, %c0_132, %c0_133] : memref<4x4x64x128xf32, #tpu.memory_space<vmem>>, vector<1x1x64x128xf32>
    %102 = vector.shape_cast %101 : vector<1x1x64x128xf32> to vector<64x128xf32>
    %cst_134 = arith.constant dense<0.000000e+00> : vector<2x128xf32>
    %103 = tpu.matmul %100, %102, %cst_134 {dimension_numbers = #tpu.dot_dimension_numbers<[1], [0], [0], [1], [0, 0, 1, 1], [], []>} : vector<2x64xf32>, vector<64x128xf32>, vector<2x128xf32> -> vector<2x128xf32>
    %104 = arith.addf %98, %103 : vector<2x128xf32>
    %c0_135 = arith.constant 0 : index
    %c2_136 = arith.constant 2 : index
    %c2_137 = arith.constant 2 : index
    %c0_138 = arith.constant 0 : index
    %105 = vector.load %arg12[%c0_135, %c2_136, %c2_137, %c0_138] : memref<2x6x6x64xf32, #tpu.memory_space<vmem>>, vector<2x1x1x64xf32>
    %106 = vector.shape_cast %105 : vector<2x1x1x64xf32> to vector<2x64xf32>
    %c2_139 = arith.constant 2 : index
    %c2_140 = arith.constant 2 : index
    %c0_141 = arith.constant 0 : index
    %c0_142 = arith.constant 0 : index
    %107 = vector.load %arg3[%c2_139, %c2_140, %c0_141, %c0_142] : memref<4x4x64x128xf32, #tpu.memory_space<vmem>>, vector<1x1x64x128xf32>
    %108 = vector.shape_cast %107 : vector<1x1x64x128xf32> to vector<64x128xf32>
    %cst_143 = arith.constant dense<0.000000e+00> : vector<2x128xf32>
    %109 = tpu.matmul %106, %108, %cst_143 {dimension_numbers = #tpu.dot_dimension_numbers<[1], [0], [0], [1], [0, 0, 1, 1], [], []>} : vector<2x64xf32>, vector<64x128xf32>, vector<2x128xf32> -> vector<2x128xf32>
    %110 = arith.addf %104, %109 : vector<2x128xf32>
    %c0_144 = arith.constant 0 : index
    %c2_145 = arith.constant 2 : index
    %c3_146 = arith.constant 3 : index
    %c0_147 = arith.constant 0 : index
    %111 = vector.load %arg12[%c0_144, %c2_145, %c3_146, %c0_147] : memref<2x6x6x64xf32, #tpu.memory_space<vmem>>, vector<2x1x1x64xf32>
    %112 = vector.shape_cast %111 : vector<2x1x1x64xf32> to vector<2x64xf32>
    %c2_148 = arith.constant 2 : index
    %c3_149 = arith.constant 3 : index
    %c0_150 = arith.constant 0 : index
    %c0_151 = arith.constant 0 : index
    %113 = vector.load %arg3[%c2_148, %c3_149, %c0_150, %c0_151] : memref<4x4x64x128xf32, #tpu.memory_space<vmem>>, vector<1x1x64x128xf32>
    %114 = vector.shape_cast %113 : vector<1x1x64x128xf32> to vector<64x128xf32>
    %cst_152 = arith.constant dense<0.000000e+00> : vector<2x128xf32>
    %115 = tpu.matmul %112, %114, %cst_152 {dimension_numbers = #tpu.dot_dimension_numbers<[1], [0], [0], [1], [0, 0, 1, 1], [], []>} : vector<2x64xf32>, vector<64x128xf32>, vector<2x128xf32> -> vector<2x128xf32>
    %116 = arith.addf %110, %115 : vector<2x128xf32>
    %c0_153 = arith.constant 0 : index
    %c3_154 = arith.constant 3 : index
    %c0_155 = arith.constant 0 : index
    %c0_156 = arith.constant 0 : index
    %117 = vector.load %arg12[%c0_153, %c3_154, %c0_155, %c0_156] : memref<2x6x6x64xf32, #tpu.memory_space<vmem>>, vector<2x1x1x64xf32>
    %118 = vector.shape_cast %117 : vector<2x1x1x64xf32> to vector<2x64xf32>
    %c3_157 = arith.constant 3 : index
    %c0_158 = arith.constant 0 : index
    %c0_159 = arith.constant 0 : index
    %c0_160 = arith.constant 0 : index
    %119 = vector.load %arg3[%c3_157, %c0_158, %c0_159, %c0_160] : memref<4x4x64x128xf32, #tpu.memory_space<vmem>>, vector<1x1x64x128xf32>
    %120 = vector.shape_cast %119 : vector<1x1x64x128xf32> to vector<64x128xf32>
    %cst_161 = arith.constant dense<0.000000e+00> : vector<2x128xf32>
    %121 = tpu.matmul %118, %120, %cst_161 {dimension_numbers = #tpu.dot_dimension_numbers<[1], [0], [0], [1], [0, 0, 1, 1], [], []>} : vector<2x64xf32>, vector<64x128xf32>, vector<2x128xf32> -> vector<2x128xf32>
    %122 = arith.addf %116, %121 : vector<2x128xf32>
    %c0_162 = arith.constant 0 : index
    %c3_163 = arith.constant 3 : index
    %c1_164 = arith.constant 1 : index
    %c0_165 = arith.constant 0 : index
    %123 = vector.load %arg12[%c0_162, %c3_163, %c1_164, %c0_165] : memref<2x6x6x64xf32, #tpu.memory_space<vmem>>, vector<2x1x1x64xf32>
    %124 = vector.shape_cast %123 : vector<2x1x1x64xf32> to vector<2x64xf32>
    %c3_166 = arith.constant 3 : index
    %c1_167 = arith.constant 1 : index
    %c0_168 = arith.constant 0 : index
    %c0_169 = arith.constant 0 : index
    %125 = vector.load %arg3[%c3_166, %c1_167, %c0_168, %c0_169] : memref<4x4x64x128xf32, #tpu.memory_space<vmem>>, vector<1x1x64x128xf32>
    %126 = vector.shape_cast %125 : vector<1x1x64x128xf32> to vector<64x128xf32>
    %cst_170 = arith.constant dense<0.000000e+00> : vector<2x128xf32>
    %127 = tpu.matmul %124, %126, %cst_170 {dimension_numbers = #tpu.dot_dimension_numbers<[1], [0], [0], [1], [0, 0, 1, 1], [], []>} : vector<2x64xf32>, vector<64x128xf32>, vector<2x128xf32> -> vector<2x128xf32>
    %128 = arith.addf %122, %127 : vector<2x128xf32>
    %c0_171 = arith.constant 0 : index
    %c3_172 = arith.constant 3 : index
    %c2_173 = arith.constant 2 : index
    %c0_174 = arith.constant 0 : index
    %129 = vector.load %arg12[%c0_171, %c3_172, %c2_173, %c0_174] : memref<2x6x6x64xf32, #tpu.memory_space<vmem>>, vector<2x1x1x64xf32>
    %130 = vector.shape_cast %129 : vector<2x1x1x64xf32> to vector<2x64xf32>
    %c3_175 = arith.constant 3 : index
    %c2_176 = arith.constant 2 : index
    %c0_177 = arith.constant 0 : index
    %c0_178 = arith.constant 0 : index
    %131 = vector.load %arg3[%c3_175, %c2_176, %c0_177, %c0_178] : memref<4x4x64x128xf32, #tpu.memory_space<vmem>>, vector<1x1x64x128xf32>
    %132 = vector.shape_cast %131 : vector<1x1x64x128xf32> to vector<64x128xf32>
    %cst_179 = arith.constant dense<0.000000e+00> : vector<2x128xf32>
    %133 = tpu.matmul %130, %132, %cst_179 {dimension_numbers = #tpu.dot_dimension_numbers<[1], [0], [0], [1], [0, 0, 1, 1], [], []>} : vector<2x64xf32>, vector<64x128xf32>, vector<2x128xf32> -> vector<2x128xf32>
    %134 = arith.addf %128, %133 : vector<2x128xf32>
    %c0_180 = arith.constant 0 : index
    %c3_181 = arith.constant 3 : index
    %c3_182 = arith.constant 3 : index
    %c0_183 = arith.constant 0 : index
    %135 = vector.load %arg12[%c0_180, %c3_181, %c3_182, %c0_183] : memref<2x6x6x64xf32, #tpu.memory_space<vmem>>, vector<2x1x1x64xf32>
    %136 = vector.shape_cast %135 : vector<2x1x1x64xf32> to vector<2x64xf32>
    %c3_184 = arith.constant 3 : index
    %c3_185 = arith.constant 3 : index
    %c0_186 = arith.constant 0 : index
    %c0_187 = arith.constant 0 : index
    %137 = vector.load %arg3[%c3_184, %c3_185, %c0_186, %c0_187] : memref<4x4x64x128xf32, #tpu.memory_space<vmem>>, vector<1x1x64x128xf32>
    %138 = vector.shape_cast %137 : vector<1x1x64x128xf32> to vector<64x128xf32>
    %cst_188 = arith.constant dense<0.000000e+00> : vector<2x128xf32>
    %139 = tpu.matmul %136, %138, %cst_188 {dimension_numbers = #tpu.dot_dimension_numbers<[1], [0], [0], [1], [0, 0, 1, 1], [], []>} : vector<2x64xf32>, vector<64x128xf32>, vector<2x128xf32> -> vector<2x128xf32>
    %140 = arith.addf %134, %139 : vector<2x128xf32>
    %c0_189 = arith.constant 0 : index
    %c0_190 = arith.constant 0 : index
    %141 = vector.load %arg4[%c0_189, %c0_190] : memref<1x128xf32, #tpu.memory_space<vmem>>, vector<1x128xf32>
    %142 = vector.broadcast %141 : vector<1x128xf32> to vector<2x128xf32>
    %143 = arith.addf %140, %142 : vector<2x128xf32>
    %cst_191 = arith.constant 0.000000e+00 : f32
    %144 = vector.broadcast %cst_191 : f32 to vector<2x128xf32>
    %145 = arith.maximumf %143, %144 : vector<2x128xf32>
    %c0_192 = arith.constant 0 : index
    %c1_193 = arith.constant 1 : index
    %c1_194 = arith.constant 1 : index
    %c0_195 = arith.constant 0 : index
    %146 = vector.load %arg13[%c0_192, %c1_193, %c1_194, %c0_195] : memref<2x4x4x128xf32, #tpu.memory_space<vmem>>, vector<2x1x1x128xf32>
    %147 = vector.shape_cast %146 : vector<2x1x1x128xf32> to vector<2x128xf32>
    %148 = vector.shape_cast %145 : vector<2x128xf32> to vector<2x1x1x128xf32>
    tpu.vector_store %arg13[%c0_192, %c1_193, %c1_194, %c0_195], %148 {strides = array<i32>} : memref<2x4x4x128xf32, #tpu.memory_space<vmem>>, vector<2x1x1x128xf32>,
    %cst_196 = arith.constant 0.000000e+00 : f32
    %149 = vector.broadcast %cst_196 : f32 to vector<2x128xf32>
    %c0_197 = arith.constant 0 : index
    %c0_198 = arith.constant 0 : index
    %c2_199 = arith.constant 2 : index
    %c0_200 = arith.constant 0 : index
    %150 = vector.load %arg12[%c0_197, %c0_198, %c2_199, %c0_200] : memref<2x6x6x64xf32, #tpu.memory_space<vmem>>, vector<2x1x1x64xf32>
    %151 = vector.shape_cast %150 : vector<2x1x1x64xf32> to vector<2x64xf32>
    %c0_201 = arith.constant 0 : index
    %c0_202 = arith.constant 0 : index
    %c0_203 = arith.constant 0 : index
    %c0_204 = arith.constant 0 : index
    %152 = vector.load %arg3[%c0_201, %c0_202, %c0_203, %c0_204] : memref<4x4x64x128xf32, #tpu.memory_space<vmem>>, vector<1x1x64x128xf32>
    %153 = vector.shape_cast %152 : vector<1x1x64x128xf32> to vector<64x128xf32>
    %cst_205 = arith.constant dense<0.000000e+00> : vector<2x128xf32>
    %154 = tpu.matmul %151, %153, %cst_205 {dimension_numbers = #tpu.dot_dimension_numbers<[1], [0], [0], [1], [0, 0, 1, 1], [], []>} : vector<2x64xf32>, vector<64x128xf32>, vector<2x128xf32> -> vector<2x128xf32>
    %155 = arith.addf %149, %154 : vector<2x128xf32>
    %c0_206 = arith.constant 0 : index
    %c0_207 = arith.constant 0 : index
    %c3_208 = arith.constant 3 : index
    %c0_209 = arith.constant 0 : index
    %156 = vector.load %arg12[%c0_206, %c0_207, %c3_208, %c0_209] : memref<2x6x6x64xf32, #tpu.memory_space<vmem>>, vector<2x1x1x64xf32>
    %157 = vector.shape_cast %156 : vector<2x1x1x64xf32> to vector<2x64xf32>
    %c0_210 = arith.constant 0 : index
    %c1_211 = arith.constant 1 : index
    %c0_212 = arith.constant 0 : index
    %c0_213 = arith.constant 0 : index
    %158 = vector.load %arg3[%c0_210, %c1_211, %c0_212, %c0_213] : memref<4x4x64x128xf32, #tpu.memory_space<vmem>>, vector<1x1x64x128xf32>
    %159 = vector.shape_cast %158 : vector<1x1x64x128xf32> to vector<64x128xf32>
    %cst_214 = arith.constant dense<0.000000e+00> : vector<2x128xf32>
    %160 = tpu.matmul %157, %159, %cst_214 {dimension_numbers = #tpu.dot_dimension_numbers<[1], [0], [0], [1], [0, 0, 1, 1], [], []>} : vector<2x64xf32>, vector<64x128xf32>, vector<2x128xf32> -> vector<2x128xf32>
    %161 = arith.addf %155, %160 : vector<2x128xf32>
    %c0_215 = arith.constant 0 : index
    %c0_216 = arith.constant 0 : index
    %c4_217 = arith.constant 4 : index
    %c0_218 = arith.constant 0 : index
    %162 = vector.load %arg12[%c0_215, %c0_216, %c4_217, %c0_218] : memref<2x6x6x64xf32, #tpu.memory_space<vmem>>, vector<2x1x1x64xf32>
    %163 = vector.shape_cast %162 : vector<2x1x1x64xf32> to vector<2x64xf32>
    %c0_219 = arith.constant 0 : index
    %c2_220 = arith.constant 2 : index
    %c0_221 = arith.constant 0 : index
    %c0_222 = arith.constant 0 : index
    %164 = vector.load %arg3[%c0_219, %c2_220, %c0_221, %c0_222] : memref<4x4x64x128xf32, #tpu.memory_space<vmem>>, vector<1x1x64x128xf32>
    %165 = vector.shape_cast %164 : vector<1x1x64x128xf32> to vector<64x128xf32>
    %cst_223 = arith.constant dense<0.000000e+00> : vector<2x128xf32>
    %166 = tpu.matmul %163, %165, %cst_223 {dimension_numbers = #tpu.dot_dimension_numbers<[1], [0], [0], [1], [0, 0, 1, 1], [], []>} : vector<2x64xf32>, vector<64x128xf32>, vector<2x128xf32> -> vector<2x128xf32>
    %167 = arith.addf %161, %166 : vector<2x128xf32>
    %c0_224 = arith.constant 0 : index
    %c0_225 = arith.constant 0 : index
    %c5 = arith.constant 5 : index
    %c0_226 = arith.constant 0 : index
    %168 = vector.load %arg12[%c0_224, %c0_225, %c5, %c0_226] : memref<2x6x6x64xf32, #tpu.memory_space<vmem>>, vector<2x1x1x64xf32>
    %169 = vector.shape_cast %168 : vector<2x1x1x64xf32> to vector<2x64xf32>
    %c0_227 = arith.constant 0 : index
    %c3_228 = arith.constant 3 : index
    %c0_229 = arith.constant 0 : index
    %c0_230 = arith.constant 0 : index
    %170 = vector.load %arg3[%c0_227, %c3_228, %c0_229, %c0_230] : memref<4x4x64x128xf32, #tpu.memory_space<vmem>>, vector<1x1x64x128xf32>
    %171 = vector.shape_cast %170 : vector<1x1x64x128xf32> to vector<64x128xf32>
    %cst_231 = arith.constant dense<0.000000e+00> : vector<2x128xf32>
    %172 = tpu.matmul %169, %171, %cst_231 {dimension_numbers = #tpu.dot_dimension_numbers<[1], [0], [0], [1], [0, 0, 1, 1], [], []>} : vector<2x64xf32>, vector<64x128xf32>, vector<2x128xf32> -> vector<2x128xf32>
    %173 = arith.addf %167, %172 : vector<2x128xf32>
    %c0_232 = arith.constant 0 : index
    %c1_233 = arith.constant 1 : index
    %c2_234 = arith.constant 2 : index
    %c0_235 = arith.constant 0 : index
    %174 = vector.load %arg12[%c0_232, %c1_233, %c2_234, %c0_235] : memref<2x6x6x64xf32, #tpu.memory_space<vmem>>, vector<2x1x1x64xf32>
    %175 = vector.shape_cast %174 : vector<2x1x1x64xf32> to vector<2x64xf32>
    %c1_236 = arith.constant 1 : index
    %c0_237 = arith.constant 0 : index
    %c0_238 = arith.constant 0 : index
    %c0_239 = arith.constant 0 : index
    %176 = vector.load %arg3[%c1_236, %c0_237, %c0_238, %c0_239] : memref<4x4x64x128xf32, #tpu.memory_space<vmem>>, vector<1x1x64x128xf32>
    %177 = vector.shape_cast %176 : vector<1x1x64x128xf32> to vector<64x128xf32>
    %cst_240 = arith.constant dense<0.000000e+00> : vector<2x128xf32>
    %178 = tpu.matmul %175, %177, %cst_240 {dimension_numbers = #tpu.dot_dimension_numbers<[1], [0], [0], [1], [0, 0, 1, 1], [], []>} : vector<2x64xf32>, vector<64x128xf32>, vector<2x128xf32> -> vector<2x128xf32>
    %179 = arith.addf %173, %178 : vector<2x128xf32>
    %c0_241 = arith.constant 0 : index
    %c1_242 = arith.constant 1 : index
    %c3_243 = arith.constant 3 : index
    %c0_244 = arith.constant 0 : index
    %180 = vector.load %arg12[%c0_241, %c1_242, %c3_243, %c0_244] : memref<2x6x6x64xf32, #tpu.memory_space<vmem>>, vector<2x1x1x64xf32>
    %181 = vector.shape_cast %180 : vector<2x1x1x64xf32> to vector<2x64xf32>
    %c1_245 = arith.constant 1 : index
    %c1_246 = arith.constant 1 : index
    %c0_247 = arith.constant 0 : index
    %c0_248 = arith.constant 0 : index
    %182 = vector.load %arg3[%c1_245, %c1_246, %c0_247, %c0_248] : memref<4x4x64x128xf32, #tpu.memory_space<vmem>>, vector<1x1x64x128xf32>
    %183 = vector.shape_cast %182 : vector<1x1x64x128xf32> to vector<64x128xf32>
    %cst_249 = arith.constant dense<0.000000e+00> : vector<2x128xf32>
    %184 = tpu.matmul %181, %183, %cst_249 {dimension_numbers = #tpu.dot_dimension_numbers<[1], [0], [0], [1], [0, 0, 1, 1], [], []>} : vector<2x64xf32>, vector<64x128xf32>, vector<2x128xf32> -> vector<2x128xf32>
    %185 = arith.addf %179, %184 : vector<2x128xf32>
    %c0_250 = arith.constant 0 : index
    %c1_251 = arith.constant 1 : index
    %c4_252 = arith.constant 4 : index
    %c0_253 = arith.constant 0 : index
    %186 = vector.load %arg12[%c0_250, %c1_251, %c4_252, %c0_253] : memref<2x6x6x64xf32, #tpu.memory_space<vmem>>, vector<2x1x1x64xf32>
    %187 = vector.shape_cast %186 : vector<2x1x1x64xf32> to vector<2x64xf32>
    %c1_254 = arith.constant 1 : index
    %c2_255 = arith.constant 2 : index
    %c0_256 = arith.constant 0 : index
    %c0_257 = arith.constant 0 : index
    %188 = vector.load %arg3[%c1_254, %c2_255, %c0_256, %c0_257] : memref<4x4x64x128xf32, #tpu.memory_space<vmem>>, vector<1x1x64x128xf32>
    %189 = vector.shape_cast %188 : vector<1x1x64x128xf32> to vector<64x128xf32>
    %cst_258 = arith.constant dense<0.000000e+00> : vector<2x128xf32>
    %190 = tpu.matmul %187, %189, %cst_258 {dimension_numbers = #tpu.dot_dimension_numbers<[1], [0], [0], [1], [0, 0, 1, 1], [], []>} : vector<2x64xf32>, vector<64x128xf32>, vector<2x128xf32> -> vector<2x128xf32>
    %191 = arith.addf %185, %190 : vector<2x128xf32>
    %c0_259 = arith.constant 0 : index
    %c1_260 = arith.constant 1 : index
    %c5_261 = arith.constant 5 : index
    %c0_262 = arith.constant 0 : index
    %192 = vector.load %arg12[%c0_259, %c1_260, %c5_261, %c0_262] : memref<2x6x6x64xf32, #tpu.memory_space<vmem>>, vector<2x1x1x64xf32>
    %193 = vector.shape_cast %192 : vector<2x1x1x64xf32> to vector<2x64xf32>
    %c1_263 = arith.constant 1 : index
    %c3_264 = arith.constant 3 : index
    %c0_265 = arith.constant 0 : index
    %c0_266 = arith.constant 0 : index
    %194 = vector.load %arg3[%c1_263, %c3_264, %c0_265, %c0_266] : memref<4x4x64x128xf32, #tpu.memory_space<vmem>>, vector<1x1x64x128xf32>
    %195 = vector.shape_cast %194 : vector<1x1x64x128xf32> to vector<64x128xf32>
    %cst_267 = arith.constant dense<0.000000e+00> : vector<2x128xf32>
    %196 = tpu.matmul %193, %195, %cst_267 {dimension_numbers = #tpu.dot_dimension_numbers<[1], [0], [0], [1], [0, 0, 1, 1], [], []>} : vector<2x64xf32>, vector<64x128xf32>, vector<2x128xf32> -> vector<2x128xf32>
    %197 = arith.addf %191, %196 : vector<2x128xf32>
    %c0_268 = arith.constant 0 : index
    %c2_269 = arith.constant 2 : index
    %c2_270 = arith.constant 2 : index
    %c0_271 = arith.constant 0 : index
    %198 = vector.load %arg12[%c0_268, %c2_269, %c2_270, %c0_271] : memref<2x6x6x64xf32, #tpu.memory_space<vmem>>, vector<2x1x1x64xf32>
    %199 = vector.shape_cast %198 : vector<2x1x1x64xf32> to vector<2x64xf32>
    %c2_272 = arith.constant 2 : index
    %c0_273 = arith.constant 0 : index
    %c0_274 = arith.constant 0 : index
    %c0_275 = arith.constant 0 : index
    %200 = vector.load %arg3[%c2_272, %c0_273, %c0_274, %c0_275] : memref<4x4x64x128xf32, #tpu.memory_space<vmem>>, vector<1x1x64x128xf32>
    %201 = vector.shape_cast %200 : vector<1x1x64x128xf32> to vector<64x128xf32>
    %cst_276 = arith.constant dense<0.000000e+00> : vector<2x128xf32>
    %202 = tpu.matmul %199, %201, %cst_276 {dimension_numbers = #tpu.dot_dimension_numbers<[1], [0], [0], [1], [0, 0, 1, 1], [], []>} : vector<2x64xf32>, vector<64x128xf32>, vector<2x128xf32> -> vector<2x128xf32>
    %203 = arith.addf %197, %202 : vector<2x128xf32>
    %c0_277 = arith.constant 0 : index
    %c2_278 = arith.constant 2 : index
    %c3_279 = arith.constant 3 : index
    %c0_280 = arith.constant 0 : index
    %204 = vector.load %arg12[%c0_277, %c2_278, %c3_279, %c0_280] : memref<2x6x6x64xf32, #tpu.memory_space<vmem>>, vector<2x1x1x64xf32>
    %205 = vector.shape_cast %204 : vector<2x1x1x64xf32> to vector<2x64xf32>
    %c2_281 = arith.constant 2 : index
    %c1_282 = arith.constant 1 : index
    %c0_283 = arith.constant 0 : index
    %c0_284 = arith.constant 0 : index
    %206 = vector.load %arg3[%c2_281, %c1_282, %c0_283, %c0_284] : memref<4x4x64x128xf32, #tpu.memory_space<vmem>>, vector<1x1x64x128xf32>
    %207 = vector.shape_cast %206 : vector<1x1x64x128xf32> to vector<64x128xf32>
    %cst_285 = arith.constant dense<0.000000e+00> : vector<2x128xf32>
    %208 = tpu.matmul %205, %207, %cst_285 {dimension_numbers = #tpu.dot_dimension_numbers<[1], [0], [0], [1], [0, 0, 1, 1], [], []>} : vector<2x64xf32>, vector<64x128xf32>, vector<2x128xf32> -> vector<2x128xf32>
    %209 = arith.addf %203, %208 : vector<2x128xf32>
    %c0_286 = arith.constant 0 : index
    %c2_287 = arith.constant 2 : index
    %c4_288 = arith.constant 4 : index
    %c0_289 = arith.constant 0 : index
    %210 = vector.load %arg12[%c0_286, %c2_287, %c4_288, %c0_289] : memref<2x6x6x64xf32, #tpu.memory_space<vmem>>, vector<2x1x1x64xf32>
    %211 = vector.shape_cast %210 : vector<2x1x1x64xf32> to vector<2x64xf32>
    %c2_290 = arith.constant 2 : index
    %c2_291 = arith.constant 2 : index
    %c0_292 = arith.constant 0 : index
    %c0_293 = arith.constant 0 : index
    %212 = vector.load %arg3[%c2_290, %c2_291, %c0_292, %c0_293] : memref<4x4x64x128xf32, #tpu.memory_space<vmem>>, vector<1x1x64x128xf32>
    %213 = vector.shape_cast %212 : vector<1x1x64x128xf32> to vector<64x128xf32>
    %cst_294 = arith.constant dense<0.000000e+00> : vector<2x128xf32>
    %214 = tpu.matmul %211, %213, %cst_294 {dimension_numbers = #tpu.dot_dimension_numbers<[1], [0], [0], [1], [0, 0, 1, 1], [], []>} : vector<2x64xf32>, vector<64x128xf32>, vector<2x128xf32> -> vector<2x128xf32>
    %215 = arith.addf %209, %214 : vector<2x128xf32>
    %c0_295 = arith.constant 0 : index
    %c2_296 = arith.constant 2 : index
    %c5_297 = arith.constant 5 : index
    %c0_298 = arith.constant 0 : index
    %216 = vector.load %arg12[%c0_295, %c2_296, %c5_297, %c0_298] : memref<2x6x6x64xf32, #tpu.memory_space<vmem>>, vector<2x1x1x64xf32>
    %217 = vector.shape_cast %216 : vector<2x1x1x64xf32> to vector<2x64xf32>
    %c2_299 = arith.constant 2 : index
    %c3_300 = arith.constant 3 : index
    %c0_301 = arith.constant 0 : index
    %c0_302 = arith.constant 0 : index
    %218 = vector.load %arg3[%c2_299, %c3_300, %c0_301, %c0_302] : memref<4x4x64x128xf32, #tpu.memory_space<vmem>>, vector<1x1x64x128xf32>
    %219 = vector.shape_cast %218 : vector<1x1x64x128xf32> to vector<64x128xf32>
    %cst_303 = arith.constant dense<0.000000e+00> : vector<2x128xf32>
    %220 = tpu.matmul %217, %219, %cst_303 {dimension_numbers = #tpu.dot_dimension_numbers<[1], [0], [0], [1], [0, 0, 1, 1], [], []>} : vector<2x64xf32>, vector<64x128xf32>, vector<2x128xf32> -> vector<2x128xf32>
    %221 = arith.addf %215, %220 : vector<2x128xf32>
    %c0_304 = arith.constant 0 : index
    %c3_305 = arith.constant 3 : index
    %c2_306 = arith.constant 2 : index
    %c0_307 = arith.constant 0 : index
    %222 = vector.load %arg12[%c0_304, %c3_305, %c2_306, %c0_307] : memref<2x6x6x64xf32, #tpu.memory_space<vmem>>, vector<2x1x1x64xf32>
    %223 = vector.shape_cast %222 : vector<2x1x1x64xf32> to vector<2x64xf32>
    %c3_308 = arith.constant 3 : index
    %c0_309 = arith.constant 0 : index
    %c0_310 = arith.constant 0 : index
    %c0_311 = arith.constant 0 : index
    %224 = vector.load %arg3[%c3_308, %c0_309, %c0_310, %c0_311] : memref<4x4x64x128xf32, #tpu.memory_space<vmem>>, vector<1x1x64x128xf32>
    %225 = vector.shape_cast %224 : vector<1x1x64x128xf32> to vector<64x128xf32>
    %cst_312 = arith.constant dense<0.000000e+00> : vector<2x128xf32>
    %226 = tpu.matmul %223, %225, %cst_312 {dimension_numbers = #tpu.dot_dimension_numbers<[1], [0], [0], [1], [0, 0, 1, 1], [], []>} : vector<2x64xf32>, vector<64x128xf32>, vector<2x128xf32> -> vector<2x128xf32>
    %227 = arith.addf %221, %226 : vector<2x128xf32>
    %c0_313 = arith.constant 0 : index
    %c3_314 = arith.constant 3 : index
    %c3_315 = arith.constant 3 : index
    %c0_316 = arith.constant 0 : index
    %228 = vector.load %arg12[%c0_313, %c3_314, %c3_315, %c0_316] : memref<2x6x6x64xf32, #tpu.memory_space<vmem>>, vector<2x1x1x64xf32>
    %229 = vector.shape_cast %228 : vector<2x1x1x64xf32> to vector<2x64xf32>
    %c3_317 = arith.constant 3 : index
    %c1_318 = arith.constant 1 : index
    %c0_319 = arith.constant 0 : index
    %c0_320 = arith.constant 0 : index
    %230 = vector.load %arg3[%c3_317, %c1_318, %c0_319, %c0_320] : memref<4x4x64x128xf32, #tpu.memory_space<vmem>>, vector<1x1x64x128xf32>
    %231 = vector.shape_cast %230 : vector<1x1x64x128xf32> to vector<64x128xf32>
    %cst_321 = arith.constant dense<0.000000e+00> : vector<2x128xf32>
    %232 = tpu.matmul %229, %231, %cst_321 {dimension_numbers = #tpu.dot_dimension_numbers<[1], [0], [0], [1], [0, 0, 1, 1], [], []>} : vector<2x64xf32>, vector<64x128xf32>, vector<2x128xf32> -> vector<2x128xf32>
    %233 = arith.addf %227, %232 : vector<2x128xf32>
    %c0_322 = arith.constant 0 : index
    %c3_323 = arith.constant 3 : index
    %c4_324 = arith.constant 4 : index
    %c0_325 = arith.constant 0 : index
    %234 = vector.load %arg12[%c0_322, %c3_323, %c4_324, %c0_325] : memref<2x6x6x64xf32, #tpu.memory_space<vmem>>, vector<2x1x1x64xf32>
    %235 = vector.shape_cast %234 : vector<2x1x1x64xf32> to vector<2x64xf32>
    %c3_326 = arith.constant 3 : index
    %c2_327 = arith.constant 2 : index
    %c0_328 = arith.constant 0 : index
    %c0_329 = arith.constant 0 : index
    %236 = vector.load %arg3[%c3_326, %c2_327, %c0_328, %c0_329] : memref<4x4x64x128xf32, #tpu.memory_space<vmem>>, vector<1x1x64x128xf32>
    %237 = vector.shape_cast %236 : vector<1x1x64x128xf32> to vector<64x128xf32>
    %cst_330 = arith.constant dense<0.000000e+00> : vector<2x128xf32>
    %238 = tpu.matmul %235, %237, %cst_330 {dimension_numbers = #tpu.dot_dimension_numbers<[1], [0], [0], [1], [0, 0, 1, 1], [], []>} : vector<2x64xf32>, vector<64x128xf32>, vector<2x128xf32> -> vector<2x128xf32>
    %239 = arith.addf %233, %238 : vector<2x128xf32>
    %c0_331 = arith.constant 0 : index
    %c3_332 = arith.constant 3 : index
    %c5_333 = arith.constant 5 : index
    %c0_334 = arith.constant 0 : index
    %240 = vector.load %arg12[%c0_331, %c3_332, %c5_333, %c0_334] : memref<2x6x6x64xf32, #tpu.memory_space<vmem>>, vector<2x1x1x64xf32>
    %241 = vector.shape_cast %240 : vector<2x1x1x64xf32> to vector<2x64xf32>
    %c3_335 = arith.constant 3 : index
    %c3_336 = arith.constant 3 : index
    %c0_337 = arith.constant 0 : index
    %c0_338 = arith.constant 0 : index
    %242 = vector.load %arg3[%c3_335, %c3_336, %c0_337, %c0_338] : memref<4x4x64x128xf32, #tpu.memory_space<vmem>>, vector<1x1x64x128xf32>
    %243 = vector.shape_cast %242 : vector<1x1x64x128xf32> to vector<64x128xf32>
    %cst_339 = arith.constant dense<0.000000e+00> : vector<2x128xf32>
    %244 = tpu.matmul %241, %243, %cst_339 {dimension_numbers = #tpu.dot_dimension_numbers<[1], [0], [0], [1], [0, 0, 1, 1], [], []>} : vector<2x64xf32>, vector<64x128xf32>, vector<2x128xf32> -> vector<2x128xf32>
    %245 = arith.addf %239, %244 : vector<2x128xf32>
    %c0_340 = arith.constant 0 : index
    %c0_341 = arith.constant 0 : index
    %246 = vector.load %arg4[%c0_340, %c0_341] : memref<1x128xf32, #tpu.memory_space<vmem>>, vector<1x128xf32>
    %247 = vector.broadcast %246 : vector<1x128xf32> to vector<2x128xf32>
    %248 = arith.addf %245, %247 : vector<2x128xf32>
    %cst_342 = arith.constant 0.000000e+00 : f32
    %249 = vector.broadcast %cst_342 : f32 to vector<2x128xf32>
    %250 = arith.maximumf %248, %249 : vector<2x128xf32>
    %c0_343 = arith.constant 0 : index
    %c1_344 = arith.constant 1 : index
    %c2_345 = arith.constant 2 : index
    %c0_346 = arith.constant 0 : index
    %251 = vector.load %arg13[%c0_343, %c1_344, %c2_345, %c0_346] : memref<2x4x4x128xf32, #tpu.memory_space<vmem>>, vector<2x1x1x128xf32>
    %252 = vector.shape_cast %251 : vector<2x1x1x128xf32> to vector<2x128xf32>
    %253 = vector.shape_cast %250 : vector<2x128xf32> to vector<2x1x1x128xf32>
    tpu.vector_store %arg13[%c0_343, %c1_344, %c2_345, %c0_346], %253 {strides = array<i32>} : memref<2x4x4x128xf32, #tpu.memory_space<vmem>>, vector<2x1x1x128xf32>,
    %cst_347 = arith.constant 0.000000e+00 : f32
    %254 = vector.broadcast %cst_347 : f32 to vector<2x128xf32>
    %c0_348 = arith.constant 0 : index
    %c2_349 = arith.constant 2 : index
    %c0_350 = arith.constant 0 : index
    %c0_351 = arith.constant 0 : index
    %255 = vector.load %arg12[%c0_348, %c2_349, %c0_350, %c0_351] : memref<2x6x6x64xf32, #tpu.memory_space<vmem>>, vector<2x1x1x64xf32>
    %256 = vector.shape_cast %255 : vector<2x1x1x64xf32> to vector<2x64xf32>
    %c0_352 = arith.constant 0 : index
    %c0_353 = arith.constant 0 : index
    %c0_354 = arith.constant 0 : index
    %c0_355 = arith.constant 0 : index
    %257 = vector.load %arg3[%c0_352, %c0_353, %c0_354, %c0_355] : memref<4x4x64x128xf32, #tpu.memory_space<vmem>>, vector<1x1x64x128xf32>
    %258 = vector.shape_cast %257 : vector<1x1x64x128xf32> to vector<64x128xf32>
    %cst_356 = arith.constant dense<0.000000e+00> : vector<2x128xf32>
    %259 = tpu.matmul %256, %258, %cst_356 {dimension_numbers = #tpu.dot_dimension_numbers<[1], [0], [0], [1], [0, 0, 1, 1], [], []>} : vector<2x64xf32>, vector<64x128xf32>, vector<2x128xf32> -> vector<2x128xf32>
    %260 = arith.addf %254, %259 : vector<2x128xf32>
    %c0_357 = arith.constant 0 : index
    %c2_358 = arith.constant 2 : index
    %c1_359 = arith.constant 1 : index
    %c0_360 = arith.constant 0 : index
    %261 = vector.load %arg12[%c0_357, %c2_358, %c1_359, %c0_360] : memref<2x6x6x64xf32, #tpu.memory_space<vmem>>, vector<2x1x1x64xf32>
    %262 = vector.shape_cast %261 : vector<2x1x1x64xf32> to vector<2x64xf32>
    %c0_361 = arith.constant 0 : index
    %c1_362 = arith.constant 1 : index
    %c0_363 = arith.constant 0 : index
    %c0_364 = arith.constant 0 : index
    %263 = vector.load %arg3[%c0_361, %c1_362, %c0_363, %c0_364] : memref<4x4x64x128xf32, #tpu.memory_space<vmem>>, vector<1x1x64x128xf32>
    %264 = vector.shape_cast %263 : vector<1x1x64x128xf32> to vector<64x128xf32>
    %cst_365 = arith.constant dense<0.000000e+00> : vector<2x128xf32>
    %265 = tpu.matmul %262, %264, %cst_365 {dimension_numbers = #tpu.dot_dimension_numbers<[1], [0], [0], [1], [0, 0, 1, 1], [], []>} : vector<2x64xf32>, vector<64x128xf32>, vector<2x128xf32> -> vector<2x128xf32>
    %266 = arith.addf %260, %265 : vector<2x128xf32>
    %c0_366 = arith.constant 0 : index
    %c2_367 = arith.constant 2 : index
    %c2_368 = arith.constant 2 : index
    %c0_369 = arith.constant 0 : index
    %267 = vector.load %arg12[%c0_366, %c2_367, %c2_368, %c0_369] : memref<2x6x6x64xf32, #tpu.memory_space<vmem>>, vector<2x1x1x64xf32>
    %268 = vector.shape_cast %267 : vector<2x1x1x64xf32> to vector<2x64xf32>
    %c0_370 = arith.constant 0 : index
    %c2_371 = arith.constant 2 : index
    %c0_372 = arith.constant 0 : index
    %c0_373 = arith.constant 0 : index
    %269 = vector.load %arg3[%c0_370, %c2_371, %c0_372, %c0_373] : memref<4x4x64x128xf32, #tpu.memory_space<vmem>>, vector<1x1x64x128xf32>
    %270 = vector.shape_cast %269 : vector<1x1x64x128xf32> to vector<64x128xf32>
    %cst_374 = arith.constant dense<0.000000e+00> : vector<2x128xf32>
    %271 = tpu.matmul %268, %270, %cst_374 {dimension_numbers = #tpu.dot_dimension_numbers<[1], [0], [0], [1], [0, 0, 1, 1], [], []>} : vector<2x64xf32>, vector<64x128xf32>, vector<2x128xf32> -> vector<2x128xf32>
    %272 = arith.addf %266, %271 : vector<2x128xf32>
    %c0_375 = arith.constant 0 : index
    %c2_376 = arith.constant 2 : index
    %c3_377 = arith.constant 3 : index
    %c0_378 = arith.constant 0 : index
    %273 = vector.load %arg12[%c0_375, %c2_376, %c3_377, %c0_378] : memref<2x6x6x64xf32, #tpu.memory_space<vmem>>, vector<2x1x1x64xf32>
    %274 = vector.shape_cast %273 : vector<2x1x1x64xf32> to vector<2x64xf32>
    %c0_379 = arith.constant 0 : index
    %c3_380 = arith.constant 3 : index
    %c0_381 = arith.constant 0 : index
    %c0_382 = arith.constant 0 : index
    %275 = vector.load %arg3[%c0_379, %c3_380, %c0_381, %c0_382] : memref<4x4x64x128xf32, #tpu.memory_space<vmem>>, vector<1x1x64x128xf32>
    %276 = vector.shape_cast %275 : vector<1x1x64x128xf32> to vector<64x128xf32>
    %cst_383 = arith.constant dense<0.000000e+00> : vector<2x128xf32>
    %277 = tpu.matmul %274, %276, %cst_383 {dimension_numbers = #tpu.dot_dimension_numbers<[1], [0], [0], [1], [0, 0, 1, 1], [], []>} : vector<2x64xf32>, vector<64x128xf32>, vector<2x128xf32> -> vector<2x128xf32>
    %278 = arith.addf %272, %277 : vector<2x128xf32>
    %c0_384 = arith.constant 0 : index
    %c3_385 = arith.constant 3 : index
    %c0_386 = arith.constant 0 : index
    %c0_387 = arith.constant 0 : index
    %279 = vector.load %arg12[%c0_384, %c3_385, %c0_386, %c0_387] : memref<2x6x6x64xf32, #tpu.memory_space<vmem>>, vector<2x1x1x64xf32>
    %280 = vector.shape_cast %279 : vector<2x1x1x64xf32> to vector<2x64xf32>
    %c1_388 = arith.constant 1 : index
    %c0_389 = arith.constant 0 : index
    %c0_390 = arith.constant 0 : index
    %c0_391 = arith.constant 0 : index
    %281 = vector.load %arg3[%c1_388, %c0_389, %c0_390, %c0_391] : memref<4x4x64x128xf32, #tpu.memory_space<vmem>>, vector<1x1x64x128xf32>
    %282 = vector.shape_cast %281 : vector<1x1x64x128xf32> to vector<64x128xf32>
    %cst_392 = arith.constant dense<0.000000e+00> : vector<2x128xf32>
    %283 = tpu.matmul %280, %282, %cst_392 {dimension_numbers = #tpu.dot_dimension_numbers<[1], [0], [0], [1], [0, 0, 1, 1], [], []>} : vector<2x64xf32>, vector<64x128xf32>, vector<2x128xf32> -> vector<2x128xf32>
    %284 = arith.addf %278, %283 : vector<2x128xf32>
    %c0_393 = arith.constant 0 : index
    %c3_394 = arith.constant 3 : index
    %c1_395 = arith.constant 1 : index
    %c0_396 = arith.constant 0 : index
    %285 = vector.load %arg12[%c0_393, %c3_394, %c1_395, %c0_396] : memref<2x6x6x64xf32, #tpu.memory_space<vmem>>, vector<2x1x1x64xf32>
    %286 = vector.shape_cast %285 : vector<2x1x1x64xf32> to vector<2x64xf32>
    %c1_397 = arith.constant 1 : index
    %c1_398 = arith.constant 1 : index
    %c0_399 = arith.constant 0 : index
    %c0_400 = arith.constant 0 : index
    %287 = vector.load %arg3[%c1_397, %c1_398, %c0_399, %c0_400] : memref<4x4x64x128xf32, #tpu.memory_space<vmem>>, vector<1x1x64x128xf32>
    %288 = vector.shape_cast %287 : vector<1x1x64x128xf32> to vector<64x128xf32>
    %cst_401 = arith.constant dense<0.000000e+00> : vector<2x128xf32>
    %289 = tpu.matmul %286, %288, %cst_401 {dimension_numbers = #tpu.dot_dimension_numbers<[1], [0], [0], [1], [0, 0, 1, 1], [], []>} : vector<2x64xf32>, vector<64x128xf32>, vector<2x128xf32> -> vector<2x128xf32>
    %290 = arith.addf %284, %289 : vector<2x128xf32>
    %c0_402 = arith.constant 0 : index
    %c3_403 = arith.constant 3 : index
    %c2_404 = arith.constant 2 : index
    %c0_405 = arith.constant 0 : index
    %291 = vector.load %arg12[%c0_402, %c3_403, %c2_404, %c0_405] : memref<2x6x6x64xf32, #tpu.memory_space<vmem>>, vector<2x1x1x64xf32>
    %292 = vector.shape_cast %291 : vector<2x1x1x64xf32> to vector<2x64xf32>
    %c1_406 = arith.constant 1 : index
    %c2_407 = arith.constant 2 : index
    %c0_408 = arith.constant 0 : index
    %c0_409 = arith.constant 0 : index
    %293 = vector.load %arg3[%c1_406, %c2_407, %c0_408, %c0_409] : memref<4x4x64x128xf32, #tpu.memory_space<vmem>>, vector<1x1x64x128xf32>
    %294 = vector.shape_cast %293 : vector<1x1x64x128xf32> to vector<64x128xf32>
    %cst_410 = arith.constant dense<0.000000e+00> : vector<2x128xf32>
    %295 = tpu.matmul %292, %294, %cst_410 {dimension_numbers = #tpu.dot_dimension_numbers<[1], [0], [0], [1], [0, 0, 1, 1], [], []>} : vector<2x64xf32>, vector<64x128xf32>, vector<2x128xf32> -> vector<2x128xf32>
    %296 = arith.addf %290, %295 : vector<2x128xf32>
    %c0_411 = arith.constant 0 : index
    %c3_412 = arith.constant 3 : index
    %c3_413 = arith.constant 3 : index
    %c0_414 = arith.constant 0 : index
    %297 = vector.load %arg12[%c0_411, %c3_412, %c3_413, %c0_414] : memref<2x6x6x64xf32, #tpu.memory_space<vmem>>, vector<2x1x1x64xf32>
    %298 = vector.shape_cast %297 : vector<2x1x1x64xf32> to vector<2x64xf32>
    %c1_415 = arith.constant 1 : index
    %c3_416 = arith.constant 3 : index
    %c0_417 = arith.constant 0 : index
    %c0_418 = arith.constant 0 : index
    %299 = vector.load %arg3[%c1_415, %c3_416, %c0_417, %c0_418] : memref<4x4x64x128xf32, #tpu.memory_space<vmem>>, vector<1x1x64x128xf32>
    %300 = vector.shape_cast %299 : vector<1x1x64x128xf32> to vector<64x128xf32>
    %cst_419 = arith.constant dense<0.000000e+00> : vector<2x128xf32>
    %301 = tpu.matmul %298, %300, %cst_419 {dimension_numbers = #tpu.dot_dimension_numbers<[1], [0], [0], [1], [0, 0, 1, 1], [], []>} : vector<2x64xf32>, vector<64x128xf32>, vector<2x128xf32> -> vector<2x128xf32>
    %302 = arith.addf %296, %301 : vector<2x128xf32>
    %c0_420 = arith.constant 0 : index
    %c4_421 = arith.constant 4 : index
    %c0_422 = arith.constant 0 : index
    %c0_423 = arith.constant 0 : index
    %303 = vector.load %arg12[%c0_420, %c4_421, %c0_422, %c0_423] : memref<2x6x6x64xf32, #tpu.memory_space<vmem>>, vector<2x1x1x64xf32>
    %304 = vector.shape_cast %303 : vector<2x1x1x64xf32> to vector<2x64xf32>
    %c2_424 = arith.constant 2 : index
    %c0_425 = arith.constant 0 : index
    %c0_426 = arith.constant 0 : index
    %c0_427 = arith.constant 0 : index
    %305 = vector.load %arg3[%c2_424, %c0_425, %c0_426, %c0_427] : memref<4x4x64x128xf32, #tpu.memory_space<vmem>>, vector<1x1x64x128xf32>
    %306 = vector.shape_cast %305 : vector<1x1x64x128xf32> to vector<64x128xf32>
    %cst_428 = arith.constant dense<0.000000e+00> : vector<2x128xf32>
    %307 = tpu.matmul %304, %306, %cst_428 {dimension_numbers = #tpu.dot_dimension_numbers<[1], [0], [0], [1], [0, 0, 1, 1], [], []>} : vector<2x64xf32>, vector<64x128xf32>, vector<2x128xf32> -> vector<2x128xf32>
    %308 = arith.addf %302, %307 : vector<2x128xf32>
    %c0_429 = arith.constant 0 : index
    %c4_430 = arith.constant 4 : index
    %c1_431 = arith.constant 1 : index
    %c0_432 = arith.constant 0 : index
    %309 = vector.load %arg12[%c0_429, %c4_430, %c1_431, %c0_432] : memref<2x6x6x64xf32, #tpu.memory_space<vmem>>, vector<2x1x1x64xf32>
    %310 = vector.shape_cast %309 : vector<2x1x1x64xf32> to vector<2x64xf32>
    %c2_433 = arith.constant 2 : index
    %c1_434 = arith.constant 1 : index
    %c0_435 = arith.constant 0 : index
    %c0_436 = arith.constant 0 : index
    %311 = vector.load %arg3[%c2_433, %c1_434, %c0_435, %c0_436] : memref<4x4x64x128xf32, #tpu.memory_space<vmem>>, vector<1x1x64x128xf32>
    %312 = vector.shape_cast %311 : vector<1x1x64x128xf32> to vector<64x128xf32>
    %cst_437 = arith.constant dense<0.000000e+00> : vector<2x128xf32>
    %313 = tpu.matmul %310, %312, %cst_437 {dimension_numbers = #tpu.dot_dimension_numbers<[1], [0], [0], [1], [0, 0, 1, 1], [], []>} : vector<2x64xf32>, vector<64x128xf32>, vector<2x128xf32> -> vector<2x128xf32>
    %314 = arith.addf %308, %313 : vector<2x128xf32>
    %c0_438 = arith.constant 0 : index
    %c4_439 = arith.constant 4 : index
    %c2_440 = arith.constant 2 : index
    %c0_441 = arith.constant 0 : index
    %315 = vector.load %arg12[%c0_438, %c4_439, %c2_440, %c0_441] : memref<2x6x6x64xf32, #tpu.memory_space<vmem>>, vector<2x1x1x64xf32>
    %316 = vector.shape_cast %315 : vector<2x1x1x64xf32> to vector<2x64xf32>
    %c2_442 = arith.constant 2 : index
    %c2_443 = arith.constant 2 : index
    %c0_444 = arith.constant 0 : index
    %c0_445 = arith.constant 0 : index
    %317 = vector.load %arg3[%c2_442, %c2_443, %c0_444, %c0_445] : memref<4x4x64x128xf32, #tpu.memory_space<vmem>>, vector<1x1x64x128xf32>
    %318 = vector.shape_cast %317 : vector<1x1x64x128xf32> to vector<64x128xf32>
    %cst_446 = arith.constant dense<0.000000e+00> : vector<2x128xf32>
    %319 = tpu.matmul %316, %318, %cst_446 {dimension_numbers = #tpu.dot_dimension_numbers<[1], [0], [0], [1], [0, 0, 1, 1], [], []>} : vector<2x64xf32>, vector<64x128xf32>, vector<2x128xf32> -> vector<2x128xf32>
    %320 = arith.addf %314, %319 : vector<2x128xf32>
    %c0_447 = arith.constant 0 : index
    %c4_448 = arith.constant 4 : index
    %c3_449 = arith.constant 3 : index
    %c0_450 = arith.constant 0 : index
    %321 = vector.load %arg12[%c0_447, %c4_448, %c3_449, %c0_450] : memref<2x6x6x64xf32, #tpu.memory_space<vmem>>, vector<2x1x1x64xf32>
    %322 = vector.shape_cast %321 : vector<2x1x1x64xf32> to vector<2x64xf32>
    %c2_451 = arith.constant 2 : index
    %c3_452 = arith.constant 3 : index
    %c0_453 = arith.constant 0 : index
    %c0_454 = arith.constant 0 : index
    %323 = vector.load %arg3[%c2_451, %c3_452, %c0_453, %c0_454] : memref<4x4x64x128xf32, #tpu.memory_space<vmem>>, vector<1x1x64x128xf32>
    %324 = vector.shape_cast %323 : vector<1x1x64x128xf32> to vector<64x128xf32>
    %cst_455 = arith.constant dense<0.000000e+00> : vector<2x128xf32>
    %325 = tpu.matmul %322, %324, %cst_455 {dimension_numbers = #tpu.dot_dimension_numbers<[1], [0], [0], [1], [0, 0, 1, 1], [], []>} : vector<2x64xf32>, vector<64x128xf32>, vector<2x128xf32> -> vector<2x128xf32>
    %326 = arith.addf %320, %325 : vector<2x128xf32>
    %c0_456 = arith.constant 0 : index
    %c5_457 = arith.constant 5 : index
    %c0_458 = arith.constant 0 : index
    %c0_459 = arith.constant 0 : index
    %327 = vector.load %arg12[%c0_456, %c5_457, %c0_458, %c0_459] : memref<2x6x6x64xf32, #tpu.memory_space<vmem>>, vector<2x1x1x64xf32>
    %328 = vector.shape_cast %327 : vector<2x1x1x64xf32> to vector<2x64xf32>
    %c3_460 = arith.constant 3 : index
    %c0_461 = arith.constant 0 : index
    %c0_462 = arith.constant 0 : index
    %c0_463 = arith.constant 0 : index
    %329 = vector.load %arg3[%c3_460, %c0_461, %c0_462, %c0_463] : memref<4x4x64x128xf32, #tpu.memory_space<vmem>>, vector<1x1x64x128xf32>
    %330 = vector.shape_cast %329 : vector<1x1x64x128xf32> to vector<64x128xf32>
    %cst_464 = arith.constant dense<0.000000e+00> : vector<2x128xf32>
    %331 = tpu.matmul %328, %330, %cst_464 {dimension_numbers = #tpu.dot_dimension_numbers<[1], [0], [0], [1], [0, 0, 1, 1], [], []>} : vector<2x64xf32>, vector<64x128xf32>, vector<2x128xf32> -> vector<2x128xf32>
    %332 = arith.addf %326, %331 : vector<2x128xf32>
    %c0_465 = arith.constant 0 : index
    %c5_466 = arith.constant 5 : index
    %c1_467 = arith.constant 1 : index
    %c0_468 = arith.constant 0 : index
    %333 = vector.load %arg12[%c0_465, %c5_466, %c1_467, %c0_468] : memref<2x6x6x64xf32, #tpu.memory_space<vmem>>, vector<2x1x1x64xf32>
    %334 = vector.shape_cast %333 : vector<2x1x1x64xf32> to vector<2x64xf32>
    %c3_469 = arith.constant 3 : index
    %c1_470 = arith.constant 1 : index
    %c0_471 = arith.constant 0 : index
    %c0_472 = arith.constant 0 : index
    %335 = vector.load %arg3[%c3_469, %c1_470, %c0_471, %c0_472] : memref<4x4x64x128xf32, #tpu.memory_space<vmem>>, vector<1x1x64x128xf32>
    %336 = vector.shape_cast %335 : vector<1x1x64x128xf32> to vector<64x128xf32>
    %cst_473 = arith.constant dense<0.000000e+00> : vector<2x128xf32>
    %337 = tpu.matmul %334, %336, %cst_473 {dimension_numbers = #tpu.dot_dimension_numbers<[1], [0], [0], [1], [0, 0, 1, 1], [], []>} : vector<2x64xf32>, vector<64x128xf32>, vector<2x128xf32> -> vector<2x128xf32>
    %338 = arith.addf %332, %337 : vector<2x128xf32>
    %c0_474 = arith.constant 0 : index
    %c5_475 = arith.constant 5 : index
    %c2_476 = arith.constant 2 : index
    %c0_477 = arith.constant 0 : index
    %339 = vector.load %arg12[%c0_474, %c5_475, %c2_476, %c0_477] : memref<2x6x6x64xf32, #tpu.memory_space<vmem>>, vector<2x1x1x64xf32>
    %340 = vector.shape_cast %339 : vector<2x1x1x64xf32> to vector<2x64xf32>
    %c3_478 = arith.constant 3 : index
    %c2_479 = arith.constant 2 : index
    %c0_480 = arith.constant 0 : index
    %c0_481 = arith.constant 0 : index
    %341 = vector.load %arg3[%c3_478, %c2_479, %c0_480, %c0_481] : memref<4x4x64x128xf32, #tpu.memory_space<vmem>>, vector<1x1x64x128xf32>
    %342 = vector.shape_cast %341 : vector<1x1x64x128xf32> to vector<64x128xf32>
    %cst_482 = arith.constant dense<0.000000e+00> : vector<2x128xf32>
    %343 = tpu.matmul %340, %342, %cst_482 {dimension_numbers = #tpu.dot_dimension_numbers<[1], [0], [0], [1], [0, 0, 1, 1], [], []>} : vector<2x64xf32>, vector<64x128xf32>, vector<2x128xf32> -> vector<2x128xf32>
    %344 = arith.addf %338, %343 : vector<2x128xf32>
    %c0_483 = arith.constant 0 : index
    %c5_484 = arith.constant 5 : index
    %c3_485 = arith.constant 3 : index
    %c0_486 = arith.constant 0 : index
    %345 = vector.load %arg12[%c0_483, %c5_484, %c3_485, %c0_486] : memref<2x6x6x64xf32, #tpu.memory_space<vmem>>, vector<2x1x1x64xf32>
    %346 = vector.shape_cast %345 : vector<2x1x1x64xf32> to vector<2x64xf32>
    %c3_487 = arith.constant 3 : index
    %c3_488 = arith.constant 3 : index
    %c0_489 = arith.constant 0 : index
    %c0_490 = arith.constant 0 : index
    %347 = vector.load %arg3[%c3_487, %c3_488, %c0_489, %c0_490] : memref<4x4x64x128xf32, #tpu.memory_space<vmem>>, vector<1x1x64x128xf32>
    %348 = vector.shape_cast %347 : vector<1x1x64x128xf32> to vector<64x128xf32>
    %cst_491 = arith.constant dense<0.000000e+00> : vector<2x128xf32>
    %349 = tpu.matmul %346, %348, %cst_491 {dimension_numbers = #tpu.dot_dimension_numbers<[1], [0], [0], [1], [0, 0, 1, 1], [], []>} : vector<2x64xf32>, vector<64x128xf32>, vector<2x128xf32> -> vector<2x128xf32>
    %350 = arith.addf %344, %349 : vector<2x128xf32>
    %c0_492 = arith.constant 0 : index
    %c0_493 = arith.constant 0 : index
    %351 = vector.load %arg4[%c0_492, %c0_493] : memref<1x128xf32, #tpu.memory_space<vmem>>, vector<1x128xf32>
    %352 = vector.broadcast %351 : vector<1x128xf32> to vector<2x128xf32>
    %353 = arith.addf %350, %352 : vector<2x128xf32>
    %cst_494 = arith.constant 0.000000e+00 : f32
    %354 = vector.broadcast %cst_494 : f32 to vector<2x128xf32>
    %355 = arith.maximumf %353, %354 : vector<2x128xf32>
    %c0_495 = arith.constant 0 : index
    %c2_496 = arith.constant 2 : index
    %c1_497 = arith.constant 1 : index
    %c0_498 = arith.constant 0 : index
    %356 = vector.load %arg13[%c0_495, %c2_496, %c1_497, %c0_498] : memref<2x4x4x128xf32, #tpu.memory_space<vmem>>, vector<2x1x1x128xf32>
    %357 = vector.shape_cast %356 : vector<2x1x1x128xf32> to vector<2x128xf32>
    %358 = vector.shape_cast %355 : vector<2x128xf32> to vector<2x1x1x128xf32>
    tpu.vector_store %arg13[%c0_495, %c2_496, %c1_497, %c0_498], %358 {strides = array<i32>} : memref<2x4x4x128xf32, #tpu.memory_space<vmem>>, vector<2x1x1x128xf32>,
    %cst_499 = arith.constant 0.000000e+00 : f32
    %359 = vector.broadcast %cst_499 : f32 to vector<2x128xf32>
    %c0_500 = arith.constant 0 : index
    %c2_501 = arith.constant 2 : index
    %c2_502 = arith.constant 2 : index
    %c0_503 = arith.constant 0 : index
    %360 = vector.load %arg12[%c0_500, %c2_501, %c2_502, %c0_503] : memref<2x6x6x64xf32, #tpu.memory_space<vmem>>, vector<2x1x1x64xf32>
    %361 = vector.shape_cast %360 : vector<2x1x1x64xf32> to vector<2x64xf32>
    %c0_504 = arith.constant 0 : index
    %c0_505 = arith.constant 0 : index
    %c0_506 = arith.constant 0 : index
    %c0_507 = arith.constant 0 : index
    %362 = vector.load %arg3[%c0_504, %c0_505, %c0_506, %c0_507] : memref<4x4x64x128xf32, #tpu.memory_space<vmem>>, vector<1x1x64x128xf32>
    %363 = vector.shape_cast %362 : vector<1x1x64x128xf32> to vector<64x128xf32>
    %cst_508 = arith.constant dense<0.000000e+00> : vector<2x128xf32>
    %364 = tpu.matmul %361, %363, %cst_508 {dimension_numbers = #tpu.dot_dimension_numbers<[1], [0], [0], [1], [0, 0, 1, 1], [], []>} : vector<2x64xf32>, vector<64x128xf32>, vector<2x128xf32> -> vector<2x128xf32>
    %365 = arith.addf %359, %364 : vector<2x128xf32>
    %c0_509 = arith.constant 0 : index
    %c2_510 = arith.constant 2 : index
    %c3_511 = arith.constant 3 : index
    %c0_512 = arith.constant 0 : index
    %366 = vector.load %arg12[%c0_509, %c2_510, %c3_511, %c0_512] : memref<2x6x6x64xf32, #tpu.memory_space<vmem>>, vector<2x1x1x64xf32>
    %367 = vector.shape_cast %366 : vector<2x1x1x64xf32> to vector<2x64xf32>
    %c0_513 = arith.constant 0 : index
    %c1_514 = arith.constant 1 : index
    %c0_515 = arith.constant 0 : index
    %c0_516 = arith.constant 0 : index
    %368 = vector.load %arg3[%c0_513, %c1_514, %c0_515, %c0_516] : memref<4x4x64x128xf32, #tpu.memory_space<vmem>>, vector<1x1x64x128xf32>
    %369 = vector.shape_cast %368 : vector<1x1x64x128xf32> to vector<64x128xf32>
    %cst_517 = arith.constant dense<0.000000e+00> : vector<2x128xf32>
    %370 = tpu.matmul %367, %369, %cst_517 {dimension_numbers = #tpu.dot_dimension_numbers<[1], [0], [0], [1], [0, 0, 1, 1], [], []>} : vector<2x64xf32>, vector<64x128xf32>, vector<2x128xf32> -> vector<2x128xf32>
    %371 = arith.addf %365, %370 : vector<2x128xf32>
    %c0_518 = arith.constant 0 : index
    %c2_519 = arith.constant 2 : index
    %c4_520 = arith.constant 4 : index
    %c0_521 = arith.constant 0 : index
    %372 = vector.load %arg12[%c0_518, %c2_519, %c4_520, %c0_521] : memref<2x6x6x64xf32, #tpu.memory_space<vmem>>, vector<2x1x1x64xf32>
    %373 = vector.shape_cast %372 : vector<2x1x1x64xf32> to vector<2x64xf32>
    %c0_522 = arith.constant 0 : index
    %c2_523 = arith.constant 2 : index
    %c0_524 = arith.constant 0 : index
    %c0_525 = arith.constant 0 : index
    %374 = vector.load %arg3[%c0_522, %c2_523, %c0_524, %c0_525] : memref<4x4x64x128xf32, #tpu.memory_space<vmem>>, vector<1x1x64x128xf32>
    %375 = vector.shape_cast %374 : vector<1x1x64x128xf32> to vector<64x128xf32>
    %cst_526 = arith.constant dense<0.000000e+00> : vector<2x128xf32>
    %376 = tpu.matmul %373, %375, %cst_526 {dimension_numbers = #tpu.dot_dimension_numbers<[1], [0], [0], [1], [0, 0, 1, 1], [], []>} : vector<2x64xf32>, vector<64x128xf32>, vector<2x128xf32> -> vector<2x128xf32>
    %377 = arith.addf %371, %376 : vector<2x128xf32>
    %c0_527 = arith.constant 0 : index
    %c2_528 = arith.constant 2 : index
    %c5_529 = arith.constant 5 : index
    %c0_530 = arith.constant 0 : index
    %378 = vector.load %arg12[%c0_527, %c2_528, %c5_529, %c0_530] : memref<2x6x6x64xf32, #tpu.memory_space<vmem>>, vector<2x1x1x64xf32>
    %379 = vector.shape_cast %378 : vector<2x1x1x64xf32> to vector<2x64xf32>
    %c0_531 = arith.constant 0 : index
    %c3_532 = arith.constant 3 : index
    %c0_533 = arith.constant 0 : index
    %c0_534 = arith.constant 0 : index
    %380 = vector.load %arg3[%c0_531, %c3_532, %c0_533, %c0_534] : memref<4x4x64x128xf32, #tpu.memory_space<vmem>>, vector<1x1x64x128xf32>
    %381 = vector.shape_cast %380 : vector<1x1x64x128xf32> to vector<64x128xf32>
    %cst_535 = arith.constant dense<0.000000e+00> : vector<2x128xf32>
    %382 = tpu.matmul %379, %381, %cst_535 {dimension_numbers = #tpu.dot_dimension_numbers<[1], [0], [0], [1], [0, 0, 1, 1], [], []>} : vector<2x64xf32>, vector<64x128xf32>, vector<2x128xf32> -> vector<2x128xf32>
    %383 = arith.addf %377, %382 : vector<2x128xf32>
    %c0_536 = arith.constant 0 : index
    %c3_537 = arith.constant 3 : index
    %c2_538 = arith.constant 2 : index
    %c0_539 = arith.constant 0 : index
    %384 = vector.load %arg12[%c0_536, %c3_537, %c2_538, %c0_539] : memref<2x6x6x64xf32, #tpu.memory_space<vmem>>, vector<2x1x1x64xf32>
    %385 = vector.shape_cast %384 : vector<2x1x1x64xf32> to vector<2x64xf32>
    %c1_540 = arith.constant 1 : index
    %c0_541 = arith.constant 0 : index
    %c0_542 = arith.constant 0 : index
    %c0_543 = arith.constant 0 : index
    %386 = vector.load %arg3[%c1_540, %c0_541, %c0_542, %c0_543] : memref<4x4x64x128xf32, #tpu.memory_space<vmem>>, vector<1x1x64x128xf32>
    %387 = vector.shape_cast %386 : vector<1x1x64x128xf32> to vector<64x128xf32>
    %cst_544 = arith.constant dense<0.000000e+00> : vector<2x128xf32>
    %388 = tpu.matmul %385, %387, %cst_544 {dimension_numbers = #tpu.dot_dimension_numbers<[1], [0], [0], [1], [0, 0, 1, 1], [], []>} : vector<2x64xf32>, vector<64x128xf32>, vector<2x128xf32> -> vector<2x128xf32>
    %389 = arith.addf %383, %388 : vector<2x128xf32>
    %c0_545 = arith.constant 0 : index
    %c3_546 = arith.constant 3 : index
    %c3_547 = arith.constant 3 : index
    %c0_548 = arith.constant 0 : index
    %390 = vector.load %arg12[%c0_545, %c3_546, %c3_547, %c0_548] : memref<2x6x6x64xf32, #tpu.memory_space<vmem>>, vector<2x1x1x64xf32>
    %391 = vector.shape_cast %390 : vector<2x1x1x64xf32> to vector<2x64xf32>
    %c1_549 = arith.constant 1 : index
    %c1_550 = arith.constant 1 : index
    %c0_551 = arith.constant 0 : index
    %c0_552 = arith.constant 0 : index
    %392 = vector.load %arg3[%c1_549, %c1_550, %c0_551, %c0_552] : memref<4x4x64x128xf32, #tpu.memory_space<vmem>>, vector<1x1x64x128xf32>
    %393 = vector.shape_cast %392 : vector<1x1x64x128xf32> to vector<64x128xf32>
    %cst_553 = arith.constant dense<0.000000e+00> : vector<2x128xf32>
    %394 = tpu.matmul %391, %393, %cst_553 {dimension_numbers = #tpu.dot_dimension_numbers<[1], [0], [0], [1], [0, 0, 1, 1], [], []>} : vector<2x64xf32>, vector<64x128xf32>, vector<2x128xf32> -> vector<2x128xf32>
    %395 = arith.addf %389, %394 : vector<2x128xf32>
    %c0_554 = arith.constant 0 : index
    %c3_555 = arith.constant 3 : index
    %c4_556 = arith.constant 4 : index
    %c0_557 = arith.constant 0 : index
    %396 = vector.load %arg12[%c0_554, %c3_555, %c4_556, %c0_557] : memref<2x6x6x64xf32, #tpu.memory_space<vmem>>, vector<2x1x1x64xf32>
    %397 = vector.shape_cast %396 : vector<2x1x1x64xf32> to vector<2x64xf32>
    %c1_558 = arith.constant 1 : index
    %c2_559 = arith.constant 2 : index
    %c0_560 = arith.constant 0 : index
    %c0_561 = arith.constant 0 : index
    %398 = vector.load %arg3[%c1_558, %c2_559, %c0_560, %c0_561] : memref<4x4x64x128xf32, #tpu.memory_space<vmem>>, vector<1x1x64x128xf32>
    %399 = vector.shape_cast %398 : vector<1x1x64x128xf32> to vector<64x128xf32>
    %cst_562 = arith.constant dense<0.000000e+00> : vector<2x128xf32>
    %400 = tpu.matmul %397, %399, %cst_562 {dimension_numbers = #tpu.dot_dimension_numbers<[1], [0], [0], [1], [0, 0, 1, 1], [], []>} : vector<2x64xf32>, vector<64x128xf32>, vector<2x128xf32> -> vector<2x128xf32>
    %401 = arith.addf %395, %400 : vector<2x128xf32>
    %c0_563 = arith.constant 0 : index
    %c3_564 = arith.constant 3 : index
    %c5_565 = arith.constant 5 : index
    %c0_566 = arith.constant 0 : index
    %402 = vector.load %arg12[%c0_563, %c3_564, %c5_565, %c0_566] : memref<2x6x6x64xf32, #tpu.memory_space<vmem>>, vector<2x1x1x64xf32>
    %403 = vector.shape_cast %402 : vector<2x1x1x64xf32> to vector<2x64xf32>
    %c1_567 = arith.constant 1 : index
    %c3_568 = arith.constant 3 : index
    %c0_569 = arith.constant 0 : index
    %c0_570 = arith.constant 0 : index
    %404 = vector.load %arg3[%c1_567, %c3_568, %c0_569, %c0_570] : memref<4x4x64x128xf32, #tpu.memory_space<vmem>>, vector<1x1x64x128xf32>
    %405 = vector.shape_cast %404 : vector<1x1x64x128xf32> to vector<64x128xf32>
    %cst_571 = arith.constant dense<0.000000e+00> : vector<2x128xf32>
    %406 = tpu.matmul %403, %405, %cst_571 {dimension_numbers = #tpu.dot_dimension_numbers<[1], [0], [0], [1], [0, 0, 1, 1], [], []>} : vector<2x64xf32>, vector<64x128xf32>, vector<2x128xf32> -> vector<2x128xf32>
    %407 = arith.addf %401, %406 : vector<2x128xf32>
    %c0_572 = arith.constant 0 : index
    %c4_573 = arith.constant 4 : index
    %c2_574 = arith.constant 2 : index
    %c0_575 = arith.constant 0 : index
    %408 = vector.load %arg12[%c0_572, %c4_573, %c2_574, %c0_575] : memref<2x6x6x64xf32, #tpu.memory_space<vmem>>, vector<2x1x1x64xf32>
    %409 = vector.shape_cast %408 : vector<2x1x1x64xf32> to vector<2x64xf32>
    %c2_576 = arith.constant 2 : index
    %c0_577 = arith.constant 0 : index
    %c0_578 = arith.constant 0 : index
    %c0_579 = arith.constant 0 : index
    %410 = vector.load %arg3[%c2_576, %c0_577, %c0_578, %c0_579] : memref<4x4x64x128xf32, #tpu.memory_space<vmem>>, vector<1x1x64x128xf32>
    %411 = vector.shape_cast %410 : vector<1x1x64x128xf32> to vector<64x128xf32>
    %cst_580 = arith.constant dense<0.000000e+00> : vector<2x128xf32>
    %412 = tpu.matmul %409, %411, %cst_580 {dimension_numbers = #tpu.dot_dimension_numbers<[1], [0], [0], [1], [0, 0, 1, 1], [], []>} : vector<2x64xf32>, vector<64x128xf32>, vector<2x128xf32> -> vector<2x128xf32>
    %413 = arith.addf %407, %412 : vector<2x128xf32>
    %c0_581 = arith.constant 0 : index
    %c4_582 = arith.constant 4 : index
    %c3_583 = arith.constant 3 : index
    %c0_584 = arith.constant 0 : index
    %414 = vector.load %arg12[%c0_581, %c4_582, %c3_583, %c0_584] : memref<2x6x6x64xf32, #tpu.memory_space<vmem>>, vector<2x1x1x64xf32>
    %415 = vector.shape_cast %414 : vector<2x1x1x64xf32> to vector<2x64xf32>
    %c2_585 = arith.constant 2 : index
    %c1_586 = arith.constant 1 : index
    %c0_587 = arith.constant 0 : index
    %c0_588 = arith.constant 0 : index
    %416 = vector.load %arg3[%c2_585, %c1_586, %c0_587, %c0_588] : memref<4x4x64x128xf32, #tpu.memory_space<vmem>>, vector<1x1x64x128xf32>
    %417 = vector.shape_cast %416 : vector<1x1x64x128xf32> to vector<64x128xf32>
    %cst_589 = arith.constant dense<0.000000e+00> : vector<2x128xf32>
    %418 = tpu.matmul %415, %417, %cst_589 {dimension_numbers = #tpu.dot_dimension_numbers<[1], [0], [0], [1], [0, 0, 1, 1], [], []>} : vector<2x64xf32>, vector<64x128xf32>, vector<2x128xf32> -> vector<2x128xf32>
    %419 = arith.addf %413, %418 : vector<2x128xf32>
    %c0_590 = arith.constant 0 : index
    %c4_591 = arith.constant 4 : index
    %c4_592 = arith.constant 4 : index
    %c0_593 = arith.constant 0 : index
    %420 = vector.load %arg12[%c0_590, %c4_591, %c4_592, %c0_593] : memref<2x6x6x64xf32, #tpu.memory_space<vmem>>, vector<2x1x1x64xf32>
    %421 = vector.shape_cast %420 : vector<2x1x1x64xf32> to vector<2x64xf32>
    %c2_594 = arith.constant 2 : index
    %c2_595 = arith.constant 2 : index
    %c0_596 = arith.constant 0 : index
    %c0_597 = arith.constant 0 : index
    %422 = vector.load %arg3[%c2_594, %c2_595, %c0_596, %c0_597] : memref<4x4x64x128xf32, #tpu.memory_space<vmem>>, vector<1x1x64x128xf32>
    %423 = vector.shape_cast %422 : vector<1x1x64x128xf32> to vector<64x128xf32>
    %cst_598 = arith.constant dense<0.000000e+00> : vector<2x128xf32>
    %424 = tpu.matmul %421, %423, %cst_598 {dimension_numbers = #tpu.dot_dimension_numbers<[1], [0], [0], [1], [0, 0, 1, 1], [], []>} : vector<2x64xf32>, vector<64x128xf32>, vector<2x128xf32> -> vector<2x128xf32>
    %425 = arith.addf %419, %424 : vector<2x128xf32>
    %c0_599 = arith.constant 0 : index
    %c4_600 = arith.constant 4 : index
    %c5_601 = arith.constant 5 : index
    %c0_602 = arith.constant 0 : index
    %426 = vector.load %arg12[%c0_599, %c4_600, %c5_601, %c0_602] : memref<2x6x6x64xf32, #tpu.memory_space<vmem>>, vector<2x1x1x64xf32>
    %427 = vector.shape_cast %426 : vector<2x1x1x64xf32> to vector<2x64xf32>
    %c2_603 = arith.constant 2 : index
    %c3_604 = arith.constant 3 : index
    %c0_605 = arith.constant 0 : index
    %c0_606 = arith.constant 0 : index
    %428 = vector.load %arg3[%c2_603, %c3_604, %c0_605, %c0_606] : memref<4x4x64x128xf32, #tpu.memory_space<vmem>>, vector<1x1x64x128xf32>
    %429 = vector.shape_cast %428 : vector<1x1x64x128xf32> to vector<64x128xf32>
    %cst_607 = arith.constant dense<0.000000e+00> : vector<2x128xf32>
    %430 = tpu.matmul %427, %429, %cst_607 {dimension_numbers = #tpu.dot_dimension_numbers<[1], [0], [0], [1], [0, 0, 1, 1], [], []>} : vector<2x64xf32>, vector<64x128xf32>, vector<2x128xf32> -> vector<2x128xf32>
    %431 = arith.addf %425, %430 : vector<2x128xf32>
    %c0_608 = arith.constant 0 : index
    %c5_609 = arith.constant 5 : index
    %c2_610 = arith.constant 2 : index
    %c0_611 = arith.constant 0 : index
    %432 = vector.load %arg12[%c0_608, %c5_609, %c2_610, %c0_611] : memref<2x6x6x64xf32, #tpu.memory_space<vmem>>, vector<2x1x1x64xf32>
    %433 = vector.shape_cast %432 : vector<2x1x1x64xf32> to vector<2x64xf32>
    %c3_612 = arith.constant 3 : index
    %c0_613 = arith.constant 0 : index
    %c0_614 = arith.constant 0 : index
    %c0_615 = arith.constant 0 : index
    %434 = vector.load %arg3[%c3_612, %c0_613, %c0_614, %c0_615] : memref<4x4x64x128xf32, #tpu.memory_space<vmem>>, vector<1x1x64x128xf32>
    %435 = vector.shape_cast %434 : vector<1x1x64x128xf32> to vector<64x128xf32>
    %cst_616 = arith.constant dense<0.000000e+00> : vector<2x128xf32>
    %436 = tpu.matmul %433, %435, %cst_616 {dimension_numbers = #tpu.dot_dimension_numbers<[1], [0], [0], [1], [0, 0, 1, 1], [], []>} : vector<2x64xf32>, vector<64x128xf32>, vector<2x128xf32> -> vector<2x128xf32>
    %437 = arith.addf %431, %436 : vector<2x128xf32>
    %c0_617 = arith.constant 0 : index
    %c5_618 = arith.constant 5 : index
    %c3_619 = arith.constant 3 : index
    %c0_620 = arith.constant 0 : index
    %438 = vector.load %arg12[%c0_617, %c5_618, %c3_619, %c0_620] : memref<2x6x6x64xf32, #tpu.memory_space<vmem>>, vector<2x1x1x64xf32>
    %439 = vector.shape_cast %438 : vector<2x1x1x64xf32> to vector<2x64xf32>
    %c3_621 = arith.constant 3 : index
    %c1_622 = arith.constant 1 : index
    %c0_623 = arith.constant 0 : index
    %c0_624 = arith.constant 0 : index
    %440 = vector.load %arg3[%c3_621, %c1_622, %c0_623, %c0_624] : memref<4x4x64x128xf32, #tpu.memory_space<vmem>>, vector<1x1x64x128xf32>
    %441 = vector.shape_cast %440 : vector<1x1x64x128xf32> to vector<64x128xf32>
    %cst_625 = arith.constant dense<0.000000e+00> : vector<2x128xf32>
    %442 = tpu.matmul %439, %441, %cst_625 {dimension_numbers = #tpu.dot_dimension_numbers<[1], [0], [0], [1], [0, 0, 1, 1], [], []>} : vector<2x64xf32>, vector<64x128xf32>, vector<2x128xf32> -> vector<2x128xf32>
    %443 = arith.addf %437, %442 : vector<2x128xf32>
    %c0_626 = arith.constant 0 : index
    %c5_627 = arith.constant 5 : index
    %c4_628 = arith.constant 4 : index
    %c0_629 = arith.constant 0 : index
    %444 = vector.load %arg12[%c0_626, %c5_627, %c4_628, %c0_629] : memref<2x6x6x64xf32, #tpu.memory_space<vmem>>, vector<2x1x1x64xf32>
    %445 = vector.shape_cast %444 : vector<2x1x1x64xf32> to vector<2x64xf32>
    %c3_630 = arith.constant 3 : index
    %c2_631 = arith.constant 2 : index
    %c0_632 = arith.constant 0 : index
    %c0_633 = arith.constant 0 : index
    %446 = vector.load %arg3[%c3_630, %c2_631, %c0_632, %c0_633] : memref<4x4x64x128xf32, #tpu.memory_space<vmem>>, vector<1x1x64x128xf32>
    %447 = vector.shape_cast %446 : vector<1x1x64x128xf32> to vector<64x128xf32>
    %cst_634 = arith.constant dense<0.000000e+00> : vector<2x128xf32>
    %448 = tpu.matmul %445, %447, %cst_634 {dimension_numbers = #tpu.dot_dimension_numbers<[1], [0], [0], [1], [0, 0, 1, 1], [], []>} : vector<2x64xf32>, vector<64x128xf32>, vector<2x128xf32> -> vector<2x128xf32>
    %449 = arith.addf %443, %448 : vector<2x128xf32>
    %c0_635 = arith.constant 0 : index
    %c5_636 = arith.constant 5 : index
    %c5_637 = arith.constant 5 : index
    %c0_638 = arith.constant 0 : index
    %450 = vector.load %arg12[%c0_635, %c5_636, %c5_637, %c0_638] : memref<2x6x6x64xf32, #tpu.memory_space<vmem>>, vector<2x1x1x64xf32>
    %451 = vector.shape_cast %450 : vector<2x1x1x64xf32> to vector<2x64xf32>
    %c3_639 = arith.constant 3 : index
    %c3_640 = arith.constant 3 : index
    %c0_641 = arith.constant 0 : index
    %c0_642 = arith.constant 0 : index
    %452 = vector.load %arg3[%c3_639, %c3_640, %c0_641, %c0_642] : memref<4x4x64x128xf32, #tpu.memory_space<vmem>>, vector<1x1x64x128xf32>
    %453 = vector.shape_cast %452 : vector<1x1x64x128xf32> to vector<64x128xf32>
    %cst_643 = arith.constant dense<0.000000e+00> : vector<2x128xf32>
    %454 = tpu.matmul %451, %453, %cst_643 {dimension_numbers = #tpu.dot_dimension_numbers<[1], [0], [0], [1], [0, 0, 1, 1], [], []>} : vector<2x64xf32>, vector<64x128xf32>, vector<2x128xf32> -> vector<2x128xf32>
    %455 = arith.addf %449, %454 : vector<2x128xf32>
    %c0_644 = arith.constant 0 : index
    %c0_645 = arith.constant 0 : index
    %456 = vector.load %arg4[%c0_644, %c0_645] : memref<1x128xf32, #tpu.memory_space<vmem>>, vector<1x128xf32>
    %457 = vector.broadcast %456 : vector<1x128xf32> to vector<2x128xf32>
    %458 = arith.addf %455, %457 : vector<2x128xf32>
    %cst_646 = arith.constant 0.000000e+00 : f32
    %459 = vector.broadcast %cst_646 : f32 to vector<2x128xf32>
    %460 = arith.maximumf %458, %459 : vector<2x128xf32>
    %c0_647 = arith.constant 0 : index
    %c2_648 = arith.constant 2 : index
    %c2_649 = arith.constant 2 : index
    %c0_650 = arith.constant 0 : index
    %461 = vector.load %arg13[%c0_647, %c2_648, %c2_649, %c0_650] : memref<2x4x4x128xf32, #tpu.memory_space<vmem>>, vector<2x1x1x128xf32>
    %462 = vector.shape_cast %461 : vector<2x1x1x128xf32> to vector<2x128xf32>
    %463 = vector.shape_cast %460 : vector<2x128xf32> to vector<2x1x1x128xf32>
    tpu.vector_store %arg13[%c0_647, %c2_648, %c2_649, %c0_650], %463 {strides = array<i32>} : memref<2x4x4x128xf32, #tpu.memory_space<vmem>>, vector<2x1x1x128xf32>,
    %cst_651 = arith.constant 0.000000e+00 : f32
    %464 = vector.broadcast %cst_651 : f32 to vector<2x256xf32>
    %c0_652 = arith.constant 0 : index
    %c0_653 = arith.constant 0 : index
    %c0_654 = arith.constant 0 : index
    %c0_655 = arith.constant 0 : index
    %465 = vector.load %arg13[%c0_652, %c0_653, %c0_654, %c0_655] : memref<2x4x4x128xf32, #tpu.memory_space<vmem>>, vector<2x1x1x128xf32>
    %466 = vector.shape_cast %465 : vector<2x1x1x128xf32> to vector<2x128xf32>
    %c0_656 = arith.constant 0 : index
    %c0_657 = arith.constant 0 : index
    %c0_658 = arith.constant 0 : index
    %c0_659 = arith.constant 0 : index
    %467 = vector.load %arg5[%c0_656, %c0_657, %c0_658, %c0_659] : memref<4x4x128x256xf32, #tpu.memory_space<vmem>>, vector<1x1x128x256xf32>
    %468 = vector.shape_cast %467 : vector<1x1x128x256xf32> to vector<128x256xf32>
    %cst_660 = arith.constant dense<0.000000e+00> : vector<2x256xf32>
    %469 = tpu.matmul %466, %468, %cst_660 {dimension_numbers = #tpu.dot_dimension_numbers<[1], [0], [0], [1], [0, 0, 1, 1], [], []>} : vector<2x128xf32>, vector<128x256xf32>, vector<2x256xf32> -> vector<2x256xf32>
    %470 = arith.addf %464, %469 : vector<2x256xf32>
    %c0_661 = arith.constant 0 : index
    %c0_662 = arith.constant 0 : index
    %c1_663 = arith.constant 1 : index
    %c0_664 = arith.constant 0 : index
    %471 = vector.load %arg13[%c0_661, %c0_662, %c1_663, %c0_664] : memref<2x4x4x128xf32, #tpu.memory_space<vmem>>, vector<2x1x1x128xf32>
    %472 = vector.shape_cast %471 : vector<2x1x1x128xf32> to vector<2x128xf32>
    %c0_665 = arith.constant 0 : index
    %c1_666 = arith.constant 1 : index
    %c0_667 = arith.constant 0 : index
    %c0_668 = arith.constant 0 : index
    %473 = vector.load %arg5[%c0_665, %c1_666, %c0_667, %c0_668] : memref<4x4x128x256xf32, #tpu.memory_space<vmem>>, vector<1x1x128x256xf32>
    %474 = vector.shape_cast %473 : vector<1x1x128x256xf32> to vector<128x256xf32>
    %cst_669 = arith.constant dense<0.000000e+00> : vector<2x256xf32>
    %475 = tpu.matmul %472, %474, %cst_669 {dimension_numbers = #tpu.dot_dimension_numbers<[1], [0], [0], [1], [0, 0, 1, 1], [], []>} : vector<2x128xf32>, vector<128x256xf32>, vector<2x256xf32> -> vector<2x256xf32>
    %476 = arith.addf %470, %475 : vector<2x256xf32>
    %c0_670 = arith.constant 0 : index
    %c0_671 = arith.constant 0 : index
    %c2_672 = arith.constant 2 : index
    %c0_673 = arith.constant 0 : index
    %477 = vector.load %arg13[%c0_670, %c0_671, %c2_672, %c0_673] : memref<2x4x4x128xf32, #tpu.memory_space<vmem>>, vector<2x1x1x128xf32>
    %478 = vector.shape_cast %477 : vector<2x1x1x128xf32> to vector<2x128xf32>
    %c0_674 = arith.constant 0 : index
    %c2_675 = arith.constant 2 : index
    %c0_676 = arith.constant 0 : index
    %c0_677 = arith.constant 0 : index
    %479 = vector.load %arg5[%c0_674, %c2_675, %c0_676, %c0_677] : memref<4x4x128x256xf32, #tpu.memory_space<vmem>>, vector<1x1x128x256xf32>
    %480 = vector.shape_cast %479 : vector<1x1x128x256xf32> to vector<128x256xf32>
    %cst_678 = arith.constant dense<0.000000e+00> : vector<2x256xf32>
    %481 = tpu.matmul %478, %480, %cst_678 {dimension_numbers = #tpu.dot_dimension_numbers<[1], [0], [0], [1], [0, 0, 1, 1], [], []>} : vector<2x128xf32>, vector<128x256xf32>, vector<2x256xf32> -> vector<2x256xf32>
    %482 = arith.addf %476, %481 : vector<2x256xf32>
    %c0_679 = arith.constant 0 : index
    %c0_680 = arith.constant 0 : index
    %c3_681 = arith.constant 3 : index
    %c0_682 = arith.constant 0 : index
    %483 = vector.load %arg13[%c0_679, %c0_680, %c3_681, %c0_682] : memref<2x4x4x128xf32, #tpu.memory_space<vmem>>, vector<2x1x1x128xf32>
    %484 = vector.shape_cast %483 : vector<2x1x1x128xf32> to vector<2x128xf32>
    %c0_683 = arith.constant 0 : index
    %c3_684 = arith.constant 3 : index
    %c0_685 = arith.constant 0 : index
    %c0_686 = arith.constant 0 : index
    %485 = vector.load %arg5[%c0_683, %c3_684, %c0_685, %c0_686] : memref<4x4x128x256xf32, #tpu.memory_space<vmem>>, vector<1x1x128x256xf32>
    %486 = vector.shape_cast %485 : vector<1x1x128x256xf32> to vector<128x256xf32>
    %cst_687 = arith.constant dense<0.000000e+00> : vector<2x256xf32>
    %487 = tpu.matmul %484, %486, %cst_687 {dimension_numbers = #tpu.dot_dimension_numbers<[1], [0], [0], [1], [0, 0, 1, 1], [], []>} : vector<2x128xf32>, vector<128x256xf32>, vector<2x256xf32> -> vector<2x256xf32>
    %488 = arith.addf %482, %487 : vector<2x256xf32>
    %c0_688 = arith.constant 0 : index
    %c1_689 = arith.constant 1 : index
    %c0_690 = arith.constant 0 : index
    %c0_691 = arith.constant 0 : index
    %489 = vector.load %arg13[%c0_688, %c1_689, %c0_690, %c0_691] : memref<2x4x4x128xf32, #tpu.memory_space<vmem>>, vector<2x1x1x128xf32>
    %490 = vector.shape_cast %489 : vector<2x1x1x128xf32> to vector<2x128xf32>
    %c1_692 = arith.constant 1 : index
    %c0_693 = arith.constant 0 : index
    %c0_694 = arith.constant 0 : index
    %c0_695 = arith.constant 0 : index
    %491 = vector.load %arg5[%c1_692, %c0_693, %c0_694, %c0_695] : memref<4x4x128x256xf32, #tpu.memory_space<vmem>>, vector<1x1x128x256xf32>
    %492 = vector.shape_cast %491 : vector<1x1x128x256xf32> to vector<128x256xf32>
    %cst_696 = arith.constant dense<0.000000e+00> : vector<2x256xf32>
    %493 = tpu.matmul %490, %492, %cst_696 {dimension_numbers = #tpu.dot_dimension_numbers<[1], [0], [0], [1], [0, 0, 1, 1], [], []>} : vector<2x128xf32>, vector<128x256xf32>, vector<2x256xf32> -> vector<2x256xf32>
    %494 = arith.addf %488, %493 : vector<2x256xf32>
    %c0_697 = arith.constant 0 : index
    %c1_698 = arith.constant 1 : index
    %c1_699 = arith.constant 1 : index
    %c0_700 = arith.constant 0 : index
    %495 = vector.load %arg13[%c0_697, %c1_698, %c1_699, %c0_700] : memref<2x4x4x128xf32, #tpu.memory_space<vmem>>, vector<2x1x1x128xf32>
    %496 = vector.shape_cast %495 : vector<2x1x1x128xf32> to vector<2x128xf32>
    %c1_701 = arith.constant 1 : index
    %c1_702 = arith.constant 1 : index
    %c0_703 = arith.constant 0 : index
    %c0_704 = arith.constant 0 : index
    %497 = vector.load %arg5[%c1_701, %c1_702, %c0_703, %c0_704] : memref<4x4x128x256xf32, #tpu.memory_space<vmem>>, vector<1x1x128x256xf32>
    %498 = vector.shape_cast %497 : vector<1x1x128x256xf32> to vector<128x256xf32>
    %cst_705 = arith.constant dense<0.000000e+00> : vector<2x256xf32>
    %499 = tpu.matmul %496, %498, %cst_705 {dimension_numbers = #tpu.dot_dimension_numbers<[1], [0], [0], [1], [0, 0, 1, 1], [], []>} : vector<2x128xf32>, vector<128x256xf32>, vector<2x256xf32> -> vector<2x256xf32>
    %500 = arith.addf %494, %499 : vector<2x256xf32>
    %c0_706 = arith.constant 0 : index
    %c1_707 = arith.constant 1 : index
    %c2_708 = arith.constant 2 : index
    %c0_709 = arith.constant 0 : index
    %501 = vector.load %arg13[%c0_706, %c1_707, %c2_708, %c0_709] : memref<2x4x4x128xf32, #tpu.memory_space<vmem>>, vector<2x1x1x128xf32>
    %502 = vector.shape_cast %501 : vector<2x1x1x128xf32> to vector<2x128xf32>
    %c1_710 = arith.constant 1 : index
    %c2_711 = arith.constant 2 : index
    %c0_712 = arith.constant 0 : index
    %c0_713 = arith.constant 0 : index
    %503 = vector.load %arg5[%c1_710, %c2_711, %c0_712, %c0_713] : memref<4x4x128x256xf32, #tpu.memory_space<vmem>>, vector<1x1x128x256xf32>
    %504 = vector.shape_cast %503 : vector<1x1x128x256xf32> to vector<128x256xf32>
    %cst_714 = arith.constant dense<0.000000e+00> : vector<2x256xf32>
    %505 = tpu.matmul %502, %504, %cst_714 {dimension_numbers = #tpu.dot_dimension_numbers<[1], [0], [0], [1], [0, 0, 1, 1], [], []>} : vector<2x128xf32>, vector<128x256xf32>, vector<2x256xf32> -> vector<2x256xf32>
    %506 = arith.addf %500, %505 : vector<2x256xf32>
    %c0_715 = arith.constant 0 : index
    %c1_716 = arith.constant 1 : index
    %c3_717 = arith.constant 3 : index
    %c0_718 = arith.constant 0 : index
    %507 = vector.load %arg13[%c0_715, %c1_716, %c3_717, %c0_718] : memref<2x4x4x128xf32, #tpu.memory_space<vmem>>, vector<2x1x1x128xf32>
    %508 = vector.shape_cast %507 : vector<2x1x1x128xf32> to vector<2x128xf32>
    %c1_719 = arith.constant 1 : index
    %c3_720 = arith.constant 3 : index
    %c0_721 = arith.constant 0 : index
    %c0_722 = arith.constant 0 : index
    %509 = vector.load %arg5[%c1_719, %c3_720, %c0_721, %c0_722] : memref<4x4x128x256xf32, #tpu.memory_space<vmem>>, vector<1x1x128x256xf32>
    %510 = vector.shape_cast %509 : vector<1x1x128x256xf32> to vector<128x256xf32>
    %cst_723 = arith.constant dense<0.000000e+00> : vector<2x256xf32>
    %511 = tpu.matmul %508, %510, %cst_723 {dimension_numbers = #tpu.dot_dimension_numbers<[1], [0], [0], [1], [0, 0, 1, 1], [], []>} : vector<2x128xf32>, vector<128x256xf32>, vector<2x256xf32> -> vector<2x256xf32>
    %512 = arith.addf %506, %511 : vector<2x256xf32>
    %c0_724 = arith.constant 0 : index
    %c2_725 = arith.constant 2 : index
    %c0_726 = arith.constant 0 : index
    %c0_727 = arith.constant 0 : index
    %513 = vector.load %arg13[%c0_724, %c2_725, %c0_726, %c0_727] : memref<2x4x4x128xf32, #tpu.memory_space<vmem>>, vector<2x1x1x128xf32>
    %514 = vector.shape_cast %513 : vector<2x1x1x128xf32> to vector<2x128xf32>
    %c2_728 = arith.constant 2 : index
    %c0_729 = arith.constant 0 : index
    %c0_730 = arith.constant 0 : index
    %c0_731 = arith.constant 0 : index
    %515 = vector.load %arg5[%c2_728, %c0_729, %c0_730, %c0_731] : memref<4x4x128x256xf32, #tpu.memory_space<vmem>>, vector<1x1x128x256xf32>
    %516 = vector.shape_cast %515 : vector<1x1x128x256xf32> to vector<128x256xf32>
    %cst_732 = arith.constant dense<0.000000e+00> : vector<2x256xf32>
    %517 = tpu.matmul %514, %516, %cst_732 {dimension_numbers = #tpu.dot_dimension_numbers<[1], [0], [0], [1], [0, 0, 1, 1], [], []>} : vector<2x128xf32>, vector<128x256xf32>, vector<2x256xf32> -> vector<2x256xf32>
    %518 = arith.addf %512, %517 : vector<2x256xf32>
    %c0_733 = arith.constant 0 : index
    %c2_734 = arith.constant 2 : index
    %c1_735 = arith.constant 1 : index
    %c0_736 = arith.constant 0 : index
    %519 = vector.load %arg13[%c0_733, %c2_734, %c1_735, %c0_736] : memref<2x4x4x128xf32, #tpu.memory_space<vmem>>, vector<2x1x1x128xf32>
    %520 = vector.shape_cast %519 : vector<2x1x1x128xf32> to vector<2x128xf32>
    %c2_737 = arith.constant 2 : index
    %c1_738 = arith.constant 1 : index
    %c0_739 = arith.constant 0 : index
    %c0_740 = arith.constant 0 : index
    %521 = vector.load %arg5[%c2_737, %c1_738, %c0_739, %c0_740] : memref<4x4x128x256xf32, #tpu.memory_space<vmem>>, vector<1x1x128x256xf32>
    %522 = vector.shape_cast %521 : vector<1x1x128x256xf32> to vector<128x256xf32>
    %cst_741 = arith.constant dense<0.000000e+00> : vector<2x256xf32>
    %523 = tpu.matmul %520, %522, %cst_741 {dimension_numbers = #tpu.dot_dimension_numbers<[1], [0], [0], [1], [0, 0, 1, 1], [], []>} : vector<2x128xf32>, vector<128x256xf32>, vector<2x256xf32> -> vector<2x256xf32>
    %524 = arith.addf %518, %523 : vector<2x256xf32>
    %c0_742 = arith.constant 0 : index
    %c2_743 = arith.constant 2 : index
    %c2_744 = arith.constant 2 : index
    %c0_745 = arith.constant 0 : index
    %525 = vector.load %arg13[%c0_742, %c2_743, %c2_744, %c0_745] : memref<2x4x4x128xf32, #tpu.memory_space<vmem>>, vector<2x1x1x128xf32>
    %526 = vector.shape_cast %525 : vector<2x1x1x128xf32> to vector<2x128xf32>
    %c2_746 = arith.constant 2 : index
    %c2_747 = arith.constant 2 : index
    %c0_748 = arith.constant 0 : index
    %c0_749 = arith.constant 0 : index
    %527 = vector.load %arg5[%c2_746, %c2_747, %c0_748, %c0_749] : memref<4x4x128x256xf32, #tpu.memory_space<vmem>>, vector<1x1x128x256xf32>
    %528 = vector.shape_cast %527 : vector<1x1x128x256xf32> to vector<128x256xf32>
    %cst_750 = arith.constant dense<0.000000e+00> : vector<2x256xf32>
    %529 = tpu.matmul %526, %528, %cst_750 {dimension_numbers = #tpu.dot_dimension_numbers<[1], [0], [0], [1], [0, 0, 1, 1], [], []>} : vector<2x128xf32>, vector<128x256xf32>, vector<2x256xf32> -> vector<2x256xf32>
    %530 = arith.addf %524, %529 : vector<2x256xf32>
    %c0_751 = arith.constant 0 : index
    %c2_752 = arith.constant 2 : index
    %c3_753 = arith.constant 3 : index
    %c0_754 = arith.constant 0 : index
    %531 = vector.load %arg13[%c0_751, %c2_752, %c3_753, %c0_754] : memref<2x4x4x128xf32, #tpu.memory_space<vmem>>, vector<2x1x1x128xf32>
    %532 = vector.shape_cast %531 : vector<2x1x1x128xf32> to vector<2x128xf32>
    %c2_755 = arith.constant 2 : index
    %c3_756 = arith.constant 3 : index
    %c0_757 = arith.constant 0 : index
    %c0_758 = arith.constant 0 : index
    %533 = vector.load %arg5[%c2_755, %c3_756, %c0_757, %c0_758] : memref<4x4x128x256xf32, #tpu.memory_space<vmem>>, vector<1x1x128x256xf32>
    %534 = vector.shape_cast %533 : vector<1x1x128x256xf32> to vector<128x256xf32>
    %cst_759 = arith.constant dense<0.000000e+00> : vector<2x256xf32>
    %535 = tpu.matmul %532, %534, %cst_759 {dimension_numbers = #tpu.dot_dimension_numbers<[1], [0], [0], [1], [0, 0, 1, 1], [], []>} : vector<2x128xf32>, vector<128x256xf32>, vector<2x256xf32> -> vector<2x256xf32>
    %536 = arith.addf %530, %535 : vector<2x256xf32>
    %c0_760 = arith.constant 0 : index
    %c3_761 = arith.constant 3 : index
    %c0_762 = arith.constant 0 : index
    %c0_763 = arith.constant 0 : index
    %537 = vector.load %arg13[%c0_760, %c3_761, %c0_762, %c0_763] : memref<2x4x4x128xf32, #tpu.memory_space<vmem>>, vector<2x1x1x128xf32>
    %538 = vector.shape_cast %537 : vector<2x1x1x128xf32> to vector<2x128xf32>
    %c3_764 = arith.constant 3 : index
    %c0_765 = arith.constant 0 : index
    %c0_766 = arith.constant 0 : index
    %c0_767 = arith.constant 0 : index
    %539 = vector.load %arg5[%c3_764, %c0_765, %c0_766, %c0_767] : memref<4x4x128x256xf32, #tpu.memory_space<vmem>>, vector<1x1x128x256xf32>
    %540 = vector.shape_cast %539 : vector<1x1x128x256xf32> to vector<128x256xf32>
    %cst_768 = arith.constant dense<0.000000e+00> : vector<2x256xf32>
    %541 = tpu.matmul %538, %540, %cst_768 {dimension_numbers = #tpu.dot_dimension_numbers<[1], [0], [0], [1], [0, 0, 1, 1], [], []>} : vector<2x128xf32>, vector<128x256xf32>, vector<2x256xf32> -> vector<2x256xf32>
    %542 = arith.addf %536, %541 : vector<2x256xf32>
    %c0_769 = arith.constant 0 : index
    %c3_770 = arith.constant 3 : index
    %c1_771 = arith.constant 1 : index
    %c0_772 = arith.constant 0 : index
    %543 = vector.load %arg13[%c0_769, %c3_770, %c1_771, %c0_772] : memref<2x4x4x128xf32, #tpu.memory_space<vmem>>, vector<2x1x1x128xf32>
    %544 = vector.shape_cast %543 : vector<2x1x1x128xf32> to vector<2x128xf32>
    %c3_773 = arith.constant 3 : index
    %c1_774 = arith.constant 1 : index
    %c0_775 = arith.constant 0 : index
    %c0_776 = arith.constant 0 : index
    %545 = vector.load %arg5[%c3_773, %c1_774, %c0_775, %c0_776] : memref<4x4x128x256xf32, #tpu.memory_space<vmem>>, vector<1x1x128x256xf32>
    %546 = vector.shape_cast %545 : vector<1x1x128x256xf32> to vector<128x256xf32>
    %cst_777 = arith.constant dense<0.000000e+00> : vector<2x256xf32>
    %547 = tpu.matmul %544, %546, %cst_777 {dimension_numbers = #tpu.dot_dimension_numbers<[1], [0], [0], [1], [0, 0, 1, 1], [], []>} : vector<2x128xf32>, vector<128x256xf32>, vector<2x256xf32> -> vector<2x256xf32>
    %548 = arith.addf %542, %547 : vector<2x256xf32>
    %c0_778 = arith.constant 0 : index
    %c3_779 = arith.constant 3 : index
    %c2_780 = arith.constant 2 : index
    %c0_781 = arith.constant 0 : index
    %549 = vector.load %arg13[%c0_778, %c3_779, %c2_780, %c0_781] : memref<2x4x4x128xf32, #tpu.memory_space<vmem>>, vector<2x1x1x128xf32>
    %550 = vector.shape_cast %549 : vector<2x1x1x128xf32> to vector<2x128xf32>
    %c3_782 = arith.constant 3 : index
    %c2_783 = arith.constant 2 : index
    %c0_784 = arith.constant 0 : index
    %c0_785 = arith.constant 0 : index
    %551 = vector.load %arg5[%c3_782, %c2_783, %c0_784, %c0_785] : memref<4x4x128x256xf32, #tpu.memory_space<vmem>>, vector<1x1x128x256xf32>
    %552 = vector.shape_cast %551 : vector<1x1x128x256xf32> to vector<128x256xf32>
    %cst_786 = arith.constant dense<0.000000e+00> : vector<2x256xf32>
    %553 = tpu.matmul %550, %552, %cst_786 {dimension_numbers = #tpu.dot_dimension_numbers<[1], [0], [0], [1], [0, 0, 1, 1], [], []>} : vector<2x128xf32>, vector<128x256xf32>, vector<2x256xf32> -> vector<2x256xf32>
    %554 = arith.addf %548, %553 : vector<2x256xf32>
    %c0_787 = arith.constant 0 : index
    %c3_788 = arith.constant 3 : index
    %c3_789 = arith.constant 3 : index
    %c0_790 = arith.constant 0 : index
    %555 = vector.load %arg13[%c0_787, %c3_788, %c3_789, %c0_790] : memref<2x4x4x128xf32, #tpu.memory_space<vmem>>, vector<2x1x1x128xf32>
    %556 = vector.shape_cast %555 : vector<2x1x1x128xf32> to vector<2x128xf32>
    %c3_791 = arith.constant 3 : index
    %c3_792 = arith.constant 3 : index
    %c0_793 = arith.constant 0 : index
    %c0_794 = arith.constant 0 : index
    %557 = vector.load %arg5[%c3_791, %c3_792, %c0_793, %c0_794] : memref<4x4x128x256xf32, #tpu.memory_space<vmem>>, vector<1x1x128x256xf32>
    %558 = vector.shape_cast %557 : vector<1x1x128x256xf32> to vector<128x256xf32>
    %cst_795 = arith.constant dense<0.000000e+00> : vector<2x256xf32>
    %559 = tpu.matmul %556, %558, %cst_795 {dimension_numbers = #tpu.dot_dimension_numbers<[1], [0], [0], [1], [0, 0, 1, 1], [], []>} : vector<2x128xf32>, vector<128x256xf32>, vector<2x256xf32> -> vector<2x256xf32>
    %560 = arith.addf %554, %559 : vector<2x256xf32>
    %c0_796 = arith.constant 0 : index
    %c0_797 = arith.constant 0 : index
    %561 = vector.load %arg6[%c0_796, %c0_797] : memref<1x256xf32, #tpu.memory_space<vmem>>, vector<1x256xf32>
    %562 = vector.broadcast %561 : vector<1x256xf32> to vector<2x256xf32>
    %563 = arith.addf %560, %562 : vector<2x256xf32>
    %cst_798 = arith.constant 0.000000e+00 : f32
    %564 = vector.broadcast %cst_798 : f32 to vector<2x256xf32>
    %565 = arith.maximumf %563, %564 : vector<2x256xf32>
    %c0_799 = arith.constant 0 : index
    %c0_800 = arith.constant 0 : index
    %566 = vector.load %arg14[%c0_799, %c0_800] : memref<2x256xf32, #tpu.memory_space<vmem>>, vector<2x256xf32>
    tpu.vector_store %arg14[%c0_799, %c0_800], %565 {strides = array<i32>} : memref<2x256xf32, #tpu.memory_space<vmem>>, vector<2x256xf32>,
    %c0_801 = arith.constant 0 : index
    %c0_802 = arith.constant 0 : index
    %567 = vector.load %arg14[%c0_801, %c0_802] : memref<2x256xf32, #tpu.memory_space<vmem>>, vector<2x256xf32>
    %c0_803 = arith.constant 0 : index
    %c0_804 = arith.constant 0 : index
    %568 = vector.load %arg7[%c0_803, %c0_804] : memref<256x128xf32, #tpu.memory_space<vmem>>, vector<256x128xf32>
    %cst_805 = arith.constant dense<0.000000e+00> : vector<2x128xf32>
    %569 = tpu.matmul %567, %568, %cst_805 {dimension_numbers = #tpu.dot_dimension_numbers<[1], [0], [0], [1], [0, 0, 1, 1], [], []>} : vector<2x256xf32>, vector<256x128xf32>, vector<2x128xf32> -> vector<2x128xf32>
    %c0_806 = arith.constant 0 : index
    %c0_807 = arith.constant 0 : index
    %570 = vector.load %arg8[%c0_806, %c0_807] : memref<1x128xf32, #tpu.memory_space<vmem>>, vector<1x128xf32>
    %571 = vector.broadcast %570 : vector<1x128xf32> to vector<2x128xf32>
    %572 = arith.addf %569, %571 : vector<2x128xf32>
    %c0_808 = arith.constant 0 : index
    %c0_809 = arith.constant 0 : index
    %573 = vector.load %arg9[%c0_808, %c0_809] : memref<128x32xf32, #tpu.memory_space<vmem>>, vector<128x32xf32>
    %cst_810 = arith.constant dense<0.000000e+00> : vector<2x32xf32>
    %574 = tpu.matmul %572, %573, %cst_810 {dimension_numbers = #tpu.dot_dimension_numbers<[1], [0], [0], [1], [0, 0, 1, 1], [], []>} : vector<2x128xf32>, vector<128x32xf32>, vector<2x32xf32> -> vector<2x32xf32>
    %c0_811 = arith.constant 0 : index
    %c0_812 = arith.constant 0 : index
    %575 = vector.load %arg10[%c0_811, %c0_812] : memref<1x32xf32, #tpu.memory_space<vmem>>, vector<1x32xf32>
    %576 = vector.broadcast %575 : vector<1x32xf32> to vector<2x32xf32>
    %577 = arith.addf %574, %576 : vector<2x32xf32>
    %c0_813 = arith.constant 0 : index
    %c0_814 = arith.constant 0 : index
    %578 = vector.load %arg11[%c0_813, %c0_814] : memref<2x32xf32, #tpu.memory_space<vmem>>, vector<2x32xf32>
    tpu.vector_store %arg11[%c0_813, %c0_814], %577 {strides = array<i32>} : memref<2x32xf32, #tpu.memory_space<vmem>>, vector<2x32xf32>,
    return
  }
}

</mosaic_0001>

<llo_original>
// kernel: encoder_forward.2
$region0: #{encoder_forward.2}
  #allocation0 [shape = 'u32[]', space=smem, size = 0x4, offset = 0x4, fixed_abs, tag = 'smem constant byte address 0x4 - core index']
  #allocation1 [shape = 'u32[144,128]{1,0:T(1,128)}', space=vmem, size = 0x12000, scoped, tag = 'internal scratch']
  %s0 = inlined_call_operand.vmem [shape: f32[128,48], index: 0, kind: input, shape index: {}]
  %s1 = inlined_call_operand.vmem [shape: f32[48,32], index: 1, kind: input, shape index: {}]
  %s2 = inlined_call_operand.vmem [shape: f32[1,32], index: 2, kind: input, shape index: {}]
  %s3 = inlined_call_operand.vmem [shape: f32[2,10,10,32], index: 3, kind: output, shape index: {}]
  %s4 = sld [smem:[#allocation0]]
  $region22: #{encoder_forward.2} parent=0
    _
  %s6 = ssub.s32 1, %s4
  %s7 = scalar_select 0, %s6, %s4
  // Predicated region
  $region2: #{encoder_forward.2} parent=0 // pred_check
    _
  $region3: #{encoder_forward.2} parent=0 // pred_check_branch
    %9 = sbr.rel (0) target = $region5
  $region4: #{encoder_forward.2} parent=0 // pred_region
    _
  $region5: #{encoder_forward.2} parent=0 // pred_fallthru
    _
  // Predicated region
  $region6: #{encoder_forward.2} parent=0 // pred_check
    _
  $region7: #{encoder_forward.2} parent=0 // pred_check_branch
    %11 = sbr.rel (0) target = $region9
  $region8: #{encoder_forward.2} parent=0 // pred_region
    _
  $region9: #{encoder_forward.2} parent=0 // pred_fallthru
    _
  // Predicated region
  $region10: #{encoder_forward.2} parent=0 // pred_check
    _
  $region11: #{encoder_forward.2} parent=0 // pred_check_branch
    %13 = sbr.rel (0) target = $region13
  $region12: #{encoder_forward.2} parent=0 // pred_region
    _
  $region13: #{encoder_forward.2} parent=0 // pred_fallthru
    _
  %v14 = vld [vmem:[%s0] sm:$0xff]
  %v15 = vld [vmem:[%s0 + $0x8] sm:$0xff]
  %v16 = vld [vmem:[%s0 + $0x10] sm:$0xff]
  %v17 = vld [vmem:[%s0 + $0x18] sm:$0xff]
  %v18 = vld [vmem:[%s0 + $0x20] sm:$0xff]
  %v19 = vld [vmem:[%s0 + $0x28] sm:$0xff]
  %v20 = vld [vmem:[%s0 + $0x30] sm:$0xff]
  %v21 = vld [vmem:[%s0 + $0x38] sm:$0xff]
  %v22 = vld [vmem:[%s0 + $0x40] sm:$0xff]
  %v23 = vld [vmem:[%s0 + $0x48] sm:$0xff]
  %v24 = vld [vmem:[%s0 + $0x50] sm:$0xff]
  %v25 = vld [vmem:[%s0 + $0x58] sm:$0xff]
  %v26 = vld [vmem:[%s0 + $0x60] sm:$0xff]
  %v27 = vld [vmem:[%s0 + $0x68] sm:$0xff]
  %v28 = vld [vmem:[%s0 + $0x70] sm:$0xff]
  %v29 = vld [vmem:[%s0 + $0x78] sm:$0xff]
  %v30 = vld [vmem:[%s1] sm:$0xff]
  %v31 = vld [vmem:[%s1 + $0x8] sm:$0xff]
  %v32 = vld [vmem:[%s1 + $0x10] sm:$0xff]
  %v33 = vld [vmem:[%s1 + $0x18] sm:$0xff]
  %v34 = vld [vmem:[%s1 + $0x20] sm:$0xff]
  %v35 = vld [vmem:[%s1 + $0x28] sm:$0xff]
  %v36 = vld [vmem:[%s2] sm:$0x1]
  %v38 = vlaneseq
  %v39 = vshrl.u32 %v38, 7
  %v40 = vsub.s32 0, %v39
  %v41 = vrot.slane %v36, %v40
  %vm43 = vcmask 392192
  %v45 = vsel %vm43, %v14, 0
  %v48 = vsel %vm43, %v15, 0
  %v51 = vsel %vm43, %v16, 0
  %v54 = vsel %vm43, %v17, 0
  %v57 = vsel %vm43, %v18, 0
  %v60 = vsel %vm43, %v19, 0
  %v63 = vsel %vm43, %v20, 0
  %v66 = vsel %vm43, %v21, 0
  %v69 = vsel %vm43, %v22, 0
  %v72 = vsel %vm43, %v23, 0
  %v75 = vsel %vm43, %v24, 0
  %v78 = vsel %vm43, %v25, 0
  %v81 = vsel %vm43, %v26, 0
  %v84 = vsel %vm43, %v27, 0
  %v87 = vsel %vm43, %v28, 0
  %v90 = vsel %vm43, %v29, 0
  %92 = vmatprep.subr.mxu0 0.0
  %93 = vmatpush1.msra.mxu0 %v30
  %94 = vmatprep.subr.mxu0 0.0
  %95 = vmatpush1.msra.mxu0 %v31
  %96 = vmatprep.subr.mxu0 0.0
  %97 = vmatpush1.msra.mxu0 %v32
  %98 = vmatprep.subr.mxu0 0.0
  %99 = vmatpush1.msra.mxu0 %v33
  %100 = vmatprep.subr.mxu0 0.0
  %101 = vmatpush1.msra.mxu0 %v34
  %102 = vmatprep.subr.mxu0 0.0
  %103 = vmatpush1.msra.mxu0 %v35
  %104 = vmatprep.subr.mxu0 0.0
  %105 = vmatpush1.msra.mxu0 0.0
  %106 = vmatprep.subr.mxu0 0.0
  %107 = vmatpush1.msra.mxu0 0.0
  %108 = vmatprep.subr.mxu0 0.0
  %109 = vmatpush1.msra.mxu0 0.0
  %110 = vmatprep.subr.mxu0 0.0
  %111 = vmatpush1.msra.mxu0 0.0
  %112 = vmatprep.subr.mxu0 0.0
  %113 = vmatpush1.msra.mxu0 0.0
  %114 = vmatprep.subr.mxu0 0.0
  %115 = vmatpush1.msra.mxu0 0.0
  %116 = vmatprep.subr.mxu0 0.0
  %117 = vmatpush1.msra.mxu0 0.0
  %118 = vmatprep.subr.mxu0 0.0
  %119 = vmatpush1.msra.mxu0 0.0
  %120 = vmatprep.subr.mxu0 0.0
  %121 = vmatpush1.msra.mxu0 0.0
  %122 = vmatprep.subr.mxu0 0.0
  %123 = vmatpush1.msra.mxu0 0.0
  %124 = vmatprep.subr.mxu0 0.0
  %125 = vmatpush1.msra.mxu0 0.0
  %126 = vmatprep.subr.mxu0 0.0
  %127 = vmatpush1.msra.mxu0 0.0
  %128 = vmatprep.subr.mxu0 0.0
  %129 = vmatpush1.msra.mxu0 0.0
  %130 = vmatprep.subr.mxu0 0.0
  %131 = vmatpush1.msra.mxu0 0.0
  %132 = vmatprep.subr.mxu0 0.0
  %133 = vmatpush1.msra.mxu0 0.0
  %134 = vmatprep.subr.mxu0 0.0
  %135 = vmatpush1.msra.mxu0 0.0
  %136 = vmatprep.subr.mxu0 0.0
  %137 = vmatpush1.msra.mxu0 0.0
  %138 = vmatprep.subr.mxu0 0.0
  %139 = vmatpush1.msra.mxu0 0.0
  %140 = vmatprep.subr.mxu0 0.0
  %141 = vmatpush1.msra.mxu0 0.0
  %142 = vmatprep.subr.mxu0 0.0
  %143 = vmatpush1.msra.mxu0 0.0
  %144 = vmatprep.subr.mxu0 0.0
  %145 = vmatpush1.msra.mxu0 0.0
  %146 = vmatprep.subr.mxu0 0.0
  %147 = vmatpush1.msra.mxu0 0.0
  %148 = vmatprep.subr.mxu0 0.0
  %149 = vmatpush1.msra.mxu0 0.0
  %150 = vmatprep.subr.mxu0 0.0
  %151 = vmatpush1.msra.mxu0 0.0
  %152 = vmatprep.subr.mxu0 0.0
  %153 = vmatpush1.msra.mxu0 0.0
  %154 = vmatprep.subr.mxu0 0.0
  %155 = vmatpush1.msra.mxu0 0.0
  %156 = vmatprep.mubr.f32.mxu0 0.0
  %157 = vmatmul.mubr.f32.gmra.mrb[0].mxu0 %v45
  %v158 = vpop.f32.mrb[0].mxu0
  %v159 = vadd.f32 %v41, %v158
  %v160 = vpop.f32.mrb[0].mxu0
  %161 = vmatprep.mubr.f32.mxu0 0.0
  %162 = vmatmul.mubr.f32.gmra.mrb[0].mxu0 %v48
  %v163 = vpop.f32.mrb[0].mxu0
  %v164 = vadd.f32 %v41, %v163
  %v165 = vpop.f32.mrb[0].mxu0
  %166 = vmatprep.mubr.f32.mxu0 0.0
  %167 = vmatmul.mubr.f32.gmra.mrb[0].mxu0 %v51
  %v168 = vpop.f32.mrb[0].mxu0
  %v169 = vadd.f32 %v41, %v168
  %v170 = vpop.f32.mrb[0].mxu0
  %171 = vmatprep.mubr.f32.mxu0 0.0
  %172 = vmatmul.mubr.f32.gmra.mrb[0].mxu0 %v54
  %v173 = vpop.f32.mrb[0].mxu0
  %v174 = vadd.f32 %v41, %v173
  %v175 = vpop.f32.mrb[0].mxu0
  %176 = vmatprep.mubr.f32.mxu0 0.0
  %177 = vmatmul.mubr.f32.gmra.mrb[0].mxu0 %v57
  %v178 = vpop.f32.mrb[0].mxu0
  %v179 = vadd.f32 %v41, %v178
  %v180 = vpop.f32.mrb[0].mxu0
  %181 = vmatprep.mubr.f32.mxu0 0.0
  %182 = vmatmul.mubr.f32.gmra.mrb[0].mxu0 %v60
  %v183 = vpop.f32.mrb[0].mxu0
  %v184 = vadd.f32 %v41, %v183
  %v185 = vpop.f32.mrb[0].mxu0
  %186 = vmatprep.mubr.f32.mxu0 0.0
  %187 = vmatmul.mubr.f32.gmra.mrb[0].mxu0 %v63
  %v188 = vpop.f32.mrb[0].mxu0
  %v189 = vadd.f32 %v41, %v188
  %v190 = vpop.f32.mrb[0].mxu0
  %191 = vmatprep.mubr.f32.mxu0 0.0
  %192 = vmatmul.mubr.f32.gmra.mrb[0].mxu0 %v66
  %v193 = vpop.f32.mrb[0].mxu0
  %v194 = vadd.f32 %v41, %v193
  %v195 = vpop.f32.mrb[0].mxu0
  %196 = vmatprep.mubr.f32.mxu0 0.0
  %197 = vmatmul.mubr.f32.gmra.mrb[0].mxu0 %v69
  %v198 = vpop.f32.mrb[0].mxu0
  %v199 = vadd.f32 %v41, %v198
  %v200 = vpop.f32.mrb[0].mxu0
  %201 = vmatprep.mubr.f32.mxu0 0.0
  %202 = vmatmul.mubr.f32.gmra.mrb[0].mxu0 %v72
  %v203 = vpop.f32.mrb[0].mxu0
  %v204 = vadd.f32 %v41, %v203
  %v205 = vpop.f32.mrb[0].mxu0
  %206 = vmatprep.mubr.f32.mxu0 0.0
  %207 = vmatmul.mubr.f32.gmra.mrb[0].mxu0 %v75
  %v208 = vpop.f32.mrb[0].mxu0
  %v209 = vadd.f32 %v41, %v208
  %v210 = vpop.f32.mrb[0].mxu0
  %211 = vmatprep.mubr.f32.mxu0 0.0
  %212 = vmatmul.mubr.f32.gmra.mrb[0].mxu0 %v78
  %v213 = vpop.f32.mrb[0].mxu0
  %v214 = vadd.f32 %v41, %v213
  %v215 = vpop.f32.mrb[0].mxu0
  %216 = vmatprep.mubr.f32.mxu0 0.0
  %217 = vmatmul.mubr.f32.gmra.mrb[0].mxu0 %v81
  %v218 = vpop.f32.mrb[0].mxu0
  %v219 = vadd.f32 %v41, %v218
  %v220 = vpop.f32.mrb[0].mxu0
  %221 = vmatprep.mubr.f32.mxu0 0.0
  %222 = vmatmul.mubr.f32.gmra.mrb[0].mxu0 %v84
  %v223 = vpop.f32.mrb[0].mxu0
  %v224 = vadd.f32 %v41, %v223
  %v225 = vpop.f32.mrb[0].mxu0
  %226 = vmatprep.mubr.f32.mxu0 0.0
  %227 = vmatmul.mubr.f32.gmra.mrb[0].mxu0 %v87
  %v228 = vpop.f32.mrb[0].mxu0
  %v229 = vadd.f32 %v41, %v228
  %v230 = vpop.f32.mrb[0].mxu0
  %231 = vmatprep.mubr.f32.mxu0 0.0
  %232 = vmatmul.mubr.f32.gmra.mrb[0].mxu0 %v90
  %v233 = vpop.f32.mrb[0].mxu0
  %v234 = vadd.f32 %v41, %v233
  %v235 = vpop.f32.mrb[0].mxu0
  %236 = vdwg.mxu0
  %v237 = vmax.f32 %v159, 0.0
  %v238 = vmax.f32 %v164, 0.0
  %v239 = vmax.f32 %v169, 0.0
  %v240 = vmax.f32 %v174, 0.0
  %v241 = vmax.f32 %v179, 0.0
  %v242 = vmax.f32 %v184, 0.0
  %v243 = vmax.f32 %v189, 0.0
  %v244 = vmax.f32 %v194, 0.0
  %v245 = vmax.f32 %v199, 0.0
  %v246 = vmax.f32 %v204, 0.0
  %v247 = vmax.f32 %v209, 0.0
  %v248 = vmax.f32 %v214, 0.0
  %v249 = vmax.f32 %v219, 0.0
  %v250 = vmax.f32 %v224, 0.0
  %v251 = vmax.f32 %v229, 0.0
  %v252 = vmax.f32 %v234, 0.0
  %vm253 = vcmask 261120
  %254 = vst.msk [vmem:[%s3] sm:$0xff] %vm253, 0.0
  %vm255 = vcmask 254976
  %256 = vst.msk [vmem:[%s3 + $0x8] sm:$0x3] %vm255, 0.0
  %257 = vst.msk [vmem:[%s3 + $0x10] sm:$0xff] %vm253, 0.0
  %258 = vst.msk [vmem:[%s3 + $0x18] sm:$0x3] %vm255, 0.0
  %259 = vst.msk [vmem:[%s3 + $0x20] sm:$0xff] %vm253, 0.0
  %260 = vst.msk [vmem:[%s3 + $0x28] sm:$0x3] %vm255, 0.0
  %261 = vst.msk [vmem:[%s3 + $0x30] sm:$0xff] %vm253, 0.0
  %262 = vst.msk [vmem:[%s3 + $0x38] sm:$0x3] %vm255, 0.0
  %263 = vst.msk [vmem:[%s3 + $0x40] sm:$0xff] %vm253, 0.0
  %264 = vst.msk [vmem:[%s3 + $0x48] sm:$0x3] %vm255, 0.0
  %265 = vst.msk [vmem:[%s3 + $0x50] sm:$0xff] %vm253, 0.0
  %266 = vst.msk [vmem:[%s3 + $0x58] sm:$0x3] %vm255, 0.0
  %267 = vst.msk [vmem:[%s3 + $0x60] sm:$0xff] %vm253, 0.0
  %268 = vst.msk [vmem:[%s3 + $0x68] sm:$0x3] %vm255, 0.0
  %269 = vst.msk [vmem:[%s3 + $0x70] sm:$0xff] %vm253, 0.0
  %270 = vst.msk [vmem:[%s3 + $0x78] sm:$0x3] %vm255, 0.0
  %271 = vst.msk [vmem:[%s3 + $0x80] sm:$0xff] %vm253, 0.0
  %272 = vst.msk [vmem:[%s3 + $0x88] sm:$0x3] %vm255, 0.0
  %273 = vst.msk [vmem:[%s3 + $0x90] sm:$0xff] %vm253, 0.0
  %274 = vst.msk [vmem:[%s3 + $0x98] sm:$0x3] %vm255, 0.0
  %275 = vst.msk [vmem:[%s3 + $0xa0] sm:$0xff] %vm253, 0.0
  %276 = vst.msk [vmem:[%s3 + $0xa8] sm:$0x3] %vm255, 0.0
  %277 = vst.msk [vmem:[%s3 + $0xb0] sm:$0xff] %vm253, 0.0
  %278 = vst.msk [vmem:[%s3 + $0xb8] sm:$0x3] %vm255, 0.0
  %279 = vst.msk [vmem:[%s3 + $0xc0] sm:$0xff] %vm253, 0.0
  %280 = vst.msk [vmem:[%s3 + $0xc8] sm:$0x3] %vm255, 0.0
  %281 = vst.msk [vmem:[%s3 + $0xd0] sm:$0xff] %vm253, 0.0
  %282 = vst.msk [vmem:[%s3 + $0xd8] sm:$0x3] %vm255, 0.0
  %283 = vst.msk [vmem:[%s3 + $0xe0] sm:$0xff] %vm253, 0.0
  %284 = vst.msk [vmem:[%s3 + $0xe8] sm:$0x3] %vm255, 0.0
  %285 = vst.msk [vmem:[%s3 + $0xf0] sm:$0xff] %vm253, 0.0
  %286 = vst.msk [vmem:[%s3 + $0xf8] sm:$0x3] %vm255, 0.0
  %287 = vst.msk [vmem:[%s3 + $0x100] sm:$0xff] %vm253, 0.0
  %288 = vst.msk [vmem:[%s3 + $0x108] sm:$0x3] %vm255, 0.0
  %289 = vst.msk [vmem:[%s3 + $0x110] sm:$0xff] %vm253, 0.0
  %290 = vst.msk [vmem:[%s3 + $0x118] sm:$0x3] %vm255, 0.0
  %291 = vst.msk [vmem:[%s3 + $0x120] sm:$0xff] %vm253, 0.0
  %292 = vst.msk [vmem:[%s3 + $0x128] sm:$0x3] %vm255, 0.0
  %293 = vst.msk [vmem:[%s3 + $0x130] sm:$0xff] %vm253, 0.0
  %294 = vst.msk [vmem:[%s3 + $0x138] sm:$0x3] %vm255, 0.0
  %s295 = scalar_lea.vmem %s3, 16
  %296 = vst.msk [vmem:[%s295 + $0x1] sm:$0xff] %vm253, %v237
  %s297 = scalar_lea.vmem %s3, 32
  %298 = vst.msk [vmem:[%s297 + $0x1] sm:$0xff] %vm253, %v238
  %s299 = scalar_lea.vmem %s3, 48
  %300 = vst.msk [vmem:[%s299 + $0x1] sm:$0xff] %vm253, %v239
  %s301 = scalar_lea.vmem %s3, 64
  %302 = vst.msk [vmem:[%s301 + $0x1] sm:$0xff] %vm253, %v240
  %s303 = scalar_lea.vmem %s3, 80
  %304 = vst.msk [vmem:[%s303 + $0x1] sm:$0xff] %vm253, %v241
  %s305 = scalar_lea.vmem %s3, 96
  %306 = vst.msk [vmem:[%s305 + $0x1] sm:$0xff] %vm253, %v242
  %s307 = scalar_lea.vmem %s3, 112
  %308 = vst.msk [vmem:[%s307 + $0x1] sm:$0xff] %vm253, %v243
  %s309 = scalar_lea.vmem %s3, 128
  %310 = vst.msk [vmem:[%s309 + $0x1] sm:$0xff] %vm253, %v244
  %s311 = scalar_lea.vmem %s3, 176
  %312 = vst.msk [vmem:[%s311 + $0x1] sm:$0xff] %vm253, %v245
  %s313 = scalar_lea.vmem %s3, 192
  %314 = vst.msk [vmem:[%s313 + $0x1] sm:$0xff] %vm253, %v246
  %s315 = scalar_lea.vmem %s3, 208
  %316 = vst.msk [vmem:[%s315 + $0x1] sm:$0xff] %vm253, %v247
  %s317 = scalar_lea.vmem %s3, 224
  %318 = vst.msk [vmem:[%s317 + $0x1] sm:$0xff] %vm253, %v248
  %s319 = scalar_lea.vmem %s3, 240
  %320 = vst.msk [vmem:[%s319 + $0x1] sm:$0xff] %vm253, %v249
  %s321 = scalar_lea.vmem %s3, 256
  %322 = vst.msk [vmem:[%s321 + $0x1] sm:$0xff] %vm253, %v250
  %s323 = scalar_lea.vmem %s3, 272
  %324 = vst.msk [vmem:[%s323 + $0x1] sm:$0xff] %vm253, %v251
  %s325 = scalar_lea.vmem %s3, 288
  %326 = vst.msk [vmem:[%s325 + $0x1] sm:$0xff] %vm253, %v252
  // Predicated region
  $region14: #{encoder_forward.2} parent=0 // pred_check
    _
  $region15: #{encoder_forward.2} parent=0 // pred_check_branch
    %328 = sbr.rel (0) target = $region17
  $region16: #{encoder_forward.2} parent=0 // pred_region
    _
  $region17: #{encoder_forward.2} parent=0 // pred_fallthru
    _
  // Predicated region
  $region18: #{encoder_forward.2} parent=0 // pred_check
    _
  $region19: #{encoder_forward.2} parent=0 // pred_check_branch
    %330 = sbr.rel (0) target = $region21
  $region20: #{encoder_forward.2} parent=0 // pred_region
    _
  $region21: #{encoder_forward.2} parent=0 // pred_fallthru
    _

// kernel: encoder_forward.3
$region0: #{encoder_forward.3}
  #allocation0 [shape = 'u32[]', space=smem, size = 0x4, offset = 0x4, fixed_abs, tag = 'smem constant byte address 0x4 - core index']
  #allocation1 [shape = 'u32[144,128]{1,0:T(1,128)}', space=vmem, size = 0x12000, scoped, tag = 'internal scratch']
  #allocation2 [shape = 'f32[2,6,6,64]{3,2,1,0:T(8,128)}', space=vmem, size = 0xc000, scoped, tag = 'scratch operand']
  #allocation3 [shape = 'f32[2,4,4,128]{3,2,1,0:T(4,128)}', space=vmem, size = 0x4000, scoped, tag = 'scratch operand']
  #allocation4 [shape = 'f32[2,256]{1,0:T(2,128)}', space=vmem, size = 0x800, scoped, tag = 'scratch operand']
  %s0 = inlined_call_operand.vmem [shape: f32[32,512], index: 0, kind: input, shape index: {}]
  %s1 = inlined_call_operand.vmem [shape: f32[512,64], index: 1, kind: input, shape index: {}]
  %s2 = inlined_call_operand.vmem [shape: f32[1,64], index: 2, kind: input, shape index: {}]
  %s3 = inlined_call_operand.vmem [shape: f32[4,4,64,128], index: 3, kind: input, shape index: {}]
  %s4 = inlined_call_operand.vmem [shape: f32[1,128], index: 4, kind: input, shape index: {}]
  %s5 = inlined_call_operand.vmem [shape: f32[4,4,128,256], index: 5, kind: input, shape index: {}]
  %s6 = inlined_call_operand.vmem [shape: f32[1,256], index: 6, kind: input, shape index: {}]
  %s7 = inlined_call_operand.vmem [shape: f32[256,128], index: 7, kind: input, shape index: {}]
  %s8 = inlined_call_operand.vmem [shape: f32[1,128], index: 8, kind: input, shape index: {}]
  %s9 = inlined_call_operand.vmem [shape: f32[128,32], index: 9, kind: input, shape index: {}]
  %s10 = inlined_call_operand.vmem [shape: f32[1,32], index: 10, kind: input, shape index: {}]
  %s11 = inlined_call_operand.hbm [shape: f32[2,32], index: 11, kind: output, shape index: {}]
  %s12 = sld [smem:[#allocation0]]
  $region54: #{encoder_forward.3} parent=0
    _
  %s14 = ssub.s32 1, %s12
  %s15 = scalar_select 0, %s14, %s12
  $region1: #{encoder_forward.3} parent=0
    #allocation5 [shape = 'u8[1024]{0}', space=vmem, size = 0x400, scoped, tag = 'output window, operand 0, single buffered']
    #allocation6 [shape = 's32[1]{0}', space=sflag, size = 0x4, scoped, tag = 'scoped memory for encoder_forward.3']
    %16 = vsyncpa [#allocation6], 0
    // Predicated region
    $region2: #{encoder_forward.3} parent=1 // pred_check
      _
    $region3: #{encoder_forward.3} parent=1 // pred_check_branch
      %18 = sbr.rel (0) target = $region5
    $region4: #{encoder_forward.3} parent=1 // pred_region
      _
    $region5: #{encoder_forward.3} parent=1 // pred_fallthru
      _
    // Predicated region
    $region6: #{encoder_forward.3} parent=1 // pred_check
      _
    $region7: #{encoder_forward.3} parent=1 // pred_check_branch
      %20 = sbr.rel (0) target = $region9
    $region8: #{encoder_forward.3} parent=1 // pred_region
      _
    $region9: #{encoder_forward.3} parent=1 // pred_fallthru
      _
    // Predicated region
    $region10: #{encoder_forward.3} parent=1 // pred_check
      _
    $region11: #{encoder_forward.3} parent=1 // pred_check_branch
      %22 = sbr.rel (0) target = $region13
    $region12: #{encoder_forward.3} parent=1 // pred_region
      _
    $region13: #{encoder_forward.3} parent=1 // pred_fallthru
      _
    // Predicated region
    $region14: #{encoder_forward.3} parent=1 // pred_check
      _
    $region15: #{encoder_forward.3} parent=1 // pred_check_branch
      %24 = sbr.rel (0) target = $region17
    $region16: #{encoder_forward.3} parent=1 // pred_region
      _
    $region17: #{encoder_forward.3} parent=1 // pred_fallthru
      _
    // Predicated region
    $region18: #{encoder_forward.3} parent=1 // pred_check
      _
    $region19: #{encoder_forward.3} parent=1 // pred_check_branch
      %26 = sbr.rel (0) target = $region21
    $region20: #{encoder_forward.3} parent=1 // pred_region
      _
    $region21: #{encoder_forward.3} parent=1 // pred_fallthru
      _
    // Predicated region
    $region22: #{encoder_forward.3} parent=1 // pred_check
      _
    $region23: #{encoder_forward.3} parent=1 // pred_check_branch
      %28 = sbr.rel (0) target = $region25
    $region24: #{encoder_forward.3} parent=1 // pred_region
      _
    $region25: #{encoder_forward.3} parent=1 // pred_fallthru
      _
    // Predicated region
    $region26: #{encoder_forward.3} parent=1 // pred_check
      _
    $region27: #{encoder_forward.3} parent=1 // pred_check_branch
      %30 = sbr.rel (0) target = $region29
    $region28: #{encoder_forward.3} parent=1 // pred_region
      _
    $region29: #{encoder_forward.3} parent=1 // pred_fallthru
      _
    // Predicated region
    $region30: #{encoder_forward.3} parent=1 // pred_check
      _
    $region31: #{encoder_forward.3} parent=1 // pred_check_branch
      %32 = sbr.rel (0) target = $region33
    $region32: #{encoder_forward.3} parent=1 // pred_region
      _
    $region33: #{encoder_forward.3} parent=1 // pred_fallthru
      _
    // Predicated region
    $region34: #{encoder_forward.3} parent=1 // pred_check
      _
    $region35: #{encoder_forward.3} parent=1 // pred_check_branch
      %34 = sbr.rel (0) target = $region37
    $region36: #{encoder_forward.3} parent=1 // pred_region
      _
    $region37: #{encoder_forward.3} parent=1 // pred_fallthru
      _
    // Predicated region
    $region38: #{encoder_forward.3} parent=1 // pred_check
      _
    $region39: #{encoder_forward.3} parent=1 // pred_check_branch
      %36 = sbr.rel (0) target = $region41
    $region40: #{encoder_forward.3} parent=1 // pred_region
      _
    $region41: #{encoder_forward.3} parent=1 // pred_fallthru
      _
    // Predicated region
    $region42: #{encoder_forward.3} parent=1 // pred_check
      _
    $region43: #{encoder_forward.3} parent=1 // pred_check_branch
      %38 = sbr.rel (0) target = $region45
    $region44: #{encoder_forward.3} parent=1 // pred_region
      _
    $region45: #{encoder_forward.3} parent=1 // pred_fallthru
      _
    %v39 = vld [vmem:[%s0] sm:$0xff]
    %v40 = vld [vmem:[%s0 + $0x8] sm:$0xff]
    %v41 = vld [vmem:[%s0 + $0x10] sm:$0xff]
    %v42 = vld [vmem:[%s0 + $0x18] sm:$0xff]
    %v43 = vld [vmem:[%s0 + $0x20] sm:$0xff]
    %v44 = vld [vmem:[%s0 + $0x28] sm:$0xff]
    %v45 = vld [vmem:[%s0 + $0x30] sm:$0xff]
    %v46 = vld [vmem:[%s0 + $0x38] sm:$0xff]
    %v47 = vld [vmem:[%s0 + $0x40] sm:$0xff]
    %v48 = vld [vmem:[%s0 + $0x48] sm:$0xff]
    %v49 = vld [vmem:[%s0 + $0x50] sm:$0xff]
    %v50 = vld [vmem:[%s0 + $0x58] sm:$0xff]
    %v51 = vld [vmem:[%s0 + $0x60] sm:$0xff]
    %v52 = vld [vmem:[%s0 + $0x68] sm:$0xff]
    %v53 = vld [vmem:[%s0 + $0x70] sm:$0xff]
    %v54 = vld [vmem:[%s0 + $0x78] sm:$0xff]
    %v55 = vld [vmem:[%s1] sm:$0xff]
    %v56 = vld [vmem:[%s1 + $0x8] sm:$0xff]
    %v57 = vld [vmem:[%s1 + $0x10] sm:$0xff]
    %v58 = vld [vmem:[%s1 + $0x18] sm:$0xff]
    %v59 = vld [vmem:[%s1 + $0x20] sm:$0xff]
    %v60 = vld [vmem:[%s1 + $0x28] sm:$0xff]
    %v61 = vld [vmem:[%s1 + $0x30] sm:$0xff]
    %v62 = vld [vmem:[%s1 + $0x38] sm:$0xff]
    %v63 = vld [vmem:[%s1 + $0x40] sm:$0xff]
    %v64 = vld [vmem:[%s1 + $0x48] sm:$0xff]
    %v65 = vld [vmem:[%s1 + $0x50] sm:$0xff]
    %v66 = vld [vmem:[%s1 + $0x58] sm:$0xff]
    %v67 = vld [vmem:[%s1 + $0x60] sm:$0xff]
    %v68 = vld [vmem:[%s1 + $0x68] sm:$0xff]
    %v69 = vld [vmem:[%s1 + $0x70] sm:$0xff]
    %v70 = vld [vmem:[%s1 + $0x78] sm:$0xff]
    %v71 = vld [vmem:[%s1 + $0x80] sm:$0xff]
    %v72 = vld [vmem:[%s1 + $0x88] sm:$0xff]
    %v73 = vld [vmem:[%s1 + $0x90] sm:$0xff]
    %v74 = vld [vmem:[%s1 + $0x98] sm:$0xff]
    %v75 = vld [vmem:[%s1 + $0xa0] sm:$0xff]
    %v76 = vld [vmem:[%s1 + $0xa8] sm:$0xff]
    %v77 = vld [vmem:[%s1 + $0xb0] sm:$0xff]
    %v78 = vld [vmem:[%s1 + $0xb8] sm:$0xff]
    %v79 = vld [vmem:[%s1 + $0xc0] sm:$0xff]
    %v80 = vld [vmem:[%s1 + $0xc8] sm:$0xff]
    %v81 = vld [vmem:[%s1 + $0xd0] sm:$0xff]
    %v82 = vld [vmem:[%s1 + $0xd8] sm:$0xff]
    %v83 = vld [vmem:[%s1 + $0xe0] sm:$0xff]
    %v84 = vld [vmem:[%s1 + $0xe8] sm:$0xff]
    %v85 = vld [vmem:[%s1 + $0xf0] sm:$0xff]
    %v86 = vld [vmem:[%s1 + $0xf8] sm:$0xff]
    %v87 = vld [vmem:[%s1 + $0x100] sm:$0xff]
    %v88 = vld [vmem:[%s1 + $0x108] sm:$0xff]
    %v89 = vld [vmem:[%s1 + $0x110] sm:$0xff]
    %v90 = vld [vmem:[%s1 + $0x118] sm:$0xff]
    %v91 = vld [vmem:[%s1 + $0x120] sm:$0xff]
    %v92 = vld [vmem:[%s1 + $0x128] sm:$0xff]
    %v93 = vld [vmem:[%s1 + $0x130] sm:$0xff]
    %v94 = vld [vmem:[%s1 + $0x138] sm:$0xff]
    %v95 = vld [vmem:[%s1 + $0x140] sm:$0xff]
    %v96 = vld [vmem:[%s1 + $0x148] sm:$0xff]
    %v97 = vld [vmem:[%s1 + $0x150] sm:$0xff]
    %v98 = vld [vmem:[%s1 + $0x158] sm:$0xff]
    %v99 = vld [vmem:[%s1 + $0x160] sm:$0xff]
    %v100 = vld [vmem:[%s1 + $0x168] sm:$0xff]
    %v101 = vld [vmem:[%s1 + $0x170] sm:$0xff]
    %v102 = vld [vmem:[%s1 + $0x178] sm:$0xff]
    %v103 = vld [vmem:[%s1 + $0x180] sm:$0xff]
    %v104 = vld [vmem:[%s1 + $0x188] sm:$0xff]
    %v105 = vld [vmem:[%s1 + $0x190] sm:$0xff]
    %v106 = vld [vmem:[%s1 + $0x198] sm:$0xff]
    %v107 = vld [vmem:[%s1 + $0x1a0] sm:$0xff]
    %v108 = vld [vmem:[%s1 + $0x1a8] sm:$0xff]
    %v109 = vld [vmem:[%s1 + $0x1b0] sm:$0xff]
    %v110 = vld [vmem:[%s1 + $0x1b8] sm:$0xff]
    %v111 = vld [vmem:[%s1 + $0x1c0] sm:$0xff]
    %v112 = vld [vmem:[%s1 + $0x1c8] sm:$0xff]
    %v113 = vld [vmem:[%s1 + $0x1d0] sm:$0xff]
    %v114 = vld [vmem:[%s1 + $0x1d8] sm:$0xff]
    %v115 = vld [vmem:[%s1 + $0x1e0] sm:$0xff]
    %v116 = vld [vmem:[%s1 + $0x1e8] sm:$0xff]
    %v117 = vld [vmem:[%s1 + $0x1f0] sm:$0xff]
    %v118 = vld [vmem:[%s1 + $0x1f8] sm:$0xff]
    %v119 = vld [vmem:[%s2] sm:$0x1]
    %v121 = vlaneseq
    %v122 = vshrl.u32 %v121, 7
    %v123 = vsub.s32 0, %v122
    %v124 = vrot.slane %v119, %v123
    %126 = vmatprep.subr.mxu0 0.0
    %127 = vmatpush1.msra.mxu0 %v55
    %128 = vmatprep.subr.mxu0 0.0
    %129 = vmatpush1.msra.mxu0 %v56
    %130 = vmatprep.subr.mxu0 0.0
    %131 = vmatpush1.msra.mxu0 %v57
    %132 = vmatprep.subr.mxu0 0.0
    %133 = vmatpush1.msra.mxu0 %v58
    %134 = vmatprep.subr.mxu0 0.0
    %135 = vmatpush1.msra.mxu0 %v59
    %136 = vmatprep.subr.mxu0 0.0
    %137 = vmatpush1.msra.mxu0 %v60
    %138 = vmatprep.subr.mxu0 0.0
    %139 = vmatpush1.msra.mxu0 %v61
    %140 = vmatprep.subr.mxu0 0.0
    %141 = vmatpush1.msra.mxu0 %v62
    %142 = vmatprep.subr.mxu0 0.0
    %143 = vmatpush1.msra.mxu0 %v63
    %144 = vmatprep.subr.mxu0 0.0
    %145 = vmatpush1.msra.mxu0 %v64
    %146 = vmatprep.subr.mxu0 0.0
    %147 = vmatpush1.msra.mxu0 %v65
    %148 = vmatprep.subr.mxu0 0.0
    %149 = vmatpush1.msra.mxu0 %v66
    %150 = vmatprep.subr.mxu0 0.0
    %151 = vmatpush1.msra.mxu0 %v67
    %152 = vmatprep.subr.mxu0 0.0
    %153 = vmatpush1.msra.mxu0 %v68
    %154 = vmatprep.subr.mxu0 0.0
    %155 = vmatpush1.msra.mxu0 %v69
    %156 = vmatprep.subr.mxu0 0.0
    %157 = vmatpush1.msra.mxu0 %v70
    %158 = vmatprep.subr.mxu0 0.0
    %159 = vmatpush1.msra.mxu0 %v71
    %160 = vmatprep.subr.mxu0 0.0
    %161 = vmatpush1.msra.mxu0 %v72
    %162 = vmatprep.subr.mxu0 0.0
    %163 = vmatpush1.msra.mxu0 %v73
    %164 = vmatprep.subr.mxu0 0.0
    %165 = vmatpush1.msra.mxu0 %v74
    %166 = vmatprep.subr.mxu0 0.0
    %167 = vmatpush1.msra.mxu0 %v75
    %168 = vmatprep.subr.mxu0 0.0
    %169 = vmatpush1.msra.mxu0 %v76
    %170 = vmatprep.subr.mxu0 0.0
    %171 = vmatpush1.msra.mxu0 %v77
    %172 = vmatprep.subr.mxu0 0.0
    %173 = vmatpush1.msra.mxu0 %v78
    %174 = vmatprep.subr.mxu0 0.0
    %175 = vmatpush1.msra.mxu0 %v79
    %176 = vmatprep.subr.mxu0 0.0
    %177 = vmatpush1.msra.mxu0 %v80
    %178 = vmatprep.subr.mxu0 0.0
    %179 = vmatpush1.msra.mxu0 %v81
    %180 = vmatprep.subr.mxu0 0.0
    %181 = vmatpush1.msra.mxu0 %v82
    %182 = vmatprep.subr.mxu0 0.0
    %183 = vmatpush1.msra.mxu0 %v83
    %184 = vmatprep.subr.mxu0 0.0
    %185 = vmatpush1.msra.mxu0 %v84
    %186 = vmatprep.subr.mxu0 0.0
    %187 = vmatpush1.msra.mxu0 %v85
    %188 = vmatprep.subr.mxu0 0.0
    %189 = vmatpush1.msra.mxu0 %v86
    %190 = vmatprep.mubr.f32.mxu0 %v40
    %191 = vmatmul.mubr.f32.gmra.mrb[0].mxu0 %v39
    %v192 = vpop.f32.mrb[0].mxu0
    %v193 = vadd.f32 %v124, %v192
    %v194 = vpop.f32.mrb[0].mxu0
    %195 = vmatprep.mubr.f32.mxu0 %v44
    %196 = vmatmul.mubr.f32.gmra.mrb[0].mxu0 %v43
    %v197 = vpop.f32.mrb[0].mxu0
    %v198 = vadd.f32 %v124, %v197
    %v199 = vpop.f32.mrb[0].mxu0
    %200 = vmatprep.mubr.f32.mxu0 %v48
    %201 = vmatmul.mubr.f32.gmra.mrb[0].mxu0 %v47
    %v202 = vpop.f32.mrb[0].mxu0
    %v203 = vadd.f32 %v124, %v202
    %v204 = vpop.f32.mrb[0].mxu0
    %205 = vmatprep.mubr.f32.mxu0 %v52
    %206 = vmatmul.mubr.f32.gmra.mrb[0].mxu0 %v51
    %v207 = vpop.f32.mrb[0].mxu0
    %v208 = vadd.f32 %v124, %v207
    %v209 = vpop.f32.mrb[0].mxu0
    %210 = vdwg.mxu0
    %211 = vmatprep.subr.mxu0 0.0
    %212 = vmatpush1.msra.mxu0 %v87
    %213 = vmatprep.subr.mxu0 0.0
    %214 = vmatpush1.msra.mxu0 %v88
    %215 = vmatprep.subr.mxu0 0.0
    %216 = vmatpush1.msra.mxu0 %v89
    %217 = vmatprep.subr.mxu0 0.0
    %218 = vmatpush1.msra.mxu0 %v90
    %219 = vmatprep.subr.mxu0 0.0
    %220 = vmatpush1.msra.mxu0 %v91
    %221 = vmatprep.subr.mxu0 0.0
    %222 = vmatpush1.msra.mxu0 %v92
    %223 = vmatprep.subr.mxu0 0.0
    %224 = vmatpush1.msra.mxu0 %v93
    %225 = vmatprep.subr.mxu0 0.0
    %226 = vmatpush1.msra.mxu0 %v94
    %227 = vmatprep.subr.mxu0 0.0
    %228 = vmatpush1.msra.mxu0 %v95
    %229 = vmatprep.subr.mxu0 0.0
    %230 = vmatpush1.msra.mxu0 %v96
    %231 = vmatprep.subr.mxu0 0.0
    %232 = vmatpush1.msra.mxu0 %v97
    %233 = vmatprep.subr.mxu0 0.0
    %234 = vmatpush1.msra.mxu0 %v98
    %235 = vmatprep.subr.mxu0 0.0
    %236 = vmatpush1.msra.mxu0 %v99
    %237 = vmatprep.subr.mxu0 0.0
    %238 = vmatpush1.msra.mxu0 %v100
    %239 = vmatprep.subr.mxu0 0.0
    %240 = vmatpush1.msra.mxu0 %v101
    %241 = vmatprep.subr.mxu0 0.0
    %242 = vmatpush1.msra.mxu0 %v102
    %243 = vmatprep.subr.mxu0 0.0
    %244 = vmatpush1.msra.mxu0 %v103
    %245 = vmatprep.subr.mxu0 0.0
    %246 = vmatpush1.msra.mxu0 %v104
    %247 = vmatprep.subr.mxu0 0.0
    %248 = vmatpush1.msra.mxu0 %v105
    %249 = vmatprep.subr.mxu0 0.0
    %250 = vmatpush1.msra.mxu0 %v106
    %251 = vmatprep.subr.mxu0 0.0
    %252 = vmatpush1.msra.mxu0 %v107
    %253 = vmatprep.subr.mxu0 0.0
    %254 = vmatpush1.msra.mxu0 %v108
    %255 = vmatprep.subr.mxu0 0.0
    %256 = vmatpush1.msra.mxu0 %v109
    %257 = vmatprep.subr.mxu0 0.0
    %258 = vmatpush1.msra.mxu0 %v110
    %259 = vmatprep.subr.mxu0 0.0
    %260 = vmatpush1.msra.mxu0 %v111
    %261 = vmatprep.subr.mxu0 0.0
    %262 = vmatpush1.msra.mxu0 %v112
    %263 = vmatprep.subr.mxu0 0.0
    %264 = vmatpush1.msra.mxu0 %v113
    %265 = vmatprep.subr.mxu0 0.0
    %266 = vmatpush1.msra.mxu0 %v114
    %267 = vmatprep.subr.mxu0 0.0
    %268 = vmatpush1.msra.mxu0 %v115
    %269 = vmatprep.subr.mxu0 0.0
    %270 = vmatpush1.msra.mxu0 %v116
    %271 = vmatprep.subr.mxu0 0.0
    %272 = vmatpush1.msra.mxu0 %v117
    %273 = vmatprep.subr.mxu0 0.0
    %274 = vmatpush1.msra.mxu0 %v118
    %275 = vmatprep.mubr.f32.mxu0 %v42
    %276 = vmatmul.mubr.f32.gmra.mrb[0].mxu0 %v41
    %v277 = vpop.f32.mrb[0].mxu0
    %v278 = vadd.f32 %v193, %v277
    %v279 = vpop.f32.mrb[0].mxu0
    %280 = vmatprep.mubr.f32.mxu0 %v46
    %281 = vmatmul.mubr.f32.gmra.mrb[0].mxu0 %v45
    %v282 = vpop.f32.mrb[0].mxu0
    %v283 = vadd.f32 %v198, %v282
    %v284 = vpop.f32.mrb[0].mxu0
    %285 = vmatprep.mubr.f32.mxu0 %v50
    %286 = vmatmul.mubr.f32.gmra.mrb[0].mxu0 %v49
    %v287 = vpop.f32.mrb[0].mxu0
    %v288 = vadd.f32 %v203, %v287
    %v289 = vpop.f32.mrb[0].mxu0
    %290 = vmatprep.mubr.f32.mxu0 %v54
    %291 = vmatmul.mubr.f32.gmra.mrb[0].mxu0 %v53
    %v292 = vpop.f32.mrb[0].mxu0
    %v293 = vadd.f32 %v208, %v292
    %v294 = vpop.f32.mrb[0].mxu0
    %295 = vdwg.mxu0
    %v296 = vmax.f32 %v278, 0.0
    %v297 = vmax.f32 %v283, 0.0
    %v298 = vmax.f32 %v288, 0.0
    %v299 = vmax.f32 %v293, 0.0
    %vm300 = vcmask 521216
    %301 = vst.msk [vmem:[#allocation2] sm:$0x3f] %vm300, 0.0
    %302 = vst.msk [vmem:[#allocation2 + $0x8] sm:$0x3f] %vm300, 0.0
    %303 = vst.msk [vmem:[#allocation2 + $0x10] sm:$0x3f] %vm300, 0.0
    %304 = vst.msk [vmem:[#allocation2 + $0x18] sm:$0x3f] %vm300, 0.0
    %305 = vst.msk [vmem:[#allocation2 + $0x20] sm:$0x3f] %vm300, 0.0
    %306 = vst.msk [vmem:[#allocation2 + $0x28] sm:$0x3f] %vm300, 0.0
    %307 = vst.msk [vmem:[#allocation2 + $0x30] sm:$0x3f] %vm300, 0.0
    %308 = vst.msk [vmem:[#allocation2 + $0x38] sm:$0x3f] %vm300, 0.0
    %309 = vst.msk [vmem:[#allocation2 + $0x40] sm:$0x3f] %vm300, 0.0
    %310 = vst.msk [vmem:[#allocation2 + $0x48] sm:$0x3f] %vm300, 0.0
    %311 = vst.msk [vmem:[#allocation2 + $0x50] sm:$0x3f] %vm300, 0.0
    %312 = vst.msk [vmem:[#allocation2 + $0x58] sm:$0x3f] %vm300, 0.0
    %s313 = scalar_lea.vmem [#allocation2], 8
    %vm314 = vcmask 519168
    %315 = vst.msk [vmem:[%s313 + $0x1] sm:$0xf] %vm314, %v296
    %s316 = scalar_lea.vmem [#allocation2], 16
    %vm317 = vcmask 523268
    %318 = vst.msk [vmem:[%s316 - $0x3] sm:$0xf0] %vm317, %v296
    %s319 = scalar_lea.vmem [#allocation2], 24
    %320 = vst.msk [vmem:[%s319 + $0x1] sm:$0xf] %vm314, %v297
    %s321 = scalar_lea.vmem [#allocation2], 32
    %322 = vst.msk [vmem:[%s321 - $0x3] sm:$0xf0] %vm317, %v297
    %s323 = scalar_lea.vmem [#allocation2], 56
    %324 = vst.msk [vmem:[%s323 + $0x1] sm:$0xf] %vm314, %v298
    %s325 = scalar_lea.vmem [#allocation2], 64
    %326 = vst.msk [vmem:[%s325 - $0x3] sm:$0xf0] %vm317, %v298
    %s327 = scalar_lea.vmem [#allocation2], 72
    %328 = vst.msk [vmem:[%s327 + $0x1] sm:$0xf] %vm314, %v299
    %s329 = scalar_lea.vmem [#allocation2], 80
    %330 = vst.msk [vmem:[%s329 - $0x3] sm:$0xf0] %vm317, %v299
    %331 = vst [vmem:[#allocation3] sm:$0xf] 0.0
    %332 = vst [vmem:[#allocation3 + $0x4] sm:$0xf] 0.0
    %333 = vst [vmem:[#allocation3 + $0x8] sm:$0xf] 0.0
    %334 = vst [vmem:[#allocation3 + $0xc] sm:$0xf] 0.0
    %335 = vst [vmem:[#allocation3 + $0x10] sm:$0xf] 0.0
    %336 = vst [vmem:[#allocation3 + $0x14] sm:$0xf] 0.0
    %337 = vst [vmem:[#allocation3 + $0x18] sm:$0xf] 0.0
    %338 = vst [vmem:[#allocation3 + $0x1c] sm:$0xf] 0.0
    %v339 = vld [vmem:[#allocation2] sm:$0x1]
    %v340 = vld [vmem:[#allocation2 + $0x30] sm:$0x1]
    %v341 = vld [vmem:[%s3] sm:$0xff]
    %v342 = vld [vmem:[%s3 + $0x8] sm:$0xff]
    %v343 = vld [vmem:[%s3 + $0x10] sm:$0xff]
    %v344 = vld [vmem:[%s3 + $0x18] sm:$0xff]
    %v345 = vld [vmem:[%s3 + $0x20] sm:$0xff]
    %v346 = vld [vmem:[%s3 + $0x28] sm:$0xff]
    %v347 = vld [vmem:[%s3 + $0x30] sm:$0xff]
    %v348 = vld [vmem:[%s3 + $0x38] sm:$0xff]
    %v349 = vld [vmem:[#allocation2 + $0x1] sm:$0x1]
    %v350 = vld [vmem:[#allocation2 + $0x31] sm:$0x1]
    %s351 = scalar_lea.vmem %s3, 64
    %v352 = vld [vmem:[%s351] sm:$0xff]
    %v353 = vld [vmem:[%s351 + $0x8] sm:$0xff]
    %v354 = vld [vmem:[%s351 + $0x10] sm:$0xff]
    %v355 = vld [vmem:[%s351 + $0x18] sm:$0xff]
    %v356 = vld [vmem:[%s351 + $0x20] sm:$0xff]
    %v357 = vld [vmem:[%s351 + $0x28] sm:$0xff]
    %v358 = vld [vmem:[%s351 + $0x30] sm:$0xff]
    %v359 = vld [vmem:[%s351 + $0x38] sm:$0xff]
    %v362 = vrot.slane %v350, 7
    %vm363 = vcmask 1041409
    %v364 = vsel %vm363, %v362, %v349
    %vm365 = vcmask 523264
    %v366 = vsel %vm365, %v364, 0
    %368 = vmatprep.subr.mxu0 0.0
    %369 = vmatpush1.msra.mxu0 %v352
    %370 = vmatprep.subr.mxu0 0.0
    %371 = vmatpush1.msra.mxu0 %v353
    %372 = vmatprep.subr.mxu0 0.0
    %373 = vmatpush1.msra.mxu0 %v354
    %374 = vmatprep.subr.mxu0 0.0
    %375 = vmatpush1.msra.mxu0 %v355
    %376 = vmatprep.subr.mxu0 0.0
    %377 = vmatpush1.msra.mxu0 %v356
    %378 = vmatprep.subr.mxu0 0.0
    %379 = vmatpush1.msra.mxu0 %v357
    %380 = vmatprep.subr.mxu0 0.0
    %381 = vmatpush1.msra.mxu0 %v358
    %382 = vmatprep.subr.mxu0 0.0
    %383 = vmatpush1.msra.mxu0 %v359
    %384 = vmatprep.subr.mxu0 0.0
    %385 = vmatpush1.msra.mxu0 0.0
    %386 = vmatprep.subr.mxu0 0.0
    %387 = vmatpush1.msra.mxu0 0.0
    %388 = vmatprep.subr.mxu0 0.0
    %389 = vmatpush1.msra.mxu0 0.0
    %390 = vmatprep.subr.mxu0 0.0
    %391 = vmatpush1.msra.mxu0 0.0
    %392 = vmatprep.subr.mxu0 0.0
    %393 = vmatpush1.msra.mxu0 0.0
    %394 = vmatprep.subr.mxu0 0.0
    %395 = vmatpush1.msra.mxu0 0.0
    %396 = vmatprep.subr.mxu0 0.0
    %397 = vmatpush1.msra.mxu0 0.0
    %398 = vmatprep.subr.mxu0 0.0
    %399 = vmatpush1.msra.mxu0 0.0
    %400 = vmatprep.subr.mxu0 0.0
    %401 = vmatpush1.msra.mxu0 0.0
    %402 = vmatprep.subr.mxu0 0.0
    %403 = vmatpush1.msra.mxu0 0.0
    %404 = vmatprep.subr.mxu0 0.0
    %405 = vmatpush1.msra.mxu0 0.0
    %406 = vmatprep.subr.mxu0 0.0
    %407 = vmatpush1.msra.mxu0 0.0
    %408 = vmatprep.subr.mxu0 0.0
    %409 = vmatpush1.msra.mxu0 0.0
    %410 = vmatprep.subr.mxu0 0.0
    %411 = vmatpush1.msra.mxu0 0.0
    %412 = vmatprep.subr.mxu0 0.0
    %413 = vmatpush1.msra.mxu0 0.0
    %414 = vmatprep.subr.mxu0 0.0
    %415 = vmatpush1.msra.mxu0 0.0
    %416 = vmatprep.subr.mxu0 0.0
    %417 = vmatpush1.msra.mxu0 0.0
    %418 = vmatprep.subr.mxu0 0.0
    %419 = vmatpush1.msra.mxu0 0.0
    %420 = vmatprep.subr.mxu0 0.0
    %421 = vmatpush1.msra.mxu0 0.0
    %422 = vmatprep.subr.mxu0 0.0
    %423 = vmatpush1.msra.mxu0 0.0
    %424 = vmatprep.subr.mxu0 0.0
    %425 = vmatpush1.msra.mxu0 0.0
    %426 = vmatprep.subr.mxu0 0.0
    %427 = vmatpush1.msra.mxu0 0.0
    %428 = vmatprep.subr.mxu0 0.0
    %429 = vmatpush1.msra.mxu0 0.0
    %430 = vmatprep.subr.mxu0 0.0
    %431 = vmatpush1.msra.mxu0 0.0
    %432 = vmatprep.mubr.f32.mxu0 0.0
    %433 = vmatmul.mubr.f32.gmra.mrb[0].mxu0 %v366
    %v434 = vpop.f32.mrb[0].mxu0
    %v435 = vadd.f32 0.0, %v434
    %v436 = vpop.f32.mrb[0].mxu0
    %437 = vdwg.mxu0
    %v440 = vrot.slane %v340, 7
    %v441 = vsel %vm363, %v440, %v339
    %v442 = vsel %vm365, %v441, 0
    %444 = vmatprep.subr.mxu0 0.0
    %445 = vmatpush1.msra.mxu0 %v341
    %446 = vmatprep.subr.mxu0 0.0
    %447 = vmatpush1.msra.mxu0 %v342
    %448 = vmatprep.subr.mxu0 0.0
    %449 = vmatpush1.msra.mxu0 %v343
    %450 = vmatprep.subr.mxu0 0.0
    %451 = vmatpush1.msra.mxu0 %v344
    %452 = vmatprep.subr.mxu0 0.0
    %453 = vmatpush1.msra.mxu0 %v345
    %454 = vmatprep.subr.mxu0 0.0
    %455 = vmatpush1.msra.mxu0 %v346
    %456 = vmatprep.subr.mxu0 0.0
    %457 = vmatpush1.msra.mxu0 %v347
    %458 = vmatprep.subr.mxu0 0.0
    %459 = vmatpush1.msra.mxu0 %v348
    %460 = vmatprep.subr.mxu0 0.0
    %461 = vmatpush1.msra.mxu0 0.0
    %462 = vmatprep.subr.mxu0 0.0
    %463 = vmatpush1.msra.mxu0 0.0
    %464 = vmatprep.subr.mxu0 0.0
    %465 = vmatpush1.msra.mxu0 0.0
    %466 = vmatprep.subr.mxu0 0.0
    %467 = vmatpush1.msra.mxu0 0.0
    %468 = vmatprep.subr.mxu0 0.0
    %469 = vmatpush1.msra.mxu0 0.0
    %470 = vmatprep.subr.mxu0 0.0
    %471 = vmatpush1.msra.mxu0 0.0
    %472 = vmatprep.subr.mxu0 0.0
    %473 = vmatpush1.msra.mxu0 0.0
    %474 = vmatprep.subr.mxu0 0.0
    %475 = vmatpush1.msra.mxu0 0.0
    %476 = vmatprep.subr.mxu0 0.0
    %477 = vmatpush1.msra.mxu0 0.0
    %478 = vmatprep.subr.mxu0 0.0
    %479 = vmatpush1.msra.mxu0 0.0
    %480 = vmatprep.subr.mxu0 0.0
    %481 = vmatpush1.msra.mxu0 0.0
    %482 = vmatprep.subr.mxu0 0.0
    %483 = vmatpush1.msra.mxu0 0.0
    %484 = vmatprep.subr.mxu0 0.0
    %485 = vmatpush1.msra.mxu0 0.0
    %486 = vmatprep.subr.mxu0 0.0
    %487 = vmatpush1.msra.mxu0 0.0
    %488 = vmatprep.subr.mxu0 0.0
    %489 = vmatpush1.msra.mxu0 0.0
    %490 = vmatprep.subr.mxu0 0.0
    %491 = vmatpush1.msra.mxu0 0.0
    %492 = vmatprep.subr.mxu0 0.0
    %493 = vmatpush1.msra.mxu0 0.0
    %494 = vmatprep.subr.mxu0 0.0
    %495 = vmatpush1.msra.mxu0 0.0
    %496 = vmatprep.subr.mxu0 0.0
    %497 = vmatpush1.msra.mxu0 0.0
    %498 = vmatprep.subr.mxu0 0.0
    %499 = vmatpush1.msra.mxu0 0.0
    %500 = vmatprep.subr.mxu0 0.0
    %501 = vmatpush1.msra.mxu0 0.0
    %502 = vmatprep.subr.mxu0 0.0
    %503 = vmatpush1.msra.mxu0 0.0
    %504 = vmatprep.subr.mxu0 0.0
    %505 = vmatpush1.msra.mxu0 0.0
    %506 = vmatprep.subr.mxu0 0.0
    %507 = vmatpush1.msra.mxu0 0.0
    %508 = vmatprep.mubr.f32.mxu0 0.0
    %509 = vmatmul.mubr.f32.gmra.mrb[0].mxu0 %v442
    %v510 = vpop.f32.mrb[0].mxu0
    %v511 = vadd.f32 %v435, %v510
    %v512 = vpop.f32.mrb[0].mxu0
    %513 = vdwg.mxu0
    %v514 = vld [vmem:[#allocation2 + $0x2] sm:$0x1]
    %v515 = vld [vmem:[#allocation2 + $0x32] sm:$0x1]
    %s516 = scalar_lea.vmem %s3, 128
    %v517 = vld [vmem:[%s516] sm:$0xff]
    %v518 = vld [vmem:[%s516 + $0x8] sm:$0xff]
    %v519 = vld [vmem:[%s516 + $0x10] sm:$0xff]
    %v520 = vld [vmem:[%s516 + $0x18] sm:$0xff]
    %v521 = vld [vmem:[%s516 + $0x20] sm:$0xff]
    %v522 = vld [vmem:[%s516 + $0x28] sm:$0xff]
    %v523 = vld [vmem:[%s516 + $0x30] sm:$0xff]
    %v524 = vld [vmem:[%s516 + $0x38] sm:$0xff]
    %v527 = vrot.slane %v515, 7
    %v528 = vsel %vm363, %v527, %v514
    %v529 = vsel %vm365, %v528, 0
    %531 = vmatprep.subr.mxu0 0.0
    %532 = vmatpush1.msra.mxu0 %v517
    %533 = vmatprep.subr.mxu0 0.0
    %534 = vmatpush1.msra.mxu0 %v518
    %535 = vmatprep.subr.mxu0 0.0
    %536 = vmatpush1.msra.mxu0 %v519
    %537 = vmatprep.subr.mxu0 0.0
    %538 = vmatpush1.msra.mxu0 %v520
    %539 = vmatprep.subr.mxu0 0.0
    %540 = vmatpush1.msra.mxu0 %v521
    %541 = vmatprep.subr.mxu0 0.0
    %542 = vmatpush1.msra.mxu0 %v522
    %543 = vmatprep.subr.mxu0 0.0
    %544 = vmatpush1.msra.mxu0 %v523
    %545 = vmatprep.subr.mxu0 0.0
    %546 = vmatpush1.msra.mxu0 %v524
    %547 = vmatprep.subr.mxu0 0.0
    %548 = vmatpush1.msra.mxu0 0.0
    %549 = vmatprep.subr.mxu0 0.0
    %550 = vmatpush1.msra.mxu0 0.0
    %551 = vmatprep.subr.mxu0 0.0
    %552 = vmatpush1.msra.mxu0 0.0
    %553 = vmatprep.subr.mxu0 0.0
    %554 = vmatpush1.msra.mxu0 0.0
    %555 = vmatprep.subr.mxu0 0.0
    %556 = vmatpush1.msra.mxu0 0.0
    %557 = vmatprep.subr.mxu0 0.0
    %558 = vmatpush1.msra.mxu0 0.0
    %559 = vmatprep.subr.mxu0 0.0
    %560 = vmatpush1.msra.mxu0 0.0
    %561 = vmatprep.subr.mxu0 0.0
    %562 = vmatpush1.msra.mxu0 0.0
    %563 = vmatprep.subr.mxu0 0.0
    %564 = vmatpush1.msra.mxu0 0.0
    %565 = vmatprep.subr.mxu0 0.0
    %566 = vmatpush1.msra.mxu0 0.0
    %567 = vmatprep.subr.mxu0 0.0
    %568 = vmatpush1.msra.mxu0 0.0
    %569 = vmatprep.subr.mxu0 0.0
    %570 = vmatpush1.msra.mxu0 0.0
    %571 = vmatprep.subr.mxu0 0.0
    %572 = vmatpush1.msra.mxu0 0.0
    %573 = vmatprep.subr.mxu0 0.0
    %574 = vmatpush1.msra.mxu0 0.0
    %575 = vmatprep.subr.mxu0 0.0
    %576 = vmatpush1.msra.mxu0 0.0
    %577 = vmatprep.subr.mxu0 0.0
    %578 = vmatpush1.msra.mxu0 0.0
    %579 = vmatprep.subr.mxu0 0.0
    %580 = vmatpush1.msra.mxu0 0.0
    %581 = vmatprep.subr.mxu0 0.0
    %582 = vmatpush1.msra.mxu0 0.0
    %583 = vmatprep.subr.mxu0 0.0
    %584 = vmatpush1.msra.mxu0 0.0
    %585 = vmatprep.subr.mxu0 0.0
    %586 = vmatpush1.msra.mxu0 0.0
    %587 = vmatprep.subr.mxu0 0.0
    %588 = vmatpush1.msra.mxu0 0.0
    %589 = vmatprep.subr.mxu0 0.0
    %590 = vmatpush1.msra.mxu0 0.0
    %591 = vmatprep.subr.mxu0 0.0
    %592 = vmatpush1.msra.mxu0 0.0
    %593 = vmatprep.subr.mxu0 0.0
    %594 = vmatpush1.msra.mxu0 0.0
    %595 = vmatprep.mubr.f32.mxu0 0.0
    %596 = vmatmul.mubr.f32.gmra.mrb[0].mxu0 %v529
    %v597 = vpop.f32.mrb[0].mxu0
    %v598 = vadd.f32 0.0, %v597
    %v599 = vpop.f32.mrb[0].mxu0
    %600 = vdwg.mxu0
    %v601 = vadd.f32 %v511, %v598
    %v602 = vld [vmem:[#allocation2 + $0x3] sm:$0x1]
    %v603 = vld [vmem:[#allocation2 + $0x33] sm:$0x1]
    %s604 = scalar_lea.vmem %s3, 192
    %v605 = vld [vmem:[%s604] sm:$0xff]
    %v606 = vld [vmem:[%s604 + $0x8] sm:$0xff]
    %v607 = vld [vmem:[%s604 + $0x10] sm:$0xff]
    %v608 = vld [vmem:[%s604 + $0x18] sm:$0xff]
    %v609 = vld [vmem:[%s604 + $0x20] sm:$0xff]
    %v610 = vld [vmem:[%s604 + $0x28] sm:$0xff]
    %v611 = vld [vmem:[%s604 + $0x30] sm:$0xff]
    %v612 = vld [vmem:[%s604 + $0x38] sm:$0xff]
    %v615 = vrot.slane %v603, 7
    %v616 = vsel %vm363, %v615, %v602
    %v617 = vsel %vm365, %v616, 0
    %619 = vmatprep.subr.mxu0 0.0
    %620 = vmatpush1.msra.mxu0 %v605
    %621 = vmatprep.subr.mxu0 0.0
    %622 = vmatpush1.msra.mxu0 %v606
    %623 = vmatprep.subr.mxu0 0.0
    %624 = vmatpush1.msra.mxu0 %v607
    %625 = vmatprep.subr.mxu0 0.0
    %626 = vmatpush1.msra.mxu0 %v608
    %627 = vmatprep.subr.mxu0 0.0
    %628 = vmatpush1.msra.mxu0 %v609
    %629 = vmatprep.subr.mxu0 0.0
    %630 = vmatpush1.msra.mxu0 %v610
    %631 = vmatprep.subr.mxu0 0.0
    %632 = vmatpush1.msra.mxu0 %v611
    %633 = vmatprep.subr.mxu0 0.0
    %634 = vmatpush1.msra.mxu0 %v612
    %635 = vmatprep.subr.mxu0 0.0
    %636 = vmatpush1.msra.mxu0 0.0
    %637 = vmatprep.subr.mxu0 0.0
    %638 = vmatpush1.msra.mxu0 0.0
    %639 = vmatprep.subr.mxu0 0.0
    %640 = vmatpush1.msra.mxu0 0.0
    %641 = vmatprep.subr.mxu0 0.0
    %642 = vmatpush1.msra.mxu0 0.0
    %643 = vmatprep.subr.mxu0 0.0
    %644 = vmatpush1.msra.mxu0 0.0
    %645 = vmatprep.subr.mxu0 0.0
    %646 = vmatpush1.msra.mxu0 0.0
    %647 = vmatprep.subr.mxu0 0.0
    %648 = vmatpush1.msra.mxu0 0.0
    %649 = vmatprep.subr.mxu0 0.0
    %650 = vmatpush1.msra.mxu0 0.0
    %651 = vmatprep.subr.mxu0 0.0
    %652 = vmatpush1.msra.mxu0 0.0
    %653 = vmatprep.subr.mxu0 0.0
    %654 = vmatpush1.msra.mxu0 0.0
    %655 = vmatprep.subr.mxu0 0.0
    %656 = vmatpush1.msra.mxu0 0.0
    %657 = vmatprep.subr.mxu0 0.0
    %658 = vmatpush1.msra.mxu0 0.0
    %659 = vmatprep.subr.mxu0 0.0
    %660 = vmatpush1.msra.mxu0 0.0
    %661 = vmatprep.subr.mxu0 0.0
    %662 = vmatpush1.msra.mxu0 0.0
    %663 = vmatprep.subr.mxu0 0.0
    %664 = vmatpush1.msra.mxu0 0.0
    %665 = vmatprep.subr.mxu0 0.0
    %666 = vmatpush1.msra.mxu0 0.0
    %667 = vmatprep.subr.mxu0 0.0
    %668 = vmatpush1.msra.mxu0 0.0
    %669 = vmatprep.subr.mxu0 0.0
    %670 = vmatpush1.msra.mxu0 0.0
    %671 = vmatprep.subr.mxu0 0.0
    %672 = vmatpush1.msra.mxu0 0.0
    %673 = vmatprep.subr.mxu0 0.0
    %674 = vmatpush1.msra.mxu0 0.0
    %675 = vmatprep.subr.mxu0 0.0
    %676 = vmatpush1.msra.mxu0 0.0
    %677 = vmatprep.subr.mxu0 0.0
    %678 = vmatpush1.msra.mxu0 0.0
    %679 = vmatprep.subr.mxu0 0.0
    %680 = vmatpush1.msra.mxu0 0.0
    %681 = vmatprep.subr.mxu0 0.0
    %682 = vmatpush1.msra.mxu0 0.0
    %683 = vmatprep.mubr.f32.mxu0 0.0
    %684 = vmatmul.mubr.f32.gmra.mrb[0].mxu0 %v617
    %v685 = vpop.f32.mrb[0].mxu0
    %v686 = vadd.f32 0.0, %v685
    %v687 = vpop.f32.mrb[0].mxu0
    %688 = vdwg.mxu0
    %v689 = vadd.f32 %v601, %v686
    %v690 = vld [vmem:[%s313] sm:$0x1]
    %v691 = vld [vmem:[%s313 + $0x30] sm:$0x1]
    %s692 = scalar_lea.vmem %s3, 256
    %v693 = vld [vmem:[%s692] sm:$0xff]
    %v694 = vld [vmem:[%s692 + $0x8] sm:$0xff]
    %v695 = vld [vmem:[%s692 + $0x10] sm:$0xff]
    %v696 = vld [vmem:[%s692 + $0x18] sm:$0xff]
    %v697 = vld [vmem:[%s692 + $0x20] sm:$0xff]
    %v698 = vld [vmem:[%s692 + $0x28] sm:$0xff]
    %v699 = vld [vmem:[%s692 + $0x30] sm:$0xff]
    %v700 = vld [vmem:[%s692 + $0x38] sm:$0xff]
    %v703 = vrot.slane %v691, 7
    %v704 = vsel %vm363, %v703, %v690
    %v705 = vsel %vm365, %v704, 0
    %707 = vmatprep.subr.mxu0 0.0
    %708 = vmatpush1.msra.mxu0 %v693
    %709 = vmatprep.subr.mxu0 0.0
    %710 = vmatpush1.msra.mxu0 %v694
    %711 = vmatprep.subr.mxu0 0.0
    %712 = vmatpush1.msra.mxu0 %v695
    %713 = vmatprep.subr.mxu0 0.0
    %714 = vmatpush1.msra.mxu0 %v696
    %715 = vmatprep.subr.mxu0 0.0
    %716 = vmatpush1.msra.mxu0 %v697
    %717 = vmatprep.subr.mxu0 0.0
    %718 = vmatpush1.msra.mxu0 %v698
    %719 = vmatprep.subr.mxu0 0.0
    %720 = vmatpush1.msra.mxu0 %v699
    %721 = vmatprep.subr.mxu0 0.0
    %722 = vmatpush1.msra.mxu0 %v700
    %723 = vmatprep.subr.mxu0 0.0
    %724 = vmatpush1.msra.mxu0 0.0
    %725 = vmatprep.subr.mxu0 0.0
    %726 = vmatpush1.msra.mxu0 0.0
    %727 = vmatprep.subr.mxu0 0.0
    %728 = vmatpush1.msra.mxu0 0.0
    %729 = vmatprep.subr.mxu0 0.0
    %730 = vmatpush1.msra.mxu0 0.0
    %731 = vmatprep.subr.mxu0 0.0
    %732 = vmatpush1.msra.mxu0 0.0
    %733 = vmatprep.subr.mxu0 0.0
    %734 = vmatpush1.msra.mxu0 0.0
    %735 = vmatprep.subr.mxu0 0.0
    %736 = vmatpush1.msra.mxu0 0.0
    %737 = vmatprep.subr.mxu0 0.0
    %738 = vmatpush1.msra.mxu0 0.0
    %739 = vmatprep.subr.mxu0 0.0
    %740 = vmatpush1.msra.mxu0 0.0
    %741 = vmatprep.subr.mxu0 0.0
    %742 = vmatpush1.msra.mxu0 0.0
    %743 = vmatprep.subr.mxu0 0.0
    %744 = vmatpush1.msra.mxu0 0.0
    %745 = vmatprep.subr.mxu0 0.0
    %746 = vmatpush1.msra.mxu0 0.0
    %747 = vmatprep.subr.mxu0 0.0
    %748 = vmatpush1.msra.mxu0 0.0
    %749 = vmatprep.subr.mxu0 0.0
    %750 = vmatpush1.msra.mxu0 0.0
    %751 = vmatprep.subr.mxu0 0.0
    %752 = vmatpush1.msra.mxu0 0.0
    %753 = vmatprep.subr.mxu0 0.0
    %754 = vmatpush1.msra.mxu0 0.0
    %755 = vmatprep.subr.mxu0 0.0
    %756 = vmatpush1.msra.mxu0 0.0
    %757 = vmatprep.subr.mxu0 0.0
    %758 = vmatpush1.msra.mxu0 0.0
    %759 = vmatprep.subr.mxu0 0.0
    %760 = vmatpush1.msra.mxu0 0.0
    %761 = vmatprep.subr.mxu0 0.0
    %762 = vmatpush1.msra.mxu0 0.0
    %763 = vmatprep.subr.mxu0 0.0
    %764 = vmatpush1.msra.mxu0 0.0
    %765 = vmatprep.subr.mxu0 0.0
    %766 = vmatpush1.msra.mxu0 0.0
    %767 = vmatprep.subr.mxu0 0.0
    %768 = vmatpush1.msra.mxu0 0.0
    %769 = vmatprep.subr.mxu0 0.0
    %770 = vmatpush1.msra.mxu0 0.0
    %771 = vmatprep.mubr.f32.mxu0 0.0
    %772 = vmatmul.mubr.f32.gmra.mrb[0].mxu0 %v705
    %v773 = vpop.f32.mrb[0].mxu0
    %v774 = vadd.f32 0.0, %v773
    %v775 = vpop.f32.mrb[0].mxu0
    %776 = vdwg.mxu0
    %v777 = vadd.f32 %v689, %v774
    %v778 = vld [vmem:[%s313 + $0x1] sm:$0x1]
    %v779 = vld [vmem:[%s313 + $0x31] sm:$0x1]
    %s780 = scalar_lea.vmem %s3, 320
    %v781 = vld [vmem:[%s780] sm:$0xff]
    %v782 = vld [vmem:[%s780 + $0x8] sm:$0xff]
    %v783 = vld [vmem:[%s780 + $0x10] sm:$0xff]
    %v784 = vld [vmem:[%s780 + $0x18] sm:$0xff]
    %v785 = vld [vmem:[%s780 + $0x20] sm:$0xff]
    %v786 = vld [vmem:[%s780 + $0x28] sm:$0xff]
    %v787 = vld [vmem:[%s780 + $0x30] sm:$0xff]
    %v788 = vld [vmem:[%s780 + $0x38] sm:$0xff]
    %v791 = vrot.slane %v779, 7
    %v792 = vsel %vm363, %v791, %v778
    %v793 = vsel %vm365, %v792, 0
    %795 = vmatprep.subr.mxu0 0.0
    %796 = vmatpush1.msra.mxu0 %v781
    %797 = vmatprep.subr.mxu0 0.0
    %798 = vmatpush1.msra.mxu0 %v782
    %799 = vmatprep.subr.mxu0 0.0
    %800 = vmatpush1.msra.mxu0 %v783
    %801 = vmatprep.subr.mxu0 0.0
    %802 = vmatpush1.msra.mxu0 %v784
    %803 = vmatprep.subr.mxu0 0.0
    %804 = vmatpush1.msra.mxu0 %v785
    %805 = vmatprep.subr.mxu0 0.0
    %806 = vmatpush1.msra.mxu0 %v786
    %807 = vmatprep.subr.mxu0 0.0
    %808 = vmatpush1.msra.mxu0 %v787
    %809 = vmatprep.subr.mxu0 0.0
    %810 = vmatpush1.msra.mxu0 %v788
    %811 = vmatprep.subr.mxu0 0.0
    %812 = vmatpush1.msra.mxu0 0.0
    %813 = vmatprep.subr.mxu0 0.0
    %814 = vmatpush1.msra.mxu0 0.0
    %815 = vmatprep.subr.mxu0 0.0
    %816 = vmatpush1.msra.mxu0 0.0
    %817 = vmatprep.subr.mxu0 0.0
    %818 = vmatpush1.msra.mxu0 0.0
    %819 = vmatprep.subr.mxu0 0.0
    %820 = vmatpush1.msra.mxu0 0.0
    %821 = vmatprep.subr.mxu0 0.0
    %822 = vmatpush1.msra.mxu0 0.0
    %823 = vmatprep.subr.mxu0 0.0
    %824 = vmatpush1.msra.mxu0 0.0
    %825 = vmatprep.subr.mxu0 0.0
    %826 = vmatpush1.msra.mxu0 0.0
    %827 = vmatprep.subr.mxu0 0.0
    %828 = vmatpush1.msra.mxu0 0.0
    %829 = vmatprep.subr.mxu0 0.0
    %830 = vmatpush1.msra.mxu0 0.0
    %831 = vmatprep.subr.mxu0 0.0
    %832 = vmatpush1.msra.mxu0 0.0
    %833 = vmatprep.subr.mxu0 0.0
    %834 = vmatpush1.msra.mxu0 0.0
    %835 = vmatprep.subr.mxu0 0.0
    %836 = vmatpush1.msra.mxu0 0.0
    %837 = vmatprep.subr.mxu0 0.0
    %838 = vmatpush1.msra.mxu0 0.0
    %839 = vmatprep.subr.mxu0 0.0
    %840 = vmatpush1.msra.mxu0 0.0
    %841 = vmatprep.subr.mxu0 0.0
    %842 = vmatpush1.msra.mxu0 0.0
    %843 = vmatprep.subr.mxu0 0.0
    %844 = vmatpush1.msra.mxu0 0.0
    %845 = vmatprep.subr.mxu0 0.0
    %846 = vmatpush1.msra.mxu0 0.0
    %847 = vmatprep.subr.mxu0 0.0
    %848 = vmatpush1.msra.mxu0 0.0
    %849 = vmatprep.subr.mxu0 0.0
    %850 = vmatpush1.msra.mxu0 0.0
    %851 = vmatprep.subr.mxu0 0.0
    %852 = vmatpush1.msra.mxu0 0.0
    %853 = vmatprep.subr.mxu0 0.0
    %854 = vmatpush1.msra.mxu0 0.0
    %855 = vmatprep.subr.mxu0 0.0
    %856 = vmatpush1.msra.mxu0 0.0
    %857 = vmatprep.subr.mxu0 0.0
    %858 = vmatpush1.msra.mxu0 0.0
    %859 = vmatprep.mubr.f32.mxu0 0.0
    %860 = vmatmul.mubr.f32.gmra.mrb[0].mxu0 %v793
    %v861 = vpop.f32.mrb[0].mxu0
    %v862 = vadd.f32 0.0, %v861
    %v863 = vpop.f32.mrb[0].mxu0
    %864 = vdwg.mxu0
    %v865 = vadd.f32 %v777, %v862
    %v866 = vld [vmem:[%s313 + $0x2] sm:$0x1]
    %v867 = vld [vmem:[%s313 + $0x32] sm:$0x1]
    %s868 = scalar_lea.vmem %s3, 384
    %v869 = vld [vmem:[%s868] sm:$0xff]
    %v870 = vld [vmem:[%s868 + $0x8] sm:$0xff]
    %v871 = vld [vmem:[%s868 + $0x10] sm:$0xff]
    %v872 = vld [vmem:[%s868 + $0x18] sm:$0xff]
    %v873 = vld [vmem:[%s868 + $0x20] sm:$0xff]
    %v874 = vld [vmem:[%s868 + $0x28] sm:$0xff]
    %v875 = vld [vmem:[%s868 + $0x30] sm:$0xff]
    %v876 = vld [vmem:[%s868 + $0x38] sm:$0xff]
    %v879 = vrot.slane %v867, 7
    %v880 = vsel %vm363, %v879, %v866
    %v881 = vsel %vm365, %v880, 0
    %883 = vmatprep.subr.mxu0 0.0
    %884 = vmatpush1.msra.mxu0 %v869
    %885 = vmatprep.subr.mxu0 0.0
    %886 = vmatpush1.msra.mxu0 %v870
    %887 = vmatprep.subr.mxu0 0.0
    %888 = vmatpush1.msra.mxu0 %v871
    %889 = vmatprep.subr.mxu0 0.0
    %890 = vmatpush1.msra.mxu0 %v872
    %891 = vmatprep.subr.mxu0 0.0
    %892 = vmatpush1.msra.mxu0 %v873
    %893 = vmatprep.subr.mxu0 0.0
    %894 = vmatpush1.msra.mxu0 %v874
    %895 = vmatprep.subr.mxu0 0.0
    %896 = vmatpush1.msra.mxu0 %v875
    %897 = vmatprep.subr.mxu0 0.0
    %898 = vmatpush1.msra.mxu0 %v876
    %899 = vmatprep.subr.mxu0 0.0
    %900 = vmatpush1.msra.mxu0 0.0
    %901 = vmatprep.subr.mxu0 0.0
    %902 = vmatpush1.msra.mxu0 0.0
    %903 = vmatprep.subr.mxu0 0.0
    %904 = vmatpush1.msra.mxu0 0.0
    %905 = vmatprep.subr.mxu0 0.0
    %906 = vmatpush1.msra.mxu0 0.0
    %907 = vmatprep.subr.mxu0 0.0
    %908 = vmatpush1.msra.mxu0 0.0
    %909 = vmatprep.subr.mxu0 0.0
    %910 = vmatpush1.msra.mxu0 0.0
    %911 = vmatprep.subr.mxu0 0.0
    %912 = vmatpush1.msra.mxu0 0.0
    %913 = vmatprep.subr.mxu0 0.0
    %914 = vmatpush1.msra.mxu0 0.0
    %915 = vmatprep.subr.mxu0 0.0
    %916 = vmatpush1.msra.mxu0 0.0
    %917 = vmatprep.subr.mxu0 0.0
    %918 = vmatpush1.msra.mxu0 0.0
    %919 = vmatprep.subr.mxu0 0.0
    %920 = vmatpush1.msra.mxu0 0.0
    %921 = vmatprep.subr.mxu0 0.0
    %922 = vmatpush1.msra.mxu0 0.0
    %923 = vmatprep.subr.mxu0 0.0
    %924 = vmatpush1.msra.mxu0 0.0
    %925 = vmatprep.subr.mxu0 0.0
    %926 = vmatpush1.msra.mxu0 0.0
    %927 = vmatprep.subr.mxu0 0.0
    %928 = vmatpush1.msra.mxu0 0.0
    %929 = vmatprep.subr.mxu0 0.0
    %930 = vmatpush1.msra.mxu0 0.0
    %931 = vmatprep.subr.mxu0 0.0
    %932 = vmatpush1.msra.mxu0 0.0
    %933 = vmatprep.subr.mxu0 0.0
    %934 = vmatpush1.msra.mxu0 0.0
    %935 = vmatprep.subr.mxu0 0.0
    %936 = vmatpush1.msra.mxu0 0.0
    %937 = vmatprep.subr.mxu0 0.0
    %938 = vmatpush1.msra.mxu0 0.0
    %939 = vmatprep.subr.mxu0 0.0
    %940 = vmatpush1.msra.mxu0 0.0
    %941 = vmatprep.subr.mxu0 0.0
    %942 = vmatpush1.msra.mxu0 0.0
    %943 = vmatprep.subr.mxu0 0.0
    %944 = vmatpush1.msra.mxu0 0.0
    %945 = vmatprep.subr.mxu0 0.0
    %946 = vmatpush1.msra.mxu0 0.0
    %947 = vmatprep.mubr.f32.mxu0 0.0
    %948 = vmatmul.mubr.f32.gmra.mrb[0].mxu0 %v881
    %v949 = vpop.f32.mrb[0].mxu0
    %v950 = vadd.f32 0.0, %v949
    %v951 = vpop.f32.mrb[0].mxu0
    %952 = vdwg.mxu0
    %v953 = vadd.f32 %v865, %v950
    %v954 = vld [vmem:[%s313 + $0x3] sm:$0x1]
    %v955 = vld [vmem:[%s313 + $0x33] sm:$0x1]
    %s956 = scalar_lea.vmem %s3, 448
    %v957 = vld [vmem:[%s956] sm:$0xff]
    %v958 = vld [vmem:[%s956 + $0x8] sm:$0xff]
    %v959 = vld [vmem:[%s956 + $0x10] sm:$0xff]
    %v960 = vld [vmem:[%s956 + $0x18] sm:$0xff]
    %v961 = vld [vmem:[%s956 + $0x20] sm:$0xff]
    %v962 = vld [vmem:[%s956 + $0x28] sm:$0xff]
    %v963 = vld [vmem:[%s956 + $0x30] sm:$0xff]
    %v964 = vld [vmem:[%s956 + $0x38] sm:$0xff]
    %v967 = vrot.slane %v955, 7
    %v968 = vsel %vm363, %v967, %v954
    %v969 = vsel %vm365, %v968, 0
    %971 = vmatprep.subr.mxu0 0.0
    %972 = vmatpush1.msra.mxu0 %v957
    %973 = vmatprep.subr.mxu0 0.0
    %974 = vmatpush1.msra.mxu0 %v958
    %975 = vmatprep.subr.mxu0 0.0
    %976 = vmatpush1.msra.mxu0 %v959
    %977 = vmatprep.subr.mxu0 0.0
    %978 = vmatpush1.msra.mxu0 %v960
    %979 = vmatprep.subr.mxu0 0.0
    %980 = vmatpush1.msra.mxu0 %v961
    %981 = vmatprep.subr.mxu0 0.0
    %982 = vmatpush1.msra.mxu0 %v962
    %983 = vmatprep.subr.mxu0 0.0
    %984 = vmatpush1.msra.mxu0 %v963
    %985 = vmatprep.subr.mxu0 0.0
    %986 = vmatpush1.msra.mxu0 %v964
    %987 = vmatprep.subr.mxu0 0.0
    %988 = vmatpush1.msra.mxu0 0.0
    %989 = vmatprep.subr.mxu0 0.0
    %990 = vmatpush1.msra.mxu0 0.0
    %991 = vmatprep.subr.mxu0 0.0
    %992 = vmatpush1.msra.mxu0 0.0
    %993 = vmatprep.subr.mxu0 0.0
    %994 = vmatpush1.msra.mxu0 0.0
    %995 = vmatprep.subr.mxu0 0.0
    %996 = vmatpush1.msra.mxu0 0.0
    %997 = vmatprep.subr.mxu0 0.0
    %998 = vmatpush1.msra.mxu0 0.0
    %999 = vmatprep.subr.mxu0 0.0
    %1000 = vmatpush1.msra.mxu0 0.0
    %1001 = vmatprep.subr.mxu0 0.0
    %1002 = vmatpush1.msra.mxu0 0.0
    %1003 = vmatprep.subr.mxu0 0.0
    %1004 = vmatpush1.msra.mxu0 0.0
    %1005 = vmatprep.subr.mxu0 0.0
    %1006 = vmatpush1.msra.mxu0 0.0
    %1007 = vmatprep.subr.mxu0 0.0
    %1008 = vmatpush1.msra.mxu0 0.0
    %1009 = vmatprep.subr.mxu0 0.0
    %1010 = vmatpush1.msra.mxu0 0.0
    %1011 = vmatprep.subr.mxu0 0.0
    %1012 = vmatpush1.msra.mxu0 0.0
    %1013 = vmatprep.subr.mxu0 0.0
    %1014 = vmatpush1.msra.mxu0 0.0
    %1015 = vmatprep.subr.mxu0 0.0
    %1016 = vmatpush1.msra.mxu0 0.0
    %1017 = vmatprep.subr.mxu0 0.0
    %1018 = vmatpush1.msra.mxu0 0.0
    %1019 = vmatprep.subr.mxu0 0.0
    %1020 = vmatpush1.msra.mxu0 0.0
    %1021 = vmatprep.subr.mxu0 0.0
    %1022 = vmatpush1.msra.mxu0 0.0
    %1023 = vmatprep.subr.mxu0 0.0
    %1024 = vmatpush1.msra.mxu0 0.0
    %1025 = vmatprep.subr.mxu0 0.0
    %1026 = vmatpush1.msra.mxu0 0.0
    %1027 = vmatprep.subr.mxu0 0.0
    %1028 = vmatpush1.msra.mxu0 0.0
    %1029 = vmatprep.subr.mxu0 0.0
    %1030 = vmatpush1.msra.mxu0 0.0
    %1031 = vmatprep.subr.mxu0 0.0
    %1032 = vmatpush1.msra.mxu0 0.0
    %1033 = vmatprep.subr.mxu0 0.0
    %1034 = vmatpush1.msra.mxu0 0.0
    %1035 = vmatprep.mubr.f32.mxu0 0.0
    %1036 = vmatmul.mubr.f32.gmra.mrb[0].mxu0 %v969
    %v1037 = vpop.f32.mrb[0].mxu0
    %v1038 = vadd.f32 0.0, %v1037
    %v1039 = vpop.f32.mrb[0].mxu0
    %1040 = vdwg.mxu0
    %v1041 = vadd.f32 %v953, %v1038
    %v1042 = vld [vmem:[%s316] sm:$0x1]
    %v1043 = vld [vmem:[%s316 + $0x30] sm:$0x1]
    %s1044 = scalar_lea.vmem %s3, 512
    %v1045 = vld [vmem:[%s1044] sm:$0xff]
    %v1046 = vld [vmem:[%s1044 + $0x8] sm:$0xff]
    %v1047 = vld [vmem:[%s1044 + $0x10] sm:$0xff]
    %v1048 = vld [vmem:[%s1044 + $0x18] sm:$0xff]
    %v1049 = vld [vmem:[%s1044 + $0x20] sm:$0xff]
    %v1050 = vld [vmem:[%s1044 + $0x28] sm:$0xff]
    %v1051 = vld [vmem:[%s1044 + $0x30] sm:$0xff]
    %v1052 = vld [vmem:[%s1044 + $0x38] sm:$0xff]
    %v1055 = vrot.slane %v1043, 7
    %v1056 = vsel %vm363, %v1055, %v1042
    %v1057 = vsel %vm365, %v1056, 0
    %1059 = vmatprep.subr.mxu0 0.0
    %1060 = vmatpush1.msra.mxu0 %v1045
    %1061 = vmatprep.subr.mxu0 0.0
    %1062 = vmatpush1.msra.mxu0 %v1046
    %1063 = vmatprep.subr.mxu0 0.0
    %1064 = vmatpush1.msra.mxu0 %v1047
    %1065 = vmatprep.subr.mxu0 0.0
    %1066 = vmatpush1.msra.mxu0 %v1048
    %1067 = vmatprep.subr.mxu0 0.0
    %1068 = vmatpush1.msra.mxu0 %v1049
    %1069 = vmatprep.subr.mxu0 0.0
    %1070 = vmatpush1.msra.mxu0 %v1050
    %1071 = vmatprep.subr.mxu0 0.0
    %1072 = vmatpush1.msra.mxu0 %v1051
    %1073 = vmatprep.subr.mxu0 0.0
    %1074 = vmatpush1.msra.mxu0 %v1052
    %1075 = vmatprep.subr.mxu0 0.0
    %1076 = vmatpush1.msra.mxu0 0.0
    %1077 = vmatprep.subr.mxu0 0.0
    %1078 = vmatpush1.msra.mxu0 0.0
    %1079 = vmatprep.subr.mxu0 0.0
    %1080 = vmatpush1.msra.mxu0 0.0
    %1081 = vmatprep.subr.mxu0 0.0
    %1082 = vmatpush1.msra.mxu0 0.0
    %1083 = vmatprep.subr.mxu0 0.0
    %1084 = vmatpush1.msra.mxu0 0.0
    %1085 = vmatprep.subr.mxu0 0.0
    %1086 = vmatpush1.msra.mxu0 0.0
    %1087 = vmatprep.subr.mxu0 0.0
    %1088 = vmatpush1.msra.mxu0 0.0
    %1089 = vmatprep.subr.mxu0 0.0
    %1090 = vmatpush1.msra.mxu0 0.0
    %1091 = vmatprep.subr.mxu0 0.0
    %1092 = vmatpush1.msra.mxu0 0.0
    %1093 = vmatprep.subr.mxu0 0.0
    %1094 = vmatpush1.msra.mxu0 0.0
    %1095 = vmatprep.subr.mxu0 0.0
    %1096 = vmatpush1.msra.mxu0 0.0
    %1097 = vmatprep.subr.mxu0 0.0
    %1098 = vmatpush1.msra.mxu0 0.0
    %1099 = vmatprep.subr.mxu0 0.0
    %1100 = vmatpush1.msra.mxu0 0.0
    %1101 = vmatprep.subr.mxu0 0.0
    %1102 = vmatpush1.msra.mxu0 0.0
    %1103 = vmatprep.subr.mxu0 0.0
    %1104 = vmatpush1.msra.mxu0 0.0
    %1105 = vmatprep.subr.mxu0 0.0
    %1106 = vmatpush1.msra.mxu0 0.0
    %1107 = vmatprep.subr.mxu0 0.0
    %1108 = vmatpush1.msra.mxu0 0.0
    %1109 = vmatprep.subr.mxu0 0.0
    %1110 = vmatpush1.msra.mxu0 0.0
    %1111 = vmatprep.subr.mxu0 0.0
    %1112 = vmatpush1.msra.mxu0 0.0
    %1113 = vmatprep.subr.mxu0 0.0
    %1114 = vmatpush1.msra.mxu0 0.0
    %1115 = vmatprep.subr.mxu0 0.0
    %1116 = vmatpush1.msra.mxu0 0.0
    %1117 = vmatprep.subr.mxu0 0.0
    %1118 = vmatpush1.msra.mxu0 0.0
    %1119 = vmatprep.subr.mxu0 0.0
    %1120 = vmatpush1.msra.mxu0 0.0
    %1121 = vmatprep.subr.mxu0 0.0
    %1122 = vmatpush1.msra.mxu0 0.0
    %1123 = vmatprep.mubr.f32.mxu0 0.0
    %1124 = vmatmul.mubr.f32.gmra.mrb[0].mxu0 %v1057
    %v1125 = vpop.f32.mrb[0].mxu0
    %v1126 = vadd.f32 0.0, %v1125
    %v1127 = vpop.f32.mrb[0].mxu0
    %1128 = vdwg.mxu0
    %v1129 = vadd.f32 %v1041, %v1126
    %v1130 = vld [vmem:[%s316 + $0x1] sm:$0x1]
    %v1131 = vld [vmem:[%s316 + $0x31] sm:$0x1]
    %s1132 = scalar_lea.vmem %s3, 576
    %v1133 = vld [vmem:[%s1132] sm:$0xff]
    %v1134 = vld [vmem:[%s1132 + $0x8] sm:$0xff]
    %v1135 = vld [vmem:[%s1132 + $0x10] sm:$0xff]
    %v1136 = vld [vmem:[%s1132 + $0x18] sm:$0xff]
    %v1137 = vld [vmem:[%s1132 + $0x20] sm:$0xff]
    %v1138 = vld [vmem:[%s1132 + $0x28] sm:$0xff]
    %v1139 = vld [vmem:[%s1132 + $0x30] sm:$0xff]
    %v1140 = vld [vmem:[%s1132 + $0x38] sm:$0xff]
    %v1143 = vrot.slane %v1131, 7
    %v1144 = vsel %vm363, %v1143, %v1130
    %v1145 = vsel %vm365, %v1144, 0
    %1147 = vmatprep.subr.mxu0 0.0
    %1148 = vmatpush1.msra.mxu0 %v1133
    %1149 = vmatprep.subr.mxu0 0.0
    %1150 = vmatpush1.msra.mxu0 %v1134
    %1151 = vmatprep.subr.mxu0 0.0
    %1152 = vmatpush1.msra.mxu0 %v1135
    %1153 = vmatprep.subr.mxu0 0.0
    %1154 = vmatpush1.msra.mxu0 %v1136
    %1155 = vmatprep.subr.mxu0 0.0
    %1156 = vmatpush1.msra.mxu0 %v1137
    %1157 = vmatprep.subr.mxu0 0.0
    %1158 = vmatpush1.msra.mxu0 %v1138
    %1159 = vmatprep.subr.mxu0 0.0
    %1160 = vmatpush1.msra.mxu0 %v1139
    %1161 = vmatprep.subr.mxu0 0.0
    %1162 = vmatpush1.msra.mxu0 %v1140
    %1163 = vmatprep.subr.mxu0 0.0
    %1164 = vmatpush1.msra.mxu0 0.0
    %1165 = vmatprep.subr.mxu0 0.0
    %1166 = vmatpush1.msra.mxu0 0.0
    %1167 = vmatprep.subr.mxu0 0.0
    %1168 = vmatpush1.msra.mxu0 0.0
    %1169 = vmatprep.subr.mxu0 0.0
    %1170 = vmatpush1.msra.mxu0 0.0
    %1171 = vmatprep.subr.mxu0 0.0
    %1172 = vmatpush1.msra.mxu0 0.0
    %1173 = vmatprep.subr.mxu0 0.0
    %1174 = vmatpush1.msra.mxu0 0.0
    %1175 = vmatprep.subr.mxu0 0.0
    %1176 = vmatpush1.msra.mxu0 0.0
    %1177 = vmatprep.subr.mxu0 0.0
    %1178 = vmatpush1.msra.mxu0 0.0
    %1179 = vmatprep.subr.mxu0 0.0
    %1180 = vmatpush1.msra.mxu0 0.0
    %1181 = vmatprep.subr.mxu0 0.0
    %1182 = vmatpush1.msra.mxu0 0.0
    %1183 = vmatprep.subr.mxu0 0.0
    %1184 = vmatpush1.msra.mxu0 0.0
    %1185 = vmatprep.subr.mxu0 0.0
    %1186 = vmatpush1.msra.mxu0 0.0
    %1187 = vmatprep.subr.mxu0 0.0
    %1188 = vmatpush1.msra.mxu0 0.0
    %1189 = vmatprep.subr.mxu0 0.0
    %1190 = vmatpush1.msra.mxu0 0.0
    %1191 = vmatprep.subr.mxu0 0.0
    %1192 = vmatpush1.msra.mxu0 0.0
    %1193 = vmatprep.subr.mxu0 0.0
    %1194 = vmatpush1.msra.mxu0 0.0
    %1195 = vmatprep.subr.mxu0 0.0
    %1196 = vmatpush1.msra.mxu0 0.0
    %1197 = vmatprep.subr.mxu0 0.0
    %1198 = vmatpush1.msra.mxu0 0.0
    %1199 = vmatprep.subr.mxu0 0.0
    %1200 = vmatpush1.msra.mxu0 0.0
    %1201 = vmatprep.subr.mxu0 0.0
    %1202 = vmatpush1.msra.mxu0 0.0
    %1203 = vmatprep.subr.mxu0 0.0
    %1204 = vmatpush1.msra.mxu0 0.0
    %1205 = vmatprep.subr.mxu0 0.0
    %1206 = vmatpush1.msra.mxu0 0.0
    %1207 = vmatprep.subr.mxu0 0.0
    %1208 = vmatpush1.msra.mxu0 0.0
    %1209 = vmatprep.subr.mxu0 0.0
    %1210 = vmatpush1.msra.mxu0 0.0
    %1211 = vmatprep.mubr.f32.mxu0 0.0
    %1212 = vmatmul.mubr.f32.gmra.mrb[0].mxu0 %v1145
    %v1213 = vpop.f32.mrb[0].mxu0
    %v1214 = vadd.f32 0.0, %v1213
    %v1215 = vpop.f32.mrb[0].mxu0
    %1216 = vdwg.mxu0
    %v1217 = vadd.f32 %v1129, %v1214
    %v1218 = vld [vmem:[%s316 + $0x2] sm:$0x1]
    %v1219 = vld [vmem:[%s316 + $0x32] sm:$0x1]
    %s1220 = scalar_lea.vmem %s3, 640
    %v1221 = vld [vmem:[%s1220] sm:$0xff]
    %v1222 = vld [vmem:[%s1220 + $0x8] sm:$0xff]
    %v1223 = vld [vmem:[%s1220 + $0x10] sm:$0xff]
    %v1224 = vld [vmem:[%s1220 + $0x18] sm:$0xff]
    %v1225 = vld [vmem:[%s1220 + $0x20] sm:$0xff]
    %v1226 = vld [vmem:[%s1220 + $0x28] sm:$0xff]
    %v1227 = vld [vmem:[%s1220 + $0x30] sm:$0xff]
    %v1228 = vld [vmem:[%s1220 + $0x38] sm:$0xff]
    %v1231 = vrot.slane %v1219, 7
    %v1232 = vsel %vm363, %v1231, %v1218
    %v1233 = vsel %vm365, %v1232, 0
    %1235 = vmatprep.subr.mxu0 0.0
    %1236 = vmatpush1.msra.mxu0 %v1221
    %1237 = vmatprep.subr.mxu0 0.0
    %1238 = vmatpush1.msra.mxu0 %v1222
    %1239 = vmatprep.subr.mxu0 0.0
    %1240 = vmatpush1.msra.mxu0 %v1223
    %1241 = vmatprep.subr.mxu0 0.0
    %1242 = vmatpush1.msra.mxu0 %v1224
    %1243 = vmatprep.subr.mxu0 0.0
    %1244 = vmatpush1.msra.mxu0 %v1225
    %1245 = vmatprep.subr.mxu0 0.0
    %1246 = vmatpush1.msra.mxu0 %v1226
    %1247 = vmatprep.subr.mxu0 0.0
    %1248 = vmatpush1.msra.mxu0 %v1227
    %1249 = vmatprep.subr.mxu0 0.0
    %1250 = vmatpush1.msra.mxu0 %v1228
    %1251 = vmatprep.subr.mxu0 0.0
    %1252 = vmatpush1.msra.mxu0 0.0
    %1253 = vmatprep.subr.mxu0 0.0
    %1254 = vmatpush1.msra.mxu0 0.0
    %1255 = vmatprep.subr.mxu0 0.0
    %1256 = vmatpush1.msra.mxu0 0.0
    %1257 = vmatprep.subr.mxu0 0.0
    %1258 = vmatpush1.msra.mxu0 0.0
    %1259 = vmatprep.subr.mxu0 0.0
    %1260 = vmatpush1.msra.mxu0 0.0
    %1261 = vmatprep.subr.mxu0 0.0
    %1262 = vmatpush1.msra.mxu0 0.0
    %1263 = vmatprep.subr.mxu0 0.0
    %1264 = vmatpush1.msra.mxu0 0.0
    %1265 = vmatprep.subr.mxu0 0.0
    %1266 = vmatpush1.msra.mxu0 0.0
    %1267 = vmatprep.subr.mxu0 0.0
    %1268 = vmatpush1.msra.mxu0 0.0
    %1269 = vmatprep.subr.mxu0 0.0
    %1270 = vmatpush1.msra.mxu0 0.0
    %1271 = vmatprep.subr.mxu0 0.0
    %1272 = vmatpush1.msra.mxu0 0.0
    %1273 = vmatprep.subr.mxu0 0.0
    %1274 = vmatpush1.msra.mxu0 0.0
    %1275 = vmatprep.subr.mxu0 0.0
    %1276 = vmatpush1.msra.mxu0 0.0
    %1277 = vmatprep.subr.mxu0 0.0
    %1278 = vmatpush1.msra.mxu0 0.0
    %1279 = vmatprep.subr.mxu0 0.0
    %1280 = vmatpush1.msra.mxu0 0.0
    %1281 = vmatprep.subr.mxu0 0.0
    %1282 = vmatpush1.msra.mxu0 0.0
    %1283 = vmatprep.subr.mxu0 0.0
    %1284 = vmatpush1.msra.mxu0 0.0
    %1285 = vmatprep.subr.mxu0 0.0
    %1286 = vmatpush1.msra.mxu0 0.0
    %1287 = vmatprep.subr.mxu0 0.0
    %1288 = vmatpush1.msra.mxu0 0.0
    %1289 = vmatprep.subr.mxu0 0.0
    %1290 = vmatpush1.msra.mxu0 0.0
    %1291 = vmatprep.subr.mxu0 0.0
    %1292 = vmatpush1.msra.mxu0 0.0
    %1293 = vmatprep.subr.mxu0 0.0
    %1294 = vmatpush1.msra.mxu0 0.0
    %1295 = vmatprep.subr.mxu0 0.0
    %1296 = vmatpush1.msra.mxu0 0.0
    %1297 = vmatprep.subr.mxu0 0.0
    %1298 = vmatpush1.msra.mxu0 0.0
    %1299 = vmatprep.mubr.f32.mxu0 0.0
    %1300 = vmatmul.mubr.f32.gmra.mrb[0].mxu0 %v1233
    %v1301 = vpop.f32.mrb[0].mxu0
    %v1302 = vadd.f32 0.0, %v1301
    %v1303 = vpop.f32.mrb[0].mxu0
    %1304 = vdwg.mxu0
    %v1305 = vadd.f32 %v1217, %v1302
    %v1306 = vld [vmem:[%s316 + $0x3] sm:$0x1]
    %v1307 = vld [vmem:[%s316 + $0x33] sm:$0x1]
    %s1308 = scalar_lea.vmem %s3, 704
    %v1309 = vld [vmem:[%s1308] sm:$0xff]
    %v1310 = vld [vmem:[%s1308 + $0x8] sm:$0xff]
    %v1311 = vld [vmem:[%s1308 + $0x10] sm:$0xff]
    %v1312 = vld [vmem:[%s1308 + $0x18] sm:$0xff]
    %v1313 = vld [vmem:[%s1308 + $0x20] sm:$0xff]
    %v1314 = vld [vmem:[%s1308 + $0x28] sm:$0xff]
    %v1315 = vld [vmem:[%s1308 + $0x30] sm:$0xff]
    %v1316 = vld [vmem:[%s1308 + $0x38] sm:$0xff]
    %v1319 = vrot.slane %v1307, 7
    %v1320 = vsel %vm363, %v1319, %v1306
    %v1321 = vsel %vm365, %v1320, 0
    %1323 = vmatprep.subr.mxu0 0.0
    %1324 = vmatpush1.msra.mxu0 %v1309
    %1325 = vmatprep.subr.mxu0 0.0
    %1326 = vmatpush1.msra.mxu0 %v1310
    %1327 = vmatprep.subr.mxu0 0.0
    %1328 = vmatpush1.msra.mxu0 %v1311
    %1329 = vmatprep.subr.mxu0 0.0
    %1330 = vmatpush1.msra.mxu0 %v1312
    %1331 = vmatprep.subr.mxu0 0.0
    %1332 = vmatpush1.msra.mxu0 %v1313
    %1333 = vmatprep.subr.mxu0 0.0
    %1334 = vmatpush1.msra.mxu0 %v1314
    %1335 = vmatprep.subr.mxu0 0.0
    %1336 = vmatpush1.msra.mxu0 %v1315
    %1337 = vmatprep.subr.mxu0 0.0
    %1338 = vmatpush1.msra.mxu0 %v1316
    %1339 = vmatprep.subr.mxu0 0.0
    %1340 = vmatpush1.msra.mxu0 0.0
    %1341 = vmatprep.subr.mxu0 0.0
    %1342 = vmatpush1.msra.mxu0 0.0
    %1343 = vmatprep.subr.mxu0 0.0
    %1344 = vmatpush1.msra.mxu0 0.0
    %1345 = vmatprep.subr.mxu0 0.0
    %1346 = vmatpush1.msra.mxu0 0.0
    %1347 = vmatprep.subr.mxu0 0.0
    %1348 = vmatpush1.msra.mxu0 0.0
    %1349 = vmatprep.subr.mxu0 0.0
    %1350 = vmatpush1.msra.mxu0 0.0
    %1351 = vmatprep.subr.mxu0 0.0
    %1352 = vmatpush1.msra.mxu0 0.0
    %1353 = vmatprep.subr.mxu0 0.0
    %1354 = vmatpush1.msra.mxu0 0.0
    %1355 = vmatprep.subr.mxu0 0.0
    %1356 = vmatpush1.msra.mxu0 0.0
    %1357 = vmatprep.subr.mxu0 0.0
    %1358 = vmatpush1.msra.mxu0 0.0
    %1359 = vmatprep.subr.mxu0 0.0
    %1360 = vmatpush1.msra.mxu0 0.0
    %1361 = vmatprep.subr.mxu0 0.0
    %1362 = vmatpush1.msra.mxu0 0.0
    %1363 = vmatprep.subr.mxu0 0.0
    %1364 = vmatpush1.msra.mxu0 0.0
    %1365 = vmatprep.subr.mxu0 0.0
    %1366 = vmatpush1.msra.mxu0 0.0
    %1367 = vmatprep.subr.mxu0 0.0
    %1368 = vmatpush1.msra.mxu0 0.0
    %1369 = vmatprep.subr.mxu0 0.0
    %1370 = vmatpush1.msra.mxu0 0.0
    %1371 = vmatprep.subr.mxu0 0.0
    %1372 = vmatpush1.msra.mxu0 0.0
    %1373 = vmatprep.subr.mxu0 0.0
    %1374 = vmatpush1.msra.mxu0 0.0
    %1375 = vmatprep.subr.mxu0 0.0
    %1376 = vmatpush1.msra.mxu0 0.0
    %1377 = vmatprep.subr.mxu0 0.0
    %1378 = vmatpush1.msra.mxu0 0.0
    %1379 = vmatprep.subr.mxu0 0.0
    %1380 = vmatpush1.msra.mxu0 0.0
    %1381 = vmatprep.subr.mxu0 0.0
    %1382 = vmatpush1.msra.mxu0 0.0
    %1383 = vmatprep.subr.mxu0 0.0
    %1384 = vmatpush1.msra.mxu0 0.0
    %1385 = vmatprep.subr.mxu0 0.0
    %1386 = vmatpush1.msra.mxu0 0.0
    %1387 = vmatprep.mubr.f32.mxu0 0.0
    %1388 = vmatmul.mubr.f32.gmra.mrb[0].mxu0 %v1321
    %v1389 = vpop.f32.mrb[0].mxu0
    %v1390 = vadd.f32 0.0, %v1389
    %v1391 = vpop.f32.mrb[0].mxu0
    %1392 = vdwg.mxu0
    %v1393 = vadd.f32 %v1305, %v1390
    %v1394 = vld [vmem:[%s319] sm:$0x1]
    %v1395 = vld [vmem:[%s319 + $0x30] sm:$0x1]
    %s1396 = scalar_lea.vmem %s3, 768
    %v1397 = vld [vmem:[%s1396] sm:$0xff]
    %v1398 = vld [vmem:[%s1396 + $0x8] sm:$0xff]
    %v1399 = vld [vmem:[%s1396 + $0x10] sm:$0xff]
    %v1400 = vld [vmem:[%s1396 + $0x18] sm:$0xff]
    %v1401 = vld [vmem:[%s1396 + $0x20] sm:$0xff]
    %v1402 = vld [vmem:[%s1396 + $0x28] sm:$0xff]
    %v1403 = vld [vmem:[%s1396 + $0x30] sm:$0xff]
    %v1404 = vld [vmem:[%s1396 + $0x38] sm:$0xff]
    %v1407 = vrot.slane %v1395, 7
    %v1408 = vsel %vm363, %v1407, %v1394
    %v1409 = vsel %vm365, %v1408, 0
    %1411 = vmatprep.subr.mxu0 0.0
    %1412 = vmatpush1.msra.mxu0 %v1397
    %1413 = vmatprep.subr.mxu0 0.0
    %1414 = vmatpush1.msra.mxu0 %v1398
    %1415 = vmatprep.subr.mxu0 0.0
    %1416 = vmatpush1.msra.mxu0 %v1399
    %1417 = vmatprep.subr.mxu0 0.0
    %1418 = vmatpush1.msra.mxu0 %v1400
    %1419 = vmatprep.subr.mxu0 0.0
    %1420 = vmatpush1.msra.mxu0 %v1401
    %1421 = vmatprep.subr.mxu0 0.0
    %1422 = vmatpush1.msra.mxu0 %v1402
    %1423 = vmatprep.subr.mxu0 0.0
    %1424 = vmatpush1.msra.mxu0 %v1403
    %1425 = vmatprep.subr.mxu0 0.0
    %1426 = vmatpush1.msra.mxu0 %v1404
    %1427 = vmatprep.subr.mxu0 0.0
    %1428 = vmatpush1.msra.mxu0 0.0
    %1429 = vmatprep.subr.mxu0 0.0
    %1430 = vmatpush1.msra.mxu0 0.0
    %1431 = vmatprep.subr.mxu0 0.0
    %1432 = vmatpush1.msra.mxu0 0.0
    %1433 = vmatprep.subr.mxu0 0.0
    %1434 = vmatpush1.msra.mxu0 0.0
    %1435 = vmatprep.subr.mxu0 0.0
    %1436 = vmatpush1.msra.mxu0 0.0
    %1437 = vmatprep.subr.mxu0 0.0
    %1438 = vmatpush1.msra.mxu0 0.0
    %1439 = vmatprep.subr.mxu0 0.0
    %1440 = vmatpush1.msra.mxu0 0.0
    %1441 = vmatprep.subr.mxu0 0.0
    %1442 = vmatpush1.msra.mxu0 0.0
    %1443 = vmatprep.subr.mxu0 0.0
    %1444 = vmatpush1.msra.mxu0 0.0
    %1445 = vmatprep.subr.mxu0 0.0
    %1446 = vmatpush1.msra.mxu0 0.0
    %1447 = vmatprep.subr.mxu0 0.0
    %1448 = vmatpush1.msra.mxu0 0.0
    %1449 = vmatprep.subr.mxu0 0.0
    %1450 = vmatpush1.msra.mxu0 0.0
    %1451 = vmatprep.subr.mxu0 0.0
    %1452 = vmatpush1.msra.mxu0 0.0
    %1453 = vmatprep.subr.mxu0 0.0
    %1454 = vmatpush1.msra.mxu0 0.0
    %1455 = vmatprep.subr.mxu0 0.0
    %1456 = vmatpush1.msra.mxu0 0.0
    %1457 = vmatprep.subr.mxu0 0.0
    %1458 = vmatpush1.msra.mxu0 0.0
    %1459 = vmatprep.subr.mxu0 0.0
    %1460 = vmatpush1.msra.mxu0 0.0
    %1461 = vmatprep.subr.mxu0 0.0
    %1462 = vmatpush1.msra.mxu0 0.0
    %1463 = vmatprep.subr.mxu0 0.0
    %1464 = vmatpush1.msra.mxu0 0.0
    %1465 = vmatprep.subr.mxu0 0.0
    %1466 = vmatpush1.msra.mxu0 0.0
    %1467 = vmatprep.subr.mxu0 0.0
    %1468 = vmatpush1.msra.mxu0 0.0
    %1469 = vmatprep.subr.mxu0 0.0
    %1470 = vmatpush1.msra.mxu0 0.0
    %1471 = vmatprep.subr.mxu0 0.0
    %1472 = vmatpush1.msra.mxu0 0.0
    %1473 = vmatprep.subr.mxu0 0.0
    %1474 = vmatpush1.msra.mxu0 0.0
    %1475 = vmatprep.mubr.f32.mxu0 0.0
    %1476 = vmatmul.mubr.f32.gmra.mrb[0].mxu0 %v1409
    %v1477 = vpop.f32.mrb[0].mxu0
    %v1478 = vadd.f32 0.0, %v1477
    %v1479 = vpop.f32.mrb[0].mxu0
    %1480 = vdwg.mxu0
    %v1481 = vadd.f32 %v1393, %v1478
    %v1482 = vld [vmem:[%s319 + $0x1] sm:$0x1]
    %v1483 = vld [vmem:[%s319 + $0x31] sm:$0x1]
    %s1484 = scalar_lea.vmem %s3, 832
    %v1485 = vld [vmem:[%s1484] sm:$0xff]
    %v1486 = vld [vmem:[%s1484 + $0x8] sm:$0xff]
    %v1487 = vld [vmem:[%s1484 + $0x10] sm:$0xff]
    %v1488 = vld [vmem:[%s1484 + $0x18] sm:$0xff]
    %v1489 = vld [vmem:[%s1484 + $0x20] sm:$0xff]
    %v1490 = vld [vmem:[%s1484 + $0x28] sm:$0xff]
    %v1491 = vld [vmem:[%s1484 + $0x30] sm:$0xff]
    %v1492 = vld [vmem:[%s1484 + $0x38] sm:$0xff]
    %v1495 = vrot.slane %v1483, 7
    %v1496 = vsel %vm363, %v1495, %v1482
    %v1497 = vsel %vm365, %v1496, 0
    %1499 = vmatprep.subr.mxu0 0.0
    %1500 = vmatpush1.msra.mxu0 %v1485
    %1501 = vmatprep.subr.mxu0 0.0
    %1502 = vmatpush1.msra.mxu0 %v1486
    %1503 = vmatprep.subr.mxu0 0.0
    %1504 = vmatpush1.msra.mxu0 %v1487
    %1505 = vmatprep.subr.mxu0 0.0
    %1506 = vmatpush1.msra.mxu0 %v1488
    %1507 = vmatprep.subr.mxu0 0.0
    %1508 = vmatpush1.msra.mxu0 %v1489
    %1509 = vmatprep.subr.mxu0 0.0
    %1510 = vmatpush1.msra.mxu0 %v1490
    %1511 = vmatprep.subr.mxu0 0.0
    %1512 = vmatpush1.msra.mxu0 %v1491
    %1513 = vmatprep.subr.mxu0 0.0
    %1514 = vmatpush1.msra.mxu0 %v1492
    %1515 = vmatprep.subr.mxu0 0.0
    %1516 = vmatpush1.msra.mxu0 0.0
    %1517 = vmatprep.subr.mxu0 0.0
    %1518 = vmatpush1.msra.mxu0 0.0
    %1519 = vmatprep.subr.mxu0 0.0
    %1520 = vmatpush1.msra.mxu0 0.0
    %1521 = vmatprep.subr.mxu0 0.0
    %1522 = vmatpush1.msra.mxu0 0.0
    %1523 = vmatprep.subr.mxu0 0.0
    %1524 = vmatpush1.msra.mxu0 0.0
    %1525 = vmatprep.subr.mxu0 0.0
    %1526 = vmatpush1.msra.mxu0 0.0
    %1527 = vmatprep.subr.mxu0 0.0
    %1528 = vmatpush1.msra.mxu0 0.0
    %1529 = vmatprep.subr.mxu0 0.0
    %1530 = vmatpush1.msra.mxu0 0.0
    %1531 = vmatprep.subr.mxu0 0.0
    %1532 = vmatpush1.msra.mxu0 0.0
    %1533 = vmatprep.subr.mxu0 0.0
    %1534 = vmatpush1.msra.mxu0 0.0
    %1535 = vmatprep.subr.mxu0 0.0
    %1536 = vmatpush1.msra.mxu0 0.0
    %1537 = vmatprep.subr.mxu0 0.0
    %1538 = vmatpush1.msra.mxu0 0.0
    %1539 = vmatprep.subr.mxu0 0.0
    %1540 = vmatpush1.msra.mxu0 0.0
    %1541 = vmatprep.subr.mxu0 0.0
    %1542 = vmatpush1.msra.mxu0 0.0
    %1543 = vmatprep.subr.mxu0 0.0
    %1544 = vmatpush1.msra.mxu0 0.0
    %1545 = vmatprep.subr.mxu0 0.0
    %1546 = vmatpush1.msra.mxu0 0.0
    %1547 = vmatprep.subr.mxu0 0.0
    %1548 = vmatpush1.msra.mxu0 0.0
    %1549 = vmatprep.subr.mxu0 0.0
    %1550 = vmatpush1.msra.mxu0 0.0
    %1551 = vmatprep.subr.mxu0 0.0
    %1552 = vmatpush1.msra.mxu0 0.0
    %1553 = vmatprep.subr.mxu0 0.0
    %1554 = vmatpush1.msra.mxu0 0.0
    %1555 = vmatprep.subr.mxu0 0.0
    %1556 = vmatpush1.msra.mxu0 0.0
    %1557 = vmatprep.subr.mxu0 0.0
    %1558 = vmatpush1.msra.mxu0 0.0
    %1559 = vmatprep.subr.mxu0 0.0
    %1560 = vmatpush1.msra.mxu0 0.0
    %1561 = vmatprep.subr.mxu0 0.0
    %1562 = vmatpush1.msra.mxu0 0.0
    %1563 = vmatprep.mubr.f32.mxu0 0.0
    %1564 = vmatmul.mubr.f32.gmra.mrb[0].mxu0 %v1497
    %v1565 = vpop.f32.mrb[0].mxu0
    %v1566 = vadd.f32 0.0, %v1565
    %v1567 = vpop.f32.mrb[0].mxu0
    %1568 = vdwg.mxu0
    %v1569 = vadd.f32 %v1481, %v1566
    %v1570 = vld [vmem:[%s319 + $0x2] sm:$0x1]
    %v1571 = vld [vmem:[%s319 + $0x32] sm:$0x1]
    %s1572 = scalar_lea.vmem %s3, 896
    %v1573 = vld [vmem:[%s1572] sm:$0xff]
    %v1574 = vld [vmem:[%s1572 + $0x8] sm:$0xff]
    %v1575 = vld [vmem:[%s1572 + $0x10] sm:$0xff]
    %v1576 = vld [vmem:[%s1572 + $0x18] sm:$0xff]
    %v1577 = vld [vmem:[%s1572 + $0x20] sm:$0xff]
    %v1578 = vld [vmem:[%s1572 + $0x28] sm:$0xff]
    %v1579 = vld [vmem:[%s1572 + $0x30] sm:$0xff]
    %v1580 = vld [vmem:[%s1572 + $0x38] sm:$0xff]
    %v1583 = vrot.slane %v1571, 7
    %v1584 = vsel %vm363, %v1583, %v1570
    %v1585 = vsel %vm365, %v1584, 0
    %1587 = vmatprep.subr.mxu0 0.0
    %1588 = vmatpush1.msra.mxu0 %v1573
    %1589 = vmatprep.subr.mxu0 0.0
    %1590 = vmatpush1.msra.mxu0 %v1574
    %1591 = vmatprep.subr.mxu0 0.0
    %1592 = vmatpush1.msra.mxu0 %v1575
    %1593 = vmatprep.subr.mxu0 0.0
    %1594 = vmatpush1.msra.mxu0 %v1576
    %1595 = vmatprep.subr.mxu0 0.0
    %1596 = vmatpush1.msra.mxu0 %v1577
    %1597 = vmatprep.subr.mxu0 0.0
    %1598 = vmatpush1.msra.mxu0 %v1578
    %1599 = vmatprep.subr.mxu0 0.0
    %1600 = vmatpush1.msra.mxu0 %v1579
    %1601 = vmatprep.subr.mxu0 0.0
    %1602 = vmatpush1.msra.mxu0 %v1580
    %1603 = vmatprep.subr.mxu0 0.0
    %1604 = vmatpush1.msra.mxu0 0.0
    %1605 = vmatprep.subr.mxu0 0.0
    %1606 = vmatpush1.msra.mxu0 0.0
    %1607 = vmatprep.subr.mxu0 0.0
    %1608 = vmatpush1.msra.mxu0 0.0
    %1609 = vmatprep.subr.mxu0 0.0
    %1610 = vmatpush1.msra.mxu0 0.0
    %1611 = vmatprep.subr.mxu0 0.0
    %1612 = vmatpush1.msra.mxu0 0.0
    %1613 = vmatprep.subr.mxu0 0.0
    %1614 = vmatpush1.msra.mxu0 0.0
    %1615 = vmatprep.subr.mxu0 0.0
    %1616 = vmatpush1.msra.mxu0 0.0
    %1617 = vmatprep.subr.mxu0 0.0
    %1618 = vmatpush1.msra.mxu0 0.0
    %1619 = vmatprep.subr.mxu0 0.0
    %1620 = vmatpush1.msra.mxu0 0.0
    %1621 = vmatprep.subr.mxu0 0.0
    %1622 = vmatpush1.msra.mxu0 0.0
    %1623 = vmatprep.subr.mxu0 0.0
    %1624 = vmatpush1.msra.mxu0 0.0
    %1625 = vmatprep.subr.mxu0 0.0
    %1626 = vmatpush1.msra.mxu0 0.0
    %1627 = vmatprep.subr.mxu0 0.0
    %1628 = vmatpush1.msra.mxu0 0.0
    %1629 = vmatprep.subr.mxu0 0.0
    %1630 = vmatpush1.msra.mxu0 0.0
    %1631 = vmatprep.subr.mxu0 0.0
    %1632 = vmatpush1.msra.mxu0 0.0
    %1633 = vmatprep.subr.mxu0 0.0
    %1634 = vmatpush1.msra.mxu0 0.0
    %1635 = vmatprep.subr.mxu0 0.0
    %1636 = vmatpush1.msra.mxu0 0.0
    %1637 = vmatprep.subr.mxu0 0.0
    %1638 = vmatpush1.msra.mxu0 0.0
    %1639 = vmatprep.subr.mxu0 0.0
    %1640 = vmatpush1.msra.mxu0 0.0
    %1641 = vmatprep.subr.mxu0 0.0
    %1642 = vmatpush1.msra.mxu0 0.0
    %1643 = vmatprep.subr.mxu0 0.0
    %1644 = vmatpush1.msra.mxu0 0.0
    %1645 = vmatprep.subr.mxu0 0.0
    %1646 = vmatpush1.msra.mxu0 0.0
    %1647 = vmatprep.subr.mxu0 0.0
    %1648 = vmatpush1.msra.mxu0 0.0
    %1649 = vmatprep.subr.mxu0 0.0
    %1650 = vmatpush1.msra.mxu0 0.0
    %1651 = vmatprep.mubr.f32.mxu0 0.0
    %1652 = vmatmul.mubr.f32.gmra.mrb[0].mxu0 %v1585
    %v1653 = vpop.f32.mrb[0].mxu0
    %v1654 = vadd.f32 0.0, %v1653
    %v1655 = vpop.f32.mrb[0].mxu0
    %1656 = vdwg.mxu0
    %v1657 = vadd.f32 %v1569, %v1654
    %v1658 = vld [vmem:[%s319 + $0x3] sm:$0x1]
    %v1659 = vld [vmem:[%s319 + $0x33] sm:$0x1]
    %s1660 = scalar_lea.vmem %s3, 960
    %v1661 = vld [vmem:[%s1660] sm:$0xff]
    %v1662 = vld [vmem:[%s1660 + $0x8] sm:$0xff]
    %v1663 = vld [vmem:[%s1660 + $0x10] sm:$0xff]
    %v1664 = vld [vmem:[%s1660 + $0x18] sm:$0xff]
    %v1665 = vld [vmem:[%s1660 + $0x20] sm:$0xff]
    %v1666 = vld [vmem:[%s1660 + $0x28] sm:$0xff]
    %v1667 = vld [vmem:[%s1660 + $0x30] sm:$0xff]
    %v1668 = vld [vmem:[%s1660 + $0x38] sm:$0xff]
    %v1671 = vrot.slane %v1659, 7
    %v1672 = vsel %vm363, %v1671, %v1658
    %v1673 = vsel %vm365, %v1672, 0
    %1675 = vmatprep.subr.mxu0 0.0
    %1676 = vmatpush1.msra.mxu0 %v1661
    %1677 = vmatprep.subr.mxu0 0.0
    %1678 = vmatpush1.msra.mxu0 %v1662
    %1679 = vmatprep.subr.mxu0 0.0
    %1680 = vmatpush1.msra.mxu0 %v1663
    %1681 = vmatprep.subr.mxu0 0.0
    %1682 = vmatpush1.msra.mxu0 %v1664
    %1683 = vmatprep.subr.mxu0 0.0
    %1684 = vmatpush1.msra.mxu0 %v1665
    %1685 = vmatprep.subr.mxu0 0.0
    %1686 = vmatpush1.msra.mxu0 %v1666
    %1687 = vmatprep.subr.mxu0 0.0
    %1688 = vmatpush1.msra.mxu0 %v1667
    %1689 = vmatprep.subr.mxu0 0.0
    %1690 = vmatpush1.msra.mxu0 %v1668
    %1691 = vmatprep.subr.mxu0 0.0
    %1692 = vmatpush1.msra.mxu0 0.0
    %1693 = vmatprep.subr.mxu0 0.0
    %1694 = vmatpush1.msra.mxu0 0.0
    %1695 = vmatprep.subr.mxu0 0.0
    %1696 = vmatpush1.msra.mxu0 0.0
    %1697 = vmatprep.subr.mxu0 0.0
    %1698 = vmatpush1.msra.mxu0 0.0
    %1699 = vmatprep.subr.mxu0 0.0
    %1700 = vmatpush1.msra.mxu0 0.0
    %1701 = vmatprep.subr.mxu0 0.0
    %1702 = vmatpush1.msra.mxu0 0.0
    %1703 = vmatprep.subr.mxu0 0.0
    %1704 = vmatpush1.msra.mxu0 0.0
    %1705 = vmatprep.subr.mxu0 0.0
    %1706 = vmatpush1.msra.mxu0 0.0
    %1707 = vmatprep.subr.mxu0 0.0
    %1708 = vmatpush1.msra.mxu0 0.0
    %1709 = vmatprep.subr.mxu0 0.0
    %1710 = vmatpush1.msra.mxu0 0.0
    %1711 = vmatprep.subr.mxu0 0.0
    %1712 = vmatpush1.msra.mxu0 0.0
    %1713 = vmatprep.subr.mxu0 0.0
    %1714 = vmatpush1.msra.mxu0 0.0
    %1715 = vmatprep.subr.mxu0 0.0
    %1716 = vmatpush1.msra.mxu0 0.0
    %1717 = vmatprep.subr.mxu0 0.0
    %1718 = vmatpush1.msra.mxu0 0.0
    %1719 = vmatprep.subr.mxu0 0.0
    %1720 = vmatpush1.msra.mxu0 0.0
    %1721 = vmatprep.subr.mxu0 0.0
    %1722 = vmatpush1.msra.mxu0 0.0
    %1723 = vmatprep.subr.mxu0 0.0
    %1724 = vmatpush1.msra.mxu0 0.0
    %1725 = vmatprep.subr.mxu0 0.0
    %1726 = vmatpush1.msra.mxu0 0.0
    %1727 = vmatprep.subr.mxu0 0.0
    %1728 = vmatpush1.msra.mxu0 0.0
    %1729 = vmatprep.subr.mxu0 0.0
    %1730 = vmatpush1.msra.mxu0 0.0
    %1731 = vmatprep.subr.mxu0 0.0
    %1732 = vmatpush1.msra.mxu0 0.0
    %1733 = vmatprep.subr.mxu0 0.0
    %1734 = vmatpush1.msra.mxu0 0.0
    %1735 = vmatprep.subr.mxu0 0.0
    %1736 = vmatpush1.msra.mxu0 0.0
    %1737 = vmatprep.subr.mxu0 0.0
    %1738 = vmatpush1.msra.mxu0 0.0
    %1739 = vmatprep.mubr.f32.mxu0 0.0
    %1740 = vmatmul.mubr.f32.gmra.mrb[0].mxu0 %v1673
    %v1741 = vpop.f32.mrb[0].mxu0
    %v1742 = vadd.f32 0.0, %v1741
    %v1743 = vpop.f32.mrb[0].mxu0
    %1744 = vdwg.mxu0
    %v1745 = vadd.f32 %v1657, %v1742
    %v1746 = vld [vmem:[%s4] sm:$0x1]
    %v1748 = vlaneseq
    %v1749 = vshrl.u32 %v1748, 7
    %v1750 = vsub.s32 0, %v1749
    %v1751 = vrot.slane %v1746, %v1750
    %v1753 = vadd.f32 %v1745, %v1751
    %v1754 = vmax.f32 %v1753, 0.0
    %v1757 = vunpack.c.l.s4 1966171168
    %v1758 = vunpack.c.0.s8 %v1757
    %v1759 = vlaneseq
    %v1760 = vshrl.u32 %v1759, 7
    %v1761 = vsub.s32 %v1758, %v1760
    %v1762 = vrot.slane %v1754, %v1761
    %v1763 = vcombine.high %v1762, %v1762
    %v1765 = vunpack.c.l.s4 1966171168
    %v1766 = vunpack.c.0.s8 %v1765
    %v1767 = vlaneseq
    %v1768 = vshrl.u32 %v1767, 7
    %v1769 = vsub.s32 %v1766, %v1768
    %v1770 = vrot.slane %v1762, %v1769
    %v1772 = vunpack.c.l.s4 1966171168
    %v1773 = vunpack.c.0.s8 %v1772
    %v1774 = vlaneseq
    %v1775 = vshrl.u32 %v1774, 7
    %v1776 = vsub.s32 %v1773, %v1775
    %v1777 = vrot.slane %v1763, %v1776
    %s1780 = scalar_lea.vmem [#allocation3], 4
    %1781 = vst [vmem:[%s1780 + $0x1] sm:$0x1] %v1770
    %1782 = vst [vmem:[%s1780 + $0x11] sm:$0x1] %v1777
    %v1783 = vld [vmem:[#allocation2 + $0x2] sm:$0x1]
    %v1784 = vld [vmem:[#allocation2 + $0x32] sm:$0x1]
    %v1785 = vld [vmem:[%s3] sm:$0xff]
    %v1786 = vld [vmem:[%s3 + $0x8] sm:$0xff]
    %v1787 = vld [vmem:[%s3 + $0x10] sm:$0xff]
    %v1788 = vld [vmem:[%s3 + $0x18] sm:$0xff]
    %v1789 = vld [vmem:[%s3 + $0x20] sm:$0xff]
    %v1790 = vld [vmem:[%s3 + $0x28] sm:$0xff]
    %v1791 = vld [vmem:[%s3 + $0x30] sm:$0xff]
    %v1792 = vld [vmem:[%s3 + $0x38] sm:$0xff]
    %v1793 = vld [vmem:[#allocation2 + $0x3] sm:$0x1]
    %v1794 = vld [vmem:[#allocation2 + $0x33] sm:$0x1]
    %v1795 = vld [vmem:[%s351] sm:$0xff]
    %v1796 = vld [vmem:[%s351 + $0x8] sm:$0xff]
    %v1797 = vld [vmem:[%s351 + $0x10] sm:$0xff]
    %v1798 = vld [vmem:[%s351 + $0x18] sm:$0xff]
    %v1799 = vld [vmem:[%s351 + $0x20] sm:$0xff]
    %v1800 = vld [vmem:[%s351 + $0x28] sm:$0xff]
    %v1801 = vld [vmem:[%s351 + $0x30] sm:$0xff]
    %v1802 = vld [vmem:[%s351 + $0x38] sm:$0xff]
    %v1805 = vrot.slane %v1794, 7
    %v1806 = vsel %vm363, %v1805, %v1793
    %v1807 = vsel %vm365, %v1806, 0
    %1809 = vmatprep.subr.mxu0 0.0
    %1810 = vmatpush1.msra.mxu0 %v1795
    %1811 = vmatprep.subr.mxu0 0.0
    %1812 = vmatpush1.msra.mxu0 %v1796
    %1813 = vmatprep.subr.mxu0 0.0
    %1814 = vmatpush1.msra.mxu0 %v1797
    %1815 = vmatprep.subr.mxu0 0.0
    %1816 = vmatpush1.msra.mxu0 %v1798
    %1817 = vmatprep.subr.mxu0 0.0
    %1818 = vmatpush1.msra.mxu0 %v1799
    %1819 = vmatprep.subr.mxu0 0.0
    %1820 = vmatpush1.msra.mxu0 %v1800
    %1821 = vmatprep.subr.mxu0 0.0
    %1822 = vmatpush1.msra.mxu0 %v1801
    %1823 = vmatprep.subr.mxu0 0.0
    %1824 = vmatpush1.msra.mxu0 %v1802
    %1825 = vmatprep.subr.mxu0 0.0
    %1826 = vmatpush1.msra.mxu0 0.0
    %1827 = vmatprep.subr.mxu0 0.0
    %1828 = vmatpush1.msra.mxu0 0.0
    %1829 = vmatprep.subr.mxu0 0.0
    %1830 = vmatpush1.msra.mxu0 0.0
    %1831 = vmatprep.subr.mxu0 0.0
    %1832 = vmatpush1.msra.mxu0 0.0
    %1833 = vmatprep.subr.mxu0 0.0
    %1834 = vmatpush1.msra.mxu0 0.0
    %1835 = vmatprep.subr.mxu0 0.0
    %1836 = vmatpush1.msra.mxu0 0.0
    %1837 = vmatprep.subr.mxu0 0.0
    %1838 = vmatpush1.msra.mxu0 0.0
    %1839 = vmatprep.subr.mxu0 0.0
    %1840 = vmatpush1.msra.mxu0 0.0
    %1841 = vmatprep.subr.mxu0 0.0
    %1842 = vmatpush1.msra.mxu0 0.0
    %1843 = vmatprep.subr.mxu0 0.0
    %1844 = vmatpush1.msra.mxu0 0.0
    %1845 = vmatprep.subr.mxu0 0.0
    %1846 = vmatpush1.msra.mxu0 0.0
    %1847 = vmatprep.subr.mxu0 0.0
    %1848 = vmatpush1.msra.mxu0 0.0
    %1849 = vmatprep.subr.mxu0 0.0
    %1850 = vmatpush1.msra.mxu0 0.0
    %1851 = vmatprep.subr.mxu0 0.0
    %1852 = vmatpush1.msra.mxu0 0.0
    %1853 = vmatprep.subr.mxu0 0.0
    %1854 = vmatpush1.msra.mxu0 0.0
    %1855 = vmatprep.subr.mxu0 0.0
    %1856 = vmatpush1.msra.mxu0 0.0
    %1857 = vmatprep.subr.mxu0 0.0
    %1858 = vmatpush1.msra.mxu0 0.0
    %1859 = vmatprep.subr.mxu0 0.0
    %1860 = vmatpush1.msra.mxu0 0.0
    %1861 = vmatprep.subr.mxu0 0.0
    %1862 = vmatpush1.msra.mxu0 0.0
    %1863 = vmatprep.subr.mxu0 0.0
    %1864 = vmatpush1.msra.mxu0 0.0
    %1865 = vmatprep.subr.mxu0 0.0
    %1866 = vmatpush1.msra.mxu0 0.0
    %1867 = vmatprep.subr.mxu0 0.0
    %1868 = vmatpush1.msra.mxu0 0.0
    %1869 = vmatprep.subr.mxu0 0.0
    %1870 = vmatpush1.msra.mxu0 0.0
    %1871 = vmatprep.subr.mxu0 0.0
    %1872 = vmatpush1.msra.mxu0 0.0
    %1873 = vmatprep.mubr.f32.mxu0 0.0
    %1874 = vmatmul.mubr.f32.gmra.mrb[0].mxu0 %v1807
    %v1875 = vpop.f32.mrb[0].mxu0
    %v1876 = vadd.f32 0.0, %v1875
    %v1877 = vpop.f32.mrb[0].mxu0
    %1878 = vdwg.mxu0
    %v1881 = vrot.slane %v1784, 7
    %v1882 = vsel %vm363, %v1881, %v1783
    %v1883 = vsel %vm365, %v1882, 0
    %1885 = vmatprep.subr.mxu0 0.0
    %1886 = vmatpush1.msra.mxu0 %v1785
    %1887 = vmatprep.subr.mxu0 0.0
    %1888 = vmatpush1.msra.mxu0 %v1786
    %1889 = vmatprep.subr.mxu0 0.0
    %1890 = vmatpush1.msra.mxu0 %v1787
    %1891 = vmatprep.subr.mxu0 0.0
    %1892 = vmatpush1.msra.mxu0 %v1788
    %1893 = vmatprep.subr.mxu0 0.0
    %1894 = vmatpush1.msra.mxu0 %v1789
    %1895 = vmatprep.subr.mxu0 0.0
    %1896 = vmatpush1.msra.mxu0 %v1790
    %1897 = vmatprep.subr.mxu0 0.0
    %1898 = vmatpush1.msra.mxu0 %v1791
    %1899 = vmatprep.subr.mxu0 0.0
    %1900 = vmatpush1.msra.mxu0 %v1792
    %1901 = vmatprep.subr.mxu0 0.0
    %1902 = vmatpush1.msra.mxu0 0.0
    %1903 = vmatprep.subr.mxu0 0.0
    %1904 = vmatpush1.msra.mxu0 0.0
    %1905 = vmatprep.subr.mxu0 0.0
    %1906 = vmatpush1.msra.mxu0 0.0
    %1907 = vmatprep.subr.mxu0 0.0
    %1908 = vmatpush1.msra.mxu0 0.0
    %1909 = vmatprep.subr.mxu0 0.0
    %1910 = vmatpush1.msra.mxu0 0.0
    %1911 = vmatprep.subr.mxu0 0.0
    %1912 = vmatpush1.msra.mxu0 0.0
    %1913 = vmatprep.subr.mxu0 0.0
    %1914 = vmatpush1.msra.mxu0 0.0
    %1915 = vmatprep.subr.mxu0 0.0
    %1916 = vmatpush1.msra.mxu0 0.0
    %1917 = vmatprep.subr.mxu0 0.0
    %1918 = vmatpush1.msra.mxu0 0.0
    %1919 = vmatprep.subr.mxu0 0.0
    %1920 = vmatpush1.msra.mxu0 0.0
    %1921 = vmatprep.subr.mxu0 0.0
    %1922 = vmatpush1.msra.mxu0 0.0
    %1923 = vmatprep.subr.mxu0 0.0
    %1924 = vmatpush1.msra.mxu0 0.0
    %1925 = vmatprep.subr.mxu0 0.0
    %1926 = vmatpush1.msra.mxu0 0.0
    %1927 = vmatprep.subr.mxu0 0.0
    %1928 = vmatpush1.msra.mxu0 0.0
    %1929 = vmatprep.subr.mxu0 0.0
    %1930 = vmatpush1.msra.mxu0 0.0
    %1931 = vmatprep.subr.mxu0 0.0
    %1932 = vmatpush1.msra.mxu0 0.0
    %1933 = vmatprep.subr.mxu0 0.0
    %1934 = vmatpush1.msra.mxu0 0.0
    %1935 = vmatprep.subr.mxu0 0.0
    %1936 = vmatpush1.msra.mxu0 0.0
    %1937 = vmatprep.subr.mxu0 0.0
    %1938 = vmatpush1.msra.mxu0 0.0
    %1939 = vmatprep.subr.mxu0 0.0
    %1940 = vmatpush1.msra.mxu0 0.0
    %1941 = vmatprep.subr.mxu0 0.0
    %1942 = vmatpush1.msra.mxu0 0.0
    %1943 = vmatprep.subr.mxu0 0.0
    %1944 = vmatpush1.msra.mxu0 0.0
    %1945 = vmatprep.subr.mxu0 0.0
    %1946 = vmatpush1.msra.mxu0 0.0
    %1947 = vmatprep.subr.mxu0 0.0
    %1948 = vmatpush1.msra.mxu0 0.0
    %1949 = vmatprep.mubr.f32.mxu0 0.0
    %1950 = vmatmul.mubr.f32.gmra.mrb[0].mxu0 %v1883
    %v1951 = vpop.f32.mrb[0].mxu0
    %v1952 = vadd.f32 %v1876, %v1951
    %v1953 = vpop.f32.mrb[0].mxu0
    %1954 = vdwg.mxu0
    %v1955 = vld [vmem:[#allocation2 + $0x4] sm:$0x1]
    %v1956 = vld [vmem:[#allocation2 + $0x34] sm:$0x1]
    %v1957 = vld [vmem:[%s516] sm:$0xff]
    %v1958 = vld [vmem:[%s516 + $0x8] sm:$0xff]
    %v1959 = vld [vmem:[%s516 + $0x10] sm:$0xff]
    %v1960 = vld [vmem:[%s516 + $0x18] sm:$0xff]
    %v1961 = vld [vmem:[%s516 + $0x20] sm:$0xff]
    %v1962 = vld [vmem:[%s516 + $0x28] sm:$0xff]
    %v1963 = vld [vmem:[%s516 + $0x30] sm:$0xff]
    %v1964 = vld [vmem:[%s516 + $0x38] sm:$0xff]
    %v1967 = vrot.slane %v1956, 7
    %v1968 = vsel %vm363, %v1967, %v1955
    %v1969 = vsel %vm365, %v1968, 0
    %1971 = vmatprep.subr.mxu0 0.0
    %1972 = vmatpush1.msra.mxu0 %v1957
    %1973 = vmatprep.subr.mxu0 0.0
    %1974 = vmatpush1.msra.mxu0 %v1958
    %1975 = vmatprep.subr.mxu0 0.0
    %1976 = vmatpush1.msra.mxu0 %v1959
    %1977 = vmatprep.subr.mxu0 0.0
    %1978 = vmatpush1.msra.mxu0 %v1960
    %1979 = vmatprep.subr.mxu0 0.0
    %1980 = vmatpush1.msra.mxu0 %v1961
    %1981 = vmatprep.subr.mxu0 0.0
    %1982 = vmatpush1.msra.mxu0 %v1962
    %1983 = vmatprep.subr.mxu0 0.0
    %1984 = vmatpush1.msra.mxu0 %v1963
    %1985 = vmatprep.subr.mxu0 0.0
    %1986 = vmatpush1.msra.mxu0 %v1964
    %1987 = vmatprep.subr.mxu0 0.0
    %1988 = vmatpush1.msra.mxu0 0.0
    %1989 = vmatprep.subr.mxu0 0.0
    %1990 = vmatpush1.msra.mxu0 0.0
    %1991 = vmatprep.subr.mxu0 0.0
    %1992 = vmatpush1.msra.mxu0 0.0
    %1993 = vmatprep.subr.mxu0 0.0
    %1994 = vmatpush1.msra.mxu0 0.0
    %1995 = vmatprep.subr.mxu0 0.0
    %1996 = vmatpush1.msra.mxu0 0.0
    %1997 = vmatprep.subr.mxu0 0.0
    %1998 = vmatpush1.msra.mxu0 0.0
    %1999 = vmatprep.subr.mxu0 0.0
    %2000 = vmatpush1.msra.mxu0 0.0
    %2001 = vmatprep.subr.mxu0 0.0
    %2002 = vmatpush1.msra.mxu0 0.0
    %2003 = vmatprep.subr.mxu0 0.0
    %2004 = vmatpush1.msra.mxu0 0.0
    %2005 = vmatprep.subr.mxu0 0.0
    %2006 = vmatpush1.msra.mxu0 0.0
    %2007 = vmatprep.subr.mxu0 0.0
    %2008 = vmatpush1.msra.mxu0 0.0
    %2009 = vmatprep.subr.mxu0 0.0
    %2010 = vmatpush1.msra.mxu0 0.0
    %2011 = vmatprep.subr.mxu0 0.0
    %2012 = vmatpush1.msra.mxu0 0.0
    %2013 = vmatprep.subr.mxu0 0.0
    %2014 = vmatpush1.msra.mxu0 0.0
    %2015 = vmatprep.subr.mxu0 0.0
    %2016 = vmatpush1.msra.mxu0 0.0
    %2017 = vmatprep.subr.mxu0 0.0
    %2018 = vmatpush1.msra.mxu0 0.0
    %2019 = vmatprep.subr.mxu0 0.0
    %2020 = vmatpush1.msra.mxu0 0.0
    %2021 = vmatprep.subr.mxu0 0.0
    %2022 = vmatpush1.msra.mxu0 0.0
    %2023 = vmatprep.subr.mxu0 0.0
    %2024 = vmatpush1.msra.mxu0 0.0
    %2025 = vmatprep.subr.mxu0 0.0
    %2026 = vmatpush1.msra.mxu0 0.0
    %2027 = vmatprep.subr.mxu0 0.0
    %2028 = vmatpush1.msra.mxu0 0.0
    %2029 = vmatprep.subr.mxu0 0.0
    %2030 = vmatpush1.msra.mxu0 0.0
    %2031 = vmatprep.subr.mxu0 0.0
    %2032 = vmatpush1.msra.mxu0 0.0
    %2033 = vmatprep.subr.mxu0 0.0
    %2034 = vmatpush1.msra.mxu0 0.0
    %2035 = vmatprep.mubr.f32.mxu0 0.0
    %2036 = vmatmul.mubr.f32.gmra.mrb[0].mxu0 %v1969
    %v2037 = vpop.f32.mrb[0].mxu0
    %v2038 = vadd.f32 0.0, %v2037
    %v2039 = vpop.f32.mrb[0].mxu0
    %2040 = vdwg.mxu0
    %v2041 = vadd.f32 %v1952, %v2038
    %v2042 = vld [vmem:[#allocation2 + $0x5] sm:$0x1]
    %v2043 = vld [vmem:[#allocation2 + $0x35] sm:$0x1]
    %v2044 = vld [vmem:[%s604] sm:$0xff]
    %v2045 = vld [vmem:[%s604 + $0x8] sm:$0xff]
    %v2046 = vld [vmem:[%s604 + $0x10] sm:$0xff]
    %v2047 = vld [vmem:[%s604 + $0x18] sm:$0xff]
    %v2048 = vld [vmem:[%s604 + $0x20] sm:$0xff]
    %v2049 = vld [vmem:[%s604 + $0x28] sm:$0xff]
    %v2050 = vld [vmem:[%s604 + $0x30] sm:$0xff]
    %v2051 = vld [vmem:[%s604 + $0x38] sm:$0xff]
    %v2054 = vrot.slane %v2043, 7
    %v2055 = vsel %vm363, %v2054, %v2042
    %v2056 = vsel %vm365, %v2055, 0
    %2058 = vmatprep.subr.mxu0 0.0
    %2059 = vmatpush1.msra.mxu0 %v2044
    %2060 = vmatprep.subr.mxu0 0.0
    %2061 = vmatpush1.msra.mxu0 %v2045
    %2062 = vmatprep.subr.mxu0 0.0
    %2063 = vmatpush1.msra.mxu0 %v2046
    %2064 = vmatprep.subr.mxu0 0.0
    %2065 = vmatpush1.msra.mxu0 %v2047
    %2066 = vmatprep.subr.mxu0 0.0
    %2067 = vmatpush1.msra.mxu0 %v2048
    %2068 = vmatprep.subr.mxu0 0.0
    %2069 = vmatpush1.msra.mxu0 %v2049
    %2070 = vmatprep.subr.mxu0 0.0
    %2071 = vmatpush1.msra.mxu0 %v2050
    %2072 = vmatprep.subr.mxu0 0.0
    %2073 = vmatpush1.msra.mxu0 %v2051
    %2074 = vmatprep.subr.mxu0 0.0
    %2075 = vmatpush1.msra.mxu0 0.0
    %2076 = vmatprep.subr.mxu0 0.0
    %2077 = vmatpush1.msra.mxu0 0.0
    %2078 = vmatprep.subr.mxu0 0.0
    %2079 = vmatpush1.msra.mxu0 0.0
    %2080 = vmatprep.subr.mxu0 0.0
    %2081 = vmatpush1.msra.mxu0 0.0
    %2082 = vmatprep.subr.mxu0 0.0
    %2083 = vmatpush1.msra.mxu0 0.0
    %2084 = vmatprep.subr.mxu0 0.0
    %2085 = vmatpush1.msra.mxu0 0.0
    %2086 = vmatprep.subr.mxu0 0.0
    %2087 = vmatpush1.msra.mxu0 0.0
    %2088 = vmatprep.subr.mxu0 0.0
    %2089 = vmatpush1.msra.mxu0 0.0
    %2090 = vmatprep.subr.mxu0 0.0
    %2091 = vmatpush1.msra.mxu0 0.0
    %2092 = vmatprep.subr.mxu0 0.0
    %2093 = vmatpush1.msra.mxu0 0.0
    %2094 = vmatprep.subr.mxu0 0.0
    %2095 = vmatpush1.msra.mxu0 0.0
    %2096 = vmatprep.subr.mxu0 0.0
    %2097 = vmatpush1.msra.mxu0 0.0
    %2098 = vmatprep.subr.mxu0 0.0
    %2099 = vmatpush1.msra.mxu0 0.0
    %2100 = vmatprep.subr.mxu0 0.0
    %2101 = vmatpush1.msra.mxu0 0.0
    %2102 = vmatprep.subr.mxu0 0.0
    %2103 = vmatpush1.msra.mxu0 0.0
    %2104 = vmatprep.subr.mxu0 0.0
    %2105 = vmatpush1.msra.mxu0 0.0
    %2106 = vmatprep.subr.mxu0 0.0
    %2107 = vmatpush1.msra.mxu0 0.0
    %2108 = vmatprep.subr.mxu0 0.0
    %2109 = vmatpush1.msra.mxu0 0.0
    %2110 = vmatprep.subr.mxu0 0.0
    %2111 = vmatpush1.msra.mxu0 0.0
    %2112 = vmatprep.subr.mxu0 0.0
    %2113 = vmatpush1.msra.mxu0 0.0
    %2114 = vmatprep.subr.mxu0 0.0
    %2115 = vmatpush1.msra.mxu0 0.0
    %2116 = vmatprep.subr.mxu0 0.0
    %2117 = vmatpush1.msra.mxu0 0.0
    %2118 = vmatprep.subr.mxu0 0.0
    %2119 = vmatpush1.msra.mxu0 0.0
    %2120 = vmatprep.subr.mxu0 0.0
    %2121 = vmatpush1.msra.mxu0 0.0
    %2122 = vmatprep.mubr.f32.mxu0 0.0
    %2123 = vmatmul.mubr.f32.gmra.mrb[0].mxu0 %v2056
    %v2124 = vpop.f32.mrb[0].mxu0
    %v2125 = vadd.f32 0.0, %v2124
    %v2126 = vpop.f32.mrb[0].mxu0
    %2127 = vdwg.mxu0
    %v2128 = vadd.f32 %v2041, %v2125
    %v2129 = vld [vmem:[%s313 + $0x2] sm:$0x1]
    %v2130 = vld [vmem:[%s313 + $0x32] sm:$0x1]
    %v2131 = vld [vmem:[%s692] sm:$0xff]
    %v2132 = vld [vmem:[%s692 + $0x8] sm:$0xff]
    %v2133 = vld [vmem:[%s692 + $0x10] sm:$0xff]
    %v2134 = vld [vmem:[%s692 + $0x18] sm:$0xff]
    %v2135 = vld [vmem:[%s692 + $0x20] sm:$0xff]
    %v2136 = vld [vmem:[%s692 + $0x28] sm:$0xff]
    %v2137 = vld [vmem:[%s692 + $0x30] sm:$0xff]
    %v2138 = vld [vmem:[%s692 + $0x38] sm:$0xff]
    %v2141 = vrot.slane %v2130, 7
    %v2142 = vsel %vm363, %v2141, %v2129
    %v2143 = vsel %vm365, %v2142, 0
    %2145 = vmatprep.subr.mxu0 0.0
    %2146 = vmatpush1.msra.mxu0 %v2131
    %2147 = vmatprep.subr.mxu0 0.0
    %2148 = vmatpush1.msra.mxu0 %v2132
    %2149 = vmatprep.subr.mxu0 0.0
    %2150 = vmatpush1.msra.mxu0 %v2133
    %2151 = vmatprep.subr.mxu0 0.0
    %2152 = vmatpush1.msra.mxu0 %v2134
    %2153 = vmatprep.subr.mxu0 0.0
    %2154 = vmatpush1.msra.mxu0 %v2135
    %2155 = vmatprep.subr.mxu0 0.0
    %2156 = vmatpush1.msra.mxu0 %v2136
    %2157 = vmatprep.subr.mxu0 0.0
    %2158 = vmatpush1.msra.mxu0 %v2137
    %2159 = vmatprep.subr.mxu0 0.0
    %2160 = vmatpush1.msra.mxu0 %v2138
    %2161 = vmatprep.subr.mxu0 0.0
    %2162 = vmatpush1.msra.mxu0 0.0
    %2163 = vmatprep.subr.mxu0 0.0
    %2164 = vmatpush1.msra.mxu0 0.0
    %2165 = vmatprep.subr.mxu0 0.0
    %2166 = vmatpush1.msra.mxu0 0.0
    %2167 = vmatprep.subr.mxu0 0.0
    %2168 = vmatpush1.msra.mxu0 0.0
    %2169 = vmatprep.subr.mxu0 0.0
    %2170 = vmatpush1.msra.mxu0 0.0
    %2171 = vmatprep.subr.mxu0 0.0
    %2172 = vmatpush1.msra.mxu0 0.0
    %2173 = vmatprep.subr.mxu0 0.0
    %2174 = vmatpush1.msra.mxu0 0.0
    %2175 = vmatprep.subr.mxu0 0.0
    %2176 = vmatpush1.msra.mxu0 0.0
    %2177 = vmatprep.subr.mxu0 0.0
    %2178 = vmatpush1.msra.mxu0 0.0
    %2179 = vmatprep.subr.mxu0 0.0
    %2180 = vmatpush1.msra.mxu0 0.0
    %2181 = vmatprep.subr.mxu0 0.0
    %2182 = vmatpush1.msra.mxu0 0.0
    %2183 = vmatprep.subr.mxu0 0.0
    %2184 = vmatpush1.msra.mxu0 0.0
    %2185 = vmatprep.subr.mxu0 0.0
    %2186 = vmatpush1.msra.mxu0 0.0
    %2187 = vmatprep.subr.mxu0 0.0
    %2188 = vmatpush1.msra.mxu0 0.0
    %2189 = vmatprep.subr.mxu0 0.0
    %2190 = vmatpush1.msra.mxu0 0.0
    %2191 = vmatprep.subr.mxu0 0.0
    %2192 = vmatpush1.msra.mxu0 0.0
    %2193 = vmatprep.subr.mxu0 0.0
    %2194 = vmatpush1.msra.mxu0 0.0
    %2195 = vmatprep.subr.mxu0 0.0
    %2196 = vmatpush1.msra.mxu0 0.0
    %2197 = vmatprep.subr.mxu0 0.0
    %2198 = vmatpush1.msra.mxu0 0.0
    %2199 = vmatprep.subr.mxu0 0.0
    %2200 = vmatpush1.msra.mxu0 0.0
    %2201 = vmatprep.subr.mxu0 0.0
    %2202 = vmatpush1.msra.mxu0 0.0
    %2203 = vmatprep.subr.mxu0 0.0
    %2204 = vmatpush1.msra.mxu0 0.0
    %2205 = vmatprep.subr.mxu0 0.0
    %2206 = vmatpush1.msra.mxu0 0.0
    %2207 = vmatprep.subr.mxu0 0.0
    %2208 = vmatpush1.msra.mxu0 0.0
    %2209 = vmatprep.mubr.f32.mxu0 0.0
    %2210 = vmatmul.mubr.f32.gmra.mrb[0].mxu0 %v2143
    %v2211 = vpop.f32.mrb[0].mxu0
    %v2212 = vadd.f32 0.0, %v2211
    %v2213 = vpop.f32.mrb[0].mxu0
    %2214 = vdwg.mxu0
    %v2215 = vadd.f32 %v2128, %v2212
    %v2216 = vld [vmem:[%s313 + $0x3] sm:$0x1]
    %v2217 = vld [vmem:[%s313 + $0x33] sm:$0x1]
    %v2218 = vld [vmem:[%s780] sm:$0xff]
    %v2219 = vld [vmem:[%s780 + $0x8] sm:$0xff]
    %v2220 = vld [vmem:[%s780 + $0x10] sm:$0xff]
    %v2221 = vld [vmem:[%s780 + $0x18] sm:$0xff]
    %v2222 = vld [vmem:[%s780 + $0x20] sm:$0xff]
    %v2223 = vld [vmem:[%s780 + $0x28] sm:$0xff]
    %v2224 = vld [vmem:[%s780 + $0x30] sm:$0xff]
    %v2225 = vld [vmem:[%s780 + $0x38] sm:$0xff]
    %v2228 = vrot.slane %v2217, 7
    %v2229 = vsel %vm363, %v2228, %v2216
    %v2230 = vsel %vm365, %v2229, 0
    %2232 = vmatprep.subr.mxu0 0.0
    %2233 = vmatpush1.msra.mxu0 %v2218
    %2234 = vmatprep.subr.mxu0 0.0
    %2235 = vmatpush1.msra.mxu0 %v2219
    %2236 = vmatprep.subr.mxu0 0.0
    %2237 = vmatpush1.msra.mxu0 %v2220
    %2238 = vmatprep.subr.mxu0 0.0
    %2239 = vmatpush1.msra.mxu0 %v2221
    %2240 = vmatprep.subr.mxu0 0.0
    %2241 = vmatpush1.msra.mxu0 %v2222
    %2242 = vmatprep.subr.mxu0 0.0
    %2243 = vmatpush1.msra.mxu0 %v2223
    %2244 = vmatprep.subr.mxu0 0.0
    %2245 = vmatpush1.msra.mxu0 %v2224
    %2246 = vmatprep.subr.mxu0 0.0
    %2247 = vmatpush1.msra.mxu0 %v2225
    %2248 = vmatprep.subr.mxu0 0.0
    %2249 = vmatpush1.msra.mxu0 0.0
    %2250 = vmatprep.subr.mxu0 0.0
    %2251 = vmatpush1.msra.mxu0 0.0
    %2252 = vmatprep.subr.mxu0 0.0
    %2253 = vmatpush1.msra.mxu0 0.0
    %2254 = vmatprep.subr.mxu0 0.0
    %2255 = vmatpush1.msra.mxu0 0.0
    %2256 = vmatprep.subr.mxu0 0.0
    %2257 = vmatpush1.msra.mxu0 0.0
    %2258 = vmatprep.subr.mxu0 0.0
    %2259 = vmatpush1.msra.mxu0 0.0
    %2260 = vmatprep.subr.mxu0 0.0
    %2261 = vmatpush1.msra.mxu0 0.0
    %2262 = vmatprep.subr.mxu0 0.0
    %2263 = vmatpush1.msra.mxu0 0.0
    %2264 = vmatprep.subr.mxu0 0.0
    %2265 = vmatpush1.msra.mxu0 0.0
    %2266 = vmatprep.subr.mxu0 0.0
    %2267 = vmatpush1.msra.mxu0 0.0
    %2268 = vmatprep.subr.mxu0 0.0
    %2269 = vmatpush1.msra.mxu0 0.0
    %2270 = vmatprep.subr.mxu0 0.0
    %2271 = vmatpush1.msra.mxu0 0.0
    %2272 = vmatprep.subr.mxu0 0.0
    %2273 = vmatpush1.msra.mxu0 0.0
    %2274 = vmatprep.subr.mxu0 0.0
    %2275 = vmatpush1.msra.mxu0 0.0
    %2276 = vmatprep.subr.mxu0 0.0
    %2277 = vmatpush1.msra.mxu0 0.0
    %2278 = vmatprep.subr.mxu0 0.0
    %2279 = vmatpush1.msra.mxu0 0.0
    %2280 = vmatprep.subr.mxu0 0.0
    %2281 = vmatpush1.msra.mxu0 0.0
    %2282 = vmatprep.subr.mxu0 0.0
    %2283 = vmatpush1.msra.mxu0 0.0
    %2284 = vmatprep.subr.mxu0 0.0
    %2285 = vmatpush1.msra.mxu0 0.0
    %2286 = vmatprep.subr.mxu0 0.0
    %2287 = vmatpush1.msra.mxu0 0.0
    %2288 = vmatprep.subr.mxu0 0.0
    %2289 = vmatpush1.msra.mxu0 0.0
    %2290 = vmatprep.subr.mxu0 0.0
    %2291 = vmatpush1.msra.mxu0 0.0
    %2292 = vmatprep.subr.mxu0 0.0
    %2293 = vmatpush1.msra.mxu0 0.0
    %2294 = vmatprep.subr.mxu0 0.0
    %2295 = vmatpush1.msra.mxu0 0.0
    %2296 = vmatprep.mubr.f32.mxu0 0.0
    %2297 = vmatmul.mubr.f32.gmra.mrb[0].mxu0 %v2230
    %v2298 = vpop.f32.mrb[0].mxu0
    %v2299 = vadd.f32 0.0, %v2298
    %v2300 = vpop.f32.mrb[0].mxu0
    %2301 = vdwg.mxu0
    %v2302 = vadd.f32 %v2215, %v2299
    %v2303 = vld [vmem:[%s313 + $0x4] sm:$0x1]
    %v2304 = vld [vmem:[%s313 + $0x34] sm:$0x1]
    %v2305 = vld [vmem:[%s868] sm:$0xff]
    %v2306 = vld [vmem:[%s868 + $0x8] sm:$0xff]
    %v2307 = vld [vmem:[%s868 + $0x10] sm:$0xff]
    %v2308 = vld [vmem:[%s868 + $0x18] sm:$0xff]
    %v2309 = vld [vmem:[%s868 + $0x20] sm:$0xff]
    %v2310 = vld [vmem:[%s868 + $0x28] sm:$0xff]
    %v2311 = vld [vmem:[%s868 + $0x30] sm:$0xff]
    %v2312 = vld [vmem:[%s868 + $0x38] sm:$0xff]
    %v2315 = vrot.slane %v2304, 7
    %v2316 = vsel %vm363, %v2315, %v2303
    %v2317 = vsel %vm365, %v2316, 0
    %2319 = vmatprep.subr.mxu0 0.0
    %2320 = vmatpush1.msra.mxu0 %v2305
    %2321 = vmatprep.subr.mxu0 0.0
    %2322 = vmatpush1.msra.mxu0 %v2306
    %2323 = vmatprep.subr.mxu0 0.0
    %2324 = vmatpush1.msra.mxu0 %v2307
    %2325 = vmatprep.subr.mxu0 0.0
    %2326 = vmatpush1.msra.mxu0 %v2308
    %2327 = vmatprep.subr.mxu0 0.0
    %2328 = vmatpush1.msra.mxu0 %v2309
    %2329 = vmatprep.subr.mxu0 0.0
    %2330 = vmatpush1.msra.mxu0 %v2310
    %2331 = vmatprep.subr.mxu0 0.0
    %2332 = vmatpush1.msra.mxu0 %v2311
    %2333 = vmatprep.subr.mxu0 0.0
    %2334 = vmatpush1.msra.mxu0 %v2312
    %2335 = vmatprep.subr.mxu0 0.0
    %2336 = vmatpush1.msra.mxu0 0.0
    %2337 = vmatprep.subr.mxu0 0.0
    %2338 = vmatpush1.msra.mxu0 0.0
    %2339 = vmatprep.subr.mxu0 0.0
    %2340 = vmatpush1.msra.mxu0 0.0
    %2341 = vmatprep.subr.mxu0 0.0
    %2342 = vmatpush1.msra.mxu0 0.0
    %2343 = vmatprep.subr.mxu0 0.0
    %2344 = vmatpush1.msra.mxu0 0.0
    %2345 = vmatprep.subr.mxu0 0.0
    %2346 = vmatpush1.msra.mxu0 0.0
    %2347 = vmatprep.subr.mxu0 0.0
    %2348 = vmatpush1.msra.mxu0 0.0
    %2349 = vmatprep.subr.mxu0 0.0
    %2350 = vmatpush1.msra.mxu0 0.0
    %2351 = vmatprep.subr.mxu0 0.0
    %2352 = vmatpush1.msra.mxu0 0.0
    %2353 = vmatprep.subr.mxu0 0.0
    %2354 = vmatpush1.msra.mxu0 0.0
    %2355 = vmatprep.subr.mxu0 0.0
    %2356 = vmatpush1.msra.mxu0 0.0
    %2357 = vmatprep.subr.mxu0 0.0
    %2358 = vmatpush1.msra.mxu0 0.0
    %2359 = vmatprep.subr.mxu0 0.0
    %2360 = vmatpush1.msra.mxu0 0.0
    %2361 = vmatprep.subr.mxu0 0.0
    %2362 = vmatpush1.msra.mxu0 0.0
    %2363 = vmatprep.subr.mxu0 0.0
    %2364 = vmatpush1.msra.mxu0 0.0
    %2365 = vmatprep.subr.mxu0 0.0
    %2366 = vmatpush1.msra.mxu0 0.0
    %2367 = vmatprep.subr.mxu0 0.0
    %2368 = vmatpush1.msra.mxu0 0.0
    %2369 = vmatprep.subr.mxu0 0.0
    %2370 = vmatpush1.msra.mxu0 0.0
    %2371 = vmatprep.subr.mxu0 0.0
    %2372 = vmatpush1.msra.mxu0 0.0
    %2373 = vmatprep.subr.mxu0 0.0
    %2374 = vmatpush1.msra.mxu0 0.0
    %2375 = vmatprep.subr.mxu0 0.0
    %2376 = vmatpush1.msra.mxu0 0.0
    %2377 = vmatprep.subr.mxu0 0.0
    %2378 = vmatpush1.msra.mxu0 0.0
    %2379 = vmatprep.subr.mxu0 0.0
    %2380 = vmatpush1.msra.mxu0 0.0
    %2381 = vmatprep.subr.mxu0 0.0
    %2382 = vmatpush1.msra.mxu0 0.0
    %2383 = vmatprep.mubr.f32.mxu0 0.0
    %2384 = vmatmul.mubr.f32.gmra.mrb[0].mxu0 %v2317
    %v2385 = vpop.f32.mrb[0].mxu0
    %v2386 = vadd.f32 0.0, %v2385
    %v2387 = vpop.f32.mrb[0].mxu0
    %2388 = vdwg.mxu0
    %v2389 = vadd.f32 %v2302, %v2386
    %v2390 = vld [vmem:[%s313 + $0x5] sm:$0x1]
    %v2391 = vld [vmem:[%s313 + $0x35] sm:$0x1]
    %v2392 = vld [vmem:[%s956] sm:$0xff]
    %v2393 = vld [vmem:[%s956 + $0x8] sm:$0xff]
    %v2394 = vld [vmem:[%s956 + $0x10] sm:$0xff]
    %v2395 = vld [vmem:[%s956 + $0x18] sm:$0xff]
    %v2396 = vld [vmem:[%s956 + $0x20] sm:$0xff]
    %v2397 = vld [vmem:[%s956 + $0x28] sm:$0xff]
    %v2398 = vld [vmem:[%s956 + $0x30] sm:$0xff]
    %v2399 = vld [vmem:[%s956 + $0x38] sm:$0xff]
    %v2402 = vrot.slane %v2391, 7
    %v2403 = vsel %vm363, %v2402, %v2390
    %v2404 = vsel %vm365, %v2403, 0
    %2406 = vmatprep.subr.mxu0 0.0
    %2407 = vmatpush1.msra.mxu0 %v2392
    %2408 = vmatprep.subr.mxu0 0.0
    %2409 = vmatpush1.msra.mxu0 %v2393
    %2410 = vmatprep.subr.mxu0 0.0
    %2411 = vmatpush1.msra.mxu0 %v2394
    %2412 = vmatprep.subr.mxu0 0.0
    %2413 = vmatpush1.msra.mxu0 %v2395
    %2414 = vmatprep.subr.mxu0 0.0
    %2415 = vmatpush1.msra.mxu0 %v2396
    %2416 = vmatprep.subr.mxu0 0.0
    %2417 = vmatpush1.msra.mxu0 %v2397
    %2418 = vmatprep.subr.mxu0 0.0
    %2419 = vmatpush1.msra.mxu0 %v2398
    %2420 = vmatprep.subr.mxu0 0.0
    %2421 = vmatpush1.msra.mxu0 %v2399
    %2422 = vmatprep.subr.mxu0 0.0
    %2423 = vmatpush1.msra.mxu0 0.0
    %2424 = vmatprep.subr.mxu0 0.0
    %2425 = vmatpush1.msra.mxu0 0.0
    %2426 = vmatprep.subr.mxu0 0.0
    %2427 = vmatpush1.msra.mxu0 0.0
    %2428 = vmatprep.subr.mxu0 0.0
    %2429 = vmatpush1.msra.mxu0 0.0
    %2430 = vmatprep.subr.mxu0 0.0
    %2431 = vmatpush1.msra.mxu0 0.0
    %2432 = vmatprep.subr.mxu0 0.0
    %2433 = vmatpush1.msra.mxu0 0.0
    %2434 = vmatprep.subr.mxu0 0.0
    %2435 = vmatpush1.msra.mxu0 0.0
    %2436 = vmatprep.subr.mxu0 0.0
    %2437 = vmatpush1.msra.mxu0 0.0
    %2438 = vmatprep.subr.mxu0 0.0
    %2439 = vmatpush1.msra.mxu0 0.0
    %2440 = vmatprep.subr.mxu0 0.0
    %2441 = vmatpush1.msra.mxu0 0.0
    %2442 = vmatprep.subr.mxu0 0.0
    %2443 = vmatpush1.msra.mxu0 0.0
    %2444 = vmatprep.subr.mxu0 0.0
    %2445 = vmatpush1.msra.mxu0 0.0
    %2446 = vmatprep.subr.mxu0 0.0
    %2447 = vmatpush1.msra.mxu0 0.0
    %2448 = vmatprep.subr.mxu0 0.0
    %2449 = vmatpush1.msra.mxu0 0.0
    %2450 = vmatprep.subr.mxu0 0.0
    %2451 = vmatpush1.msra.mxu0 0.0
    %2452 = vmatprep.subr.mxu0 0.0
    %2453 = vmatpush1.msra.mxu0 0.0
    %2454 = vmatprep.subr.mxu0 0.0
    %2455 = vmatpush1.msra.mxu0 0.0
    %2456 = vmatprep.subr.mxu0 0.0
    %2457 = vmatpush1.msra.mxu0 0.0
    %2458 = vmatprep.subr.mxu0 0.0
    %2459 = vmatpush1.msra.mxu0 0.0
    %2460 = vmatprep.subr.mxu0 0.0
    %2461 = vmatpush1.msra.mxu0 0.0
    %2462 = vmatprep.subr.mxu0 0.0
    %2463 = vmatpush1.msra.mxu0 0.0
    %2464 = vmatprep.subr.mxu0 0.0
    %2465 = vmatpush1.msra.mxu0 0.0
    %2466 = vmatprep.subr.mxu0 0.0
    %2467 = vmatpush1.msra.mxu0 0.0
    %2468 = vmatprep.subr.mxu0 0.0
    %2469 = vmatpush1.msra.mxu0 0.0
    %2470 = vmatprep.mubr.f32.mxu0 0.0
    %2471 = vmatmul.mubr.f32.gmra.mrb[0].mxu0 %v2404
    %v2472 = vpop.f32.mrb[0].mxu0
    %v2473 = vadd.f32 0.0, %v2472
    %v2474 = vpop.f32.mrb[0].mxu0
    %2475 = vdwg.mxu0
    %v2476 = vadd.f32 %v2389, %v2473
    %v2477 = vld [vmem:[%s316 + $0x2] sm:$0x1]
    %v2478 = vld [vmem:[%s316 + $0x32] sm:$0x1]
    %v2479 = vld [vmem:[%s1044] sm:$0xff]
    %v2480 = vld [vmem:[%s1044 + $0x8] sm:$0xff]
    %v2481 = vld [vmem:[%s1044 + $0x10] sm:$0xff]
    %v2482 = vld [vmem:[%s1044 + $0x18] sm:$0xff]
    %v2483 = vld [vmem:[%s1044 + $0x20] sm:$0xff]
    %v2484 = vld [vmem:[%s1044 + $0x28] sm:$0xff]
    %v2485 = vld [vmem:[%s1044 + $0x30] sm:$0xff]
    %v2486 = vld [vmem:[%s1044 + $0x38] sm:$0xff]
    %v2489 = vrot.slane %v2478, 7
    %v2490 = vsel %vm363, %v2489, %v2477
    %v2491 = vsel %vm365, %v2490, 0
    %2493 = vmatprep.subr.mxu0 0.0
    %2494 = vmatpush1.msra.mxu0 %v2479
    %2495 = vmatprep.subr.mxu0 0.0
    %2496 = vmatpush1.msra.mxu0 %v2480
    %2497 = vmatprep.subr.mxu0 0.0
    %2498 = vmatpush1.msra.mxu0 %v2481
    %2499 = vmatprep.subr.mxu0 0.0
    %2500 = vmatpush1.msra.mxu0 %v2482
    %2501 = vmatprep.subr.mxu0 0.0
    %2502 = vmatpush1.msra.mxu0 %v2483
    %2503 = vmatprep.subr.mxu0 0.0
    %2504 = vmatpush1.msra.mxu0 %v2484
    %2505 = vmatprep.subr.mxu0 0.0
    %2506 = vmatpush1.msra.mxu0 %v2485
    %2507 = vmatprep.subr.mxu0 0.0
    %2508 = vmatpush1.msra.mxu0 %v2486
    %2509 = vmatprep.subr.mxu0 0.0
    %2510 = vmatpush1.msra.mxu0 0.0
    %2511 = vmatprep.subr.mxu0 0.0
    %2512 = vmatpush1.msra.mxu0 0.0
    %2513 = vmatprep.subr.mxu0 0.0
    %2514 = vmatpush1.msra.mxu0 0.0
    %2515 = vmatprep.subr.mxu0 0.0
    %2516 = vmatpush1.msra.mxu0 0.0
    %2517 = vmatprep.subr.mxu0 0.0
    %2518 = vmatpush1.msra.mxu0 0.0
    %2519 = vmatprep.subr.mxu0 0.0
    %2520 = vmatpush1.msra.mxu0 0.0
    %2521 = vmatprep.subr.mxu0 0.0
    %2522 = vmatpush1.msra.mxu0 0.0
    %2523 = vmatprep.subr.mxu0 0.0
    %2524 = vmatpush1.msra.mxu0 0.0
    %2525 = vmatprep.subr.mxu0 0.0
    %2526 = vmatpush1.msra.mxu0 0.0
    %2527 = vmatprep.subr.mxu0 0.0
    %2528 = vmatpush1.msra.mxu0 0.0
    %2529 = vmatprep.subr.mxu0 0.0
    %2530 = vmatpush1.msra.mxu0 0.0
    %2531 = vmatprep.subr.mxu0 0.0
    %2532 = vmatpush1.msra.mxu0 0.0
    %2533 = vmatprep.subr.mxu0 0.0
    %2534 = vmatpush1.msra.mxu0 0.0
    %2535 = vmatprep.subr.mxu0 0.0
    %2536 = vmatpush1.msra.mxu0 0.0
    %2537 = vmatprep.subr.mxu0 0.0
    %2538 = vmatpush1.msra.mxu0 0.0
    %2539 = vmatprep.subr.mxu0 0.0
    %2540 = vmatpush1.msra.mxu0 0.0
    %2541 = vmatprep.subr.mxu0 0.0
    %2542 = vmatpush1.msra.mxu0 0.0
    %2543 = vmatprep.subr.mxu0 0.0
    %2544 = vmatpush1.msra.mxu0 0.0
    %2545 = vmatprep.subr.mxu0 0.0
    %2546 = vmatpush1.msra.mxu0 0.0
    %2547 = vmatprep.subr.mxu0 0.0
    %2548 = vmatpush1.msra.mxu0 0.0
    %2549 = vmatprep.subr.mxu0 0.0
    %2550 = vmatpush1.msra.mxu0 0.0
    %2551 = vmatprep.subr.mxu0 0.0
    %2552 = vmatpush1.msra.mxu0 0.0
    %2553 = vmatprep.subr.mxu0 0.0
    %2554 = vmatpush1.msra.mxu0 0.0
    %2555 = vmatprep.subr.mxu0 0.0
    %2556 = vmatpush1.msra.mxu0 0.0
    %2557 = vmatprep.mubr.f32.mxu0 0.0
    %2558 = vmatmul.mubr.f32.gmra.mrb[0].mxu0 %v2491
    %v2559 = vpop.f32.mrb[0].mxu0
    %v2560 = vadd.f32 0.0, %v2559
    %v2561 = vpop.f32.mrb[0].mxu0
    %2562 = vdwg.mxu0
    %v2563 = vadd.f32 %v2476, %v2560
    %v2564 = vld [vmem:[%s316 + $0x3] sm:$0x1]
    %v2565 = vld [vmem:[%s316 + $0x33] sm:$0x1]
    %v2566 = vld [vmem:[%s1132] sm:$0xff]
    %v2567 = vld [vmem:[%s1132 + $0x8] sm:$0xff]
    %v2568 = vld [vmem:[%s1132 + $0x10] sm:$0xff]
    %v2569 = vld [vmem:[%s1132 + $0x18] sm:$0xff]
    %v2570 = vld [vmem:[%s1132 + $0x20] sm:$0xff]
    %v2571 = vld [vmem:[%s1132 + $0x28] sm:$0xff]
    %v2572 = vld [vmem:[%s1132 + $0x30] sm:$0xff]
    %v2573 = vld [vmem:[%s1132 + $0x38] sm:$0xff]
    %v2576 = vrot.slane %v2565, 7
    %v2577 = vsel %vm363, %v2576, %v2564
    %v2578 = vsel %vm365, %v2577, 0
    %2580 = vmatprep.subr.mxu0 0.0
    %2581 = vmatpush1.msra.mxu0 %v2566
    %2582 = vmatprep.subr.mxu0 0.0
    %2583 = vmatpush1.msra.mxu0 %v2567
    %2584 = vmatprep.subr.mxu0 0.0
    %2585 = vmatpush1.msra.mxu0 %v2568
    %2586 = vmatprep.subr.mxu0 0.0
    %2587 = vmatpush1.msra.mxu0 %v2569
    %2588 = vmatprep.subr.mxu0 0.0
    %2589 = vmatpush1.msra.mxu0 %v2570
    %2590 = vmatprep.subr.mxu0 0.0
    %2591 = vmatpush1.msra.mxu0 %v2571
    %2592 = vmatprep.subr.mxu0 0.0
    %2593 = vmatpush1.msra.mxu0 %v2572
    %2594 = vmatprep.subr.mxu0 0.0
    %2595 = vmatpush1.msra.mxu0 %v2573
    %2596 = vmatprep.subr.mxu0 0.0
    %2597 = vmatpush1.msra.mxu0 0.0
    %2598 = vmatprep.subr.mxu0 0.0
    %2599 = vmatpush1.msra.mxu0 0.0
    %2600 = vmatprep.subr.mxu0 0.0
    %2601 = vmatpush1.msra.mxu0 0.0
    %2602 = vmatprep.subr.mxu0 0.0
    %2603 = vmatpush1.msra.mxu0 0.0
    %2604 = vmatprep.subr.mxu0 0.0
    %2605 = vmatpush1.msra.mxu0 0.0
    %2606 = vmatprep.subr.mxu0 0.0
    %2607 = vmatpush1.msra.mxu0 0.0
    %2608 = vmatprep.subr.mxu0 0.0
    %2609 = vmatpush1.msra.mxu0 0.0
    %2610 = vmatprep.subr.mxu0 0.0
    %2611 = vmatpush1.msra.mxu0 0.0
    %2612 = vmatprep.subr.mxu0 0.0
    %2613 = vmatpush1.msra.mxu0 0.0
    %2614 = vmatprep.subr.mxu0 0.0
    %2615 = vmatpush1.msra.mxu0 0.0
    %2616 = vmatprep.subr.mxu0 0.0
    %2617 = vmatpush1.msra.mxu0 0.0
    %2618 = vmatprep.subr.mxu0 0.0
    %2619 = vmatpush1.msra.mxu0 0.0
    %2620 = vmatprep.subr.mxu0 0.0
    %2621 = vmatpush1.msra.mxu0 0.0
    %2622 = vmatprep.subr.mxu0 0.0
    %2623 = vmatpush1.msra.mxu0 0.0
    %2624 = vmatprep.subr.mxu0 0.0
    %2625 = vmatpush1.msra.mxu0 0.0
    %2626 = vmatprep.subr.mxu0 0.0
    %2627 = vmatpush1.msra.mxu0 0.0
    %2628 = vmatprep.subr.mxu0 0.0
    %2629 = vmatpush1.msra.mxu0 0.0
    %2630 = vmatprep.subr.mxu0 0.0
    %2631 = vmatpush1.msra.mxu0 0.0
    %2632 = vmatprep.subr.mxu0 0.0
    %2633 = vmatpush1.msra.mxu0 0.0
    %2634 = vmatprep.subr.mxu0 0.0
    %2635 = vmatpush1.msra.mxu0 0.0
    %2636 = vmatprep.subr.mxu0 0.0
    %2637 = vmatpush1.msra.mxu0 0.0
    %2638 = vmatprep.subr.mxu0 0.0
    %2639 = vmatpush1.msra.mxu0 0.0
    %2640 = vmatprep.subr.mxu0 0.0
    %2641 = vmatpush1.msra.mxu0 0.0
    %2642 = vmatprep.subr.mxu0 0.0
    %2643 = vmatpush1.msra.mxu0 0.0
    %2644 = vmatprep.mubr.f32.mxu0 0.0
    %2645 = vmatmul.mubr.f32.gmra.mrb[0].mxu0 %v2578
    %v2646 = vpop.f32.mrb[0].mxu0
    %v2647 = vadd.f32 0.0, %v2646
    %v2648 = vpop.f32.mrb[0].mxu0
    %2649 = vdwg.mxu0
    %v2650 = vadd.f32 %v2563, %v2647
    %v2651 = vld [vmem:[%s316 + $0x4] sm:$0x1]
    %v2652 = vld [vmem:[%s316 + $0x34] sm:$0x1]
    %v2653 = vld [vmem:[%s1220] sm:$0xff]
    %v2654 = vld [vmem:[%s1220 + $0x8] sm:$0xff]
    %v2655 = vld [vmem:[%s1220 + $0x10] sm:$0xff]
    %v2656 = vld [vmem:[%s1220 + $0x18] sm:$0xff]
    %v2657 = vld [vmem:[%s1220 + $0x20] sm:$0xff]
    %v2658 = vld [vmem:[%s1220 + $0x28] sm:$0xff]
    %v2659 = vld [vmem:[%s1220 + $0x30] sm:$0xff]
    %v2660 = vld [vmem:[%s1220 + $0x38] sm:$0xff]
    %v2663 = vrot.slane %v2652, 7
    %v2664 = vsel %vm363, %v2663, %v2651
    %v2665 = vsel %vm365, %v2664, 0
    %2667 = vmatprep.subr.mxu0 0.0
    %2668 = vmatpush1.msra.mxu0 %v2653
    %2669 = vmatprep.subr.mxu0 0.0
    %2670 = vmatpush1.msra.mxu0 %v2654
    %2671 = vmatprep.subr.mxu0 0.0
    %2672 = vmatpush1.msra.mxu0 %v2655
    %2673 = vmatprep.subr.mxu0 0.0
    %2674 = vmatpush1.msra.mxu0 %v2656
    %2675 = vmatprep.subr.mxu0 0.0
    %2676 = vmatpush1.msra.mxu0 %v2657
    %2677 = vmatprep.subr.mxu0 0.0
    %2678 = vmatpush1.msra.mxu0 %v2658
    %2679 = vmatprep.subr.mxu0 0.0
    %2680 = vmatpush1.msra.mxu0 %v2659
    %2681 = vmatprep.subr.mxu0 0.0
    %2682 = vmatpush1.msra.mxu0 %v2660
    %2683 = vmatprep.subr.mxu0 0.0
    %2684 = vmatpush1.msra.mxu0 0.0
    %2685 = vmatprep.subr.mxu0 0.0
    %2686 = vmatpush1.msra.mxu0 0.0
    %2687 = vmatprep.subr.mxu0 0.0
    %2688 = vmatpush1.msra.mxu0 0.0
    %2689 = vmatprep.subr.mxu0 0.0
    %2690 = vmatpush1.msra.mxu0 0.0
    %2691 = vmatprep.subr.mxu0 0.0
    %2692 = vmatpush1.msra.mxu0 0.0
    %2693 = vmatprep.subr.mxu0 0.0
    %2694 = vmatpush1.msra.mxu0 0.0
    %2695 = vmatprep.subr.mxu0 0.0
    %2696 = vmatpush1.msra.mxu0 0.0
    %2697 = vmatprep.subr.mxu0 0.0
    %2698 = vmatpush1.msra.mxu0 0.0
    %2699 = vmatprep.subr.mxu0 0.0
    %2700 = vmatpush1.msra.mxu0 0.0
    %2701 = vmatprep.subr.mxu0 0.0
    %2702 = vmatpush1.msra.mxu0 0.0
    %2703 = vmatprep.subr.mxu0 0.0
    %2704 = vmatpush1.msra.mxu0 0.0
    %2705 = vmatprep.subr.mxu0 0.0
    %2706 = vmatpush1.msra.mxu0 0.0
    %2707 = vmatprep.subr.mxu0 0.0
    %2708 = vmatpush1.msra.mxu0 0.0
    %2709 = vmatprep.subr.mxu0 0.0
    %2710 = vmatpush1.msra.mxu0 0.0
    %2711 = vmatprep.subr.mxu0 0.0
    %2712 = vmatpush1.msra.mxu0 0.0
    %2713 = vmatprep.subr.mxu0 0.0
    %2714 = vmatpush1.msra.mxu0 0.0
    %2715 = vmatprep.subr.mxu0 0.0
    %2716 = vmatpush1.msra.mxu0 0.0
    %2717 = vmatprep.subr.mxu0 0.0
    %2718 = vmatpush1.msra.mxu0 0.0
    %2719 = vmatprep.subr.mxu0 0.0
    %2720 = vmatpush1.msra.mxu0 0.0
    %2721 = vmatprep.subr.mxu0 0.0
    %2722 = vmatpush1.msra.mxu0 0.0
    %2723 = vmatprep.subr.mxu0 0.0
    %2724 = vmatpush1.msra.mxu0 0.0
    %2725 = vmatprep.subr.mxu0 0.0
    %2726 = vmatpush1.msra.mxu0 0.0
    %2727 = vmatprep.subr.mxu0 0.0
    %2728 = vmatpush1.msra.mxu0 0.0
    %2729 = vmatprep.subr.mxu0 0.0
    %2730 = vmatpush1.msra.mxu0 0.0
    %2731 = vmatprep.mubr.f32.mxu0 0.0
    %2732 = vmatmul.mubr.f32.gmra.mrb[0].mxu0 %v2665
    %v2733 = vpop.f32.mrb[0].mxu0
    %v2734 = vadd.f32 0.0, %v2733
    %v2735 = vpop.f32.mrb[0].mxu0
    %2736 = vdwg.mxu0
    %v2737 = vadd.f32 %v2650, %v2734
    %v2738 = vld [vmem:[%s316 + $0x5] sm:$0x1]
    %v2739 = vld [vmem:[%s316 + $0x35] sm:$0x1]
    %v2740 = vld [vmem:[%s1308] sm:$0xff]
    %v2741 = vld [vmem:[%s1308 + $0x8] sm:$0xff]
    %v2742 = vld [vmem:[%s1308 + $0x10] sm:$0xff]
    %v2743 = vld [vmem:[%s1308 + $0x18] sm:$0xff]
    %v2744 = vld [vmem:[%s1308 + $0x20] sm:$0xff]
    %v2745 = vld [vmem:[%s1308 + $0x28] sm:$0xff]
    %v2746 = vld [vmem:[%s1308 + $0x30] sm:$0xff]
    %v2747 = vld [vmem:[%s1308 + $0x38] sm:$0xff]
    %v2750 = vrot.slane %v2739, 7
    %v2751 = vsel %vm363, %v2750, %v2738
    %v2752 = vsel %vm365, %v2751, 0
    %2754 = vmatprep.subr.mxu0 0.0
    %2755 = vmatpush1.msra.mxu0 %v2740
    %2756 = vmatprep.subr.mxu0 0.0
    %2757 = vmatpush1.msra.mxu0 %v2741
    %2758 = vmatprep.subr.mxu0 0.0
    %2759 = vmatpush1.msra.mxu0 %v2742
    %2760 = vmatprep.subr.mxu0 0.0
    %2761 = vmatpush1.msra.mxu0 %v2743
    %2762 = vmatprep.subr.mxu0 0.0
    %2763 = vmatpush1.msra.mxu0 %v2744
    %2764 = vmatprep.subr.mxu0 0.0
    %2765 = vmatpush1.msra.mxu0 %v2745
    %2766 = vmatprep.subr.mxu0 0.0
    %2767 = vmatpush1.msra.mxu0 %v2746
    %2768 = vmatprep.subr.mxu0 0.0
    %2769 = vmatpush1.msra.mxu0 %v2747
    %2770 = vmatprep.subr.mxu0 0.0
    %2771 = vmatpush1.msra.mxu0 0.0
    %2772 = vmatprep.subr.mxu0 0.0
    %2773 = vmatpush1.msra.mxu0 0.0
    %2774 = vmatprep.subr.mxu0 0.0
    %2775 = vmatpush1.msra.mxu0 0.0
    %2776 = vmatprep.subr.mxu0 0.0
    %2777 = vmatpush1.msra.mxu0 0.0
    %2778 = vmatprep.subr.mxu0 0.0
    %2779 = vmatpush1.msra.mxu0 0.0
    %2780 = vmatprep.subr.mxu0 0.0
    %2781 = vmatpush1.msra.mxu0 0.0
    %2782 = vmatprep.subr.mxu0 0.0
    %2783 = vmatpush1.msra.mxu0 0.0
    %2784 = vmatprep.subr.mxu0 0.0
    %2785 = vmatpush1.msra.mxu0 0.0
    %2786 = vmatprep.subr.mxu0 0.0
    %2787 = vmatpush1.msra.mxu0 0.0
    %2788 = vmatprep.subr.mxu0 0.0
    %2789 = vmatpush1.msra.mxu0 0.0
    %2790 = vmatprep.subr.mxu0 0.0
    %2791 = vmatpush1.msra.mxu0 0.0
    %2792 = vmatprep.subr.mxu0 0.0
    %2793 = vmatpush1.msra.mxu0 0.0
    %2794 = vmatprep.subr.mxu0 0.0
    %2795 = vmatpush1.msra.mxu0 0.0
    %2796 = vmatprep.subr.mxu0 0.0
    %2797 = vmatpush1.msra.mxu0 0.0
    %2798 = vmatprep.subr.mxu0 0.0
    %2799 = vmatpush1.msra.mxu0 0.0
    %2800 = vmatprep.subr.mxu0 0.0
    %2801 = vmatpush1.msra.mxu0 0.0
    %2802 = vmatprep.subr.mxu0 0.0
    %2803 = vmatpush1.msra.mxu0 0.0
    %2804 = vmatprep.subr.mxu0 0.0
    %2805 = vmatpush1.msra.mxu0 0.0
    %2806 = vmatprep.subr.mxu0 0.0
    %2807 = vmatpush1.msra.mxu0 0.0
    %2808 = vmatprep.subr.mxu0 0.0
    %2809 = vmatpush1.msra.mxu0 0.0
    %2810 = vmatprep.subr.mxu0 0.0
    %2811 = vmatpush1.msra.mxu0 0.0
    %2812 = vmatprep.subr.mxu0 0.0
    %2813 = vmatpush1.msra.mxu0 0.0
    %2814 = vmatprep.subr.mxu0 0.0
    %2815 = vmatpush1.msra.mxu0 0.0
    %2816 = vmatprep.subr.mxu0 0.0
    %2817 = vmatpush1.msra.mxu0 0.0
    %2818 = vmatprep.mubr.f32.mxu0 0.0
    %2819 = vmatmul.mubr.f32.gmra.mrb[0].mxu0 %v2752
    %v2820 = vpop.f32.mrb[0].mxu0
    %v2821 = vadd.f32 0.0, %v2820
    %v2822 = vpop.f32.mrb[0].mxu0
    %2823 = vdwg.mxu0
    %v2824 = vadd.f32 %v2737, %v2821
    %v2825 = vld [vmem:[%s319 + $0x2] sm:$0x1]
    %v2826 = vld [vmem:[%s319 + $0x32] sm:$0x1]
    %v2827 = vld [vmem:[%s1396] sm:$0xff]
    %v2828 = vld [vmem:[%s1396 + $0x8] sm:$0xff]
    %v2829 = vld [vmem:[%s1396 + $0x10] sm:$0xff]
    %v2830 = vld [vmem:[%s1396 + $0x18] sm:$0xff]
    %v2831 = vld [vmem:[%s1396 + $0x20] sm:$0xff]
    %v2832 = vld [vmem:[%s1396 + $0x28] sm:$0xff]
    %v2833 = vld [vmem:[%s1396 + $0x30] sm:$0xff]
    %v2834 = vld [vmem:[%s1396 + $0x38] sm:$0xff]
    %v2837 = vrot.slane %v2826, 7
    %v2838 = vsel %vm363, %v2837, %v2825
    %v2839 = vsel %vm365, %v2838, 0
    %2841 = vmatprep.subr.mxu0 0.0
    %2842 = vmatpush1.msra.mxu0 %v2827
    %2843 = vmatprep.subr.mxu0 0.0
    %2844 = vmatpush1.msra.mxu0 %v2828
    %2845 = vmatprep.subr.mxu0 0.0
    %2846 = vmatpush1.msra.mxu0 %v2829
    %2847 = vmatprep.subr.mxu0 0.0
    %2848 = vmatpush1.msra.mxu0 %v2830
    %2849 = vmatprep.subr.mxu0 0.0
    %2850 = vmatpush1.msra.mxu0 %v2831
    %2851 = vmatprep.subr.mxu0 0.0
    %2852 = vmatpush1.msra.mxu0 %v2832
    %2853 = vmatprep.subr.mxu0 0.0
    %2854 = vmatpush1.msra.mxu0 %v2833
    %2855 = vmatprep.subr.mxu0 0.0
    %2856 = vmatpush1.msra.mxu0 %v2834
    %2857 = vmatprep.subr.mxu0 0.0
    %2858 = vmatpush1.msra.mxu0 0.0
    %2859 = vmatprep.subr.mxu0 0.0
    %2860 = vmatpush1.msra.mxu0 0.0
    %2861 = vmatprep.subr.mxu0 0.0
    %2862 = vmatpush1.msra.mxu0 0.0
    %2863 = vmatprep.subr.mxu0 0.0
    %2864 = vmatpush1.msra.mxu0 0.0
    %2865 = vmatprep.subr.mxu0 0.0
    %2866 = vmatpush1.msra.mxu0 0.0
    %2867 = vmatprep.subr.mxu0 0.0
    %2868 = vmatpush1.msra.mxu0 0.0
    %2869 = vmatprep.subr.mxu0 0.0
    %2870 = vmatpush1.msra.mxu0 0.0
    %2871 = vmatprep.subr.mxu0 0.0
    %2872 = vmatpush1.msra.mxu0 0.0
    %2873 = vmatprep.subr.mxu0 0.0
    %2874 = vmatpush1.msra.mxu0 0.0
    %2875 = vmatprep.subr.mxu0 0.0
    %2876 = vmatpush1.msra.mxu0 0.0
    %2877 = vmatprep.subr.mxu0 0.0
    %2878 = vmatpush1.msra.mxu0 0.0
    %2879 = vmatprep.subr.mxu0 0.0
    %2880 = vmatpush1.msra.mxu0 0.0
    %2881 = vmatprep.subr.mxu0 0.0
    %2882 = vmatpush1.msra.mxu0 0.0
    %2883 = vmatprep.subr.mxu0 0.0
    %2884 = vmatpush1.msra.mxu0 0.0
    %2885 = vmatprep.subr.mxu0 0.0
    %2886 = vmatpush1.msra.mxu0 0.0
    %2887 = vmatprep.subr.mxu0 0.0
    %2888 = vmatpush1.msra.mxu0 0.0
    %2889 = vmatprep.subr.mxu0 0.0
    %2890 = vmatpush1.msra.mxu0 0.0
    %2891 = vmatprep.subr.mxu0 0.0
    %2892 = vmatpush1.msra.mxu0 0.0
    %2893 = vmatprep.subr.mxu0 0.0
    %2894 = vmatpush1.msra.mxu0 0.0
    %2895 = vmatprep.subr.mxu0 0.0
    %2896 = vmatpush1.msra.mxu0 0.0
    %2897 = vmatprep.subr.mxu0 0.0
    %2898 = vmatpush1.msra.mxu0 0.0
    %2899 = vmatprep.subr.mxu0 0.0
    %2900 = vmatpush1.msra.mxu0 0.0
    %2901 = vmatprep.subr.mxu0 0.0
    %2902 = vmatpush1.msra.mxu0 0.0
    %2903 = vmatprep.subr.mxu0 0.0
    %2904 = vmatpush1.msra.mxu0 0.0
    %2905 = vmatprep.mubr.f32.mxu0 0.0
    %2906 = vmatmul.mubr.f32.gmra.mrb[0].mxu0 %v2839
    %v2907 = vpop.f32.mrb[0].mxu0
    %v2908 = vadd.f32 0.0, %v2907
    %v2909 = vpop.f32.mrb[0].mxu0
    %2910 = vdwg.mxu0
    %v2911 = vadd.f32 %v2824, %v2908
    %v2912 = vld [vmem:[%s319 + $0x3] sm:$0x1]
    %v2913 = vld [vmem:[%s319 + $0x33] sm:$0x1]
    %v2914 = vld [vmem:[%s1484] sm:$0xff]
    %v2915 = vld [vmem:[%s1484 + $0x8] sm:$0xff]
    %v2916 = vld [vmem:[%s1484 + $0x10] sm:$0xff]
    %v2917 = vld [vmem:[%s1484 + $0x18] sm:$0xff]
    %v2918 = vld [vmem:[%s1484 + $0x20] sm:$0xff]
    %v2919 = vld [vmem:[%s1484 + $0x28] sm:$0xff]
    %v2920 = vld [vmem:[%s1484 + $0x30] sm:$0xff]
    %v2921 = vld [vmem:[%s1484 + $0x38] sm:$0xff]
    %v2924 = vrot.slane %v2913, 7
    %v2925 = vsel %vm363, %v2924, %v2912
    %v2926 = vsel %vm365, %v2925, 0
    %2928 = vmatprep.subr.mxu0 0.0
    %2929 = vmatpush1.msra.mxu0 %v2914
    %2930 = vmatprep.subr.mxu0 0.0
    %2931 = vmatpush1.msra.mxu0 %v2915
    %2932 = vmatprep.subr.mxu0 0.0
    %2933 = vmatpush1.msra.mxu0 %v2916
    %2934 = vmatprep.subr.mxu0 0.0
    %2935 = vmatpush1.msra.mxu0 %v2917
    %2936 = vmatprep.subr.mxu0 0.0
    %2937 = vmatpush1.msra.mxu0 %v2918
    %2938 = vmatprep.subr.mxu0 0.0
    %2939 = vmatpush1.msra.mxu0 %v2919
    %2940 = vmatprep.subr.mxu0 0.0
    %2941 = vmatpush1.msra.mxu0 %v2920
    %2942 = vmatprep.subr.mxu0 0.0
    %2943 = vmatpush1.msra.mxu0 %v2921
    %2944 = vmatprep.subr.mxu0 0.0
    %2945 = vmatpush1.msra.mxu0 0.0
    %2946 = vmatprep.subr.mxu0 0.0
    %2947 = vmatpush1.msra.mxu0 0.0
    %2948 = vmatprep.subr.mxu0 0.0
    %2949 = vmatpush1.msra.mxu0 0.0
    %2950 = vmatprep.subr.mxu0 0.0
    %2951 = vmatpush1.msra.mxu0 0.0
    %2952 = vmatprep.subr.mxu0 0.0
    %2953 = vmatpush1.msra.mxu0 0.0
    %2954 = vmatprep.subr.mxu0 0.0
    %2955 = vmatpush1.msra.mxu0 0.0
    %2956 = vmatprep.subr.mxu0 0.0
    %2957 = vmatpush1.msra.mxu0 0.0
    %2958 = vmatprep.subr.mxu0 0.0
    %2959 = vmatpush1.msra.mxu0 0.0
    %2960 = vmatprep.subr.mxu0 0.0
    %2961 = vmatpush1.msra.mxu0 0.0
    %2962 = vmatprep.subr.mxu0 0.0
    %2963 = vmatpush1.msra.mxu0 0.0
    %2964 = vmatprep.subr.mxu0 0.0
    %2965 = vmatpush1.msra.mxu0 0.0
    %2966 = vmatprep.subr.mxu0 0.0
    %2967 = vmatpush1.msra.mxu0 0.0
    %2968 = vmatprep.subr.mxu0 0.0
    %2969 = vmatpush1.msra.mxu0 0.0
    %2970 = vmatprep.subr.mxu0 0.0
    %2971 = vmatpush1.msra.mxu0 0.0
    %2972 = vmatprep.subr.mxu0 0.0
    %2973 = vmatpush1.msra.mxu0 0.0
    %2974 = vmatprep.subr.mxu0 0.0
    %2975 = vmatpush1.msra.mxu0 0.0
    %2976 = vmatprep.subr.mxu0 0.0
    %2977 = vmatpush1.msra.mxu0 0.0
    %2978 = vmatprep.subr.mxu0 0.0
    %2979 = vmatpush1.msra.mxu0 0.0
    %2980 = vmatprep.subr.mxu0 0.0
    %2981 = vmatpush1.msra.mxu0 0.0
    %2982 = vmatprep.subr.mxu0 0.0
    %2983 = vmatpush1.msra.mxu0 0.0
    %2984 = vmatprep.subr.mxu0 0.0
    %2985 = vmatpush1.msra.mxu0 0.0
    %2986 = vmatprep.subr.mxu0 0.0
    %2987 = vmatpush1.msra.mxu0 0.0
    %2988 = vmatprep.subr.mxu0 0.0
    %2989 = vmatpush1.msra.mxu0 0.0
    %2990 = vmatprep.subr.mxu0 0.0
    %2991 = vmatpush1.msra.mxu0 0.0
    %2992 = vmatprep.mubr.f32.mxu0 0.0
    %2993 = vmatmul.mubr.f32.gmra.mrb[0].mxu0 %v2926
    %v2994 = vpop.f32.mrb[0].mxu0
    %v2995 = vadd.f32 0.0, %v2994
    %v2996 = vpop.f32.mrb[0].mxu0
    %2997 = vdwg.mxu0
    %v2998 = vadd.f32 %v2911, %v2995
    %v2999 = vld [vmem:[%s319 + $0x4] sm:$0x1]
    %v3000 = vld [vmem:[%s319 + $0x34] sm:$0x1]
    %v3001 = vld [vmem:[%s1572] sm:$0xff]
    %v3002 = vld [vmem:[%s1572 + $0x8] sm:$0xff]
    %v3003 = vld [vmem:[%s1572 + $0x10] sm:$0xff]
    %v3004 = vld [vmem:[%s1572 + $0x18] sm:$0xff]
    %v3005 = vld [vmem:[%s1572 + $0x20] sm:$0xff]
    %v3006 = vld [vmem:[%s1572 + $0x28] sm:$0xff]
    %v3007 = vld [vmem:[%s1572 + $0x30] sm:$0xff]
    %v3008 = vld [vmem:[%s1572 + $0x38] sm:$0xff]
    %v3011 = vrot.slane %v3000, 7
    %v3012 = vsel %vm363, %v3011, %v2999
    %v3013 = vsel %vm365, %v3012, 0
    %3015 = vmatprep.subr.mxu0 0.0
    %3016 = vmatpush1.msra.mxu0 %v3001
    %3017 = vmatprep.subr.mxu0 0.0
    %3018 = vmatpush1.msra.mxu0 %v3002
    %3019 = vmatprep.subr.mxu0 0.0
    %3020 = vmatpush1.msra.mxu0 %v3003
    %3021 = vmatprep.subr.mxu0 0.0
    %3022 = vmatpush1.msra.mxu0 %v3004
    %3023 = vmatprep.subr.mxu0 0.0
    %3024 = vmatpush1.msra.mxu0 %v3005
    %3025 = vmatprep.subr.mxu0 0.0
    %3026 = vmatpush1.msra.mxu0 %v3006
    %3027 = vmatprep.subr.mxu0 0.0
    %3028 = vmatpush1.msra.mxu0 %v3007
    %3029 = vmatprep.subr.mxu0 0.0
    %3030 = vmatpush1.msra.mxu0 %v3008
    %3031 = vmatprep.subr.mxu0 0.0
    %3032 = vmatpush1.msra.mxu0 0.0
    %3033 = vmatprep.subr.mxu0 0.0
    %3034 = vmatpush1.msra.mxu0 0.0
    %3035 = vmatprep.subr.mxu0 0.0
    %3036 = vmatpush1.msra.mxu0 0.0
    %3037 = vmatprep.subr.mxu0 0.0
    %3038 = vmatpush1.msra.mxu0 0.0
    %3039 = vmatprep.subr.mxu0 0.0
    %3040 = vmatpush1.msra.mxu0 0.0
    %3041 = vmatprep.subr.mxu0 0.0
    %3042 = vmatpush1.msra.mxu0 0.0
    %3043 = vmatprep.subr.mxu0 0.0
    %3044 = vmatpush1.msra.mxu0 0.0
    %3045 = vmatprep.subr.mxu0 0.0
    %3046 = vmatpush1.msra.mxu0 0.0
    %3047 = vmatprep.subr.mxu0 0.0
    %3048 = vmatpush1.msra.mxu0 0.0
    %3049 = vmatprep.subr.mxu0 0.0
    %3050 = vmatpush1.msra.mxu0 0.0
    %3051 = vmatprep.subr.mxu0 0.0
    %3052 = vmatpush1.msra.mxu0 0.0
    %3053 = vmatprep.subr.mxu0 0.0
    %3054 = vmatpush1.msra.mxu0 0.0
    %3055 = vmatprep.subr.mxu0 0.0
    %3056 = vmatpush1.msra.mxu0 0.0
    %3057 = vmatprep.subr.mxu0 0.0
    %3058 = vmatpush1.msra.mxu0 0.0
    %3059 = vmatprep.subr.mxu0 0.0
    %3060 = vmatpush1.msra.mxu0 0.0
    %3061 = vmatprep.subr.mxu0 0.0
    %3062 = vmatpush1.msra.mxu0 0.0
    %3063 = vmatprep.subr.mxu0 0.0
    %3064 = vmatpush1.msra.mxu0 0.0
    %3065 = vmatprep.subr.mxu0 0.0
    %3066 = vmatpush1.msra.mxu0 0.0
    %3067 = vmatprep.subr.mxu0 0.0
    %3068 = vmatpush1.msra.mxu0 0.0
    %3069 = vmatprep.subr.mxu0 0.0
    %3070 = vmatpush1.msra.mxu0 0.0
    %3071 = vmatprep.subr.mxu0 0.0
    %3072 = vmatpush1.msra.mxu0 0.0
    %3073 = vmatprep.subr.mxu0 0.0
    %3074 = vmatpush1.msra.mxu0 0.0
    %3075 = vmatprep.subr.mxu0 0.0
    %3076 = vmatpush1.msra.mxu0 0.0
    %3077 = vmatprep.subr.mxu0 0.0
    %3078 = vmatpush1.msra.mxu0 0.0
    %3079 = vmatprep.mubr.f32.mxu0 0.0
    %3080 = vmatmul.mubr.f32.gmra.mrb[0].mxu0 %v3013
    %v3081 = vpop.f32.mrb[0].mxu0
    %v3082 = vadd.f32 0.0, %v3081
    %v3083 = vpop.f32.mrb[0].mxu0
    %3084 = vdwg.mxu0
    %v3085 = vadd.f32 %v2998, %v3082
    %v3086 = vld [vmem:[%s319 + $0x5] sm:$0x1]
    %v3087 = vld [vmem:[%s319 + $0x35] sm:$0x1]
    %v3088 = vld [vmem:[%s1660] sm:$0xff]
    %v3089 = vld [vmem:[%s1660 + $0x8] sm:$0xff]
    %v3090 = vld [vmem:[%s1660 + $0x10] sm:$0xff]
    %v3091 = vld [vmem:[%s1660 + $0x18] sm:$0xff]
    %v3092 = vld [vmem:[%s1660 + $0x20] sm:$0xff]
    %v3093 = vld [vmem:[%s1660 + $0x28] sm:$0xff]
    %v3094 = vld [vmem:[%s1660 + $0x30] sm:$0xff]
    %v3095 = vld [vmem:[%s1660 + $0x38] sm:$0xff]
    %v3098 = vrot.slane %v3087, 7
    %v3099 = vsel %vm363, %v3098, %v3086
    %v3100 = vsel %vm365, %v3099, 0
    %3102 = vmatprep.subr.mxu0 0.0
    %3103 = vmatpush1.msra.mxu0 %v3088
    %3104 = vmatprep.subr.mxu0 0.0
    %3105 = vmatpush1.msra.mxu0 %v3089
    %3106 = vmatprep.subr.mxu0 0.0
    %3107 = vmatpush1.msra.mxu0 %v3090
    %3108 = vmatprep.subr.mxu0 0.0
    %3109 = vmatpush1.msra.mxu0 %v3091
    %3110 = vmatprep.subr.mxu0 0.0
    %3111 = vmatpush1.msra.mxu0 %v3092
    %3112 = vmatprep.subr.mxu0 0.0
    %3113 = vmatpush1.msra.mxu0 %v3093
    %3114 = vmatprep.subr.mxu0 0.0
    %3115 = vmatpush1.msra.mxu0 %v3094
    %3116 = vmatprep.subr.mxu0 0.0
    %3117 = vmatpush1.msra.mxu0 %v3095
    %3118 = vmatprep.subr.mxu0 0.0
    %3119 = vmatpush1.msra.mxu0 0.0
    %3120 = vmatprep.subr.mxu0 0.0
    %3121 = vmatpush1.msra.mxu0 0.0
    %3122 = vmatprep.subr.mxu0 0.0
    %3123 = vmatpush1.msra.mxu0 0.0
    %3124 = vmatprep.subr.mxu0 0.0
    %3125 = vmatpush1.msra.mxu0 0.0
    %3126 = vmatprep.subr.mxu0 0.0
    %3127 = vmatpush1.msra.mxu0 0.0
    %3128 = vmatprep.subr.mxu0 0.0
    %3129 = vmatpush1.msra.mxu0 0.0
    %3130 = vmatprep.subr.mxu0 0.0
    %3131 = vmatpush1.msra.mxu0 0.0
    %3132 = vmatprep.subr.mxu0 0.0
    %3133 = vmatpush1.msra.mxu0 0.0
    %3134 = vmatprep.subr.mxu0 0.0
    %3135 = vmatpush1.msra.mxu0 0.0
    %3136 = vmatprep.subr.mxu0 0.0
    %3137 = vmatpush1.msra.mxu0 0.0
    %3138 = vmatprep.subr.mxu0 0.0
    %3139 = vmatpush1.msra.mxu0 0.0
    %3140 = vmatprep.subr.mxu0 0.0
    %3141 = vmatpush1.msra.mxu0 0.0
    %3142 = vmatprep.subr.mxu0 0.0
    %3143 = vmatpush1.msra.mxu0 0.0
    %3144 = vmatprep.subr.mxu0 0.0
    %3145 = vmatpush1.msra.mxu0 0.0
    %3146 = vmatprep.subr.mxu0 0.0
    %3147 = vmatpush1.msra.mxu0 0.0
    %3148 = vmatprep.subr.mxu0 0.0
    %3149 = vmatpush1.msra.mxu0 0.0
    %3150 = vmatprep.subr.mxu0 0.0
    %3151 = vmatpush1.msra.mxu0 0.0
    %3152 = vmatprep.subr.mxu0 0.0
    %3153 = vmatpush1.msra.mxu0 0.0
    %3154 = vmatprep.subr.mxu0 0.0
    %3155 = vmatpush1.msra.mxu0 0.0
    %3156 = vmatprep.subr.mxu0 0.0
    %3157 = vmatpush1.msra.mxu0 0.0
    %3158 = vmatprep.subr.mxu0 0.0
    %3159 = vmatpush1.msra.mxu0 0.0
    %3160 = vmatprep.subr.mxu0 0.0
    %3161 = vmatpush1.msra.mxu0 0.0
    %3162 = vmatprep.subr.mxu0 0.0
    %3163 = vmatpush1.msra.mxu0 0.0
    %3164 = vmatprep.subr.mxu0 0.0
    %3165 = vmatpush1.msra.mxu0 0.0
    %3166 = vmatprep.mubr.f32.mxu0 0.0
    %3167 = vmatmul.mubr.f32.gmra.mrb[0].mxu0 %v3100
    %v3168 = vpop.f32.mrb[0].mxu0
    %v3169 = vadd.f32 0.0, %v3168
    %v3170 = vpop.f32.mrb[0].mxu0
    %3171 = vdwg.mxu0
    %v3172 = vadd.f32 %v3085, %v3169
    %v3173 = vld [vmem:[%s4] sm:$0x1]
    %v3175 = vlaneseq
    %v3176 = vshrl.u32 %v3175, 7
    %v3177 = vsub.s32 0, %v3176
    %v3178 = vrot.slane %v3173, %v3177
    %v3180 = vadd.f32 %v3172, %v3178
    %v3181 = vmax.f32 %v3180, 0.0
    %v3184 = vunpack.c.l.s4 1966171168
    %v3185 = vunpack.c.0.s8 %v3184
    %v3186 = vlaneseq
    %v3187 = vshrl.u32 %v3186, 7
    %v3188 = vsub.s32 %v3185, %v3187
    %v3189 = vrot.slane %v3181, %v3188
    %v3190 = vcombine.high %v3189, %v3189
    %v3192 = vunpack.c.l.s4 1966171168
    %v3193 = vunpack.c.0.s8 %v3192
    %v3194 = vlaneseq
    %v3195 = vshrl.u32 %v3194, 7
    %v3196 = vsub.s32 %v3193, %v3195
    %v3197 = vrot.slane %v3189, %v3196
    %v3199 = vunpack.c.l.s4 1966171168
    %v3200 = vunpack.c.0.s8 %v3199
    %v3201 = vlaneseq
    %v3202 = vshrl.u32 %v3201, 7
    %v3203 = vsub.s32 %v3200, %v3202
    %v3204 = vrot.slane %v3190, %v3203
    %3207 = vst [vmem:[%s1780 + $0x2] sm:$0x1] %v3197
    %3208 = vst [vmem:[%s1780 + $0x12] sm:$0x1] %v3204
    %v3209 = vld [vmem:[%s316] sm:$0x1]
    %v3210 = vld [vmem:[%s316 + $0x30] sm:$0x1]
    %v3211 = vld [vmem:[%s3] sm:$0xff]
    %v3212 = vld [vmem:[%s3 + $0x8] sm:$0xff]
    %v3213 = vld [vmem:[%s3 + $0x10] sm:$0xff]
    %v3214 = vld [vmem:[%s3 + $0x18] sm:$0xff]
    %v3215 = vld [vmem:[%s3 + $0x20] sm:$0xff]
    %v3216 = vld [vmem:[%s3 + $0x28] sm:$0xff]
    %v3217 = vld [vmem:[%s3 + $0x30] sm:$0xff]
    %v3218 = vld [vmem:[%s3 + $0x38] sm:$0xff]
    %v3219 = vld [vmem:[%s316 + $0x1] sm:$0x1]
    %v3220 = vld [vmem:[%s316 + $0x31] sm:$0x1]
    %v3221 = vld [vmem:[%s351] sm:$0xff]
    %v3222 = vld [vmem:[%s351 + $0x8] sm:$0xff]
    %v3223 = vld [vmem:[%s351 + $0x10] sm:$0xff]
    %v3224 = vld [vmem:[%s351 + $0x18] sm:$0xff]
    %v3225 = vld [vmem:[%s351 + $0x20] sm:$0xff]
    %v3226 = vld [vmem:[%s351 + $0x28] sm:$0xff]
    %v3227 = vld [vmem:[%s351 + $0x30] sm:$0xff]
    %v3228 = vld [vmem:[%s351 + $0x38] sm:$0xff]
    %v3231 = vrot.slane %v3220, 7
    %v3232 = vsel %vm363, %v3231, %v3219
    %v3233 = vsel %vm365, %v3232, 0
    %3235 = vmatprep.subr.mxu0 0.0
    %3236 = vmatpush1.msra.mxu0 %v3221
    %3237 = vmatprep.subr.mxu0 0.0
    %3238 = vmatpush1.msra.mxu0 %v3222
    %3239 = vmatprep.subr.mxu0 0.0
    %3240 = vmatpush1.msra.mxu0 %v3223
    %3241 = vmatprep.subr.mxu0 0.0
    %3242 = vmatpush1.msra.mxu0 %v3224
    %3243 = vmatprep.subr.mxu0 0.0
    %3244 = vmatpush1.msra.mxu0 %v3225
    %3245 = vmatprep.subr.mxu0 0.0
    %3246 = vmatpush1.msra.mxu0 %v3226
    %3247 = vmatprep.subr.mxu0 0.0
    %3248 = vmatpush1.msra.mxu0 %v3227
    %3249 = vmatprep.subr.mxu0 0.0
    %3250 = vmatpush1.msra.mxu0 %v3228
    %3251 = vmatprep.subr.mxu0 0.0
    %3252 = vmatpush1.msra.mxu0 0.0
    %3253 = vmatprep.subr.mxu0 0.0
    %3254 = vmatpush1.msra.mxu0 0.0
    %3255 = vmatprep.subr.mxu0 0.0
    %3256 = vmatpush1.msra.mxu0 0.0
    %3257 = vmatprep.subr.mxu0 0.0
    %3258 = vmatpush1.msra.mxu0 0.0
    %3259 = vmatprep.subr.mxu0 0.0
    %3260 = vmatpush1.msra.mxu0 0.0
    %3261 = vmatprep.subr.mxu0 0.0
    %3262 = vmatpush1.msra.mxu0 0.0
    %3263 = vmatprep.subr.mxu0 0.0
    %3264 = vmatpush1.msra.mxu0 0.0
    %3265 = vmatprep.subr.mxu0 0.0
    %3266 = vmatpush1.msra.mxu0 0.0
    %3267 = vmatprep.subr.mxu0 0.0
    %3268 = vmatpush1.msra.mxu0 0.0
    %3269 = vmatprep.subr.mxu0 0.0
    %3270 = vmatpush1.msra.mxu0 0.0
    %3271 = vmatprep.subr.mxu0 0.0
    %3272 = vmatpush1.msra.mxu0 0.0
    %3273 = vmatprep.subr.mxu0 0.0
    %3274 = vmatpush1.msra.mxu0 0.0
    %3275 = vmatprep.subr.mxu0 0.0
    %3276 = vmatpush1.msra.mxu0 0.0
    %3277 = vmatprep.subr.mxu0 0.0
    %3278 = vmatpush1.msra.mxu0 0.0
    %3279 = vmatprep.subr.mxu0 0.0
    %3280 = vmatpush1.msra.mxu0 0.0
    %3281 = vmatprep.subr.mxu0 0.0
    %3282 = vmatpush1.msra.mxu0 0.0
    %3283 = vmatprep.subr.mxu0 0.0
    %3284 = vmatpush1.msra.mxu0 0.0
    %3285 = vmatprep.subr.mxu0 0.0
    %3286 = vmatpush1.msra.mxu0 0.0
    %3287 = vmatprep.subr.mxu0 0.0
    %3288 = vmatpush1.msra.mxu0 0.0
    %3289 = vmatprep.subr.mxu0 0.0
    %3290 = vmatpush1.msra.mxu0 0.0
    %3291 = vmatprep.subr.mxu0 0.0
    %3292 = vmatpush1.msra.mxu0 0.0
    %3293 = vmatprep.subr.mxu0 0.0
    %3294 = vmatpush1.msra.mxu0 0.0
    %3295 = vmatprep.subr.mxu0 0.0
    %3296 = vmatpush1.msra.mxu0 0.0
    %3297 = vmatprep.subr.mxu0 0.0
    %3298 = vmatpush1.msra.mxu0 0.0
    %3299 = vmatprep.mubr.f32.mxu0 0.0
    %3300 = vmatmul.mubr.f32.gmra.mrb[0].mxu0 %v3233
    %v3301 = vpop.f32.mrb[0].mxu0
    %v3302 = vadd.f32 0.0, %v3301
    %v3303 = vpop.f32.mrb[0].mxu0
    %3304 = vdwg.mxu0
    %v3307 = vrot.slane %v3210, 7
    %v3308 = vsel %vm363, %v3307, %v3209
    %v3309 = vsel %vm365, %v3308, 0
    %3311 = vmatprep.subr.mxu0 0.0
    %3312 = vmatpush1.msra.mxu0 %v3211
    %3313 = vmatprep.subr.mxu0 0.0
    %3314 = vmatpush1.msra.mxu0 %v3212
    %3315 = vmatprep.subr.mxu0 0.0
    %3316 = vmatpush1.msra.mxu0 %v3213
    %3317 = vmatprep.subr.mxu0 0.0
    %3318 = vmatpush1.msra.mxu0 %v3214
    %3319 = vmatprep.subr.mxu0 0.0
    %3320 = vmatpush1.msra.mxu0 %v3215
    %3321 = vmatprep.subr.mxu0 0.0
    %3322 = vmatpush1.msra.mxu0 %v3216
    %3323 = vmatprep.subr.mxu0 0.0
    %3324 = vmatpush1.msra.mxu0 %v3217
    %3325 = vmatprep.subr.mxu0 0.0
    %3326 = vmatpush1.msra.mxu0 %v3218
    %3327 = vmatprep.subr.mxu0 0.0
    %3328 = vmatpush1.msra.mxu0 0.0
    %3329 = vmatprep.subr.mxu0 0.0
    %3330 = vmatpush1.msra.mxu0 0.0
    %3331 = vmatprep.subr.mxu0 0.0
    %3332 = vmatpush1.msra.mxu0 0.0
    %3333 = vmatprep.subr.mxu0 0.0
    %3334 = vmatpush1.msra.mxu0 0.0
    %3335 = vmatprep.subr.mxu0 0.0
    %3336 = vmatpush1.msra.mxu0 0.0
    %3337 = vmatprep.subr.mxu0 0.0
    %3338 = vmatpush1.msra.mxu0 0.0
    %3339 = vmatprep.subr.mxu0 0.0
    %3340 = vmatpush1.msra.mxu0 0.0
    %3341 = vmatprep.subr.mxu0 0.0
    %3342 = vmatpush1.msra.mxu0 0.0
    %3343 = vmatprep.subr.mxu0 0.0
    %3344 = vmatpush1.msra.mxu0 0.0
    %3345 = vmatprep.subr.mxu0 0.0
    %3346 = vmatpush1.msra.mxu0 0.0
    %3347 = vmatprep.subr.mxu0 0.0
    %3348 = vmatpush1.msra.mxu0 0.0
    %3349 = vmatprep.subr.mxu0 0.0
    %3350 = vmatpush1.msra.mxu0 0.0
    %3351 = vmatprep.subr.mxu0 0.0
    %3352 = vmatpush1.msra.mxu0 0.0
    %3353 = vmatprep.subr.mxu0 0.0
    %3354 = vmatpush1.msra.mxu0 0.0
    %3355 = vmatprep.subr.mxu0 0.0
    %3356 = vmatpush1.msra.mxu0 0.0
    %3357 = vmatprep.subr.mxu0 0.0
    %3358 = vmatpush1.msra.mxu0 0.0
    %3359 = vmatprep.subr.mxu0 0.0
    %3360 = vmatpush1.msra.mxu0 0.0
    %3361 = vmatprep.subr.mxu0 0.0
    %3362 = vmatpush1.msra.mxu0 0.0
    %3363 = vmatprep.subr.mxu0 0.0
    %3364 = vmatpush1.msra.mxu0 0.0
    %3365 = vmatprep.subr.mxu0 0.0
    %3366 = vmatpush1.msra.mxu0 0.0
    %3367 = vmatprep.subr.mxu0 0.0
    %3368 = vmatpush1.msra.mxu0 0.0
    %3369 = vmatprep.subr.mxu0 0.0
    %3370 = vmatpush1.msra.mxu0 0.0
    %3371 = vmatprep.subr.mxu0 0.0
    %3372 = vmatpush1.msra.mxu0 0.0
    %3373 = vmatprep.subr.mxu0 0.0
    %3374 = vmatpush1.msra.mxu0 0.0
    %3375 = vmatprep.mubr.f32.mxu0 0.0
    %3376 = vmatmul.mubr.f32.gmra.mrb[0].mxu0 %v3309
    %v3377 = vpop.f32.mrb[0].mxu0
    %v3378 = vadd.f32 %v3302, %v3377
    %v3379 = vpop.f32.mrb[0].mxu0
    %3380 = vdwg.mxu0
    %v3381 = vld [vmem:[%s316 + $0x2] sm:$0x1]
    %v3382 = vld [vmem:[%s316 + $0x32] sm:$0x1]
    %v3383 = vld [vmem:[%s516] sm:$0xff]
    %v3384 = vld [vmem:[%s516 + $0x8] sm:$0xff]
    %v3385 = vld [vmem:[%s516 + $0x10] sm:$0xff]
    %v3386 = vld [vmem:[%s516 + $0x18] sm:$0xff]
    %v3387 = vld [vmem:[%s516 + $0x20] sm:$0xff]
    %v3388 = vld [vmem:[%s516 + $0x28] sm:$0xff]
    %v3389 = vld [vmem:[%s516 + $0x30] sm:$0xff]
    %v3390 = vld [vmem:[%s516 + $0x38] sm:$0xff]
    %v3393 = vrot.slane %v3382, 7
    %v3394 = vsel %vm363, %v3393, %v3381
    %v3395 = vsel %vm365, %v3394, 0
    %3397 = vmatprep.subr.mxu0 0.0
    %3398 = vmatpush1.msra.mxu0 %v3383
    %3399 = vmatprep.subr.mxu0 0.0
    %3400 = vmatpush1.msra.mxu0 %v3384
    %3401 = vmatprep.subr.mxu0 0.0
    %3402 = vmatpush1.msra.mxu0 %v3385
    %3403 = vmatprep.subr.mxu0 0.0
    %3404 = vmatpush1.msra.mxu0 %v3386
    %3405 = vmatprep.subr.mxu0 0.0
    %3406 = vmatpush1.msra.mxu0 %v3387
    %3407 = vmatprep.subr.mxu0 0.0
    %3408 = vmatpush1.msra.mxu0 %v3388
    %3409 = vmatprep.subr.mxu0 0.0
    %3410 = vmatpush1.msra.mxu0 %v3389
    %3411 = vmatprep.subr.mxu0 0.0
    %3412 = vmatpush1.msra.mxu0 %v3390
    %3413 = vmatprep.subr.mxu0 0.0
    %3414 = vmatpush1.msra.mxu0 0.0
    %3415 = vmatprep.subr.mxu0 0.0
    %3416 = vmatpush1.msra.mxu0 0.0
    %3417 = vmatprep.subr.mxu0 0.0
    %3418 = vmatpush1.msra.mxu0 0.0
    %3419 = vmatprep.subr.mxu0 0.0
    %3420 = vmatpush1.msra.mxu0 0.0
    %3421 = vmatprep.subr.mxu0 0.0
    %3422 = vmatpush1.msra.mxu0 0.0
    %3423 = vmatprep.subr.mxu0 0.0
    %3424 = vmatpush1.msra.mxu0 0.0
    %3425 = vmatprep.subr.mxu0 0.0
    %3426 = vmatpush1.msra.mxu0 0.0
    %3427 = vmatprep.subr.mxu0 0.0
    %3428 = vmatpush1.msra.mxu0 0.0
    %3429 = vmatprep.subr.mxu0 0.0
    %3430 = vmatpush1.msra.mxu0 0.0
    %3431 = vmatprep.subr.mxu0 0.0
    %3432 = vmatpush1.msra.mxu0 0.0
    %3433 = vmatprep.subr.mxu0 0.0
    %3434 = vmatpush1.msra.mxu0 0.0
    %3435 = vmatprep.subr.mxu0 0.0
    %3436 = vmatpush1.msra.mxu0 0.0
    %3437 = vmatprep.subr.mxu0 0.0
    %3438 = vmatpush1.msra.mxu0 0.0
    %3439 = vmatprep.subr.mxu0 0.0
    %3440 = vmatpush1.msra.mxu0 0.0
    %3441 = vmatprep.subr.mxu0 0.0
    %3442 = vmatpush1.msra.mxu0 0.0
    %3443 = vmatprep.subr.mxu0 0.0
    %3444 = vmatpush1.msra.mxu0 0.0
    %3445 = vmatprep.subr.mxu0 0.0
    %3446 = vmatpush1.msra.mxu0 0.0
    %3447 = vmatprep.subr.mxu0 0.0
    %3448 = vmatpush1.msra.mxu0 0.0
    %3449 = vmatprep.subr.mxu0 0.0
    %3450 = vmatpush1.msra.mxu0 0.0
    %3451 = vmatprep.subr.mxu0 0.0
    %3452 = vmatpush1.msra.mxu0 0.0
    %3453 = vmatprep.subr.mxu0 0.0
    %3454 = vmatpush1.msra.mxu0 0.0
    %3455 = vmatprep.subr.mxu0 0.0
    %3456 = vmatpush1.msra.mxu0 0.0
    %3457 = vmatprep.subr.mxu0 0.0
    %3458 = vmatpush1.msra.mxu0 0.0
    %3459 = vmatprep.subr.mxu0 0.0
    %3460 = vmatpush1.msra.mxu0 0.0
    %3461 = vmatprep.mubr.f32.mxu0 0.0
    %3462 = vmatmul.mubr.f32.gmra.mrb[0].mxu0 %v3395
    %v3463 = vpop.f32.mrb[0].mxu0
    %v3464 = vadd.f32 0.0, %v3463
    %v3465 = vpop.f32.mrb[0].mxu0
    %3466 = vdwg.mxu0
    %v3467 = vadd.f32 %v3378, %v3464
    %v3468 = vld [vmem:[%s316 + $0x3] sm:$0x1]
    %v3469 = vld [vmem:[%s316 + $0x33] sm:$0x1]
    %v3470 = vld [vmem:[%s604] sm:$0xff]
    %v3471 = vld [vmem:[%s604 + $0x8] sm:$0xff]
    %v3472 = vld [vmem:[%s604 + $0x10] sm:$0xff]
    %v3473 = vld [vmem:[%s604 + $0x18] sm:$0xff]
    %v3474 = vld [vmem:[%s604 + $0x20] sm:$0xff]
    %v3475 = vld [vmem:[%s604 + $0x28] sm:$0xff]
    %v3476 = vld [vmem:[%s604 + $0x30] sm:$0xff]
    %v3477 = vld [vmem:[%s604 + $0x38] sm:$0xff]
    %v3480 = vrot.slane %v3469, 7
    %v3481 = vsel %vm363, %v3480, %v3468
    %v3482 = vsel %vm365, %v3481, 0
    %3484 = vmatprep.subr.mxu0 0.0
    %3485 = vmatpush1.msra.mxu0 %v3470
    %3486 = vmatprep.subr.mxu0 0.0
    %3487 = vmatpush1.msra.mxu0 %v3471
    %3488 = vmatprep.subr.mxu0 0.0
    %3489 = vmatpush1.msra.mxu0 %v3472
    %3490 = vmatprep.subr.mxu0 0.0
    %3491 = vmatpush1.msra.mxu0 %v3473
    %3492 = vmatprep.subr.mxu0 0.0
    %3493 = vmatpush1.msra.mxu0 %v3474
    %3494 = vmatprep.subr.mxu0 0.0
    %3495 = vmatpush1.msra.mxu0 %v3475
    %3496 = vmatprep.subr.mxu0 0.0
    %3497 = vmatpush1.msra.mxu0 %v3476
    %3498 = vmatprep.subr.mxu0 0.0
    %3499 = vmatpush1.msra.mxu0 %v3477
    %3500 = vmatprep.subr.mxu0 0.0
    %3501 = vmatpush1.msra.mxu0 0.0
    %3502 = vmatprep.subr.mxu0 0.0
    %3503 = vmatpush1.msra.mxu0 0.0
    %3504 = vmatprep.subr.mxu0 0.0
    %3505 = vmatpush1.msra.mxu0 0.0
    %3506 = vmatprep.subr.mxu0 0.0
    %3507 = vmatpush1.msra.mxu0 0.0
    %3508 = vmatprep.subr.mxu0 0.0
    %3509 = vmatpush1.msra.mxu0 0.0
    %3510 = vmatprep.subr.mxu0 0.0
    %3511 = vmatpush1.msra.mxu0 0.0
    %3512 = vmatprep.subr.mxu0 0.0
    %3513 = vmatpush1.msra.mxu0 0.0
    %3514 = vmatprep.subr.mxu0 0.0
    %3515 = vmatpush1.msra.mxu0 0.0
    %3516 = vmatprep.subr.mxu0 0.0
    %3517 = vmatpush1.msra.mxu0 0.0
    %3518 = vmatprep.subr.mxu0 0.0
    %3519 = vmatpush1.msra.mxu0 0.0
    %3520 = vmatprep.subr.mxu0 0.0
    %3521 = vmatpush1.msra.mxu0 0.0
    %3522 = vmatprep.subr.mxu0 0.0
    %3523 = vmatpush1.msra.mxu0 0.0
    %3524 = vmatprep.subr.mxu0 0.0
    %3525 = vmatpush1.msra.mxu0 0.0
    %3526 = vmatprep.subr.mxu0 0.0
    %3527 = vmatpush1.msra.mxu0 0.0
    %3528 = vmatprep.subr.mxu0 0.0
    %3529 = vmatpush1.msra.mxu0 0.0
    %3530 = vmatprep.subr.mxu0 0.0
    %3531 = vmatpush1.msra.mxu0 0.0
    %3532 = vmatprep.subr.mxu0 0.0
    %3533 = vmatpush1.msra.mxu0 0.0
    %3534 = vmatprep.subr.mxu0 0.0
    %3535 = vmatpush1.msra.mxu0 0.0
    %3536 = vmatprep.subr.mxu0 0.0
    %3537 = vmatpush1.msra.mxu0 0.0
    %3538 = vmatprep.subr.mxu0 0.0
    %3539 = vmatpush1.msra.mxu0 0.0
    %3540 = vmatprep.subr.mxu0 0.0
    %3541 = vmatpush1.msra.mxu0 0.0
    %3542 = vmatprep.subr.mxu0 0.0
    %3543 = vmatpush1.msra.mxu0 0.0
    %3544 = vmatprep.subr.mxu0 0.0
    %3545 = vmatpush1.msra.mxu0 0.0
    %3546 = vmatprep.subr.mxu0 0.0
    %3547 = vmatpush1.msra.mxu0 0.0
    %3548 = vmatprep.mubr.f32.mxu0 0.0
    %3549 = vmatmul.mubr.f32.gmra.mrb[0].mxu0 %v3482
    %v3550 = vpop.f32.mrb[0].mxu0
    %v3551 = vadd.f32 0.0, %v3550
    %v3552 = vpop.f32.mrb[0].mxu0
    %3553 = vdwg.mxu0
    %v3554 = vadd.f32 %v3467, %v3551
    %v3555 = vld [vmem:[%s319] sm:$0x1]
    %v3556 = vld [vmem:[%s319 + $0x30] sm:$0x1]
    %v3557 = vld [vmem:[%s692] sm:$0xff]
    %v3558 = vld [vmem:[%s692 + $0x8] sm:$0xff]
    %v3559 = vld [vmem:[%s692 + $0x10] sm:$0xff]
    %v3560 = vld [vmem:[%s692 + $0x18] sm:$0xff]
    %v3561 = vld [vmem:[%s692 + $0x20] sm:$0xff]
    %v3562 = vld [vmem:[%s692 + $0x28] sm:$0xff]
    %v3563 = vld [vmem:[%s692 + $0x30] sm:$0xff]
    %v3564 = vld [vmem:[%s692 + $0x38] sm:$0xff]
    %v3567 = vrot.slane %v3556, 7
    %v3568 = vsel %vm363, %v3567, %v3555
    %v3569 = vsel %vm365, %v3568, 0
    %3571 = vmatprep.subr.mxu0 0.0
    %3572 = vmatpush1.msra.mxu0 %v3557
    %3573 = vmatprep.subr.mxu0 0.0
    %3574 = vmatpush1.msra.mxu0 %v3558
    %3575 = vmatprep.subr.mxu0 0.0
    %3576 = vmatpush1.msra.mxu0 %v3559
    %3577 = vmatprep.subr.mxu0 0.0
    %3578 = vmatpush1.msra.mxu0 %v3560
    %3579 = vmatprep.subr.mxu0 0.0
    %3580 = vmatpush1.msra.mxu0 %v3561
    %3581 = vmatprep.subr.mxu0 0.0
    %3582 = vmatpush1.msra.mxu0 %v3562
    %3583 = vmatprep.subr.mxu0 0.0
    %3584 = vmatpush1.msra.mxu0 %v3563
    %3585 = vmatprep.subr.mxu0 0.0
    %3586 = vmatpush1.msra.mxu0 %v3564
    %3587 = vmatprep.subr.mxu0 0.0
    %3588 = vmatpush1.msra.mxu0 0.0
    %3589 = vmatprep.subr.mxu0 0.0
    %3590 = vmatpush1.msra.mxu0 0.0
    %3591 = vmatprep.subr.mxu0 0.0
    %3592 = vmatpush1.msra.mxu0 0.0
    %3593 = vmatprep.subr.mxu0 0.0
    %3594 = vmatpush1.msra.mxu0 0.0
    %3595 = vmatprep.subr.mxu0 0.0
    %3596 = vmatpush1.msra.mxu0 0.0
    %3597 = vmatprep.subr.mxu0 0.0
    %3598 = vmatpush1.msra.mxu0 0.0
    %3599 = vmatprep.subr.mxu0 0.0
    %3600 = vmatpush1.msra.mxu0 0.0
    %3601 = vmatprep.subr.mxu0 0.0
    %3602 = vmatpush1.msra.mxu0 0.0
    %3603 = vmatprep.subr.mxu0 0.0
    %3604 = vmatpush1.msra.mxu0 0.0
    %3605 = vmatprep.subr.mxu0 0.0
    %3606 = vmatpush1.msra.mxu0 0.0
    %3607 = vmatprep.subr.mxu0 0.0
    %3608 = vmatpush1.msra.mxu0 0.0
    %3609 = vmatprep.subr.mxu0 0.0
    %3610 = vmatpush1.msra.mxu0 0.0
    %3611 = vmatprep.subr.mxu0 0.0
    %3612 = vmatpush1.msra.mxu0 0.0
    %3613 = vmatprep.subr.mxu0 0.0
    %3614 = vmatpush1.msra.mxu0 0.0
    %3615 = vmatprep.subr.mxu0 0.0
    %3616 = vmatpush1.msra.mxu0 0.0
    %3617 = vmatprep.subr.mxu0 0.0
    %3618 = vmatpush1.msra.mxu0 0.0
    %3619 = vmatprep.subr.mxu0 0.0
    %3620 = vmatpush1.msra.mxu0 0.0
    %3621 = vmatprep.subr.mxu0 0.0
    %3622 = vmatpush1.msra.mxu0 0.0
    %3623 = vmatprep.subr.mxu0 0.0
    %3624 = vmatpush1.msra.mxu0 0.0
    %3625 = vmatprep.subr.mxu0 0.0
    %3626 = vmatpush1.msra.mxu0 0.0
    %3627 = vmatprep.subr.mxu0 0.0
    %3628 = vmatpush1.msra.mxu0 0.0
    %3629 = vmatprep.subr.mxu0 0.0
    %3630 = vmatpush1.msra.mxu0 0.0
    %3631 = vmatprep.subr.mxu0 0.0
    %3632 = vmatpush1.msra.mxu0 0.0
    %3633 = vmatprep.subr.mxu0 0.0
    %3634 = vmatpush1.msra.mxu0 0.0
    %3635 = vmatprep.mubr.f32.mxu0 0.0
    %3636 = vmatmul.mubr.f32.gmra.mrb[0].mxu0 %v3569
    %v3637 = vpop.f32.mrb[0].mxu0
    %v3638 = vadd.f32 0.0, %v3637
    %v3639 = vpop.f32.mrb[0].mxu0
    %3640 = vdwg.mxu0
    %v3641 = vadd.f32 %v3554, %v3638
    %v3642 = vld [vmem:[%s319 + $0x1] sm:$0x1]
    %v3643 = vld [vmem:[%s319 + $0x31] sm:$0x1]
    %v3644 = vld [vmem:[%s780] sm:$0xff]
    %v3645 = vld [vmem:[%s780 + $0x8] sm:$0xff]
    %v3646 = vld [vmem:[%s780 + $0x10] sm:$0xff]
    %v3647 = vld [vmem:[%s780 + $0x18] sm:$0xff]
    %v3648 = vld [vmem:[%s780 + $0x20] sm:$0xff]
    %v3649 = vld [vmem:[%s780 + $0x28] sm:$0xff]
    %v3650 = vld [vmem:[%s780 + $0x30] sm:$0xff]
    %v3651 = vld [vmem:[%s780 + $0x38] sm:$0xff]
    %v3654 = vrot.slane %v3643, 7
    %v3655 = vsel %vm363, %v3654, %v3642
    %v3656 = vsel %vm365, %v3655, 0
    %3658 = vmatprep.subr.mxu0 0.0
    %3659 = vmatpush1.msra.mxu0 %v3644
    %3660 = vmatprep.subr.mxu0 0.0
    %3661 = vmatpush1.msra.mxu0 %v3645
    %3662 = vmatprep.subr.mxu0 0.0
    %3663 = vmatpush1.msra.mxu0 %v3646
    %3664 = vmatprep.subr.mxu0 0.0
    %3665 = vmatpush1.msra.mxu0 %v3647
    %3666 = vmatprep.subr.mxu0 0.0
    %3667 = vmatpush1.msra.mxu0 %v3648
    %3668 = vmatprep.subr.mxu0 0.0
    %3669 = vmatpush1.msra.mxu0 %v3649
    %3670 = vmatprep.subr.mxu0 0.0
    %3671 = vmatpush1.msra.mxu0 %v3650
    %3672 = vmatprep.subr.mxu0 0.0
    %3673 = vmatpush1.msra.mxu0 %v3651
    %3674 = vmatprep.subr.mxu0 0.0
    %3675 = vmatpush1.msra.mxu0 0.0
    %3676 = vmatprep.subr.mxu0 0.0
    %3677 = vmatpush1.msra.mxu0 0.0
    %3678 = vmatprep.subr.mxu0 0.0
    %3679 = vmatpush1.msra.mxu0 0.0
    %3680 = vmatprep.subr.mxu0 0.0
    %3681 = vmatpush1.msra.mxu0 0.0
    %3682 = vmatprep.subr.mxu0 0.0
    %3683 = vmatpush1.msra.mxu0 0.0
    %3684 = vmatprep.subr.mxu0 0.0
    %3685 = vmatpush1.msra.mxu0 0.0
    %3686 = vmatprep.subr.mxu0 0.0
    %3687 = vmatpush1.msra.mxu0 0.0
    %3688 = vmatprep.subr.mxu0 0.0
    %3689 = vmatpush1.msra.mxu0 0.0
    %3690 = vmatprep.subr.mxu0 0.0
    %3691 = vmatpush1.msra.mxu0 0.0
    %3692 = vmatprep.subr.mxu0 0.0
    %3693 = vmatpush1.msra.mxu0 0.0
    %3694 = vmatprep.subr.mxu0 0.0
    %3695 = vmatpush1.msra.mxu0 0.0
    %3696 = vmatprep.subr.mxu0 0.0
    %3697 = vmatpush1.msra.mxu0 0.0
    %3698 = vmatprep.subr.mxu0 0.0
    %3699 = vmatpush1.msra.mxu0 0.0
    %3700 = vmatprep.subr.mxu0 0.0
    %3701 = vmatpush1.msra.mxu0 0.0
    %3702 = vmatprep.subr.mxu0 0.0
    %3703 = vmatpush1.msra.mxu0 0.0
    %3704 = vmatprep.subr.mxu0 0.0
    %3705 = vmatpush1.msra.mxu0 0.0
    %3706 = vmatprep.subr.mxu0 0.0
    %3707 = vmatpush1.msra.mxu0 0.0
    %3708 = vmatprep.subr.mxu0 0.0
    %3709 = vmatpush1.msra.mxu0 0.0
    %3710 = vmatprep.subr.mxu0 0.0
    %3711 = vmatpush1.msra.mxu0 0.0
    %3712 = vmatprep.subr.mxu0 0.0
    %3713 = vmatpush1.msra.mxu0 0.0
    %3714 = vmatprep.subr.mxu0 0.0
    %3715 = vmatpush1.msra.mxu0 0.0
    %3716 = vmatprep.subr.mxu0 0.0
    %3717 = vmatpush1.msra.mxu0 0.0
    %3718 = vmatprep.subr.mxu0 0.0
    %3719 = vmatpush1.msra.mxu0 0.0
    %3720 = vmatprep.subr.mxu0 0.0
    %3721 = vmatpush1.msra.mxu0 0.0
    %3722 = vmatprep.mubr.f32.mxu0 0.0
    %3723 = vmatmul.mubr.f32.gmra.mrb[0].mxu0 %v3656
    %v3724 = vpop.f32.mrb[0].mxu0
    %v3725 = vadd.f32 0.0, %v3724
    %v3726 = vpop.f32.mrb[0].mxu0
    %3727 = vdwg.mxu0
    %v3728 = vadd.f32 %v3641, %v3725
    %v3729 = vld [vmem:[%s319 + $0x2] sm:$0x1]
    %v3730 = vld [vmem:[%s319 + $0x32] sm:$0x1]
    %v3731 = vld [vmem:[%s868] sm:$0xff]
    %v3732 = vld [vmem:[%s868 + $0x8] sm:$0xff]
    %v3733 = vld [vmem:[%s868 + $0x10] sm:$0xff]
    %v3734 = vld [vmem:[%s868 + $0x18] sm:$0xff]
    %v3735 = vld [vmem:[%s868 + $0x20] sm:$0xff]
    %v3736 = vld [vmem:[%s868 + $0x28] sm:$0xff]
    %v3737 = vld [vmem:[%s868 + $0x30] sm:$0xff]
    %v3738 = vld [vmem:[%s868 + $0x38] sm:$0xff]
    %v3741 = vrot.slane %v3730, 7
    %v3742 = vsel %vm363, %v3741, %v3729
    %v3743 = vsel %vm365, %v3742, 0
    %3745 = vmatprep.subr.mxu0 0.0
    %3746 = vmatpush1.msra.mxu0 %v3731
    %3747 = vmatprep.subr.mxu0 0.0
    %3748 = vmatpush1.msra.mxu0 %v3732
    %3749 = vmatprep.subr.mxu0 0.0
    %3750 = vmatpush1.msra.mxu0 %v3733
    %3751 = vmatprep.subr.mxu0 0.0
    %3752 = vmatpush1.msra.mxu0 %v3734
    %3753 = vmatprep.subr.mxu0 0.0
    %3754 = vmatpush1.msra.mxu0 %v3735
    %3755 = vmatprep.subr.mxu0 0.0
    %3756 = vmatpush1.msra.mxu0 %v3736
    %3757 = vmatprep.subr.mxu0 0.0
    %3758 = vmatpush1.msra.mxu0 %v3737
    %3759 = vmatprep.subr.mxu0 0.0
    %3760 = vmatpush1.msra.mxu0 %v3738
    %3761 = vmatprep.subr.mxu0 0.0
    %3762 = vmatpush1.msra.mxu0 0.0
    %3763 = vmatprep.subr.mxu0 0.0
    %3764 = vmatpush1.msra.mxu0 0.0
    %3765 = vmatprep.subr.mxu0 0.0
    %3766 = vmatpush1.msra.mxu0 0.0
    %3767 = vmatprep.subr.mxu0 0.0
    %3768 = vmatpush1.msra.mxu0 0.0
    %3769 = vmatprep.subr.mxu0 0.0
    %3770 = vmatpush1.msra.mxu0 0.0
    %3771 = vmatprep.subr.mxu0 0.0
    %3772 = vmatpush1.msra.mxu0 0.0
    %3773 = vmatprep.subr.mxu0 0.0
    %3774 = vmatpush1.msra.mxu0 0.0
    %3775 = vmatprep.subr.mxu0 0.0
    %3776 = vmatpush1.msra.mxu0 0.0
    %3777 = vmatprep.subr.mxu0 0.0
    %3778 = vmatpush1.msra.mxu0 0.0
    %3779 = vmatprep.subr.mxu0 0.0
    %3780 = vmatpush1.msra.mxu0 0.0
    %3781 = vmatprep.subr.mxu0 0.0
    %3782 = vmatpush1.msra.mxu0 0.0
    %3783 = vmatprep.subr.mxu0 0.0
    %3784 = vmatpush1.msra.mxu0 0.0
    %3785 = vmatprep.subr.mxu0 0.0
    %3786 = vmatpush1.msra.mxu0 0.0
    %3787 = vmatprep.subr.mxu0 0.0
    %3788 = vmatpush1.msra.mxu0 0.0
    %3789 = vmatprep.subr.mxu0 0.0
    %3790 = vmatpush1.msra.mxu0 0.0
    %3791 = vmatprep.subr.mxu0 0.0
    %3792 = vmatpush1.msra.mxu0 0.0
    %3793 = vmatprep.subr.mxu0 0.0
    %3794 = vmatpush1.msra.mxu0 0.0
    %3795 = vmatprep.subr.mxu0 0.0
    %3796 = vmatpush1.msra.mxu0 0.0
    %3797 = vmatprep.subr.mxu0 0.0
    %3798 = vmatpush1.msra.mxu0 0.0
    %3799 = vmatprep.subr.mxu0 0.0
    %3800 = vmatpush1.msra.mxu0 0.0
    %3801 = vmatprep.subr.mxu0 0.0
    %3802 = vmatpush1.msra.mxu0 0.0
    %3803 = vmatprep.subr.mxu0 0.0
    %3804 = vmatpush1.msra.mxu0 0.0
    %3805 = vmatprep.subr.mxu0 0.0
    %3806 = vmatpush1.msra.mxu0 0.0
    %3807 = vmatprep.subr.mxu0 0.0
    %3808 = vmatpush1.msra.mxu0 0.0
    %3809 = vmatprep.mubr.f32.mxu0 0.0
    %3810 = vmatmul.mubr.f32.gmra.mrb[0].mxu0 %v3743
    %v3811 = vpop.f32.mrb[0].mxu0
    %v3812 = vadd.f32 0.0, %v3811
    %v3813 = vpop.f32.mrb[0].mxu0
    %3814 = vdwg.mxu0
    %v3815 = vadd.f32 %v3728, %v3812
    %v3816 = vld [vmem:[%s319 + $0x3] sm:$0x1]
    %v3817 = vld [vmem:[%s319 + $0x33] sm:$0x1]
    %v3818 = vld [vmem:[%s956] sm:$0xff]
    %v3819 = vld [vmem:[%s956 + $0x8] sm:$0xff]
    %v3820 = vld [vmem:[%s956 + $0x10] sm:$0xff]
    %v3821 = vld [vmem:[%s956 + $0x18] sm:$0xff]
    %v3822 = vld [vmem:[%s956 + $0x20] sm:$0xff]
    %v3823 = vld [vmem:[%s956 + $0x28] sm:$0xff]
    %v3824 = vld [vmem:[%s956 + $0x30] sm:$0xff]
    %v3825 = vld [vmem:[%s956 + $0x38] sm:$0xff]
    %v3828 = vrot.slane %v3817, 7
    %v3829 = vsel %vm363, %v3828, %v3816
    %v3830 = vsel %vm365, %v3829, 0
    %3832 = vmatprep.subr.mxu0 0.0
    %3833 = vmatpush1.msra.mxu0 %v3818
    %3834 = vmatprep.subr.mxu0 0.0
    %3835 = vmatpush1.msra.mxu0 %v3819
    %3836 = vmatprep.subr.mxu0 0.0
    %3837 = vmatpush1.msra.mxu0 %v3820
    %3838 = vmatprep.subr.mxu0 0.0
    %3839 = vmatpush1.msra.mxu0 %v3821
    %3840 = vmatprep.subr.mxu0 0.0
    %3841 = vmatpush1.msra.mxu0 %v3822
    %3842 = vmatprep.subr.mxu0 0.0
    %3843 = vmatpush1.msra.mxu0 %v3823
    %3844 = vmatprep.subr.mxu0 0.0
    %3845 = vmatpush1.msra.mxu0 %v3824
    %3846 = vmatprep.subr.mxu0 0.0
    %3847 = vmatpush1.msra.mxu0 %v3825
    %3848 = vmatprep.subr.mxu0 0.0
    %3849 = vmatpush1.msra.mxu0 0.0
    %3850 = vmatprep.subr.mxu0 0.0
    %3851 = vmatpush1.msra.mxu0 0.0
    %3852 = vmatprep.subr.mxu0 0.0
    %3853 = vmatpush1.msra.mxu0 0.0
    %3854 = vmatprep.subr.mxu0 0.0
    %3855 = vmatpush1.msra.mxu0 0.0
    %3856 = vmatprep.subr.mxu0 0.0
    %3857 = vmatpush1.msra.mxu0 0.0
    %3858 = vmatprep.subr.mxu0 0.0
    %3859 = vmatpush1.msra.mxu0 0.0
    %3860 = vmatprep.subr.mxu0 0.0
    %3861 = vmatpush1.msra.mxu0 0.0
    %3862 = vmatprep.subr.mxu0 0.0
    %3863 = vmatpush1.msra.mxu0 0.0
    %3864 = vmatprep.subr.mxu0 0.0
    %3865 = vmatpush1.msra.mxu0 0.0
    %3866 = vmatprep.subr.mxu0 0.0
    %3867 = vmatpush1.msra.mxu0 0.0
    %3868 = vmatprep.subr.mxu0 0.0
    %3869 = vmatpush1.msra.mxu0 0.0
    %3870 = vmatprep.subr.mxu0 0.0
    %3871 = vmatpush1.msra.mxu0 0.0
    %3872 = vmatprep.subr.mxu0 0.0
    %3873 = vmatpush1.msra.mxu0 0.0
    %3874 = vmatprep.subr.mxu0 0.0
    %3875 = vmatpush1.msra.mxu0 0.0
    %3876 = vmatprep.subr.mxu0 0.0
    %3877 = vmatpush1.msra.mxu0 0.0
    %3878 = vmatprep.subr.mxu0 0.0
    %3879 = vmatpush1.msra.mxu0 0.0
    %3880 = vmatprep.subr.mxu0 0.0
    %3881 = vmatpush1.msra.mxu0 0.0
    %3882 = vmatprep.subr.mxu0 0.0
    %3883 = vmatpush1.msra.mxu0 0.0
    %3884 = vmatprep.subr.mxu0 0.0
    %3885 = vmatpush1.msra.mxu0 0.0
    %3886 = vmatprep.subr.mxu0 0.0
    %3887 = vmatpush1.msra.mxu0 0.0
    %3888 = vmatprep.subr.mxu0 0.0
    %3889 = vmatpush1.msra.mxu0 0.0
    %3890 = vmatprep.subr.mxu0 0.0
    %3891 = vmatpush1.msra.mxu0 0.0
    %3892 = vmatprep.subr.mxu0 0.0
    %3893 = vmatpush1.msra.mxu0 0.0
    %3894 = vmatprep.subr.mxu0 0.0
    %3895 = vmatpush1.msra.mxu0 0.0
    %3896 = vmatprep.mubr.f32.mxu0 0.0
    %3897 = vmatmul.mubr.f32.gmra.mrb[0].mxu0 %v3830
    %v3898 = vpop.f32.mrb[0].mxu0
    %v3899 = vadd.f32 0.0, %v3898
    %v3900 = vpop.f32.mrb[0].mxu0
    %3901 = vdwg.mxu0
    %v3902 = vadd.f32 %v3815, %v3899
    %v3903 = vld [vmem:[%s321] sm:$0x1]
    %v3904 = vld [vmem:[%s321 + $0x30] sm:$0x1]
    %v3905 = vld [vmem:[%s1044] sm:$0xff]
    %v3906 = vld [vmem:[%s1044 + $0x8] sm:$0xff]
    %v3907 = vld [vmem:[%s1044 + $0x10] sm:$0xff]
    %v3908 = vld [vmem:[%s1044 + $0x18] sm:$0xff]
    %v3909 = vld [vmem:[%s1044 + $0x20] sm:$0xff]
    %v3910 = vld [vmem:[%s1044 + $0x28] sm:$0xff]
    %v3911 = vld [vmem:[%s1044 + $0x30] sm:$0xff]
    %v3912 = vld [vmem:[%s1044 + $0x38] sm:$0xff]
    %v3915 = vrot.slane %v3904, 7
    %v3916 = vsel %vm363, %v3915, %v3903
    %v3917 = vsel %vm365, %v3916, 0
    %3919 = vmatprep.subr.mxu0 0.0
    %3920 = vmatpush1.msra.mxu0 %v3905
    %3921 = vmatprep.subr.mxu0 0.0
    %3922 = vmatpush1.msra.mxu0 %v3906
    %3923 = vmatprep.subr.mxu0 0.0
    %3924 = vmatpush1.msra.mxu0 %v3907
    %3925 = vmatprep.subr.mxu0 0.0
    %3926 = vmatpush1.msra.mxu0 %v3908
    %3927 = vmatprep.subr.mxu0 0.0
    %3928 = vmatpush1.msra.mxu0 %v3909
    %3929 = vmatprep.subr.mxu0 0.0
    %3930 = vmatpush1.msra.mxu0 %v3910
    %3931 = vmatprep.subr.mxu0 0.0
    %3932 = vmatpush1.msra.mxu0 %v3911
    %3933 = vmatprep.subr.mxu0 0.0
    %3934 = vmatpush1.msra.mxu0 %v3912
    %3935 = vmatprep.subr.mxu0 0.0
    %3936 = vmatpush1.msra.mxu0 0.0
    %3937 = vmatprep.subr.mxu0 0.0
    %3938 = vmatpush1.msra.mxu0 0.0
    %3939 = vmatprep.subr.mxu0 0.0
    %3940 = vmatpush1.msra.mxu0 0.0
    %3941 = vmatprep.subr.mxu0 0.0
    %3942 = vmatpush1.msra.mxu0 0.0
    %3943 = vmatprep.subr.mxu0 0.0
    %3944 = vmatpush1.msra.mxu0 0.0
    %3945 = vmatprep.subr.mxu0 0.0
    %3946 = vmatpush1.msra.mxu0 0.0
    %3947 = vmatprep.subr.mxu0 0.0
    %3948 = vmatpush1.msra.mxu0 0.0
    %3949 = vmatprep.subr.mxu0 0.0
    %3950 = vmatpush1.msra.mxu0 0.0
    %3951 = vmatprep.subr.mxu0 0.0
    %3952 = vmatpush1.msra.mxu0 0.0
    %3953 = vmatprep.subr.mxu0 0.0
    %3954 = vmatpush1.msra.mxu0 0.0
    %3955 = vmatprep.subr.mxu0 0.0
    %3956 = vmatpush1.msra.mxu0 0.0
    %3957 = vmatprep.subr.mxu0 0.0
    %3958 = vmatpush1.msra.mxu0 0.0
    %3959 = vmatprep.subr.mxu0 0.0
    %3960 = vmatpush1.msra.mxu0 0.0
    %3961 = vmatprep.subr.mxu0 0.0
    %3962 = vmatpush1.msra.mxu0 0.0
    %3963 = vmatprep.subr.mxu0 0.0
    %3964 = vmatpush1.msra.mxu0 0.0
    %3965 = vmatprep.subr.mxu0 0.0
    %3966 = vmatpush1.msra.mxu0 0.0
    %3967 = vmatprep.subr.mxu0 0.0
    %3968 = vmatpush1.msra.mxu0 0.0
    %3969 = vmatprep.subr.mxu0 0.0
    %3970 = vmatpush1.msra.mxu0 0.0
    %3971 = vmatprep.subr.mxu0 0.0
    %3972 = vmatpush1.msra.mxu0 0.0
    %3973 = vmatprep.subr.mxu0 0.0
    %3974 = vmatpush1.msra.mxu0 0.0
    %3975 = vmatprep.subr.mxu0 0.0
    %3976 = vmatpush1.msra.mxu0 0.0
    %3977 = vmatprep.subr.mxu0 0.0
    %3978 = vmatpush1.msra.mxu0 0.0
    %3979 = vmatprep.subr.mxu0 0.0
    %3980 = vmatpush1.msra.mxu0 0.0
    %3981 = vmatprep.subr.mxu0 0.0
    %3982 = vmatpush1.msra.mxu0 0.0
    %3983 = vmatprep.mubr.f32.mxu0 0.0
    %3984 = vmatmul.mubr.f32.gmra.mrb[0].mxu0 %v3917
    %v3985 = vpop.f32.mrb[0].mxu0
    %v3986 = vadd.f32 0.0, %v3985
    %v3987 = vpop.f32.mrb[0].mxu0
    %3988 = vdwg.mxu0
    %v3989 = vadd.f32 %v3902, %v3986
    %v3990 = vld [vmem:[%s321 + $0x1] sm:$0x1]
    %v3991 = vld [vmem:[%s321 + $0x31] sm:$0x1]
    %v3992 = vld [vmem:[%s1132] sm:$0xff]
    %v3993 = vld [vmem:[%s1132 + $0x8] sm:$0xff]
    %v3994 = vld [vmem:[%s1132 + $0x10] sm:$0xff]
    %v3995 = vld [vmem:[%s1132 + $0x18] sm:$0xff]
    %v3996 = vld [vmem:[%s1132 + $0x20] sm:$0xff]
    %v3997 = vld [vmem:[%s1132 + $0x28] sm:$0xff]
    %v3998 = vld [vmem:[%s1132 + $0x30] sm:$0xff]
    %v3999 = vld [vmem:[%s1132 + $0x38] sm:$0xff]
    %v4002 = vrot.slane %v3991, 7
    %v4003 = vsel %vm363, %v4002, %v3990
    %v4004 = vsel %vm365, %v4003, 0
    %4006 = vmatprep.subr.mxu0 0.0
    %4007 = vmatpush1.msra.mxu0 %v3992
    %4008 = vmatprep.subr.mxu0 0.0
    %4009 = vmatpush1.msra.mxu0 %v3993
    %4010 = vmatprep.subr.mxu0 0.0
    %4011 = vmatpush1.msra.mxu0 %v3994
    %4012 = vmatprep.subr.mxu0 0.0
    %4013 = vmatpush1.msra.mxu0 %v3995
    %4014 = vmatprep.subr.mxu0 0.0
    %4015 = vmatpush1.msra.mxu0 %v3996
    %4016 = vmatprep.subr.mxu0 0.0
    %4017 = vmatpush1.msra.mxu0 %v3997
    %4018 = vmatprep.subr.mxu0 0.0
    %4019 = vmatpush1.msra.mxu0 %v3998
    %4020 = vmatprep.subr.mxu0 0.0
    %4021 = vmatpush1.msra.mxu0 %v3999
    %4022 = vmatprep.subr.mxu0 0.0
    %4023 = vmatpush1.msra.mxu0 0.0
    %4024 = vmatprep.subr.mxu0 0.0
    %4025 = vmatpush1.msra.mxu0 0.0
    %4026 = vmatprep.subr.mxu0 0.0
    %4027 = vmatpush1.msra.mxu0 0.0
    %4028 = vmatprep.subr.mxu0 0.0
    %4029 = vmatpush1.msra.mxu0 0.0
    %4030 = vmatprep.subr.mxu0 0.0
    %4031 = vmatpush1.msra.mxu0 0.0
    %4032 = vmatprep.subr.mxu0 0.0
    %4033 = vmatpush1.msra.mxu0 0.0
    %4034 = vmatprep.subr.mxu0 0.0
    %4035 = vmatpush1.msra.mxu0 0.0
    %4036 = vmatprep.subr.mxu0 0.0
    %4037 = vmatpush1.msra.mxu0 0.0
    %4038 = vmatprep.subr.mxu0 0.0
    %4039 = vmatpush1.msra.mxu0 0.0
    %4040 = vmatprep.subr.mxu0 0.0
    %4041 = vmatpush1.msra.mxu0 0.0
    %4042 = vmatprep.subr.mxu0 0.0
    %4043 = vmatpush1.msra.mxu0 0.0
    %4044 = vmatprep.subr.mxu0 0.0
    %4045 = vmatpush1.msra.mxu0 0.0
    %4046 = vmatprep.subr.mxu0 0.0
    %4047 = vmatpush1.msra.mxu0 0.0
    %4048 = vmatprep.subr.mxu0 0.0
    %4049 = vmatpush1.msra.mxu0 0.0
    %4050 = vmatprep.subr.mxu0 0.0
    %4051 = vmatpush1.msra.mxu0 0.0
    %4052 = vmatprep.subr.mxu0 0.0
    %4053 = vmatpush1.msra.mxu0 0.0
    %4054 = vmatprep.subr.mxu0 0.0
    %4055 = vmatpush1.msra.mxu0 0.0
    %4056 = vmatprep.subr.mxu0 0.0
    %4057 = vmatpush1.msra.mxu0 0.0
    %4058 = vmatprep.subr.mxu0 0.0
    %4059 = vmatpush1.msra.mxu0 0.0
    %4060 = vmatprep.subr.mxu0 0.0
    %4061 = vmatpush1.msra.mxu0 0.0
    %4062 = vmatprep.subr.mxu0 0.0
    %4063 = vmatpush1.msra.mxu0 0.0
    %4064 = vmatprep.subr.mxu0 0.0
    %4065 = vmatpush1.msra.mxu0 0.0
    %4066 = vmatprep.subr.mxu0 0.0
    %4067 = vmatpush1.msra.mxu0 0.0
    %4068 = vmatprep.subr.mxu0 0.0
    %4069 = vmatpush1.msra.mxu0 0.0
    %4070 = vmatprep.mubr.f32.mxu0 0.0
    %4071 = vmatmul.mubr.f32.gmra.mrb[0].mxu0 %v4004
    %v4072 = vpop.f32.mrb[0].mxu0
    %v4073 = vadd.f32 0.0, %v4072
    %v4074 = vpop.f32.mrb[0].mxu0
    %4075 = vdwg.mxu0
    %v4076 = vadd.f32 %v3989, %v4073
    %v4077 = vld [vmem:[%s321 + $0x2] sm:$0x1]
    %v4078 = vld [vmem:[%s321 + $0x32] sm:$0x1]
    %v4079 = vld [vmem:[%s1220] sm:$0xff]
    %v4080 = vld [vmem:[%s1220 + $0x8] sm:$0xff]
    %v4081 = vld [vmem:[%s1220 + $0x10] sm:$0xff]
    %v4082 = vld [vmem:[%s1220 + $0x18] sm:$0xff]
    %v4083 = vld [vmem:[%s1220 + $0x20] sm:$0xff]
    %v4084 = vld [vmem:[%s1220 + $0x28] sm:$0xff]
    %v4085 = vld [vmem:[%s1220 + $0x30] sm:$0xff]
    %v4086 = vld [vmem:[%s1220 + $0x38] sm:$0xff]
    %v4089 = vrot.slane %v4078, 7
    %v4090 = vsel %vm363, %v4089, %v4077
    %v4091 = vsel %vm365, %v4090, 0
    %4093 = vmatprep.subr.mxu0 0.0
    %4094 = vmatpush1.msra.mxu0 %v4079
    %4095 = vmatprep.subr.mxu0 0.0
    %4096 = vmatpush1.msra.mxu0 %v4080
    %4097 = vmatprep.subr.mxu0 0.0
    %4098 = vmatpush1.msra.mxu0 %v4081
    %4099 = vmatprep.subr.mxu0 0.0
    %4100 = vmatpush1.msra.mxu0 %v4082
    %4101 = vmatprep.subr.mxu0 0.0
    %4102 = vmatpush1.msra.mxu0 %v4083
    %4103 = vmatprep.subr.mxu0 0.0
    %4104 = vmatpush1.msra.mxu0 %v4084
    %4105 = vmatprep.subr.mxu0 0.0
    %4106 = vmatpush1.msra.mxu0 %v4085
    %4107 = vmatprep.subr.mxu0 0.0
    %4108 = vmatpush1.msra.mxu0 %v4086
    %4109 = vmatprep.subr.mxu0 0.0
    %4110 = vmatpush1.msra.mxu0 0.0
    %4111 = vmatprep.subr.mxu0 0.0
    %4112 = vmatpush1.msra.mxu0 0.0
    %4113 = vmatprep.subr.mxu0 0.0
    %4114 = vmatpush1.msra.mxu0 0.0
    %4115 = vmatprep.subr.mxu0 0.0
    %4116 = vmatpush1.msra.mxu0 0.0
    %4117 = vmatprep.subr.mxu0 0.0
    %4118 = vmatpush1.msra.mxu0 0.0
    %4119 = vmatprep.subr.mxu0 0.0
    %4120 = vmatpush1.msra.mxu0 0.0
    %4121 = vmatprep.subr.mxu0 0.0
    %4122 = vmatpush1.msra.mxu0 0.0
    %4123 = vmatprep.subr.mxu0 0.0
    %4124 = vmatpush1.msra.mxu0 0.0
    %4125 = vmatprep.subr.mxu0 0.0
    %4126 = vmatpush1.msra.mxu0 0.0
    %4127 = vmatprep.subr.mxu0 0.0
    %4128 = vmatpush1.msra.mxu0 0.0
    %4129 = vmatprep.subr.mxu0 0.0
    %4130 = vmatpush1.msra.mxu0 0.0
    %4131 = vmatprep.subr.mxu0 0.0
    %4132 = vmatpush1.msra.mxu0 0.0
    %4133 = vmatprep.subr.mxu0 0.0
    %4134 = vmatpush1.msra.mxu0 0.0
    %4135 = vmatprep.subr.mxu0 0.0
    %4136 = vmatpush1.msra.mxu0 0.0
    %4137 = vmatprep.subr.mxu0 0.0
    %4138 = vmatpush1.msra.mxu0 0.0
    %4139 = vmatprep.subr.mxu0 0.0
    %4140 = vmatpush1.msra.mxu0 0.0
    %4141 = vmatprep.subr.mxu0 0.0
    %4142 = vmatpush1.msra.mxu0 0.0
    %4143 = vmatprep.subr.mxu0 0.0
    %4144 = vmatpush1.msra.mxu0 0.0
    %4145 = vmatprep.subr.mxu0 0.0
    %4146 = vmatpush1.msra.mxu0 0.0
    %4147 = vmatprep.subr.mxu0 0.0
    %4148 = vmatpush1.msra.mxu0 0.0
    %4149 = vmatprep.subr.mxu0 0.0
    %4150 = vmatpush1.msra.mxu0 0.0
    %4151 = vmatprep.subr.mxu0 0.0
    %4152 = vmatpush1.msra.mxu0 0.0
    %4153 = vmatprep.subr.mxu0 0.0
    %4154 = vmatpush1.msra.mxu0 0.0
    %4155 = vmatprep.subr.mxu0 0.0
    %4156 = vmatpush1.msra.mxu0 0.0
    %4157 = vmatprep.mubr.f32.mxu0 0.0
    %4158 = vmatmul.mubr.f32.gmra.mrb[0].mxu0 %v4091
    %v4159 = vpop.f32.mrb[0].mxu0
    %v4160 = vadd.f32 0.0, %v4159
    %v4161 = vpop.f32.mrb[0].mxu0
    %4162 = vdwg.mxu0
    %v4163 = vadd.f32 %v4076, %v4160
    %v4164 = vld [vmem:[%s321 + $0x3] sm:$0x1]
    %v4165 = vld [vmem:[%s321 + $0x33] sm:$0x1]
    %v4166 = vld [vmem:[%s1308] sm:$0xff]
    %v4167 = vld [vmem:[%s1308 + $0x8] sm:$0xff]
    %v4168 = vld [vmem:[%s1308 + $0x10] sm:$0xff]
    %v4169 = vld [vmem:[%s1308 + $0x18] sm:$0xff]
    %v4170 = vld [vmem:[%s1308 + $0x20] sm:$0xff]
    %v4171 = vld [vmem:[%s1308 + $0x28] sm:$0xff]
    %v4172 = vld [vmem:[%s1308 + $0x30] sm:$0xff]
    %v4173 = vld [vmem:[%s1308 + $0x38] sm:$0xff]
    %v4176 = vrot.slane %v4165, 7
    %v4177 = vsel %vm363, %v4176, %v4164
    %v4178 = vsel %vm365, %v4177, 0
    %4180 = vmatprep.subr.mxu0 0.0
    %4181 = vmatpush1.msra.mxu0 %v4166
    %4182 = vmatprep.subr.mxu0 0.0
    %4183 = vmatpush1.msra.mxu0 %v4167
    %4184 = vmatprep.subr.mxu0 0.0
    %4185 = vmatpush1.msra.mxu0 %v4168
    %4186 = vmatprep.subr.mxu0 0.0
    %4187 = vmatpush1.msra.mxu0 %v4169
    %4188 = vmatprep.subr.mxu0 0.0
    %4189 = vmatpush1.msra.mxu0 %v4170
    %4190 = vmatprep.subr.mxu0 0.0
    %4191 = vmatpush1.msra.mxu0 %v4171
    %4192 = vmatprep.subr.mxu0 0.0
    %4193 = vmatpush1.msra.mxu0 %v4172
    %4194 = vmatprep.subr.mxu0 0.0
    %4195 = vmatpush1.msra.mxu0 %v4173
    %4196 = vmatprep.subr.mxu0 0.0
    %4197 = vmatpush1.msra.mxu0 0.0
    %4198 = vmatprep.subr.mxu0 0.0
    %4199 = vmatpush1.msra.mxu0 0.0
    %4200 = vmatprep.subr.mxu0 0.0
    %4201 = vmatpush1.msra.mxu0 0.0
    %4202 = vmatprep.subr.mxu0 0.0
    %4203 = vmatpush1.msra.mxu0 0.0
    %4204 = vmatprep.subr.mxu0 0.0
    %4205 = vmatpush1.msra.mxu0 0.0
    %4206 = vmatprep.subr.mxu0 0.0
    %4207 = vmatpush1.msra.mxu0 0.0
    %4208 = vmatprep.subr.mxu0 0.0
    %4209 = vmatpush1.msra.mxu0 0.0
    %4210 = vmatprep.subr.mxu0 0.0
    %4211 = vmatpush1.msra.mxu0 0.0
    %4212 = vmatprep.subr.mxu0 0.0
    %4213 = vmatpush1.msra.mxu0 0.0
    %4214 = vmatprep.subr.mxu0 0.0
    %4215 = vmatpush1.msra.mxu0 0.0
    %4216 = vmatprep.subr.mxu0 0.0
    %4217 = vmatpush1.msra.mxu0 0.0
    %4218 = vmatprep.subr.mxu0 0.0
    %4219 = vmatpush1.msra.mxu0 0.0
    %4220 = vmatprep.subr.mxu0 0.0
    %4221 = vmatpush1.msra.mxu0 0.0
    %4222 = vmatprep.subr.mxu0 0.0
    %4223 = vmatpush1.msra.mxu0 0.0
    %4224 = vmatprep.subr.mxu0 0.0
    %4225 = vmatpush1.msra.mxu0 0.0
    %4226 = vmatprep.subr.mxu0 0.0
    %4227 = vmatpush1.msra.mxu0 0.0
    %4228 = vmatprep.subr.mxu0 0.0
    %4229 = vmatpush1.msra.mxu0 0.0
    %4230 = vmatprep.subr.mxu0 0.0
    %4231 = vmatpush1.msra.mxu0 0.0
    %4232 = vmatprep.subr.mxu0 0.0
    %4233 = vmatpush1.msra.mxu0 0.0
    %4234 = vmatprep.subr.mxu0 0.0
    %4235 = vmatpush1.msra.mxu0 0.0
    %4236 = vmatprep.subr.mxu0 0.0
    %4237 = vmatpush1.msra.mxu0 0.0
    %4238 = vmatprep.subr.mxu0 0.0
    %4239 = vmatpush1.msra.mxu0 0.0
    %4240 = vmatprep.subr.mxu0 0.0
    %4241 = vmatpush1.msra.mxu0 0.0
    %4242 = vmatprep.subr.mxu0 0.0
    %4243 = vmatpush1.msra.mxu0 0.0
    %4244 = vmatprep.mubr.f32.mxu0 0.0
    %4245 = vmatmul.mubr.f32.gmra.mrb[0].mxu0 %v4178
    %v4246 = vpop.f32.mrb[0].mxu0
    %v4247 = vadd.f32 0.0, %v4246
    %v4248 = vpop.f32.mrb[0].mxu0
    %4249 = vdwg.mxu0
    %v4250 = vadd.f32 %v4163, %v4247
    %s4251 = scalar_lea.vmem [#allocation2], 40
    %v4252 = vld [vmem:[%s4251] sm:$0x1]
    %v4253 = vld [vmem:[%s4251 + $0x30] sm:$0x1]
    %v4254 = vld [vmem:[%s1396] sm:$0xff]
    %v4255 = vld [vmem:[%s1396 + $0x8] sm:$0xff]
    %v4256 = vld [vmem:[%s1396 + $0x10] sm:$0xff]
    %v4257 = vld [vmem:[%s1396 + $0x18] sm:$0xff]
    %v4258 = vld [vmem:[%s1396 + $0x20] sm:$0xff]
    %v4259 = vld [vmem:[%s1396 + $0x28] sm:$0xff]
    %v4260 = vld [vmem:[%s1396 + $0x30] sm:$0xff]
    %v4261 = vld [vmem:[%s1396 + $0x38] sm:$0xff]
    %v4264 = vrot.slane %v4253, 7
    %v4265 = vsel %vm363, %v4264, %v4252
    %v4266 = vsel %vm365, %v4265, 0
    %4268 = vmatprep.subr.mxu0 0.0
    %4269 = vmatpush1.msra.mxu0 %v4254
    %4270 = vmatprep.subr.mxu0 0.0
    %4271 = vmatpush1.msra.mxu0 %v4255
    %4272 = vmatprep.subr.mxu0 0.0
    %4273 = vmatpush1.msra.mxu0 %v4256
    %4274 = vmatprep.subr.mxu0 0.0
    %4275 = vmatpush1.msra.mxu0 %v4257
    %4276 = vmatprep.subr.mxu0 0.0
    %4277 = vmatpush1.msra.mxu0 %v4258
    %4278 = vmatprep.subr.mxu0 0.0
    %4279 = vmatpush1.msra.mxu0 %v4259
    %4280 = vmatprep.subr.mxu0 0.0
    %4281 = vmatpush1.msra.mxu0 %v4260
    %4282 = vmatprep.subr.mxu0 0.0
    %4283 = vmatpush1.msra.mxu0 %v4261
    %4284 = vmatprep.subr.mxu0 0.0
    %4285 = vmatpush1.msra.mxu0 0.0
    %4286 = vmatprep.subr.mxu0 0.0
    %4287 = vmatpush1.msra.mxu0 0.0
    %4288 = vmatprep.subr.mxu0 0.0
    %4289 = vmatpush1.msra.mxu0 0.0
    %4290 = vmatprep.subr.mxu0 0.0
    %4291 = vmatpush1.msra.mxu0 0.0
    %4292 = vmatprep.subr.mxu0 0.0
    %4293 = vmatpush1.msra.mxu0 0.0
    %4294 = vmatprep.subr.mxu0 0.0
    %4295 = vmatpush1.msra.mxu0 0.0
    %4296 = vmatprep.subr.mxu0 0.0
    %4297 = vmatpush1.msra.mxu0 0.0
    %4298 = vmatprep.subr.mxu0 0.0
    %4299 = vmatpush1.msra.mxu0 0.0
    %4300 = vmatprep.subr.mxu0 0.0
    %4301 = vmatpush1.msra.mxu0 0.0
    %4302 = vmatprep.subr.mxu0 0.0
    %4303 = vmatpush1.msra.mxu0 0.0
    %4304 = vmatprep.subr.mxu0 0.0
    %4305 = vmatpush1.msra.mxu0 0.0
    %4306 = vmatprep.subr.mxu0 0.0
    %4307 = vmatpush1.msra.mxu0 0.0
    %4308 = vmatprep.subr.mxu0 0.0
    %4309 = vmatpush1.msra.mxu0 0.0
    %4310 = vmatprep.subr.mxu0 0.0
    %4311 = vmatpush1.msra.mxu0 0.0
    %4312 = vmatprep.subr.mxu0 0.0
    %4313 = vmatpush1.msra.mxu0 0.0
    %4314 = vmatprep.subr.mxu0 0.0
    %4315 = vmatpush1.msra.mxu0 0.0
    %4316 = vmatprep.subr.mxu0 0.0
    %4317 = vmatpush1.msra.mxu0 0.0
    %4318 = vmatprep.subr.mxu0 0.0
    %4319 = vmatpush1.msra.mxu0 0.0
    %4320 = vmatprep.subr.mxu0 0.0
    %4321 = vmatpush1.msra.mxu0 0.0
    %4322 = vmatprep.subr.mxu0 0.0
    %4323 = vmatpush1.msra.mxu0 0.0
    %4324 = vmatprep.subr.mxu0 0.0
    %4325 = vmatpush1.msra.mxu0 0.0
    %4326 = vmatprep.subr.mxu0 0.0
    %4327 = vmatpush1.msra.mxu0 0.0
    %4328 = vmatprep.subr.mxu0 0.0
    %4329 = vmatpush1.msra.mxu0 0.0
    %4330 = vmatprep.subr.mxu0 0.0
    %4331 = vmatpush1.msra.mxu0 0.0
    %4332 = vmatprep.mubr.f32.mxu0 0.0
    %4333 = vmatmul.mubr.f32.gmra.mrb[0].mxu0 %v4266
    %v4334 = vpop.f32.mrb[0].mxu0
    %v4335 = vadd.f32 0.0, %v4334
    %v4336 = vpop.f32.mrb[0].mxu0
    %4337 = vdwg.mxu0
    %v4338 = vadd.f32 %v4250, %v4335
    %v4339 = vld [vmem:[%s4251 + $0x1] sm:$0x1]
    %v4340 = vld [vmem:[%s4251 + $0x31] sm:$0x1]
    %v4341 = vld [vmem:[%s1484] sm:$0xff]
    %v4342 = vld [vmem:[%s1484 + $0x8] sm:$0xff]
    %v4343 = vld [vmem:[%s1484 + $0x10] sm:$0xff]
    %v4344 = vld [vmem:[%s1484 + $0x18] sm:$0xff]
    %v4345 = vld [vmem:[%s1484 + $0x20] sm:$0xff]
    %v4346 = vld [vmem:[%s1484 + $0x28] sm:$0xff]
    %v4347 = vld [vmem:[%s1484 + $0x30] sm:$0xff]
    %v4348 = vld [vmem:[%s1484 + $0x38] sm:$0xff]
    %v4351 = vrot.slane %v4340, 7
    %v4352 = vsel %vm363, %v4351, %v4339
    %v4353 = vsel %vm365, %v4352, 0
    %4355 = vmatprep.subr.mxu0 0.0
    %4356 = vmatpush1.msra.mxu0 %v4341
    %4357 = vmatprep.subr.mxu0 0.0
    %4358 = vmatpush1.msra.mxu0 %v4342
    %4359 = vmatprep.subr.mxu0 0.0
    %4360 = vmatpush1.msra.mxu0 %v4343
    %4361 = vmatprep.subr.mxu0 0.0
    %4362 = vmatpush1.msra.mxu0 %v4344
    %4363 = vmatprep.subr.mxu0 0.0
    %4364 = vmatpush1.msra.mxu0 %v4345
    %4365 = vmatprep.subr.mxu0 0.0
    %4366 = vmatpush1.msra.mxu0 %v4346
    %4367 = vmatprep.subr.mxu0 0.0
    %4368 = vmatpush1.msra.mxu0 %v4347
    %4369 = vmatprep.subr.mxu0 0.0
    %4370 = vmatpush1.msra.mxu0 %v4348
    %4371 = vmatprep.subr.mxu0 0.0
    %4372 = vmatpush1.msra.mxu0 0.0
    %4373 = vmatprep.subr.mxu0 0.0
    %4374 = vmatpush1.msra.mxu0 0.0
    %4375 = vmatprep.subr.mxu0 0.0
    %4376 = vmatpush1.msra.mxu0 0.0
    %4377 = vmatprep.subr.mxu0 0.0
    %4378 = vmatpush1.msra.mxu0 0.0
    %4379 = vmatprep.subr.mxu0 0.0
    %4380 = vmatpush1.msra.mxu0 0.0
    %4381 = vmatprep.subr.mxu0 0.0
    %4382 = vmatpush1.msra.mxu0 0.0
    %4383 = vmatprep.subr.mxu0 0.0
    %4384 = vmatpush1.msra.mxu0 0.0
    %4385 = vmatprep.subr.mxu0 0.0
    %4386 = vmatpush1.msra.mxu0 0.0
    %4387 = vmatprep.subr.mxu0 0.0
    %4388 = vmatpush1.msra.mxu0 0.0
    %4389 = vmatprep.subr.mxu0 0.0
    %4390 = vmatpush1.msra.mxu0 0.0
    %4391 = vmatprep.subr.mxu0 0.0
    %4392 = vmatpush1.msra.mxu0 0.0
    %4393 = vmatprep.subr.mxu0 0.0
    %4394 = vmatpush1.msra.mxu0 0.0
    %4395 = vmatprep.subr.mxu0 0.0
    %4396 = vmatpush1.msra.mxu0 0.0
    %4397 = vmatprep.subr.mxu0 0.0
    %4398 = vmatpush1.msra.mxu0 0.0
    %4399 = vmatprep.subr.mxu0 0.0
    %4400 = vmatpush1.msra.mxu0 0.0
    %4401 = vmatprep.subr.mxu0 0.0
    %4402 = vmatpush1.msra.mxu0 0.0
    %4403 = vmatprep.subr.mxu0 0.0
    %4404 = vmatpush1.msra.mxu0 0.0
    %4405 = vmatprep.subr.mxu0 0.0
    %4406 = vmatpush1.msra.mxu0 0.0
    %4407 = vmatprep.subr.mxu0 0.0
    %4408 = vmatpush1.msra.mxu0 0.0
    %4409 = vmatprep.subr.mxu0 0.0
    %4410 = vmatpush1.msra.mxu0 0.0
    %4411 = vmatprep.subr.mxu0 0.0
    %4412 = vmatpush1.msra.mxu0 0.0
    %4413 = vmatprep.subr.mxu0 0.0
    %4414 = vmatpush1.msra.mxu0 0.0
    %4415 = vmatprep.subr.mxu0 0.0
    %4416 = vmatpush1.msra.mxu0 0.0
    %4417 = vmatprep.subr.mxu0 0.0
    %4418 = vmatpush1.msra.mxu0 0.0
    %4419 = vmatprep.mubr.f32.mxu0 0.0
    %4420 = vmatmul.mubr.f32.gmra.mrb[0].mxu0 %v4353
    %v4421 = vpop.f32.mrb[0].mxu0
    %v4422 = vadd.f32 0.0, %v4421
    %v4423 = vpop.f32.mrb[0].mxu0
    %4424 = vdwg.mxu0
    %v4425 = vadd.f32 %v4338, %v4422
    %v4426 = vld [vmem:[%s4251 + $0x2] sm:$0x1]
    %v4427 = vld [vmem:[%s4251 + $0x32] sm:$0x1]
    %v4428 = vld [vmem:[%s1572] sm:$0xff]
    %v4429 = vld [vmem:[%s1572 + $0x8] sm:$0xff]
    %v4430 = vld [vmem:[%s1572 + $0x10] sm:$0xff]
    %v4431 = vld [vmem:[%s1572 + $0x18] sm:$0xff]
    %v4432 = vld [vmem:[%s1572 + $0x20] sm:$0xff]
    %v4433 = vld [vmem:[%s1572 + $0x28] sm:$0xff]
    %v4434 = vld [vmem:[%s1572 + $0x30] sm:$0xff]
    %v4435 = vld [vmem:[%s1572 + $0x38] sm:$0xff]
    %v4438 = vrot.slane %v4427, 7
    %v4439 = vsel %vm363, %v4438, %v4426
    %v4440 = vsel %vm365, %v4439, 0
    %4442 = vmatprep.subr.mxu0 0.0
    %4443 = vmatpush1.msra.mxu0 %v4428
    %4444 = vmatprep.subr.mxu0 0.0
    %4445 = vmatpush1.msra.mxu0 %v4429
    %4446 = vmatprep.subr.mxu0 0.0
    %4447 = vmatpush1.msra.mxu0 %v4430
    %4448 = vmatprep.subr.mxu0 0.0
    %4449 = vmatpush1.msra.mxu0 %v4431
    %4450 = vmatprep.subr.mxu0 0.0
    %4451 = vmatpush1.msra.mxu0 %v4432
    %4452 = vmatprep.subr.mxu0 0.0
    %4453 = vmatpush1.msra.mxu0 %v4433
    %4454 = vmatprep.subr.mxu0 0.0
    %4455 = vmatpush1.msra.mxu0 %v4434
    %4456 = vmatprep.subr.mxu0 0.0
    %4457 = vmatpush1.msra.mxu0 %v4435
    %4458 = vmatprep.subr.mxu0 0.0
    %4459 = vmatpush1.msra.mxu0 0.0
    %4460 = vmatprep.subr.mxu0 0.0
    %4461 = vmatpush1.msra.mxu0 0.0
    %4462 = vmatprep.subr.mxu0 0.0
    %4463 = vmatpush1.msra.mxu0 0.0
    %4464 = vmatprep.subr.mxu0 0.0
    %4465 = vmatpush1.msra.mxu0 0.0
    %4466 = vmatprep.subr.mxu0 0.0
    %4467 = vmatpush1.msra.mxu0 0.0
    %4468 = vmatprep.subr.mxu0 0.0
    %4469 = vmatpush1.msra.mxu0 0.0
    %4470 = vmatprep.subr.mxu0 0.0
    %4471 = vmatpush1.msra.mxu0 0.0
    %4472 = vmatprep.subr.mxu0 0.0
    %4473 = vmatpush1.msra.mxu0 0.0
    %4474 = vmatprep.subr.mxu0 0.0
    %4475 = vmatpush1.msra.mxu0 0.0
    %4476 = vmatprep.subr.mxu0 0.0
    %4477 = vmatpush1.msra.mxu0 0.0
    %4478 = vmatprep.subr.mxu0 0.0
    %4479 = vmatpush1.msra.mxu0 0.0
    %4480 = vmatprep.subr.mxu0 0.0
    %4481 = vmatpush1.msra.mxu0 0.0
    %4482 = vmatprep.subr.mxu0 0.0
    %4483 = vmatpush1.msra.mxu0 0.0
    %4484 = vmatprep.subr.mxu0 0.0
    %4485 = vmatpush1.msra.mxu0 0.0
    %4486 = vmatprep.subr.mxu0 0.0
    %4487 = vmatpush1.msra.mxu0 0.0
    %4488 = vmatprep.subr.mxu0 0.0
    %4489 = vmatpush1.msra.mxu0 0.0
    %4490 = vmatprep.subr.mxu0 0.0
    %4491 = vmatpush1.msra.mxu0 0.0
    %4492 = vmatprep.subr.mxu0 0.0
    %4493 = vmatpush1.msra.mxu0 0.0
    %4494 = vmatprep.subr.mxu0 0.0
    %4495 = vmatpush1.msra.mxu0 0.0
    %4496 = vmatprep.subr.mxu0 0.0
    %4497 = vmatpush1.msra.mxu0 0.0
    %4498 = vmatprep.subr.mxu0 0.0
    %4499 = vmatpush1.msra.mxu0 0.0
    %4500 = vmatprep.subr.mxu0 0.0
    %4501 = vmatpush1.msra.mxu0 0.0
    %4502 = vmatprep.subr.mxu0 0.0
    %4503 = vmatpush1.msra.mxu0 0.0
    %4504 = vmatprep.subr.mxu0 0.0
    %4505 = vmatpush1.msra.mxu0 0.0
    %4506 = vmatprep.mubr.f32.mxu0 0.0
    %4507 = vmatmul.mubr.f32.gmra.mrb[0].mxu0 %v4440
    %v4508 = vpop.f32.mrb[0].mxu0
    %v4509 = vadd.f32 0.0, %v4508
    %v4510 = vpop.f32.mrb[0].mxu0
    %4511 = vdwg.mxu0
    %v4512 = vadd.f32 %v4425, %v4509
    %v4513 = vld [vmem:[%s4251 + $0x3] sm:$0x1]
    %v4514 = vld [vmem:[%s4251 + $0x33] sm:$0x1]
    %v4515 = vld [vmem:[%s1660] sm:$0xff]
    %v4516 = vld [vmem:[%s1660 + $0x8] sm:$0xff]
    %v4517 = vld [vmem:[%s1660 + $0x10] sm:$0xff]
    %v4518 = vld [vmem:[%s1660 + $0x18] sm:$0xff]
    %v4519 = vld [vmem:[%s1660 + $0x20] sm:$0xff]
    %v4520 = vld [vmem:[%s1660 + $0x28] sm:$0xff]
    %v4521 = vld [vmem:[%s1660 + $0x30] sm:$0xff]
    %v4522 = vld [vmem:[%s1660 + $0x38] sm:$0xff]
    %v4525 = vrot.slane %v4514, 7
    %v4526 = vsel %vm363, %v4525, %v4513
    %v4527 = vsel %vm365, %v4526, 0
    %4529 = vmatprep.subr.mxu0 0.0
    %4530 = vmatpush1.msra.mxu0 %v4515
    %4531 = vmatprep.subr.mxu0 0.0
    %4532 = vmatpush1.msra.mxu0 %v4516
    %4533 = vmatprep.subr.mxu0 0.0
    %4534 = vmatpush1.msra.mxu0 %v4517
    %4535 = vmatprep.subr.mxu0 0.0
    %4536 = vmatpush1.msra.mxu0 %v4518
    %4537 = vmatprep.subr.mxu0 0.0
    %4538 = vmatpush1.msra.mxu0 %v4519
    %4539 = vmatprep.subr.mxu0 0.0
    %4540 = vmatpush1.msra.mxu0 %v4520
    %4541 = vmatprep.subr.mxu0 0.0
    %4542 = vmatpush1.msra.mxu0 %v4521
    %4543 = vmatprep.subr.mxu0 0.0
    %4544 = vmatpush1.msra.mxu0 %v4522
    %4545 = vmatprep.subr.mxu0 0.0
    %4546 = vmatpush1.msra.mxu0 0.0
    %4547 = vmatprep.subr.mxu0 0.0
    %4548 = vmatpush1.msra.mxu0 0.0
    %4549 = vmatprep.subr.mxu0 0.0
    %4550 = vmatpush1.msra.mxu0 0.0
    %4551 = vmatprep.subr.mxu0 0.0
    %4552 = vmatpush1.msra.mxu0 0.0
    %4553 = vmatprep.subr.mxu0 0.0
    %4554 = vmatpush1.msra.mxu0 0.0
    %4555 = vmatprep.subr.mxu0 0.0
    %4556 = vmatpush1.msra.mxu0 0.0
    %4557 = vmatprep.subr.mxu0 0.0
    %4558 = vmatpush1.msra.mxu0 0.0
    %4559 = vmatprep.subr.mxu0 0.0
    %4560 = vmatpush1.msra.mxu0 0.0
    %4561 = vmatprep.subr.mxu0 0.0
    %4562 = vmatpush1.msra.mxu0 0.0
    %4563 = vmatprep.subr.mxu0 0.0
    %4564 = vmatpush1.msra.mxu0 0.0
    %4565 = vmatprep.subr.mxu0 0.0
    %4566 = vmatpush1.msra.mxu0 0.0
    %4567 = vmatprep.subr.mxu0 0.0
    %4568 = vmatpush1.msra.mxu0 0.0
    %4569 = vmatprep.subr.mxu0 0.0
    %4570 = vmatpush1.msra.mxu0 0.0
    %4571 = vmatprep.subr.mxu0 0.0
    %4572 = vmatpush1.msra.mxu0 0.0
    %4573 = vmatprep.subr.mxu0 0.0
    %4574 = vmatpush1.msra.mxu0 0.0
    %4575 = vmatprep.subr.mxu0 0.0
    %4576 = vmatpush1.msra.mxu0 0.0
    %4577 = vmatprep.subr.mxu0 0.0
    %4578 = vmatpush1.msra.mxu0 0.0
    %4579 = vmatprep.subr.mxu0 0.0
    %4580 = vmatpush1.msra.mxu0 0.0
    %4581 = vmatprep.subr.mxu0 0.0
    %4582 = vmatpush1.msra.mxu0 0.0
    %4583 = vmatprep.subr.mxu0 0.0
    %4584 = vmatpush1.msra.mxu0 0.0
    %4585 = vmatprep.subr.mxu0 0.0
    %4586 = vmatpush1.msra.mxu0 0.0
    %4587 = vmatprep.subr.mxu0 0.0
    %4588 = vmatpush1.msra.mxu0 0.0
    %4589 = vmatprep.subr.mxu0 0.0
    %4590 = vmatpush1.msra.mxu0 0.0
    %4591 = vmatprep.subr.mxu0 0.0
    %4592 = vmatpush1.msra.mxu0 0.0
    %4593 = vmatprep.mubr.f32.mxu0 0.0
    %4594 = vmatmul.mubr.f32.gmra.mrb[0].mxu0 %v4527
    %v4595 = vpop.f32.mrb[0].mxu0
    %v4596 = vadd.f32 0.0, %v4595
    %v4597 = vpop.f32.mrb[0].mxu0
    %4598 = vdwg.mxu0
    %v4599 = vadd.f32 %v4512, %v4596
    %v4600 = vld [vmem:[%s4] sm:$0x1]
    %v4602 = vlaneseq
    %v4603 = vshrl.u32 %v4602, 7
    %v4604 = vsub.s32 0, %v4603
    %v4605 = vrot.slane %v4600, %v4604
    %v4607 = vadd.f32 %v4599, %v4605
    %v4608 = vmax.f32 %v4607, 0.0
    %v4611 = vunpack.c.l.s4 1966171168
    %v4612 = vunpack.c.0.s8 %v4611
    %v4613 = vlaneseq
    %v4614 = vshrl.u32 %v4613, 7
    %v4615 = vsub.s32 %v4612, %v4614
    %v4616 = vrot.slane %v4608, %v4615
    %v4617 = vcombine.high %v4616, %v4616
    %v4619 = vunpack.c.l.s4 1966171168
    %v4620 = vunpack.c.0.s8 %v4619
    %v4621 = vlaneseq
    %v4622 = vshrl.u32 %v4621, 7
    %v4623 = vsub.s32 %v4620, %v4622
    %v4624 = vrot.slane %v4616, %v4623
    %v4626 = vunpack.c.l.s4 1966171168
    %v4627 = vunpack.c.0.s8 %v4626
    %v4628 = vlaneseq
    %v4629 = vshrl.u32 %v4628, 7
    %v4630 = vsub.s32 %v4627, %v4629
    %v4631 = vrot.slane %v4617, %v4630
    %s4634 = scalar_lea.vmem [#allocation3], 8
    %4635 = vst [vmem:[%s4634 + $0x1] sm:$0x1] %v4624
    %4636 = vst [vmem:[%s4634 + $0x11] sm:$0x1] %v4631
    %v4637 = vld [vmem:[%s316 + $0x2] sm:$0x1]
    %v4638 = vld [vmem:[%s316 + $0x32] sm:$0x1]
    %v4639 = vld [vmem:[%s3] sm:$0xff]
    %v4640 = vld [vmem:[%s3 + $0x8] sm:$0xff]
    %v4641 = vld [vmem:[%s3 + $0x10] sm:$0xff]
    %v4642 = vld [vmem:[%s3 + $0x18] sm:$0xff]
    %v4643 = vld [vmem:[%s3 + $0x20] sm:$0xff]
    %v4644 = vld [vmem:[%s3 + $0x28] sm:$0xff]
    %v4645 = vld [vmem:[%s3 + $0x30] sm:$0xff]
    %v4646 = vld [vmem:[%s3 + $0x38] sm:$0xff]
    %v4647 = vld [vmem:[%s316 + $0x3] sm:$0x1]
    %v4648 = vld [vmem:[%s316 + $0x33] sm:$0x1]
    %v4649 = vld [vmem:[%s351] sm:$0xff]
    %v4650 = vld [vmem:[%s351 + $0x8] sm:$0xff]
    %v4651 = vld [vmem:[%s351 + $0x10] sm:$0xff]
    %v4652 = vld [vmem:[%s351 + $0x18] sm:$0xff]
    %v4653 = vld [vmem:[%s351 + $0x20] sm:$0xff]
    %v4654 = vld [vmem:[%s351 + $0x28] sm:$0xff]
    %v4655 = vld [vmem:[%s351 + $0x30] sm:$0xff]
    %v4656 = vld [vmem:[%s351 + $0x38] sm:$0xff]
    %v4659 = vrot.slane %v4648, 7
    %v4660 = vsel %vm363, %v4659, %v4647
    %v4661 = vsel %vm365, %v4660, 0
    %4663 = vmatprep.subr.mxu0 0.0
    %4664 = vmatpush1.msra.mxu0 %v4649
    %4665 = vmatprep.subr.mxu0 0.0
    %4666 = vmatpush1.msra.mxu0 %v4650
    %4667 = vmatprep.subr.mxu0 0.0
    %4668 = vmatpush1.msra.mxu0 %v4651
    %4669 = vmatprep.subr.mxu0 0.0
    %4670 = vmatpush1.msra.mxu0 %v4652
    %4671 = vmatprep.subr.mxu0 0.0
    %4672 = vmatpush1.msra.mxu0 %v4653
    %4673 = vmatprep.subr.mxu0 0.0
    %4674 = vmatpush1.msra.mxu0 %v4654
    %4675 = vmatprep.subr.mxu0 0.0
    %4676 = vmatpush1.msra.mxu0 %v4655
    %4677 = vmatprep.subr.mxu0 0.0
    %4678 = vmatpush1.msra.mxu0 %v4656
    %4679 = vmatprep.subr.mxu0 0.0
    %4680 = vmatpush1.msra.mxu0 0.0
    %4681 = vmatprep.subr.mxu0 0.0
    %4682 = vmatpush1.msra.mxu0 0.0
    %4683 = vmatprep.subr.mxu0 0.0
    %4684 = vmatpush1.msra.mxu0 0.0
    %4685 = vmatprep.subr.mxu0 0.0
    %4686 = vmatpush1.msra.mxu0 0.0
    %4687 = vmatprep.subr.mxu0 0.0
    %4688 = vmatpush1.msra.mxu0 0.0
    %4689 = vmatprep.subr.mxu0 0.0
    %4690 = vmatpush1.msra.mxu0 0.0
    %4691 = vmatprep.subr.mxu0 0.0
    %4692 = vmatpush1.msra.mxu0 0.0
    %4693 = vmatprep.subr.mxu0 0.0
    %4694 = vmatpush1.msra.mxu0 0.0
    %4695 = vmatprep.subr.mxu0 0.0
    %4696 = vmatpush1.msra.mxu0 0.0
    %4697 = vmatprep.subr.mxu0 0.0
    %4698 = vmatpush1.msra.mxu0 0.0
    %4699 = vmatprep.subr.mxu0 0.0
    %4700 = vmatpush1.msra.mxu0 0.0
    %4701 = vmatprep.subr.mxu0 0.0
    %4702 = vmatpush1.msra.mxu0 0.0
    %4703 = vmatprep.subr.mxu0 0.0
    %4704 = vmatpush1.msra.mxu0 0.0
    %4705 = vmatprep.subr.mxu0 0.0
    %4706 = vmatpush1.msra.mxu0 0.0
    %4707 = vmatprep.subr.mxu0 0.0
    %4708 = vmatpush1.msra.mxu0 0.0
    %4709 = vmatprep.subr.mxu0 0.0
    %4710 = vmatpush1.msra.mxu0 0.0
    %4711 = vmatprep.subr.mxu0 0.0
    %4712 = vmatpush1.msra.mxu0 0.0
    %4713 = vmatprep.subr.mxu0 0.0
    %4714 = vmatpush1.msra.mxu0 0.0
    %4715 = vmatprep.subr.mxu0 0.0
    %4716 = vmatpush1.msra.mxu0 0.0
    %4717 = vmatprep.subr.mxu0 0.0
    %4718 = vmatpush1.msra.mxu0 0.0
    %4719 = vmatprep.subr.mxu0 0.0
    %4720 = vmatpush1.msra.mxu0 0.0
    %4721 = vmatprep.subr.mxu0 0.0
    %4722 = vmatpush1.msra.mxu0 0.0
    %4723 = vmatprep.subr.mxu0 0.0
    %4724 = vmatpush1.msra.mxu0 0.0
    %4725 = vmatprep.subr.mxu0 0.0
    %4726 = vmatpush1.msra.mxu0 0.0
    %4727 = vmatprep.mubr.f32.mxu0 0.0
    %4728 = vmatmul.mubr.f32.gmra.mrb[0].mxu0 %v4661
    %v4729 = vpop.f32.mrb[0].mxu0
    %v4730 = vadd.f32 0.0, %v4729
    %v4731 = vpop.f32.mrb[0].mxu0
    %4732 = vdwg.mxu0
    %v4735 = vrot.slane %v4638, 7
    %v4736 = vsel %vm363, %v4735, %v4637
    %v4737 = vsel %vm365, %v4736, 0
    %4739 = vmatprep.subr.mxu0 0.0
    %4740 = vmatpush1.msra.mxu0 %v4639
    %4741 = vmatprep.subr.mxu0 0.0
    %4742 = vmatpush1.msra.mxu0 %v4640
    %4743 = vmatprep.subr.mxu0 0.0
    %4744 = vmatpush1.msra.mxu0 %v4641
    %4745 = vmatprep.subr.mxu0 0.0
    %4746 = vmatpush1.msra.mxu0 %v4642
    %4747 = vmatprep.subr.mxu0 0.0
    %4748 = vmatpush1.msra.mxu0 %v4643
    %4749 = vmatprep.subr.mxu0 0.0
    %4750 = vmatpush1.msra.mxu0 %v4644
    %4751 = vmatprep.subr.mxu0 0.0
    %4752 = vmatpush1.msra.mxu0 %v4645
    %4753 = vmatprep.subr.mxu0 0.0
    %4754 = vmatpush1.msra.mxu0 %v4646
    %4755 = vmatprep.subr.mxu0 0.0
    %4756 = vmatpush1.msra.mxu0 0.0
    %4757 = vmatprep.subr.mxu0 0.0
    %4758 = vmatpush1.msra.mxu0 0.0
    %4759 = vmatprep.subr.mxu0 0.0
    %4760 = vmatpush1.msra.mxu0 0.0
    %4761 = vmatprep.subr.mxu0 0.0
    %4762 = vmatpush1.msra.mxu0 0.0
    %4763 = vmatprep.subr.mxu0 0.0
    %4764 = vmatpush1.msra.mxu0 0.0
    %4765 = vmatprep.subr.mxu0 0.0
    %4766 = vmatpush1.msra.mxu0 0.0
    %4767 = vmatprep.subr.mxu0 0.0
    %4768 = vmatpush1.msra.mxu0 0.0
    %4769 = vmatprep.subr.mxu0 0.0
    %4770 = vmatpush1.msra.mxu0 0.0
    %4771 = vmatprep.subr.mxu0 0.0
    %4772 = vmatpush1.msra.mxu0 0.0
    %4773 = vmatprep.subr.mxu0 0.0
    %4774 = vmatpush1.msra.mxu0 0.0
    %4775 = vmatprep.subr.mxu0 0.0
    %4776 = vmatpush1.msra.mxu0 0.0
    %4777 = vmatprep.subr.mxu0 0.0
    %4778 = vmatpush1.msra.mxu0 0.0
    %4779 = vmatprep.subr.mxu0 0.0
    %4780 = vmatpush1.msra.mxu0 0.0
    %4781 = vmatprep.subr.mxu0 0.0
    %4782 = vmatpush1.msra.mxu0 0.0
    %4783 = vmatprep.subr.mxu0 0.0
    %4784 = vmatpush1.msra.mxu0 0.0
    %4785 = vmatprep.subr.mxu0 0.0
    %4786 = vmatpush1.msra.mxu0 0.0
    %4787 = vmatprep.subr.mxu0 0.0
    %4788 = vmatpush1.msra.mxu0 0.0
    %4789 = vmatprep.subr.mxu0 0.0
    %4790 = vmatpush1.msra.mxu0 0.0
    %4791 = vmatprep.subr.mxu0 0.0
    %4792 = vmatpush1.msra.mxu0 0.0
    %4793 = vmatprep.subr.mxu0 0.0
    %4794 = vmatpush1.msra.mxu0 0.0
    %4795 = vmatprep.subr.mxu0 0.0
    %4796 = vmatpush1.msra.mxu0 0.0
    %4797 = vmatprep.subr.mxu0 0.0
    %4798 = vmatpush1.msra.mxu0 0.0
    %4799 = vmatprep.subr.mxu0 0.0
    %4800 = vmatpush1.msra.mxu0 0.0
    %4801 = vmatprep.subr.mxu0 0.0
    %4802 = vmatpush1.msra.mxu0 0.0
    %4803 = vmatprep.mubr.f32.mxu0 0.0
    %4804 = vmatmul.mubr.f32.gmra.mrb[0].mxu0 %v4737
    %v4805 = vpop.f32.mrb[0].mxu0
    %v4806 = vadd.f32 %v4730, %v4805
    %v4807 = vpop.f32.mrb[0].mxu0
    %4808 = vdwg.mxu0
    %v4809 = vld [vmem:[%s316 + $0x4] sm:$0x1]
    %v4810 = vld [vmem:[%s316 + $0x34] sm:$0x1]
    %v4811 = vld [vmem:[%s516] sm:$0xff]
    %v4812 = vld [vmem:[%s516 + $0x8] sm:$0xff]
    %v4813 = vld [vmem:[%s516 + $0x10] sm:$0xff]
    %v4814 = vld [vmem:[%s516 + $0x18] sm:$0xff]
    %v4815 = vld [vmem:[%s516 + $0x20] sm:$0xff]
    %v4816 = vld [vmem:[%s516 + $0x28] sm:$0xff]
    %v4817 = vld [vmem:[%s516 + $0x30] sm:$0xff]
    %v4818 = vld [vmem:[%s516 + $0x38] sm:$0xff]
    %v4821 = vrot.slane %v4810, 7
    %v4822 = vsel %vm363, %v4821, %v4809
    %v4823 = vsel %vm365, %v4822, 0
    %4825 = vmatprep.subr.mxu0 0.0
    %4826 = vmatpush1.msra.mxu0 %v4811
    %4827 = vmatprep.subr.mxu0 0.0
    %4828 = vmatpush1.msra.mxu0 %v4812
    %4829 = vmatprep.subr.mxu0 0.0
    %4830 = vmatpush1.msra.mxu0 %v4813
    %4831 = vmatprep.subr.mxu0 0.0
    %4832 = vmatpush1.msra.mxu0 %v4814
    %4833 = vmatprep.subr.mxu0 0.0
    %4834 = vmatpush1.msra.mxu0 %v4815
    %4835 = vmatprep.subr.mxu0 0.0
    %4836 = vmatpush1.msra.mxu0 %v4816
    %4837 = vmatprep.subr.mxu0 0.0
    %4838 = vmatpush1.msra.mxu0 %v4817
    %4839 = vmatprep.subr.mxu0 0.0
    %4840 = vmatpush1.msra.mxu0 %v4818
    %4841 = vmatprep.subr.mxu0 0.0
    %4842 = vmatpush1.msra.mxu0 0.0
    %4843 = vmatprep.subr.mxu0 0.0
    %4844 = vmatpush1.msra.mxu0 0.0
    %4845 = vmatprep.subr.mxu0 0.0
    %4846 = vmatpush1.msra.mxu0 0.0
    %4847 = vmatprep.subr.mxu0 0.0
    %4848 = vmatpush1.msra.mxu0 0.0
    %4849 = vmatprep.subr.mxu0 0.0
    %4850 = vmatpush1.msra.mxu0 0.0
    %4851 = vmatprep.subr.mxu0 0.0
    %4852 = vmatpush1.msra.mxu0 0.0
    %4853 = vmatprep.subr.mxu0 0.0
    %4854 = vmatpush1.msra.mxu0 0.0
    %4855 = vmatprep.subr.mxu0 0.0
    %4856 = vmatpush1.msra.mxu0 0.0
    %4857 = vmatprep.subr.mxu0 0.0
    %4858 = vmatpush1.msra.mxu0 0.0
    %4859 = vmatprep.subr.mxu0 0.0
    %4860 = vmatpush1.msra.mxu0 0.0
    %4861 = vmatprep.subr.mxu0 0.0
    %4862 = vmatpush1.msra.mxu0 0.0
    %4863 = vmatprep.subr.mxu0 0.0
    %4864 = vmatpush1.msra.mxu0 0.0
    %4865 = vmatprep.subr.mxu0 0.0
    %4866 = vmatpush1.msra.mxu0 0.0
    %4867 = vmatprep.subr.mxu0 0.0
    %4868 = vmatpush1.msra.mxu0 0.0
    %4869 = vmatprep.subr.mxu0 0.0
    %4870 = vmatpush1.msra.mxu0 0.0
    %4871 = vmatprep.subr.mxu0 0.0
    %4872 = vmatpush1.msra.mxu0 0.0
    %4873 = vmatprep.subr.mxu0 0.0
    %4874 = vmatpush1.msra.mxu0 0.0
    %4875 = vmatprep.subr.mxu0 0.0
    %4876 = vmatpush1.msra.mxu0 0.0
    %4877 = vmatprep.subr.mxu0 0.0
    %4878 = vmatpush1.msra.mxu0 0.0
    %4879 = vmatprep.subr.mxu0 0.0
    %4880 = vmatpush1.msra.mxu0 0.0
    %4881 = vmatprep.subr.mxu0 0.0
    %4882 = vmatpush1.msra.mxu0 0.0
    %4883 = vmatprep.subr.mxu0 0.0
    %4884 = vmatpush1.msra.mxu0 0.0
    %4885 = vmatprep.subr.mxu0 0.0
    %4886 = vmatpush1.msra.mxu0 0.0
    %4887 = vmatprep.subr.mxu0 0.0
    %4888 = vmatpush1.msra.mxu0 0.0
    %4889 = vmatprep.mubr.f32.mxu0 0.0
    %4890 = vmatmul.mubr.f32.gmra.mrb[0].mxu0 %v4823
    %v4891 = vpop.f32.mrb[0].mxu0
    %v4892 = vadd.f32 0.0, %v4891
    %v4893 = vpop.f32.mrb[0].mxu0
    %4894 = vdwg.mxu0
    %v4895 = vadd.f32 %v4806, %v4892
    %v4896 = vld [vmem:[%s316 + $0x5] sm:$0x1]
    %v4897 = vld [vmem:[%s316 + $0x35] sm:$0x1]
    %v4898 = vld [vmem:[%s604] sm:$0xff]
    %v4899 = vld [vmem:[%s604 + $0x8] sm:$0xff]
    %v4900 = vld [vmem:[%s604 + $0x10] sm:$0xff]
    %v4901 = vld [vmem:[%s604 + $0x18] sm:$0xff]
    %v4902 = vld [vmem:[%s604 + $0x20] sm:$0xff]
    %v4903 = vld [vmem:[%s604 + $0x28] sm:$0xff]
    %v4904 = vld [vmem:[%s604 + $0x30] sm:$0xff]
    %v4905 = vld [vmem:[%s604 + $0x38] sm:$0xff]
    %v4908 = vrot.slane %v4897, 7
    %v4909 = vsel %vm363, %v4908, %v4896
    %v4910 = vsel %vm365, %v4909, 0
    %4912 = vmatprep.subr.mxu0 0.0
    %4913 = vmatpush1.msra.mxu0 %v4898
    %4914 = vmatprep.subr.mxu0 0.0
    %4915 = vmatpush1.msra.mxu0 %v4899
    %4916 = vmatprep.subr.mxu0 0.0
    %4917 = vmatpush1.msra.mxu0 %v4900
    %4918 = vmatprep.subr.mxu0 0.0
    %4919 = vmatpush1.msra.mxu0 %v4901
    %4920 = vmatprep.subr.mxu0 0.0
    %4921 = vmatpush1.msra.mxu0 %v4902
    %4922 = vmatprep.subr.mxu0 0.0
    %4923 = vmatpush1.msra.mxu0 %v4903
    %4924 = vmatprep.subr.mxu0 0.0
    %4925 = vmatpush1.msra.mxu0 %v4904
    %4926 = vmatprep.subr.mxu0 0.0
    %4927 = vmatpush1.msra.mxu0 %v4905
    %4928 = vmatprep.subr.mxu0 0.0
    %4929 = vmatpush1.msra.mxu0 0.0
    %4930 = vmatprep.subr.mxu0 0.0
    %4931 = vmatpush1.msra.mxu0 0.0
    %4932 = vmatprep.subr.mxu0 0.0
    %4933 = vmatpush1.msra.mxu0 0.0
    %4934 = vmatprep.subr.mxu0 0.0
    %4935 = vmatpush1.msra.mxu0 0.0
    %4936 = vmatprep.subr.mxu0 0.0
    %4937 = vmatpush1.msra.mxu0 0.0
    %4938 = vmatprep.subr.mxu0 0.0
    %4939 = vmatpush1.msra.mxu0 0.0
    %4940 = vmatprep.subr.mxu0 0.0
    %4941 = vmatpush1.msra.mxu0 0.0
    %4942 = vmatprep.subr.mxu0 0.0
    %4943 = vmatpush1.msra.mxu0 0.0
    %4944 = vmatprep.subr.mxu0 0.0
    %4945 = vmatpush1.msra.mxu0 0.0
    %4946 = vmatprep.subr.mxu0 0.0
    %4947 = vmatpush1.msra.mxu0 0.0
    %4948 = vmatprep.subr.mxu0 0.0
    %4949 = vmatpush1.msra.mxu0 0.0
    %4950 = vmatprep.subr.mxu0 0.0
    %4951 = vmatpush1.msra.mxu0 0.0
    %4952 = vmatprep.subr.mxu0 0.0
    %4953 = vmatpush1.msra.mxu0 0.0
    %4954 = vmatprep.subr.mxu0 0.0
    %4955 = vmatpush1.msra.mxu0 0.0
    %4956 = vmatprep.subr.mxu0 0.0
    %4957 = vmatpush1.msra.mxu0 0.0
    %4958 = vmatprep.subr.mxu0 0.0
    %4959 = vmatpush1.msra.mxu0 0.0
    %4960 = vmatprep.subr.mxu0 0.0
    %4961 = vmatpush1.msra.mxu0 0.0
    %4962 = vmatprep.subr.mxu0 0.0
    %4963 = vmatpush1.msra.mxu0 0.0
    %4964 = vmatprep.subr.mxu0 0.0
    %4965 = vmatpush1.msra.mxu0 0.0
    %4966 = vmatprep.subr.mxu0 0.0
    %4967 = vmatpush1.msra.mxu0 0.0
    %4968 = vmatprep.subr.mxu0 0.0
    %4969 = vmatpush1.msra.mxu0 0.0
    %4970 = vmatprep.subr.mxu0 0.0
    %4971 = vmatpush1.msra.mxu0 0.0
    %4972 = vmatprep.subr.mxu0 0.0
    %4973 = vmatpush1.msra.mxu0 0.0
    %4974 = vmatprep.subr.mxu0 0.0
    %4975 = vmatpush1.msra.mxu0 0.0
    %4976 = vmatprep.mubr.f32.mxu0 0.0
    %4977 = vmatmul.mubr.f32.gmra.mrb[0].mxu0 %v4910
    %v4978 = vpop.f32.mrb[0].mxu0
    %v4979 = vadd.f32 0.0, %v4978
    %v4980 = vpop.f32.mrb[0].mxu0
    %4981 = vdwg.mxu0
    %v4982 = vadd.f32 %v4895, %v4979
    %v4983 = vld [vmem:[%s319 + $0x2] sm:$0x1]
    %v4984 = vld [vmem:[%s319 + $0x32] sm:$0x1]
    %v4985 = vld [vmem:[%s692] sm:$0xff]
    %v4986 = vld [vmem:[%s692 + $0x8] sm:$0xff]
    %v4987 = vld [vmem:[%s692 + $0x10] sm:$0xff]
    %v4988 = vld [vmem:[%s692 + $0x18] sm:$0xff]
    %v4989 = vld [vmem:[%s692 + $0x20] sm:$0xff]
    %v4990 = vld [vmem:[%s692 + $0x28] sm:$0xff]
    %v4991 = vld [vmem:[%s692 + $0x30] sm:$0xff]
    %v4992 = vld [vmem:[%s692 + $0x38] sm:$0xff]
    %v4995 = vrot.slane %v4984, 7
    %v4996 = vsel %vm363, %v4995, %v4983
    %v4997 = vsel %vm365, %v4996, 0
    %4999 = vmatprep.subr.mxu0 0.0
    %5000 = vmatpush1.msra.mxu0 %v4985
    %5001 = vmatprep.subr.mxu0 0.0
    %5002 = vmatpush1.msra.mxu0 %v4986
    %5003 = vmatprep.subr.mxu0 0.0
    %5004 = vmatpush1.msra.mxu0 %v4987
    %5005 = vmatprep.subr.mxu0 0.0
    %5006 = vmatpush1.msra.mxu0 %v4988
    %5007 = vmatprep.subr.mxu0 0.0
    %5008 = vmatpush1.msra.mxu0 %v4989
    %5009 = vmatprep.subr.mxu0 0.0
    %5010 = vmatpush1.msra.mxu0 %v4990
    %5011 = vmatprep.subr.mxu0 0.0
    %5012 = vmatpush1.msra.mxu0 %v4991
    %5013 = vmatprep.subr.mxu0 0.0
    %5014 = vmatpush1.msra.mxu0 %v4992
    %5015 = vmatprep.subr.mxu0 0.0
    %5016 = vmatpush1.msra.mxu0 0.0
    %5017 = vmatprep.subr.mxu0 0.0
    %5018 = vmatpush1.msra.mxu0 0.0
    %5019 = vmatprep.subr.mxu0 0.0
    %5020 = vmatpush1.msra.mxu0 0.0
    %5021 = vmatprep.subr.mxu0 0.0
    %5022 = vmatpush1.msra.mxu0 0.0
    %5023 = vmatprep.subr.mxu0 0.0
    %5024 = vmatpush1.msra.mxu0 0.0
    %5025 = vmatprep.subr.mxu0 0.0
    %5026 = vmatpush1.msra.mxu0 0.0
    %5027 = vmatprep.subr.mxu0 0.0
    %5028 = vmatpush1.msra.mxu0 0.0
    %5029 = vmatprep.subr.mxu0 0.0
    %5030 = vmatpush1.msra.mxu0 0.0
    %5031 = vmatprep.subr.mxu0 0.0
    %5032 = vmatpush1.msra.mxu0 0.0
    %5033 = vmatprep.subr.mxu0 0.0
    %5034 = vmatpush1.msra.mxu0 0.0
    %5035 = vmatprep.subr.mxu0 0.0
    %5036 = vmatpush1.msra.mxu0 0.0
    %5037 = vmatprep.subr.mxu0 0.0
    %5038 = vmatpush1.msra.mxu0 0.0
    %5039 = vmatprep.subr.mxu0 0.0
    %5040 = vmatpush1.msra.mxu0 0.0
    %5041 = vmatprep.subr.mxu0 0.0
    %5042 = vmatpush1.msra.mxu0 0.0
    %5043 = vmatprep.subr.mxu0 0.0
    %5044 = vmatpush1.msra.mxu0 0.0
    %5045 = vmatprep.subr.mxu0 0.0
    %5046 = vmatpush1.msra.mxu0 0.0
    %5047 = vmatprep.subr.mxu0 0.0
    %5048 = vmatpush1.msra.mxu0 0.0
    %5049 = vmatprep.subr.mxu0 0.0
    %5050 = vmatpush1.msra.mxu0 0.0
    %5051 = vmatprep.subr.mxu0 0.0
    %5052 = vmatpush1.msra.mxu0 0.0
    %5053 = vmatprep.subr.mxu0 0.0
    %5054 = vmatpush1.msra.mxu0 0.0
    %5055 = vmatprep.subr.mxu0 0.0
    %5056 = vmatpush1.msra.mxu0 0.0
    %5057 = vmatprep.subr.mxu0 0.0
    %5058 = vmatpush1.msra.mxu0 0.0
    %5059 = vmatprep.subr.mxu0 0.0
    %5060 = vmatpush1.msra.mxu0 0.0
    %5061 = vmatprep.subr.mxu0 0.0
    %5062 = vmatpush1.msra.mxu0 0.0
    %5063 = vmatprep.mubr.f32.mxu0 0.0
    %5064 = vmatmul.mubr.f32.gmra.mrb[0].mxu0 %v4997
    %v5065 = vpop.f32.mrb[0].mxu0
    %v5066 = vadd.f32 0.0, %v5065
    %v5067 = vpop.f32.mrb[0].mxu0
    %5068 = vdwg.mxu0
    %v5069 = vadd.f32 %v4982, %v5066
    %v5070 = vld [vmem:[%s319 + $0x3] sm:$0x1]
    %v5071 = vld [vmem:[%s319 + $0x33] sm:$0x1]
    %v5072 = vld [vmem:[%s780] sm:$0xff]
    %v5073 = vld [vmem:[%s780 + $0x8] sm:$0xff]
    %v5074 = vld [vmem:[%s780 + $0x10] sm:$0xff]
    %v5075 = vld [vmem:[%s780 + $0x18] sm:$0xff]
    %v5076 = vld [vmem:[%s780 + $0x20] sm:$0xff]
    %v5077 = vld [vmem:[%s780 + $0x28] sm:$0xff]
    %v5078 = vld [vmem:[%s780 + $0x30] sm:$0xff]
    %v5079 = vld [vmem:[%s780 + $0x38] sm:$0xff]
    %v5082 = vrot.slane %v5071, 7
    %v5083 = vsel %vm363, %v5082, %v5070
    %v5084 = vsel %vm365, %v5083, 0
    %5086 = vmatprep.subr.mxu0 0.0
    %5087 = vmatpush1.msra.mxu0 %v5072
    %5088 = vmatprep.subr.mxu0 0.0
    %5089 = vmatpush1.msra.mxu0 %v5073
    %5090 = vmatprep.subr.mxu0 0.0
    %5091 = vmatpush1.msra.mxu0 %v5074
    %5092 = vmatprep.subr.mxu0 0.0
    %5093 = vmatpush1.msra.mxu0 %v5075
    %5094 = vmatprep.subr.mxu0 0.0
    %5095 = vmatpush1.msra.mxu0 %v5076
    %5096 = vmatprep.subr.mxu0 0.0
    %5097 = vmatpush1.msra.mxu0 %v5077
    %5098 = vmatprep.subr.mxu0 0.0
    %5099 = vmatpush1.msra.mxu0 %v5078
    %5100 = vmatprep.subr.mxu0 0.0
    %5101 = vmatpush1.msra.mxu0 %v5079
    %5102 = vmatprep.subr.mxu0 0.0
    %5103 = vmatpush1.msra.mxu0 0.0
    %5104 = vmatprep.subr.mxu0 0.0
    %5105 = vmatpush1.msra.mxu0 0.0
    %5106 = vmatprep.subr.mxu0 0.0
    %5107 = vmatpush1.msra.mxu0 0.0
    %5108 = vmatprep.subr.mxu0 0.0
    %5109 = vmatpush1.msra.mxu0 0.0
    %5110 = vmatprep.subr.mxu0 0.0
    %5111 = vmatpush1.msra.mxu0 0.0
    %5112 = vmatprep.subr.mxu0 0.0
    %5113 = vmatpush1.msra.mxu0 0.0
    %5114 = vmatprep.subr.mxu0 0.0
    %5115 = vmatpush1.msra.mxu0 0.0
    %5116 = vmatprep.subr.mxu0 0.0
    %5117 = vmatpush1.msra.mxu0 0.0
    %5118 = vmatprep.subr.mxu0 0.0
    %5119 = vmatpush1.msra.mxu0 0.0
    %5120 = vmatprep.subr.mxu0 0.0
    %5121 = vmatpush1.msra.mxu0 0.0
    %5122 = vmatprep.subr.mxu0 0.0
    %5123 = vmatpush1.msra.mxu0 0.0
    %5124 = vmatprep.subr.mxu0 0.0
    %5125 = vmatpush1.msra.mxu0 0.0
    %5126 = vmatprep.subr.mxu0 0.0
    %5127 = vmatpush1.msra.mxu0 0.0
    %5128 = vmatprep.subr.mxu0 0.0
    %5129 = vmatpush1.msra.mxu0 0.0
    %5130 = vmatprep.subr.mxu0 0.0
    %5131 = vmatpush1.msra.mxu0 0.0
    %5132 = vmatprep.subr.mxu0 0.0
    %5133 = vmatpush1.msra.mxu0 0.0
    %5134 = vmatprep.subr.mxu0 0.0
    %5135 = vmatpush1.msra.mxu0 0.0
    %5136 = vmatprep.subr.mxu0 0.0
    %5137 = vmatpush1.msra.mxu0 0.0
    %5138 = vmatprep.subr.mxu0 0.0
    %5139 = vmatpush1.msra.mxu0 0.0
    %5140 = vmatprep.subr.mxu0 0.0
    %5141 = vmatpush1.msra.mxu0 0.0
    %5142 = vmatprep.subr.mxu0 0.0
    %5143 = vmatpush1.msra.mxu0 0.0
    %5144 = vmatprep.subr.mxu0 0.0
    %5145 = vmatpush1.msra.mxu0 0.0
    %5146 = vmatprep.subr.mxu0 0.0
    %5147 = vmatpush1.msra.mxu0 0.0
    %5148 = vmatprep.subr.mxu0 0.0
    %5149 = vmatpush1.msra.mxu0 0.0
    %5150 = vmatprep.mubr.f32.mxu0 0.0
    %5151 = vmatmul.mubr.f32.gmra.mrb[0].mxu0 %v5084
    %v5152 = vpop.f32.mrb[0].mxu0
    %v5153 = vadd.f32 0.0, %v5152
    %v5154 = vpop.f32.mrb[0].mxu0
    %5155 = vdwg.mxu0
    %v5156 = vadd.f32 %v5069, %v5153
    %v5157 = vld [vmem:[%s319 + $0x4] sm:$0x1]
    %v5158 = vld [vmem:[%s319 + $0x34] sm:$0x1]
    %v5159 = vld [vmem:[%s868] sm:$0xff]
    %v5160 = vld [vmem:[%s868 + $0x8] sm:$0xff]
    %v5161 = vld [vmem:[%s868 + $0x10] sm:$0xff]
    %v5162 = vld [vmem:[%s868 + $0x18] sm:$0xff]
    %v5163 = vld [vmem:[%s868 + $0x20] sm:$0xff]
    %v5164 = vld [vmem:[%s868 + $0x28] sm:$0xff]
    %v5165 = vld [vmem:[%s868 + $0x30] sm:$0xff]
    %v5166 = vld [vmem:[%s868 + $0x38] sm:$0xff]
    %v5169 = vrot.slane %v5158, 7
    %v5170 = vsel %vm363, %v5169, %v5157
    %v5171 = vsel %vm365, %v5170, 0
    %5173 = vmatprep.subr.mxu0 0.0
    %5174 = vmatpush1.msra.mxu0 %v5159
    %5175 = vmatprep.subr.mxu0 0.0
    %5176 = vmatpush1.msra.mxu0 %v5160
    %5177 = vmatprep.subr.mxu0 0.0
    %5178 = vmatpush1.msra.mxu0 %v5161
    %5179 = vmatprep.subr.mxu0 0.0
    %5180 = vmatpush1.msra.mxu0 %v5162
    %5181 = vmatprep.subr.mxu0 0.0
    %5182 = vmatpush1.msra.mxu0 %v5163
    %5183 = vmatprep.subr.mxu0 0.0
    %5184 = vmatpush1.msra.mxu0 %v5164
    %5185 = vmatprep.subr.mxu0 0.0
    %5186 = vmatpush1.msra.mxu0 %v5165
    %5187 = vmatprep.subr.mxu0 0.0
    %5188 = vmatpush1.msra.mxu0 %v5166
    %5189 = vmatprep.subr.mxu0 0.0
    %5190 = vmatpush1.msra.mxu0 0.0
    %5191 = vmatprep.subr.mxu0 0.0
    %5192 = vmatpush1.msra.mxu0 0.0
    %5193 = vmatprep.subr.mxu0 0.0
    %5194 = vmatpush1.msra.mxu0 0.0
    %5195 = vmatprep.subr.mxu0 0.0
    %5196 = vmatpush1.msra.mxu0 0.0
    %5197 = vmatprep.subr.mxu0 0.0
    %5198 = vmatpush1.msra.mxu0 0.0
    %5199 = vmatprep.subr.mxu0 0.0
    %5200 = vmatpush1.msra.mxu0 0.0
    %5201 = vmatprep.subr.mxu0 0.0
    %5202 = vmatpush1.msra.mxu0 0.0
    %5203 = vmatprep.subr.mxu0 0.0
    %5204 = vmatpush1.msra.mxu0 0.0
    %5205 = vmatprep.subr.mxu0 0.0
    %5206 = vmatpush1.msra.mxu0 0.0
    %5207 = vmatprep.subr.mxu0 0.0
    %5208 = vmatpush1.msra.mxu0 0.0
    %5209 = vmatprep.subr.mxu0 0.0
    %5210 = vmatpush1.msra.mxu0 0.0
    %5211 = vmatprep.subr.mxu0 0.0
    %5212 = vmatpush1.msra.mxu0 0.0
    %5213 = vmatprep.subr.mxu0 0.0
    %5214 = vmatpush1.msra.mxu0 0.0
    %5215 = vmatprep.subr.mxu0 0.0
    %5216 = vmatpush1.msra.mxu0 0.0
    %5217 = vmatprep.subr.mxu0 0.0
    %5218 = vmatpush1.msra.mxu0 0.0
    %5219 = vmatprep.subr.mxu0 0.0
    %5220 = vmatpush1.msra.mxu0 0.0
    %5221 = vmatprep.subr.mxu0 0.0
    %5222 = vmatpush1.msra.mxu0 0.0
    %5223 = vmatprep.subr.mxu0 0.0
    %5224 = vmatpush1.msra.mxu0 0.0
    %5225 = vmatprep.subr.mxu0 0.0
    %5226 = vmatpush1.msra.mxu0 0.0
    %5227 = vmatprep.subr.mxu0 0.0
    %5228 = vmatpush1.msra.mxu0 0.0
    %5229 = vmatprep.subr.mxu0 0.0
    %5230 = vmatpush1.msra.mxu0 0.0
    %5231 = vmatprep.subr.mxu0 0.0
    %5232 = vmatpush1.msra.mxu0 0.0
    %5233 = vmatprep.subr.mxu0 0.0
    %5234 = vmatpush1.msra.mxu0 0.0
    %5235 = vmatprep.subr.mxu0 0.0
    %5236 = vmatpush1.msra.mxu0 0.0
    %5237 = vmatprep.mubr.f32.mxu0 0.0
    %5238 = vmatmul.mubr.f32.gmra.mrb[0].mxu0 %v5171
    %v5239 = vpop.f32.mrb[0].mxu0
    %v5240 = vadd.f32 0.0, %v5239
    %v5241 = vpop.f32.mrb[0].mxu0
    %5242 = vdwg.mxu0
    %v5243 = vadd.f32 %v5156, %v5240
    %v5244 = vld [vmem:[%s319 + $0x5] sm:$0x1]
    %v5245 = vld [vmem:[%s319 + $0x35] sm:$0x1]
    %v5246 = vld [vmem:[%s956] sm:$0xff]
    %v5247 = vld [vmem:[%s956 + $0x8] sm:$0xff]
    %v5248 = vld [vmem:[%s956 + $0x10] sm:$0xff]
    %v5249 = vld [vmem:[%s956 + $0x18] sm:$0xff]
    %v5250 = vld [vmem:[%s956 + $0x20] sm:$0xff]
    %v5251 = vld [vmem:[%s956 + $0x28] sm:$0xff]
    %v5252 = vld [vmem:[%s956 + $0x30] sm:$0xff]
    %v5253 = vld [vmem:[%s956 + $0x38] sm:$0xff]
    %v5256 = vrot.slane %v5245, 7
    %v5257 = vsel %vm363, %v5256, %v5244
    %v5258 = vsel %vm365, %v5257, 0
    %5260 = vmatprep.subr.mxu0 0.0
    %5261 = vmatpush1.msra.mxu0 %v5246
    %5262 = vmatprep.subr.mxu0 0.0
    %5263 = vmatpush1.msra.mxu0 %v5247
    %5264 = vmatprep.subr.mxu0 0.0
    %5265 = vmatpush1.msra.mxu0 %v5248
    %5266 = vmatprep.subr.mxu0 0.0
    %5267 = vmatpush1.msra.mxu0 %v5249
    %5268 = vmatprep.subr.mxu0 0.0
    %5269 = vmatpush1.msra.mxu0 %v5250
    %5270 = vmatprep.subr.mxu0 0.0
    %5271 = vmatpush1.msra.mxu0 %v5251
    %5272 = vmatprep.subr.mxu0 0.0
    %5273 = vmatpush1.msra.mxu0 %v5252
    %5274 = vmatprep.subr.mxu0 0.0
    %5275 = vmatpush1.msra.mxu0 %v5253
    %5276 = vmatprep.subr.mxu0 0.0
    %5277 = vmatpush1.msra.mxu0 0.0
    %5278 = vmatprep.subr.mxu0 0.0
    %5279 = vmatpush1.msra.mxu0 0.0
    %5280 = vmatprep.subr.mxu0 0.0
    %5281 = vmatpush1.msra.mxu0 0.0
    %5282 = vmatprep.subr.mxu0 0.0
    %5283 = vmatpush1.msra.mxu0 0.0
    %5284 = vmatprep.subr.mxu0 0.0
    %5285 = vmatpush1.msra.mxu0 0.0
    %5286 = vmatprep.subr.mxu0 0.0
    %5287 = vmatpush1.msra.mxu0 0.0
    %5288 = vmatprep.subr.mxu0 0.0
    %5289 = vmatpush1.msra.mxu0 0.0
    %5290 = vmatprep.subr.mxu0 0.0
    %5291 = vmatpush1.msra.mxu0 0.0
    %5292 = vmatprep.subr.mxu0 0.0
    %5293 = vmatpush1.msra.mxu0 0.0
    %5294 = vmatprep.subr.mxu0 0.0
    %5295 = vmatpush1.msra.mxu0 0.0
    %5296 = vmatprep.subr.mxu0 0.0
    %5297 = vmatpush1.msra.mxu0 0.0
    %5298 = vmatprep.subr.mxu0 0.0
    %5299 = vmatpush1.msra.mxu0 0.0
    %5300 = vmatprep.subr.mxu0 0.0
    %5301 = vmatpush1.msra.mxu0 0.0
    %5302 = vmatprep.subr.mxu0 0.0
    %5303 = vmatpush1.msra.mxu0 0.0
    %5304 = vmatprep.subr.mxu0 0.0
    %5305 = vmatpush1.msra.mxu0 0.0
    %5306 = vmatprep.subr.mxu0 0.0
    %5307 = vmatpush1.msra.mxu0 0.0
    %5308 = vmatprep.subr.mxu0 0.0
    %5309 = vmatpush1.msra.mxu0 0.0
    %5310 = vmatprep.subr.mxu0 0.0
    %5311 = vmatpush1.msra.mxu0 0.0
    %5312 = vmatprep.subr.mxu0 0.0
    %5313 = vmatpush1.msra.mxu0 0.0
    %5314 = vmatprep.subr.mxu0 0.0
    %5315 = vmatpush1.msra.mxu0 0.0
    %5316 = vmatprep.subr.mxu0 0.0
    %5317 = vmatpush1.msra.mxu0 0.0
    %5318 = vmatprep.subr.mxu0 0.0
    %5319 = vmatpush1.msra.mxu0 0.0
    %5320 = vmatprep.subr.mxu0 0.0
    %5321 = vmatpush1.msra.mxu0 0.0
    %5322 = vmatprep.subr.mxu0 0.0
    %5323 = vmatpush1.msra.mxu0 0.0
    %5324 = vmatprep.mubr.f32.mxu0 0.0
    %5325 = vmatmul.mubr.f32.gmra.mrb[0].mxu0 %v5258
    %v5326 = vpop.f32.mrb[0].mxu0
    %v5327 = vadd.f32 0.0, %v5326
    %v5328 = vpop.f32.mrb[0].mxu0
    %5329 = vdwg.mxu0
    %v5330 = vadd.f32 %v5243, %v5327
    %v5331 = vld [vmem:[%s321 + $0x2] sm:$0x1]
    %v5332 = vld [vmem:[%s321 + $0x32] sm:$0x1]
    %v5333 = vld [vmem:[%s1044] sm:$0xff]
    %v5334 = vld [vmem:[%s1044 + $0x8] sm:$0xff]
    %v5335 = vld [vmem:[%s1044 + $0x10] sm:$0xff]
    %v5336 = vld [vmem:[%s1044 + $0x18] sm:$0xff]
    %v5337 = vld [vmem:[%s1044 + $0x20] sm:$0xff]
    %v5338 = vld [vmem:[%s1044 + $0x28] sm:$0xff]
    %v5339 = vld [vmem:[%s1044 + $0x30] sm:$0xff]
    %v5340 = vld [vmem:[%s1044 + $0x38] sm:$0xff]
    %v5343 = vrot.slane %v5332, 7
    %v5344 = vsel %vm363, %v5343, %v5331
    %v5345 = vsel %vm365, %v5344, 0
    %5347 = vmatprep.subr.mxu0 0.0
    %5348 = vmatpush1.msra.mxu0 %v5333
    %5349 = vmatprep.subr.mxu0 0.0
    %5350 = vmatpush1.msra.mxu0 %v5334
    %5351 = vmatprep.subr.mxu0 0.0
    %5352 = vmatpush1.msra.mxu0 %v5335
    %5353 = vmatprep.subr.mxu0 0.0
    %5354 = vmatpush1.msra.mxu0 %v5336
    %5355 = vmatprep.subr.mxu0 0.0
    %5356 = vmatpush1.msra.mxu0 %v5337
    %5357 = vmatprep.subr.mxu0 0.0
    %5358 = vmatpush1.msra.mxu0 %v5338
    %5359 = vmatprep.subr.mxu0 0.0
    %5360 = vmatpush1.msra.mxu0 %v5339
    %5361 = vmatprep.subr.mxu0 0.0
    %5362 = vmatpush1.msra.mxu0 %v5340
    %5363 = vmatprep.subr.mxu0 0.0
    %5364 = vmatpush1.msra.mxu0 0.0
    %5365 = vmatprep.subr.mxu0 0.0
    %5366 = vmatpush1.msra.mxu0 0.0
    %5367 = vmatprep.subr.mxu0 0.0
    %5368 = vmatpush1.msra.mxu0 0.0
    %5369 = vmatprep.subr.mxu0 0.0
    %5370 = vmatpush1.msra.mxu0 0.0
    %5371 = vmatprep.subr.mxu0 0.0
    %5372 = vmatpush1.msra.mxu0 0.0
    %5373 = vmatprep.subr.mxu0 0.0
    %5374 = vmatpush1.msra.mxu0 0.0
    %5375 = vmatprep.subr.mxu0 0.0
    %5376 = vmatpush1.msra.mxu0 0.0
    %5377 = vmatprep.subr.mxu0 0.0
    %5378 = vmatpush1.msra.mxu0 0.0
    %5379 = vmatprep.subr.mxu0 0.0
    %5380 = vmatpush1.msra.mxu0 0.0
    %5381 = vmatprep.subr.mxu0 0.0
    %5382 = vmatpush1.msra.mxu0 0.0
    %5383 = vmatprep.subr.mxu0 0.0
    %5384 = vmatpush1.msra.mxu0 0.0
    %5385 = vmatprep.subr.mxu0 0.0
    %5386 = vmatpush1.msra.mxu0 0.0
    %5387 = vmatprep.subr.mxu0 0.0
    %5388 = vmatpush1.msra.mxu0 0.0
    %5389 = vmatprep.subr.mxu0 0.0
    %5390 = vmatpush1.msra.mxu0 0.0
    %5391 = vmatprep.subr.mxu0 0.0
    %5392 = vmatpush1.msra.mxu0 0.0
    %5393 = vmatprep.subr.mxu0 0.0
    %5394 = vmatpush1.msra.mxu0 0.0
    %5395 = vmatprep.subr.mxu0 0.0
    %5396 = vmatpush1.msra.mxu0 0.0
    %5397 = vmatprep.subr.mxu0 0.0
    %5398 = vmatpush1.msra.mxu0 0.0
    %5399 = vmatprep.subr.mxu0 0.0
    %5400 = vmatpush1.msra.mxu0 0.0
    %5401 = vmatprep.subr.mxu0 0.0
    %5402 = vmatpush1.msra.mxu0 0.0
    %5403 = vmatprep.subr.mxu0 0.0
    %5404 = vmatpush1.msra.mxu0 0.0
    %5405 = vmatprep.subr.mxu0 0.0
    %5406 = vmatpush1.msra.mxu0 0.0
    %5407 = vmatprep.subr.mxu0 0.0
    %5408 = vmatpush1.msra.mxu0 0.0
    %5409 = vmatprep.subr.mxu0 0.0
    %5410 = vmatpush1.msra.mxu0 0.0
    %5411 = vmatprep.mubr.f32.mxu0 0.0
    %5412 = vmatmul.mubr.f32.gmra.mrb[0].mxu0 %v5345
    %v5413 = vpop.f32.mrb[0].mxu0
    %v5414 = vadd.f32 0.0, %v5413
    %v5415 = vpop.f32.mrb[0].mxu0
    %5416 = vdwg.mxu0
    %v5417 = vadd.f32 %v5330, %v5414
    %v5418 = vld [vmem:[%s321 + $0x3] sm:$0x1]
    %v5419 = vld [vmem:[%s321 + $0x33] sm:$0x1]
    %v5420 = vld [vmem:[%s1132] sm:$0xff]
    %v5421 = vld [vmem:[%s1132 + $0x8] sm:$0xff]
    %v5422 = vld [vmem:[%s1132 + $0x10] sm:$0xff]
    %v5423 = vld [vmem:[%s1132 + $0x18] sm:$0xff]
    %v5424 = vld [vmem:[%s1132 + $0x20] sm:$0xff]
    %v5425 = vld [vmem:[%s1132 + $0x28] sm:$0xff]
    %v5426 = vld [vmem:[%s1132 + $0x30] sm:$0xff]
    %v5427 = vld [vmem:[%s1132 + $0x38] sm:$0xff]
    %v5430 = vrot.slane %v5419, 7
    %v5431 = vsel %vm363, %v5430, %v5418
    %v5432 = vsel %vm365, %v5431, 0
    %5434 = vmatprep.subr.mxu0 0.0
    %5435 = vmatpush1.msra.mxu0 %v5420
    %5436 = vmatprep.subr.mxu0 0.0
    %5437 = vmatpush1.msra.mxu0 %v5421
    %5438 = vmatprep.subr.mxu0 0.0
    %5439 = vmatpush1.msra.mxu0 %v5422
    %5440 = vmatprep.subr.mxu0 0.0
    %5441 = vmatpush1.msra.mxu0 %v5423
    %5442 = vmatprep.subr.mxu0 0.0
    %5443 = vmatpush1.msra.mxu0 %v5424
    %5444 = vmatprep.subr.mxu0 0.0
    %5445 = vmatpush1.msra.mxu0 %v5425
    %5446 = vmatprep.subr.mxu0 0.0
    %5447 = vmatpush1.msra.mxu0 %v5426
    %5448 = vmatprep.subr.mxu0 0.0
    %5449 = vmatpush1.msra.mxu0 %v5427
    %5450 = vmatprep.subr.mxu0 0.0
    %5451 = vmatpush1.msra.mxu0 0.0
    %5452 = vmatprep.subr.mxu0 0.0
    %5453 = vmatpush1.msra.mxu0 0.0
    %5454 = vmatprep.subr.mxu0 0.0
    %5455 = vmatpush1.msra.mxu0 0.0
    %5456 = vmatprep.subr.mxu0 0.0
    %5457 = vmatpush1.msra.mxu0 0.0
    %5458 = vmatprep.subr.mxu0 0.0
    %5459 = vmatpush1.msra.mxu0 0.0
    %5460 = vmatprep.subr.mxu0 0.0
    %5461 = vmatpush1.msra.mxu0 0.0
    %5462 = vmatprep.subr.mxu0 0.0
    %5463 = vmatpush1.msra.mxu0 0.0
    %5464 = vmatprep.subr.mxu0 0.0
    %5465 = vmatpush1.msra.mxu0 0.0
    %5466 = vmatprep.subr.mxu0 0.0
    %5467 = vmatpush1.msra.mxu0 0.0
    %5468 = vmatprep.subr.mxu0 0.0
    %5469 = vmatpush1.msra.mxu0 0.0
    %5470 = vmatprep.subr.mxu0 0.0
    %5471 = vmatpush1.msra.mxu0 0.0
    %5472 = vmatprep.subr.mxu0 0.0
    %5473 = vmatpush1.msra.mxu0 0.0
    %5474 = vmatprep.subr.mxu0 0.0
    %5475 = vmatpush1.msra.mxu0 0.0
    %5476 = vmatprep.subr.mxu0 0.0
    %5477 = vmatpush1.msra.mxu0 0.0
    %5478 = vmatprep.subr.mxu0 0.0
    %5479 = vmatpush1.msra.mxu0 0.0
    %5480 = vmatprep.subr.mxu0 0.0
    %5481 = vmatpush1.msra.mxu0 0.0
    %5482 = vmatprep.subr.mxu0 0.0
    %5483 = vmatpush1.msra.mxu0 0.0
    %5484 = vmatprep.subr.mxu0 0.0
    %5485 = vmatpush1.msra.mxu0 0.0
    %5486 = vmatprep.subr.mxu0 0.0
    %5487 = vmatpush1.msra.mxu0 0.0
    %5488 = vmatprep.subr.mxu0 0.0
    %5489 = vmatpush1.msra.mxu0 0.0
    %5490 = vmatprep.subr.mxu0 0.0
    %5491 = vmatpush1.msra.mxu0 0.0
    %5492 = vmatprep.subr.mxu0 0.0
    %5493 = vmatpush1.msra.mxu0 0.0
    %5494 = vmatprep.subr.mxu0 0.0
    %5495 = vmatpush1.msra.mxu0 0.0
    %5496 = vmatprep.subr.mxu0 0.0
    %5497 = vmatpush1.msra.mxu0 0.0
    %5498 = vmatprep.mubr.f32.mxu0 0.0
    %5499 = vmatmul.mubr.f32.gmra.mrb[0].mxu0 %v5432
    %v5500 = vpop.f32.mrb[0].mxu0
    %v5501 = vadd.f32 0.0, %v5500
    %v5502 = vpop.f32.mrb[0].mxu0
    %5503 = vdwg.mxu0
    %v5504 = vadd.f32 %v5417, %v5501
    %v5505 = vld [vmem:[%s321 + $0x4] sm:$0x1]
    %v5506 = vld [vmem:[%s321 + $0x34] sm:$0x1]
    %v5507 = vld [vmem:[%s1220] sm:$0xff]
    %v5508 = vld [vmem:[%s1220 + $0x8] sm:$0xff]
    %v5509 = vld [vmem:[%s1220 + $0x10] sm:$0xff]
    %v5510 = vld [vmem:[%s1220 + $0x18] sm:$0xff]
    %v5511 = vld [vmem:[%s1220 + $0x20] sm:$0xff]
    %v5512 = vld [vmem:[%s1220 + $0x28] sm:$0xff]
    %v5513 = vld [vmem:[%s1220 + $0x30] sm:$0xff]
    %v5514 = vld [vmem:[%s1220 + $0x38] sm:$0xff]
    %v5517 = vrot.slane %v5506, 7
    %v5518 = vsel %vm363, %v5517, %v5505
    %v5519 = vsel %vm365, %v5518, 0
    %5521 = vmatprep.subr.mxu0 0.0
    %5522 = vmatpush1.msra.mxu0 %v5507
    %5523 = vmatprep.subr.mxu0 0.0
    %5524 = vmatpush1.msra.mxu0 %v5508
    %5525 = vmatprep.subr.mxu0 0.0
    %5526 = vmatpush1.msra.mxu0 %v5509
    %5527 = vmatprep.subr.mxu0 0.0
    %5528 = vmatpush1.msra.mxu0 %v5510
    %5529 = vmatprep.subr.mxu0 0.0
    %5530 = vmatpush1.msra.mxu0 %v5511
    %5531 = vmatprep.subr.mxu0 0.0
    %5532 = vmatpush1.msra.mxu0 %v5512
    %5533 = vmatprep.subr.mxu0 0.0
    %5534 = vmatpush1.msra.mxu0 %v5513
    %5535 = vmatprep.subr.mxu0 0.0
    %5536 = vmatpush1.msra.mxu0 %v5514
    %5537 = vmatprep.subr.mxu0 0.0
    %5538 = vmatpush1.msra.mxu0 0.0
    %5539 = vmatprep.subr.mxu0 0.0
    %5540 = vmatpush1.msra.mxu0 0.0
    %5541 = vmatprep.subr.mxu0 0.0
    %5542 = vmatpush1.msra.mxu0 0.0
    %5543 = vmatprep.subr.mxu0 0.0
    %5544 = vmatpush1.msra.mxu0 0.0
    %5545 = vmatprep.subr.mxu0 0.0
    %5546 = vmatpush1.msra.mxu0 0.0
    %5547 = vmatprep.subr.mxu0 0.0
    %5548 = vmatpush1.msra.mxu0 0.0
    %5549 = vmatprep.subr.mxu0 0.0
    %5550 = vmatpush1.msra.mxu0 0.0
    %5551 = vmatprep.subr.mxu0 0.0
    %5552 = vmatpush1.msra.mxu0 0.0
    %5553 = vmatprep.subr.mxu0 0.0
    %5554 = vmatpush1.msra.mxu0 0.0
    %5555 = vmatprep.subr.mxu0 0.0
    %5556 = vmatpush1.msra.mxu0 0.0
    %5557 = vmatprep.subr.mxu0 0.0
    %5558 = vmatpush1.msra.mxu0 0.0
    %5559 = vmatprep.subr.mxu0 0.0
    %5560 = vmatpush1.msra.mxu0 0.0
    %5561 = vmatprep.subr.mxu0 0.0
    %5562 = vmatpush1.msra.mxu0 0.0
    %5563 = vmatprep.subr.mxu0 0.0
    %5564 = vmatpush1.msra.mxu0 0.0
    %5565 = vmatprep.subr.mxu0 0.0
    %5566 = vmatpush1.msra.mxu0 0.0
    %5567 = vmatprep.subr.mxu0 0.0
    %5568 = vmatpush1.msra.mxu0 0.0
    %5569 = vmatprep.subr.mxu0 0.0
    %5570 = vmatpush1.msra.mxu0 0.0
    %5571 = vmatprep.subr.mxu0 0.0
    %5572 = vmatpush1.msra.mxu0 0.0
    %5573 = vmatprep.subr.mxu0 0.0
    %5574 = vmatpush1.msra.mxu0 0.0
    %5575 = vmatprep.subr.mxu0 0.0
    %5576 = vmatpush1.msra.mxu0 0.0
    %5577 = vmatprep.subr.mxu0 0.0
    %5578 = vmatpush1.msra.mxu0 0.0
    %5579 = vmatprep.subr.mxu0 0.0
    %5580 = vmatpush1.msra.mxu0 0.0
    %5581 = vmatprep.subr.mxu0 0.0
    %5582 = vmatpush1.msra.mxu0 0.0
    %5583 = vmatprep.subr.mxu0 0.0
    %5584 = vmatpush1.msra.mxu0 0.0
    %5585 = vmatprep.mubr.f32.mxu0 0.0
    %5586 = vmatmul.mubr.f32.gmra.mrb[0].mxu0 %v5519
    %v5587 = vpop.f32.mrb[0].mxu0
    %v5588 = vadd.f32 0.0, %v5587
    %v5589 = vpop.f32.mrb[0].mxu0
    %5590 = vdwg.mxu0
    %v5591 = vadd.f32 %v5504, %v5588
    %v5592 = vld [vmem:[%s321 + $0x5] sm:$0x1]
    %v5593 = vld [vmem:[%s321 + $0x35] sm:$0x1]
    %v5594 = vld [vmem:[%s1308] sm:$0xff]
    %v5595 = vld [vmem:[%s1308 + $0x8] sm:$0xff]
    %v5596 = vld [vmem:[%s1308 + $0x10] sm:$0xff]
    %v5597 = vld [vmem:[%s1308 + $0x18] sm:$0xff]
    %v5598 = vld [vmem:[%s1308 + $0x20] sm:$0xff]
    %v5599 = vld [vmem:[%s1308 + $0x28] sm:$0xff]
    %v5600 = vld [vmem:[%s1308 + $0x30] sm:$0xff]
    %v5601 = vld [vmem:[%s1308 + $0x38] sm:$0xff]
    %v5604 = vrot.slane %v5593, 7
    %v5605 = vsel %vm363, %v5604, %v5592
    %v5606 = vsel %vm365, %v5605, 0
    %5608 = vmatprep.subr.mxu0 0.0
    %5609 = vmatpush1.msra.mxu0 %v5594
    %5610 = vmatprep.subr.mxu0 0.0
    %5611 = vmatpush1.msra.mxu0 %v5595
    %5612 = vmatprep.subr.mxu0 0.0
    %5613 = vmatpush1.msra.mxu0 %v5596
    %5614 = vmatprep.subr.mxu0 0.0
    %5615 = vmatpush1.msra.mxu0 %v5597
    %5616 = vmatprep.subr.mxu0 0.0
    %5617 = vmatpush1.msra.mxu0 %v5598
    %5618 = vmatprep.subr.mxu0 0.0
    %5619 = vmatpush1.msra.mxu0 %v5599
    %5620 = vmatprep.subr.mxu0 0.0
    %5621 = vmatpush1.msra.mxu0 %v5600
    %5622 = vmatprep.subr.mxu0 0.0
    %5623 = vmatpush1.msra.mxu0 %v5601
    %5624 = vmatprep.subr.mxu0 0.0
    %5625 = vmatpush1.msra.mxu0 0.0
    %5626 = vmatprep.subr.mxu0 0.0
    %5627 = vmatpush1.msra.mxu0 0.0
    %5628 = vmatprep.subr.mxu0 0.0
    %5629 = vmatpush1.msra.mxu0 0.0
    %5630 = vmatprep.subr.mxu0 0.0
    %5631 = vmatpush1.msra.mxu0 0.0
    %5632 = vmatprep.subr.mxu0 0.0
    %5633 = vmatpush1.msra.mxu0 0.0
    %5634 = vmatprep.subr.mxu0 0.0
    %5635 = vmatpush1.msra.mxu0 0.0
    %5636 = vmatprep.subr.mxu0 0.0
    %5637 = vmatpush1.msra.mxu0 0.0
    %5638 = vmatprep.subr.mxu0 0.0
    %5639 = vmatpush1.msra.mxu0 0.0
    %5640 = vmatprep.subr.mxu0 0.0
    %5641 = vmatpush1.msra.mxu0 0.0
    %5642 = vmatprep.subr.mxu0 0.0
    %5643 = vmatpush1.msra.mxu0 0.0
    %5644 = vmatprep.subr.mxu0 0.0
    %5645 = vmatpush1.msra.mxu0 0.0
    %5646 = vmatprep.subr.mxu0 0.0
    %5647 = vmatpush1.msra.mxu0 0.0
    %5648 = vmatprep.subr.mxu0 0.0
    %5649 = vmatpush1.msra.mxu0 0.0
    %5650 = vmatprep.subr.mxu0 0.0
    %5651 = vmatpush1.msra.mxu0 0.0
    %5652 = vmatprep.subr.mxu0 0.0
    %5653 = vmatpush1.msra.mxu0 0.0
    %5654 = vmatprep.subr.mxu0 0.0
    %5655 = vmatpush1.msra.mxu0 0.0
    %5656 = vmatprep.subr.mxu0 0.0
    %5657 = vmatpush1.msra.mxu0 0.0
    %5658 = vmatprep.subr.mxu0 0.0
    %5659 = vmatpush1.msra.mxu0 0.0
    %5660 = vmatprep.subr.mxu0 0.0
    %5661 = vmatpush1.msra.mxu0 0.0
    %5662 = vmatprep.subr.mxu0 0.0
    %5663 = vmatpush1.msra.mxu0 0.0
    %5664 = vmatprep.subr.mxu0 0.0
    %5665 = vmatpush1.msra.mxu0 0.0
    %5666 = vmatprep.subr.mxu0 0.0
    %5667 = vmatpush1.msra.mxu0 0.0
    %5668 = vmatprep.subr.mxu0 0.0
    %5669 = vmatpush1.msra.mxu0 0.0
    %5670 = vmatprep.subr.mxu0 0.0
    %5671 = vmatpush1.msra.mxu0 0.0
    %5672 = vmatprep.mubr.f32.mxu0 0.0
    %5673 = vmatmul.mubr.f32.gmra.mrb[0].mxu0 %v5606
    %v5674 = vpop.f32.mrb[0].mxu0
    %v5675 = vadd.f32 0.0, %v5674
    %v5676 = vpop.f32.mrb[0].mxu0
    %5677 = vdwg.mxu0
    %v5678 = vadd.f32 %v5591, %v5675
    %v5679 = vld [vmem:[%s4251 + $0x2] sm:$0x1]
    %v5680 = vld [vmem:[%s4251 + $0x32] sm:$0x1]
    %v5681 = vld [vmem:[%s1396] sm:$0xff]
    %v5682 = vld [vmem:[%s1396 + $0x8] sm:$0xff]
    %v5683 = vld [vmem:[%s1396 + $0x10] sm:$0xff]
    %v5684 = vld [vmem:[%s1396 + $0x18] sm:$0xff]
    %v5685 = vld [vmem:[%s1396 + $0x20] sm:$0xff]
    %v5686 = vld [vmem:[%s1396 + $0x28] sm:$0xff]
    %v5687 = vld [vmem:[%s1396 + $0x30] sm:$0xff]
    %v5688 = vld [vmem:[%s1396 + $0x38] sm:$0xff]
    %v5691 = vrot.slane %v5680, 7
    %v5692 = vsel %vm363, %v5691, %v5679
    %v5693 = vsel %vm365, %v5692, 0
    %5695 = vmatprep.subr.mxu0 0.0
    %5696 = vmatpush1.msra.mxu0 %v5681
    %5697 = vmatprep.subr.mxu0 0.0
    %5698 = vmatpush1.msra.mxu0 %v5682
    %5699 = vmatprep.subr.mxu0 0.0
    %5700 = vmatpush1.msra.mxu0 %v5683
    %5701 = vmatprep.subr.mxu0 0.0
    %5702 = vmatpush1.msra.mxu0 %v5684
    %5703 = vmatprep.subr.mxu0 0.0
    %5704 = vmatpush1.msra.mxu0 %v5685
    %5705 = vmatprep.subr.mxu0 0.0
    %5706 = vmatpush1.msra.mxu0 %v5686
    %5707 = vmatprep.subr.mxu0 0.0
    %5708 = vmatpush1.msra.mxu0 %v5687
    %5709 = vmatprep.subr.mxu0 0.0
    %5710 = vmatpush1.msra.mxu0 %v5688
    %5711 = vmatprep.subr.mxu0 0.0
    %5712 = vmatpush1.msra.mxu0 0.0
    %5713 = vmatprep.subr.mxu0 0.0
    %5714 = vmatpush1.msra.mxu0 0.0
    %5715 = vmatprep.subr.mxu0 0.0
    %5716 = vmatpush1.msra.mxu0 0.0
    %5717 = vmatprep.subr.mxu0 0.0
    %5718 = vmatpush1.msra.mxu0 0.0
    %5719 = vmatprep.subr.mxu0 0.0
    %5720 = vmatpush1.msra.mxu0 0.0
    %5721 = vmatprep.subr.mxu0 0.0
    %5722 = vmatpush1.msra.mxu0 0.0
    %5723 = vmatprep.subr.mxu0 0.0
    %5724 = vmatpush1.msra.mxu0 0.0
    %5725 = vmatprep.subr.mxu0 0.0
    %5726 = vmatpush1.msra.mxu0 0.0
    %5727 = vmatprep.subr.mxu0 0.0
    %5728 = vmatpush1.msra.mxu0 0.0
    %5729 = vmatprep.subr.mxu0 0.0
    %5730 = vmatpush1.msra.mxu0 0.0
    %5731 = vmatprep.subr.mxu0 0.0
    %5732 = vmatpush1.msra.mxu0 0.0
    %5733 = vmatprep.subr.mxu0 0.0
    %5734 = vmatpush1.msra.mxu0 0.0
    %5735 = vmatprep.subr.mxu0 0.0
    %5736 = vmatpush1.msra.mxu0 0.0
    %5737 = vmatprep.subr.mxu0 0.0
    %5738 = vmatpush1.msra.mxu0 0.0
    %5739 = vmatprep.subr.mxu0 0.0
    %5740 = vmatpush1.msra.mxu0 0.0
    %5741 = vmatprep.subr.mxu0 0.0
    %5742 = vmatpush1.msra.mxu0 0.0
    %5743 = vmatprep.subr.mxu0 0.0
    %5744 = vmatpush1.msra.mxu0 0.0
    %5745 = vmatprep.subr.mxu0 0.0
    %5746 = vmatpush1.msra.mxu0 0.0
    %5747 = vmatprep.subr.mxu0 0.0
    %5748 = vmatpush1.msra.mxu0 0.0
    %5749 = vmatprep.subr.mxu0 0.0
    %5750 = vmatpush1.msra.mxu0 0.0
    %5751 = vmatprep.subr.mxu0 0.0
    %5752 = vmatpush1.msra.mxu0 0.0
    %5753 = vmatprep.subr.mxu0 0.0
    %5754 = vmatpush1.msra.mxu0 0.0
    %5755 = vmatprep.subr.mxu0 0.0
    %5756 = vmatpush1.msra.mxu0 0.0
    %5757 = vmatprep.subr.mxu0 0.0
    %5758 = vmatpush1.msra.mxu0 0.0
    %5759 = vmatprep.mubr.f32.mxu0 0.0
    %5760 = vmatmul.mubr.f32.gmra.mrb[0].mxu0 %v5693
    %v5761 = vpop.f32.mrb[0].mxu0
    %v5762 = vadd.f32 0.0, %v5761
    %v5763 = vpop.f32.mrb[0].mxu0
    %5764 = vdwg.mxu0
    %v5765 = vadd.f32 %v5678, %v5762
    %v5766 = vld [vmem:[%s4251 + $0x3] sm:$0x1]
    %v5767 = vld [vmem:[%s4251 + $0x33] sm:$0x1]
    %v5768 = vld [vmem:[%s1484] sm:$0xff]
    %v5769 = vld [vmem:[%s1484 + $0x8] sm:$0xff]
    %v5770 = vld [vmem:[%s1484 + $0x10] sm:$0xff]
    %v5771 = vld [vmem:[%s1484 + $0x18] sm:$0xff]
    %v5772 = vld [vmem:[%s1484 + $0x20] sm:$0xff]
    %v5773 = vld [vmem:[%s1484 + $0x28] sm:$0xff]
    %v5774 = vld [vmem:[%s1484 + $0x30] sm:$0xff]
    %v5775 = vld [vmem:[%s1484 + $0x38] sm:$0xff]
    %v5778 = vrot.slane %v5767, 7
    %v5779 = vsel %vm363, %v5778, %v5766
    %v5780 = vsel %vm365, %v5779, 0
    %5782 = vmatprep.subr.mxu0 0.0
    %5783 = vmatpush1.msra.mxu0 %v5768
    %5784 = vmatprep.subr.mxu0 0.0
    %5785 = vmatpush1.msra.mxu0 %v5769
    %5786 = vmatprep.subr.mxu0 0.0
    %5787 = vmatpush1.msra.mxu0 %v5770
    %5788 = vmatprep.subr.mxu0 0.0
    %5789 = vmatpush1.msra.mxu0 %v5771
    %5790 = vmatprep.subr.mxu0 0.0
    %5791 = vmatpush1.msra.mxu0 %v5772
    %5792 = vmatprep.subr.mxu0 0.0
    %5793 = vmatpush1.msra.mxu0 %v5773
    %5794 = vmatprep.subr.mxu0 0.0
    %5795 = vmatpush1.msra.mxu0 %v5774
    %5796 = vmatprep.subr.mxu0 0.0
    %5797 = vmatpush1.msra.mxu0 %v5775
    %5798 = vmatprep.subr.mxu0 0.0
    %5799 = vmatpush1.msra.mxu0 0.0
    %5800 = vmatprep.subr.mxu0 0.0
    %5801 = vmatpush1.msra.mxu0 0.0
    %5802 = vmatprep.subr.mxu0 0.0
    %5803 = vmatpush1.msra.mxu0 0.0
    %5804 = vmatprep.subr.mxu0 0.0
    %5805 = vmatpush1.msra.mxu0 0.0
    %5806 = vmatprep.subr.mxu0 0.0
    %5807 = vmatpush1.msra.mxu0 0.0
    %5808 = vmatprep.subr.mxu0 0.0
    %5809 = vmatpush1.msra.mxu0 0.0
    %5810 = vmatprep.subr.mxu0 0.0
    %5811 = vmatpush1.msra.mxu0 0.0
    %5812 = vmatprep.subr.mxu0 0.0
    %5813 = vmatpush1.msra.mxu0 0.0
    %5814 = vmatprep.subr.mxu0 0.0
    %5815 = vmatpush1.msra.mxu0 0.0
    %5816 = vmatprep.subr.mxu0 0.0
    %5817 = vmatpush1.msra.mxu0 0.0
    %5818 = vmatprep.subr.mxu0 0.0
    %5819 = vmatpush1.msra.mxu0 0.0
    %5820 = vmatprep.subr.mxu0 0.0
    %5821 = vmatpush1.msra.mxu0 0.0
    %5822 = vmatprep.subr.mxu0 0.0
    %5823 = vmatpush1.msra.mxu0 0.0
    %5824 = vmatprep.subr.mxu0 0.0
    %5825 = vmatpush1.msra.mxu0 0.0
    %5826 = vmatprep.subr.mxu0 0.0
    %5827 = vmatpush1.msra.mxu0 0.0
    %5828 = vmatprep.subr.mxu0 0.0
    %5829 = vmatpush1.msra.mxu0 0.0
    %5830 = vmatprep.subr.mxu0 0.0
    %5831 = vmatpush1.msra.mxu0 0.0
    %5832 = vmatprep.subr.mxu0 0.0
    %5833 = vmatpush1.msra.mxu0 0.0
    %5834 = vmatprep.subr.mxu0 0.0
    %5835 = vmatpush1.msra.mxu0 0.0
    %5836 = vmatprep.subr.mxu0 0.0
    %5837 = vmatpush1.msra.mxu0 0.0
    %5838 = vmatprep.subr.mxu0 0.0
    %5839 = vmatpush1.msra.mxu0 0.0
    %5840 = vmatprep.subr.mxu0 0.0
    %5841 = vmatpush1.msra.mxu0 0.0
    %5842 = vmatprep.subr.mxu0 0.0
    %5843 = vmatpush1.msra.mxu0 0.0
    %5844 = vmatprep.subr.mxu0 0.0
    %5845 = vmatpush1.msra.mxu0 0.0
    %5846 = vmatprep.mubr.f32.mxu0 0.0
    %5847 = vmatmul.mubr.f32.gmra.mrb[0].mxu0 %v5780
    %v5848 = vpop.f32.mrb[0].mxu0
    %v5849 = vadd.f32 0.0, %v5848
    %v5850 = vpop.f32.mrb[0].mxu0
    %5851 = vdwg.mxu0
    %v5852 = vadd.f32 %v5765, %v5849
    %v5853 = vld [vmem:[%s4251 + $0x4] sm:$0x1]
    %v5854 = vld [vmem:[%s4251 + $0x34] sm:$0x1]
    %v5855 = vld [vmem:[%s1572] sm:$0xff]
    %v5856 = vld [vmem:[%s1572 + $0x8] sm:$0xff]
    %v5857 = vld [vmem:[%s1572 + $0x10] sm:$0xff]
    %v5858 = vld [vmem:[%s1572 + $0x18] sm:$0xff]
    %v5859 = vld [vmem:[%s1572 + $0x20] sm:$0xff]
    %v5860 = vld [vmem:[%s1572 + $0x28] sm:$0xff]
    %v5861 = vld [vmem:[%s1572 + $0x30] sm:$0xff]
    %v5862 = vld [vmem:[%s1572 + $0x38] sm:$0xff]
    %v5865 = vrot.slane %v5854, 7
    %v5866 = vsel %vm363, %v5865, %v5853
    %v5867 = vsel %vm365, %v5866, 0
    %5869 = vmatprep.subr.mxu0 0.0
    %5870 = vmatpush1.msra.mxu0 %v5855
    %5871 = vmatprep.subr.mxu0 0.0
    %5872 = vmatpush1.msra.mxu0 %v5856
    %5873 = vmatprep.subr.mxu0 0.0
    %5874 = vmatpush1.msra.mxu0 %v5857
    %5875 = vmatprep.subr.mxu0 0.0
    %5876 = vmatpush1.msra.mxu0 %v5858
    %5877 = vmatprep.subr.mxu0 0.0
    %5878 = vmatpush1.msra.mxu0 %v5859
    %5879 = vmatprep.subr.mxu0 0.0
    %5880 = vmatpush1.msra.mxu0 %v5860
    %5881 = vmatprep.subr.mxu0 0.0
    %5882 = vmatpush1.msra.mxu0 %v5861
    %5883 = vmatprep.subr.mxu0 0.0
    %5884 = vmatpush1.msra.mxu0 %v5862
    %5885 = vmatprep.subr.mxu0 0.0
    %5886 = vmatpush1.msra.mxu0 0.0
    %5887 = vmatprep.subr.mxu0 0.0
    %5888 = vmatpush1.msra.mxu0 0.0
    %5889 = vmatprep.subr.mxu0 0.0
    %5890 = vmatpush1.msra.mxu0 0.0
    %5891 = vmatprep.subr.mxu0 0.0
    %5892 = vmatpush1.msra.mxu0 0.0
    %5893 = vmatprep.subr.mxu0 0.0
    %5894 = vmatpush1.msra.mxu0 0.0
    %5895 = vmatprep.subr.mxu0 0.0
    %5896 = vmatpush1.msra.mxu0 0.0
    %5897 = vmatprep.subr.mxu0 0.0
    %5898 = vmatpush1.msra.mxu0 0.0
    %5899 = vmatprep.subr.mxu0 0.0
    %5900 = vmatpush1.msra.mxu0 0.0
    %5901 = vmatprep.subr.mxu0 0.0
    %5902 = vmatpush1.msra.mxu0 0.0
    %5903 = vmatprep.subr.mxu0 0.0
    %5904 = vmatpush1.msra.mxu0 0.0
    %5905 = vmatprep.subr.mxu0 0.0
    %5906 = vmatpush1.msra.mxu0 0.0
    %5907 = vmatprep.subr.mxu0 0.0
    %5908 = vmatpush1.msra.mxu0 0.0
    %5909 = vmatprep.subr.mxu0 0.0
    %5910 = vmatpush1.msra.mxu0 0.0
    %5911 = vmatprep.subr.mxu0 0.0
    %5912 = vmatpush1.msra.mxu0 0.0
    %5913 = vmatprep.subr.mxu0 0.0
    %5914 = vmatpush1.msra.mxu0 0.0
    %5915 = vmatprep.subr.mxu0 0.0
    %5916 = vmatpush1.msra.mxu0 0.0
    %5917 = vmatprep.subr.mxu0 0.0
    %5918 = vmatpush1.msra.mxu0 0.0
    %5919 = vmatprep.subr.mxu0 0.0
    %5920 = vmatpush1.msra.mxu0 0.0
    %5921 = vmatprep.subr.mxu0 0.0
    %5922 = vmatpush1.msra.mxu0 0.0
    %5923 = vmatprep.subr.mxu0 0.0
    %5924 = vmatpush1.msra.mxu0 0.0
    %5925 = vmatprep.subr.mxu0 0.0
    %5926 = vmatpush1.msra.mxu0 0.0
    %5927 = vmatprep.subr.mxu0 0.0
    %5928 = vmatpush1.msra.mxu0 0.0
    %5929 = vmatprep.subr.mxu0 0.0
    %5930 = vmatpush1.msra.mxu0 0.0
    %5931 = vmatprep.subr.mxu0 0.0
    %5932 = vmatpush1.msra.mxu0 0.0
    %5933 = vmatprep.mubr.f32.mxu0 0.0
    %5934 = vmatmul.mubr.f32.gmra.mrb[0].mxu0 %v5867
    %v5935 = vpop.f32.mrb[0].mxu0
    %v5936 = vadd.f32 0.0, %v5935
    %v5937 = vpop.f32.mrb[0].mxu0
    %5938 = vdwg.mxu0
    %v5939 = vadd.f32 %v5852, %v5936
    %v5940 = vld [vmem:[%s4251 + $0x5] sm:$0x1]
    %v5941 = vld [vmem:[%s4251 + $0x35] sm:$0x1]
    %v5942 = vld [vmem:[%s1660] sm:$0xff]
    %v5943 = vld [vmem:[%s1660 + $0x8] sm:$0xff]
    %v5944 = vld [vmem:[%s1660 + $0x10] sm:$0xff]
    %v5945 = vld [vmem:[%s1660 + $0x18] sm:$0xff]
    %v5946 = vld [vmem:[%s1660 + $0x20] sm:$0xff]
    %v5947 = vld [vmem:[%s1660 + $0x28] sm:$0xff]
    %v5948 = vld [vmem:[%s1660 + $0x30] sm:$0xff]
    %v5949 = vld [vmem:[%s1660 + $0x38] sm:$0xff]
    %v5952 = vrot.slane %v5941, 7
    %v5953 = vsel %vm363, %v5952, %v5940
    %v5954 = vsel %vm365, %v5953, 0
    %5956 = vmatprep.subr.mxu0 0.0
    %5957 = vmatpush1.msra.mxu0 %v5942
    %5958 = vmatprep.subr.mxu0 0.0
    %5959 = vmatpush1.msra.mxu0 %v5943
    %5960 = vmatprep.subr.mxu0 0.0
    %5961 = vmatpush1.msra.mxu0 %v5944
    %5962 = vmatprep.subr.mxu0 0.0
    %5963 = vmatpush1.msra.mxu0 %v5945
    %5964 = vmatprep.subr.mxu0 0.0
    %5965 = vmatpush1.msra.mxu0 %v5946
    %5966 = vmatprep.subr.mxu0 0.0
    %5967 = vmatpush1.msra.mxu0 %v5947
    %5968 = vmatprep.subr.mxu0 0.0
    %5969 = vmatpush1.msra.mxu0 %v5948
    %5970 = vmatprep.subr.mxu0 0.0
    %5971 = vmatpush1.msra.mxu0 %v5949
    %5972 = vmatprep.subr.mxu0 0.0
    %5973 = vmatpush1.msra.mxu0 0.0
    %5974 = vmatprep.subr.mxu0 0.0
    %5975 = vmatpush1.msra.mxu0 0.0
    %5976 = vmatprep.subr.mxu0 0.0
    %5977 = vmatpush1.msra.mxu0 0.0
    %5978 = vmatprep.subr.mxu0 0.0
    %5979 = vmatpush1.msra.mxu0 0.0
    %5980 = vmatprep.subr.mxu0 0.0
    %5981 = vmatpush1.msra.mxu0 0.0
    %5982 = vmatprep.subr.mxu0 0.0
    %5983 = vmatpush1.msra.mxu0 0.0
    %5984 = vmatprep.subr.mxu0 0.0
    %5985 = vmatpush1.msra.mxu0 0.0
    %5986 = vmatprep.subr.mxu0 0.0
    %5987 = vmatpush1.msra.mxu0 0.0
    %5988 = vmatprep.subr.mxu0 0.0
    %5989 = vmatpush1.msra.mxu0 0.0
    %5990 = vmatprep.subr.mxu0 0.0
    %5991 = vmatpush1.msra.mxu0 0.0
    %5992 = vmatprep.subr.mxu0 0.0
    %5993 = vmatpush1.msra.mxu0 0.0
    %5994 = vmatprep.subr.mxu0 0.0
    %5995 = vmatpush1.msra.mxu0 0.0
    %5996 = vmatprep.subr.mxu0 0.0
    %5997 = vmatpush1.msra.mxu0 0.0
    %5998 = vmatprep.subr.mxu0 0.0
    %5999 = vmatpush1.msra.mxu0 0.0
    %6000 = vmatprep.subr.mxu0 0.0
    %6001 = vmatpush1.msra.mxu0 0.0
    %6002 = vmatprep.subr.mxu0 0.0
    %6003 = vmatpush1.msra.mxu0 0.0
    %6004 = vmatprep.subr.mxu0 0.0
    %6005 = vmatpush1.msra.mxu0 0.0
    %6006 = vmatprep.subr.mxu0 0.0
    %6007 = vmatpush1.msra.mxu0 0.0
    %6008 = vmatprep.subr.mxu0 0.0
    %6009 = vmatpush1.msra.mxu0 0.0
    %6010 = vmatprep.subr.mxu0 0.0
    %6011 = vmatpush1.msra.mxu0 0.0
    %6012 = vmatprep.subr.mxu0 0.0
    %6013 = vmatpush1.msra.mxu0 0.0
    %6014 = vmatprep.subr.mxu0 0.0
    %6015 = vmatpush1.msra.mxu0 0.0
    %6016 = vmatprep.subr.mxu0 0.0
    %6017 = vmatpush1.msra.mxu0 0.0
    %6018 = vmatprep.subr.mxu0 0.0
    %6019 = vmatpush1.msra.mxu0 0.0
    %6020 = vmatprep.mubr.f32.mxu0 0.0
    %6021 = vmatmul.mubr.f32.gmra.mrb[0].mxu0 %v5954
    %v6022 = vpop.f32.mrb[0].mxu0
    %v6023 = vadd.f32 0.0, %v6022
    %v6024 = vpop.f32.mrb[0].mxu0
    %6025 = vdwg.mxu0
    %v6026 = vadd.f32 %v5939, %v6023
    %v6027 = vld [vmem:[%s4] sm:$0x1]
    %v6029 = vlaneseq
    %v6030 = vshrl.u32 %v6029, 7
    %v6031 = vsub.s32 0, %v6030
    %v6032 = vrot.slane %v6027, %v6031
    %v6034 = vadd.f32 %v6026, %v6032
    %v6035 = vmax.f32 %v6034, 0.0
    %v6038 = vunpack.c.l.s4 1966171168
    %v6039 = vunpack.c.0.s8 %v6038
    %v6040 = vlaneseq
    %v6041 = vshrl.u32 %v6040, 7
    %v6042 = vsub.s32 %v6039, %v6041
    %v6043 = vrot.slane %v6035, %v6042
    %v6044 = vcombine.high %v6043, %v6043
    %v6046 = vunpack.c.l.s4 1966171168
    %v6047 = vunpack.c.0.s8 %v6046
    %v6048 = vlaneseq
    %v6049 = vshrl.u32 %v6048, 7
    %v6050 = vsub.s32 %v6047, %v6049
    %v6051 = vrot.slane %v6043, %v6050
    %v6053 = vunpack.c.l.s4 1966171168
    %v6054 = vunpack.c.0.s8 %v6053
    %v6055 = vlaneseq
    %v6056 = vshrl.u32 %v6055, 7
    %v6057 = vsub.s32 %v6054, %v6056
    %v6058 = vrot.slane %v6044, %v6057
    %6061 = vst [vmem:[%s4634 + $0x2] sm:$0x1] %v6051
    %6062 = vst [vmem:[%s4634 + $0x12] sm:$0x1] %v6058
    %v6063 = vld [vmem:[#allocation3] sm:$0x1]
    %v6064 = vld [vmem:[#allocation3 + $0x10] sm:$0x1]
    %v6065 = vld [vmem:[%s5] sm:$0xff]
    %v6066 = vld [vmem:[%s5 + $0x8] sm:$0xff]
    %v6067 = vld [vmem:[%s5 + $0x10] sm:$0xff]
    %v6068 = vld [vmem:[%s5 + $0x18] sm:$0xff]
    %v6069 = vld [vmem:[%s5 + $0x20] sm:$0xff]
    %v6070 = vld [vmem:[%s5 + $0x28] sm:$0xff]
    %v6071 = vld [vmem:[%s5 + $0x30] sm:$0xff]
    %v6072 = vld [vmem:[%s5 + $0x38] sm:$0xff]
    %v6073 = vld [vmem:[%s5 + $0x40] sm:$0xff]
    %v6074 = vld [vmem:[%s5 + $0x48] sm:$0xff]
    %v6075 = vld [vmem:[%s5 + $0x50] sm:$0xff]
    %v6076 = vld [vmem:[%s5 + $0x58] sm:$0xff]
    %v6077 = vld [vmem:[%s5 + $0x60] sm:$0xff]
    %v6078 = vld [vmem:[%s5 + $0x68] sm:$0xff]
    %v6079 = vld [vmem:[%s5 + $0x70] sm:$0xff]
    %v6080 = vld [vmem:[%s5 + $0x78] sm:$0xff]
    %v6081 = vld [vmem:[%s5 + $0x80] sm:$0xff]
    %v6082 = vld [vmem:[%s5 + $0x88] sm:$0xff]
    %v6083 = vld [vmem:[%s5 + $0x90] sm:$0xff]
    %v6084 = vld [vmem:[%s5 + $0x98] sm:$0xff]
    %v6085 = vld [vmem:[%s5 + $0xa0] sm:$0xff]
    %v6086 = vld [vmem:[%s5 + $0xa8] sm:$0xff]
    %v6087 = vld [vmem:[%s5 + $0xb0] sm:$0xff]
    %v6088 = vld [vmem:[%s5 + $0xb8] sm:$0xff]
    %v6089 = vld [vmem:[%s5 + $0xc0] sm:$0xff]
    %v6090 = vld [vmem:[%s5 + $0xc8] sm:$0xff]
    %v6091 = vld [vmem:[%s5 + $0xd0] sm:$0xff]
    %v6092 = vld [vmem:[%s5 + $0xd8] sm:$0xff]
    %v6093 = vld [vmem:[%s5 + $0xe0] sm:$0xff]
    %v6094 = vld [vmem:[%s5 + $0xe8] sm:$0xff]
    %v6095 = vld [vmem:[%s5 + $0xf0] sm:$0xff]
    %v6096 = vld [vmem:[%s5 + $0xf8] sm:$0xff]
    %v6097 = vld [vmem:[#allocation3 + $0x1] sm:$0x1]
    %v6098 = vld [vmem:[#allocation3 + $0x11] sm:$0x1]
    %s6099 = scalar_lea.vmem %s5, 256
    %v6100 = vld [vmem:[%s6099] sm:$0xff]
    %v6101 = vld [vmem:[%s6099 + $0x8] sm:$0xff]
    %v6102 = vld [vmem:[%s6099 + $0x10] sm:$0xff]
    %v6103 = vld [vmem:[%s6099 + $0x18] sm:$0xff]
    %v6104 = vld [vmem:[%s6099 + $0x20] sm:$0xff]
    %v6105 = vld [vmem:[%s6099 + $0x28] sm:$0xff]
    %v6106 = vld [vmem:[%s6099 + $0x30] sm:$0xff]
    %v6107 = vld [vmem:[%s6099 + $0x38] sm:$0xff]
    %v6108 = vld [vmem:[%s6099 + $0x40] sm:$0xff]
    %v6109 = vld [vmem:[%s6099 + $0x48] sm:$0xff]
    %v6110 = vld [vmem:[%s6099 + $0x50] sm:$0xff]
    %v6111 = vld [vmem:[%s6099 + $0x58] sm:$0xff]
    %v6112 = vld [vmem:[%s6099 + $0x60] sm:$0xff]
    %v6113 = vld [vmem:[%s6099 + $0x68] sm:$0xff]
    %v6114 = vld [vmem:[%s6099 + $0x70] sm:$0xff]
    %v6115 = vld [vmem:[%s6099 + $0x78] sm:$0xff]
    %v6116 = vld [vmem:[%s6099 + $0x80] sm:$0xff]
    %v6117 = vld [vmem:[%s6099 + $0x88] sm:$0xff]
    %v6118 = vld [vmem:[%s6099 + $0x90] sm:$0xff]
    %v6119 = vld [vmem:[%s6099 + $0x98] sm:$0xff]
    %v6120 = vld [vmem:[%s6099 + $0xa0] sm:$0xff]
    %v6121 = vld [vmem:[%s6099 + $0xa8] sm:$0xff]
    %v6122 = vld [vmem:[%s6099 + $0xb0] sm:$0xff]
    %v6123 = vld [vmem:[%s6099 + $0xb8] sm:$0xff]
    %v6124 = vld [vmem:[%s6099 + $0xc0] sm:$0xff]
    %v6125 = vld [vmem:[%s6099 + $0xc8] sm:$0xff]
    %v6126 = vld [vmem:[%s6099 + $0xd0] sm:$0xff]
    %v6127 = vld [vmem:[%s6099 + $0xd8] sm:$0xff]
    %v6128 = vld [vmem:[%s6099 + $0xe0] sm:$0xff]
    %v6129 = vld [vmem:[%s6099 + $0xe8] sm:$0xff]
    %v6130 = vld [vmem:[%s6099 + $0xf0] sm:$0xff]
    %v6131 = vld [vmem:[%s6099 + $0xf8] sm:$0xff]
    %v6134 = vrot.slane %v6098, 7
    %v6135 = vsel %vm363, %v6134, %v6097
    %6137 = vmatprep.subr.mxu0 %v6101
    %6138 = vmatpush1.msra.mxu0 %v6100
    %6139 = vmatprep.subr.mxu0 %v6103
    %6140 = vmatpush1.msra.mxu0 %v6102
    %6141 = vmatprep.subr.mxu0 %v6105
    %6142 = vmatpush1.msra.mxu0 %v6104
    %6143 = vmatprep.subr.mxu0 %v6107
    %6144 = vmatpush1.msra.mxu0 %v6106
    %6145 = vmatprep.subr.mxu0 %v6109
    %6146 = vmatpush1.msra.mxu0 %v6108
    %6147 = vmatprep.subr.mxu0 %v6111
    %6148 = vmatpush1.msra.mxu0 %v6110
    %6149 = vmatprep.subr.mxu0 %v6113
    %6150 = vmatpush1.msra.mxu0 %v6112
    %6151 = vmatprep.subr.mxu0 %v6115
    %6152 = vmatpush1.msra.mxu0 %v6114
    %6153 = vmatprep.subr.mxu0 %v6117
    %6154 = vmatpush1.msra.mxu0 %v6116
    %6155 = vmatprep.subr.mxu0 %v6119
    %6156 = vmatpush1.msra.mxu0 %v6118
    %6157 = vmatprep.subr.mxu0 %v6121
    %6158 = vmatpush1.msra.mxu0 %v6120
    %6159 = vmatprep.subr.mxu0 %v6123
    %6160 = vmatpush1.msra.mxu0 %v6122
    %6161 = vmatprep.subr.mxu0 %v6125
    %6162 = vmatpush1.msra.mxu0 %v6124
    %6163 = vmatprep.subr.mxu0 %v6127
    %6164 = vmatpush1.msra.mxu0 %v6126
    %6165 = vmatprep.subr.mxu0 %v6129
    %6166 = vmatpush1.msra.mxu0 %v6128
    %6167 = vmatprep.subr.mxu0 %v6131
    %6168 = vmatpush1.msra.mxu0 %v6130
    %6169 = vmatprep.subr.mxu0 0.0
    %6170 = vmatpush1.msra.mxu0 0.0
    %6171 = vmatprep.subr.mxu0 0.0
    %6172 = vmatpush1.msra.mxu0 0.0
    %6173 = vmatprep.subr.mxu0 0.0
    %6174 = vmatpush1.msra.mxu0 0.0
    %6175 = vmatprep.subr.mxu0 0.0
    %6176 = vmatpush1.msra.mxu0 0.0
    %6177 = vmatprep.subr.mxu0 0.0
    %6178 = vmatpush1.msra.mxu0 0.0
    %6179 = vmatprep.subr.mxu0 0.0
    %6180 = vmatpush1.msra.mxu0 0.0
    %6181 = vmatprep.subr.mxu0 0.0
    %6182 = vmatpush1.msra.mxu0 0.0
    %6183 = vmatprep.subr.mxu0 0.0
    %6184 = vmatpush1.msra.mxu0 0.0
    %6185 = vmatprep.subr.mxu0 0.0
    %6186 = vmatpush1.msra.mxu0 0.0
    %6187 = vmatprep.subr.mxu0 0.0
    %6188 = vmatpush1.msra.mxu0 0.0
    %6189 = vmatprep.subr.mxu0 0.0
    %6190 = vmatpush1.msra.mxu0 0.0
    %6191 = vmatprep.subr.mxu0 0.0
    %6192 = vmatpush1.msra.mxu0 0.0
    %6193 = vmatprep.subr.mxu0 0.0
    %6194 = vmatpush1.msra.mxu0 0.0
    %6195 = vmatprep.subr.mxu0 0.0
    %6196 = vmatpush1.msra.mxu0 0.0
    %6197 = vmatprep.subr.mxu0 0.0
    %6198 = vmatpush1.msra.mxu0 0.0
    %6199 = vmatprep.subr.mxu0 0.0
    %6200 = vmatpush1.msra.mxu0 0.0
    %6201 = vmatprep.mubr.f32.mxu0 0.0
    %6202 = vmatmul.mubr.f32.gmra.mrb[0].mxu0 %v6135
    %v6203 = vpop.f32.mrb[0].mxu0
    %v6204 = vadd.f32 0.0, %v6203
    %v6205 = vpop.f32.mrb[0].mxu0
    %v6206 = vadd.f32 0.0, %v6205
    %6207 = vdwg.mxu0
    %v6210 = vrot.slane %v6064, 7
    %v6211 = vsel %vm363, %v6210, %v6063
    %6213 = vmatprep.subr.mxu0 %v6066
    %6214 = vmatpush1.msra.mxu0 %v6065
    %6215 = vmatprep.subr.mxu0 %v6068
    %6216 = vmatpush1.msra.mxu0 %v6067
    %6217 = vmatprep.subr.mxu0 %v6070
    %6218 = vmatpush1.msra.mxu0 %v6069
    %6219 = vmatprep.subr.mxu0 %v6072
    %6220 = vmatpush1.msra.mxu0 %v6071
    %6221 = vmatprep.subr.mxu0 %v6074
    %6222 = vmatpush1.msra.mxu0 %v6073
    %6223 = vmatprep.subr.mxu0 %v6076
    %6224 = vmatpush1.msra.mxu0 %v6075
    %6225 = vmatprep.subr.mxu0 %v6078
    %6226 = vmatpush1.msra.mxu0 %v6077
    %6227 = vmatprep.subr.mxu0 %v6080
    %6228 = vmatpush1.msra.mxu0 %v6079
    %6229 = vmatprep.subr.mxu0 %v6082
    %6230 = vmatpush1.msra.mxu0 %v6081
    %6231 = vmatprep.subr.mxu0 %v6084
    %6232 = vmatpush1.msra.mxu0 %v6083
    %6233 = vmatprep.subr.mxu0 %v6086
    %6234 = vmatpush1.msra.mxu0 %v6085
    %6235 = vmatprep.subr.mxu0 %v6088
    %6236 = vmatpush1.msra.mxu0 %v6087
    %6237 = vmatprep.subr.mxu0 %v6090
    %6238 = vmatpush1.msra.mxu0 %v6089
    %6239 = vmatprep.subr.mxu0 %v6092
    %6240 = vmatpush1.msra.mxu0 %v6091
    %6241 = vmatprep.subr.mxu0 %v6094
    %6242 = vmatpush1.msra.mxu0 %v6093
    %6243 = vmatprep.subr.mxu0 %v6096
    %6244 = vmatpush1.msra.mxu0 %v6095
    %6245 = vmatprep.subr.mxu0 0.0
    %6246 = vmatpush1.msra.mxu0 0.0
    %6247 = vmatprep.subr.mxu0 0.0
    %6248 = vmatpush1.msra.mxu0 0.0
    %6249 = vmatprep.subr.mxu0 0.0
    %6250 = vmatpush1.msra.mxu0 0.0
    %6251 = vmatprep.subr.mxu0 0.0
    %6252 = vmatpush1.msra.mxu0 0.0
    %6253 = vmatprep.subr.mxu0 0.0
    %6254 = vmatpush1.msra.mxu0 0.0
    %6255 = vmatprep.subr.mxu0 0.0
    %6256 = vmatpush1.msra.mxu0 0.0
    %6257 = vmatprep.subr.mxu0 0.0
    %6258 = vmatpush1.msra.mxu0 0.0
    %6259 = vmatprep.subr.mxu0 0.0
    %6260 = vmatpush1.msra.mxu0 0.0
    %6261 = vmatprep.subr.mxu0 0.0
    %6262 = vmatpush1.msra.mxu0 0.0
    %6263 = vmatprep.subr.mxu0 0.0
    %6264 = vmatpush1.msra.mxu0 0.0
    %6265 = vmatprep.subr.mxu0 0.0
    %6266 = vmatpush1.msra.mxu0 0.0
    %6267 = vmatprep.subr.mxu0 0.0
    %6268 = vmatpush1.msra.mxu0 0.0
    %6269 = vmatprep.subr.mxu0 0.0
    %6270 = vmatpush1.msra.mxu0 0.0
    %6271 = vmatprep.subr.mxu0 0.0
    %6272 = vmatpush1.msra.mxu0 0.0
    %6273 = vmatprep.subr.mxu0 0.0
    %6274 = vmatpush1.msra.mxu0 0.0
    %6275 = vmatprep.subr.mxu0 0.0
    %6276 = vmatpush1.msra.mxu0 0.0
    %6277 = vmatprep.mubr.f32.mxu0 0.0
    %6278 = vmatmul.mubr.f32.gmra.mrb[0].mxu0 %v6211
    %v6279 = vpop.f32.mrb[0].mxu0
    %v6280 = vadd.f32 %v6204, %v6279
    %v6281 = vpop.f32.mrb[0].mxu0
    %v6282 = vadd.f32 %v6206, %v6281
    %6283 = vdwg.mxu0
    %v6284 = vld [vmem:[#allocation3 + $0x2] sm:$0x1]
    %v6285 = vld [vmem:[#allocation3 + $0x12] sm:$0x1]
    %s6286 = scalar_lea.vmem %s5, 512
    %v6287 = vld [vmem:[%s6286] sm:$0xff]
    %v6288 = vld [vmem:[%s6286 + $0x8] sm:$0xff]
    %v6289 = vld [vmem:[%s6286 + $0x10] sm:$0xff]
    %v6290 = vld [vmem:[%s6286 + $0x18] sm:$0xff]
    %v6291 = vld [vmem:[%s6286 + $0x20] sm:$0xff]
    %v6292 = vld [vmem:[%s6286 + $0x28] sm:$0xff]
    %v6293 = vld [vmem:[%s6286 + $0x30] sm:$0xff]
    %v6294 = vld [vmem:[%s6286 + $0x38] sm:$0xff]
    %v6295 = vld [vmem:[%s6286 + $0x40] sm:$0xff]
    %v6296 = vld [vmem:[%s6286 + $0x48] sm:$0xff]
    %v6297 = vld [vmem:[%s6286 + $0x50] sm:$0xff]
    %v6298 = vld [vmem:[%s6286 + $0x58] sm:$0xff]
    %v6299 = vld [vmem:[%s6286 + $0x60] sm:$0xff]
    %v6300 = vld [vmem:[%s6286 + $0x68] sm:$0xff]
    %v6301 = vld [vmem:[%s6286 + $0x70] sm:$0xff]
    %v6302 = vld [vmem:[%s6286 + $0x78] sm:$0xff]
    %v6303 = vld [vmem:[%s6286 + $0x80] sm:$0xff]
    %v6304 = vld [vmem:[%s6286 + $0x88] sm:$0xff]
    %v6305 = vld [vmem:[%s6286 + $0x90] sm:$0xff]
    %v6306 = vld [vmem:[%s6286 + $0x98] sm:$0xff]
    %v6307 = vld [vmem:[%s6286 + $0xa0] sm:$0xff]
    %v6308 = vld [vmem:[%s6286 + $0xa8] sm:$0xff]
    %v6309 = vld [vmem:[%s6286 + $0xb0] sm:$0xff]
    %v6310 = vld [vmem:[%s6286 + $0xb8] sm:$0xff]
    %v6311 = vld [vmem:[%s6286 + $0xc0] sm:$0xff]
    %v6312 = vld [vmem:[%s6286 + $0xc8] sm:$0xff]
    %v6313 = vld [vmem:[%s6286 + $0xd0] sm:$0xff]
    %v6314 = vld [vmem:[%s6286 + $0xd8] sm:$0xff]
    %v6315 = vld [vmem:[%s6286 + $0xe0] sm:$0xff]
    %v6316 = vld [vmem:[%s6286 + $0xe8] sm:$0xff]
    %v6317 = vld [vmem:[%s6286 + $0xf0] sm:$0xff]
    %v6318 = vld [vmem:[%s6286 + $0xf8] sm:$0xff]
    %v6321 = vrot.slane %v6285, 7
    %v6322 = vsel %vm363, %v6321, %v6284
    %6324 = vmatprep.subr.mxu0 %v6288
    %6325 = vmatpush1.msra.mxu0 %v6287
    %6326 = vmatprep.subr.mxu0 %v6290
    %6327 = vmatpush1.msra.mxu0 %v6289
    %6328 = vmatprep.subr.mxu0 %v6292
    %6329 = vmatpush1.msra.mxu0 %v6291
    %6330 = vmatprep.subr.mxu0 %v6294
    %6331 = vmatpush1.msra.mxu0 %v6293
    %6332 = vmatprep.subr.mxu0 %v6296
    %6333 = vmatpush1.msra.mxu0 %v6295
    %6334 = vmatprep.subr.mxu0 %v6298
    %6335 = vmatpush1.msra.mxu0 %v6297
    %6336 = vmatprep.subr.mxu0 %v6300
    %6337 = vmatpush1.msra.mxu0 %v6299
    %6338 = vmatprep.subr.mxu0 %v6302
    %6339 = vmatpush1.msra.mxu0 %v6301
    %6340 = vmatprep.subr.mxu0 %v6304
    %6341 = vmatpush1.msra.mxu0 %v6303
    %6342 = vmatprep.subr.mxu0 %v6306
    %6343 = vmatpush1.msra.mxu0 %v6305
    %6344 = vmatprep.subr.mxu0 %v6308
    %6345 = vmatpush1.msra.mxu0 %v6307
    %6346 = vmatprep.subr.mxu0 %v6310
    %6347 = vmatpush1.msra.mxu0 %v6309
    %6348 = vmatprep.subr.mxu0 %v6312
    %6349 = vmatpush1.msra.mxu0 %v6311
    %6350 = vmatprep.subr.mxu0 %v6314
    %6351 = vmatpush1.msra.mxu0 %v6313
    %6352 = vmatprep.subr.mxu0 %v6316
    %6353 = vmatpush1.msra.mxu0 %v6315
    %6354 = vmatprep.subr.mxu0 %v6318
    %6355 = vmatpush1.msra.mxu0 %v6317
    %6356 = vmatprep.subr.mxu0 0.0
    %6357 = vmatpush1.msra.mxu0 0.0
    %6358 = vmatprep.subr.mxu0 0.0
    %6359 = vmatpush1.msra.mxu0 0.0
    %6360 = vmatprep.subr.mxu0 0.0
    %6361 = vmatpush1.msra.mxu0 0.0
    %6362 = vmatprep.subr.mxu0 0.0
    %6363 = vmatpush1.msra.mxu0 0.0
    %6364 = vmatprep.subr.mxu0 0.0
    %6365 = vmatpush1.msra.mxu0 0.0
    %6366 = vmatprep.subr.mxu0 0.0
    %6367 = vmatpush1.msra.mxu0 0.0
    %6368 = vmatprep.subr.mxu0 0.0
    %6369 = vmatpush1.msra.mxu0 0.0
    %6370 = vmatprep.subr.mxu0 0.0
    %6371 = vmatpush1.msra.mxu0 0.0
    %6372 = vmatprep.subr.mxu0 0.0
    %6373 = vmatpush1.msra.mxu0 0.0
    %6374 = vmatprep.subr.mxu0 0.0
    %6375 = vmatpush1.msra.mxu0 0.0
    %6376 = vmatprep.subr.mxu0 0.0
    %6377 = vmatpush1.msra.mxu0 0.0
    %6378 = vmatprep.subr.mxu0 0.0
    %6379 = vmatpush1.msra.mxu0 0.0
    %6380 = vmatprep.subr.mxu0 0.0
    %6381 = vmatpush1.msra.mxu0 0.0
    %6382 = vmatprep.subr.mxu0 0.0
    %6383 = vmatpush1.msra.mxu0 0.0
    %6384 = vmatprep.subr.mxu0 0.0
    %6385 = vmatpush1.msra.mxu0 0.0
    %6386 = vmatprep.subr.mxu0 0.0
    %6387 = vmatpush1.msra.mxu0 0.0
    %6388 = vmatprep.mubr.f32.mxu0 0.0
    %6389 = vmatmul.mubr.f32.gmra.mrb[0].mxu0 %v6322
    %v6390 = vpop.f32.mrb[0].mxu0
    %v6391 = vadd.f32 0.0, %v6390
    %v6392 = vpop.f32.mrb[0].mxu0
    %v6393 = vadd.f32 0.0, %v6392
    %6394 = vdwg.mxu0
    %v6395 = vadd.f32 %v6280, %v6391
    %v6396 = vadd.f32 %v6282, %v6393
    %v6397 = vld [vmem:[#allocation3 + $0x3] sm:$0x1]
    %v6398 = vld [vmem:[#allocation3 + $0x13] sm:$0x1]
    %s6399 = scalar_lea.vmem %s5, 768
    %v6400 = vld [vmem:[%s6399] sm:$0xff]
    %v6401 = vld [vmem:[%s6399 + $0x8] sm:$0xff]
    %v6402 = vld [vmem:[%s6399 + $0x10] sm:$0xff]
    %v6403 = vld [vmem:[%s6399 + $0x18] sm:$0xff]
    %v6404 = vld [vmem:[%s6399 + $0x20] sm:$0xff]
    %v6405 = vld [vmem:[%s6399 + $0x28] sm:$0xff]
    %v6406 = vld [vmem:[%s6399 + $0x30] sm:$0xff]
    %v6407 = vld [vmem:[%s6399 + $0x38] sm:$0xff]
    %v6408 = vld [vmem:[%s6399 + $0x40] sm:$0xff]
    %v6409 = vld [vmem:[%s6399 + $0x48] sm:$0xff]
    %v6410 = vld [vmem:[%s6399 + $0x50] sm:$0xff]
    %v6411 = vld [vmem:[%s6399 + $0x58] sm:$0xff]
    %v6412 = vld [vmem:[%s6399 + $0x60] sm:$0xff]
    %v6413 = vld [vmem:[%s6399 + $0x68] sm:$0xff]
    %v6414 = vld [vmem:[%s6399 + $0x70] sm:$0xff]
    %v6415 = vld [vmem:[%s6399 + $0x78] sm:$0xff]
    %v6416 = vld [vmem:[%s6399 + $0x80] sm:$0xff]
    %v6417 = vld [vmem:[%s6399 + $0x88] sm:$0xff]
    %v6418 = vld [vmem:[%s6399 + $0x90] sm:$0xff]
    %v6419 = vld [vmem:[%s6399 + $0x98] sm:$0xff]
    %v6420 = vld [vmem:[%s6399 + $0xa0] sm:$0xff]
    %v6421 = vld [vmem:[%s6399 + $0xa8] sm:$0xff]
    %v6422 = vld [vmem:[%s6399 + $0xb0] sm:$0xff]
    %v6423 = vld [vmem:[%s6399 + $0xb8] sm:$0xff]
    %v6424 = vld [vmem:[%s6399 + $0xc0] sm:$0xff]
    %v6425 = vld [vmem:[%s6399 + $0xc8] sm:$0xff]
    %v6426 = vld [vmem:[%s6399 + $0xd0] sm:$0xff]
    %v6427 = vld [vmem:[%s6399 + $0xd8] sm:$0xff]
    %v6428 = vld [vmem:[%s6399 + $0xe0] sm:$0xff]
    %v6429 = vld [vmem:[%s6399 + $0xe8] sm:$0xff]
    %v6430 = vld [vmem:[%s6399 + $0xf0] sm:$0xff]
    %v6431 = vld [vmem:[%s6399 + $0xf8] sm:$0xff]
    %v6434 = vrot.slane %v6398, 7
    %v6435 = vsel %vm363, %v6434, %v6397
    %6437 = vmatprep.subr.mxu0 %v6401
    %6438 = vmatpush1.msra.mxu0 %v6400
    %6439 = vmatprep.subr.mxu0 %v6403
    %6440 = vmatpush1.msra.mxu0 %v6402
    %6441 = vmatprep.subr.mxu0 %v6405
    %6442 = vmatpush1.msra.mxu0 %v6404
    %6443 = vmatprep.subr.mxu0 %v6407
    %6444 = vmatpush1.msra.mxu0 %v6406
    %6445 = vmatprep.subr.mxu0 %v6409
    %6446 = vmatpush1.msra.mxu0 %v6408
    %6447 = vmatprep.subr.mxu0 %v6411
    %6448 = vmatpush1.msra.mxu0 %v6410
    %6449 = vmatprep.subr.mxu0 %v6413
    %6450 = vmatpush1.msra.mxu0 %v6412
    %6451 = vmatprep.subr.mxu0 %v6415
    %6452 = vmatpush1.msra.mxu0 %v6414
    %6453 = vmatprep.subr.mxu0 %v6417
    %6454 = vmatpush1.msra.mxu0 %v6416
    %6455 = vmatprep.subr.mxu0 %v6419
    %6456 = vmatpush1.msra.mxu0 %v6418
    %6457 = vmatprep.subr.mxu0 %v6421
    %6458 = vmatpush1.msra.mxu0 %v6420
    %6459 = vmatprep.subr.mxu0 %v6423
    %6460 = vmatpush1.msra.mxu0 %v6422
    %6461 = vmatprep.subr.mxu0 %v6425
    %6462 = vmatpush1.msra.mxu0 %v6424
    %6463 = vmatprep.subr.mxu0 %v6427
    %6464 = vmatpush1.msra.mxu0 %v6426
    %6465 = vmatprep.subr.mxu0 %v6429
    %6466 = vmatpush1.msra.mxu0 %v6428
    %6467 = vmatprep.subr.mxu0 %v6431
    %6468 = vmatpush1.msra.mxu0 %v6430
    %6469 = vmatprep.subr.mxu0 0.0
    %6470 = vmatpush1.msra.mxu0 0.0
    %6471 = vmatprep.subr.mxu0 0.0
    %6472 = vmatpush1.msra.mxu0 0.0
    %6473 = vmatprep.subr.mxu0 0.0
    %6474 = vmatpush1.msra.mxu0 0.0
    %6475 = vmatprep.subr.mxu0 0.0
    %6476 = vmatpush1.msra.mxu0 0.0
    %6477 = vmatprep.subr.mxu0 0.0
    %6478 = vmatpush1.msra.mxu0 0.0
    %6479 = vmatprep.subr.mxu0 0.0
    %6480 = vmatpush1.msra.mxu0 0.0
    %6481 = vmatprep.subr.mxu0 0.0
    %6482 = vmatpush1.msra.mxu0 0.0
    %6483 = vmatprep.subr.mxu0 0.0
    %6484 = vmatpush1.msra.mxu0 0.0
    %6485 = vmatprep.subr.mxu0 0.0
    %6486 = vmatpush1.msra.mxu0 0.0
    %6487 = vmatprep.subr.mxu0 0.0
    %6488 = vmatpush1.msra.mxu0 0.0
    %6489 = vmatprep.subr.mxu0 0.0
    %6490 = vmatpush1.msra.mxu0 0.0
    %6491 = vmatprep.subr.mxu0 0.0
    %6492 = vmatpush1.msra.mxu0 0.0
    %6493 = vmatprep.subr.mxu0 0.0
    %6494 = vmatpush1.msra.mxu0 0.0
    %6495 = vmatprep.subr.mxu0 0.0
    %6496 = vmatpush1.msra.mxu0 0.0
    %6497 = vmatprep.subr.mxu0 0.0
    %6498 = vmatpush1.msra.mxu0 0.0
    %6499 = vmatprep.subr.mxu0 0.0
    %6500 = vmatpush1.msra.mxu0 0.0
    %6501 = vmatprep.mubr.f32.mxu0 0.0
    %6502 = vmatmul.mubr.f32.gmra.mrb[0].mxu0 %v6435
    %v6503 = vpop.f32.mrb[0].mxu0
    %v6504 = vadd.f32 0.0, %v6503
    %v6505 = vpop.f32.mrb[0].mxu0
    %v6506 = vadd.f32 0.0, %v6505
    %6507 = vdwg.mxu0
    %v6508 = vadd.f32 %v6395, %v6504
    %v6509 = vadd.f32 %v6396, %v6506
    %v6510 = vld [vmem:[%s1780] sm:$0x1]
    %v6511 = vld [vmem:[%s1780 + $0x10] sm:$0x1]
    %s6512 = scalar_lea.vmem %s5, 1024
    %v6513 = vld [vmem:[%s6512] sm:$0xff]
    %v6514 = vld [vmem:[%s6512 + $0x8] sm:$0xff]
    %v6515 = vld [vmem:[%s6512 + $0x10] sm:$0xff]
    %v6516 = vld [vmem:[%s6512 + $0x18] sm:$0xff]
    %v6517 = vld [vmem:[%s6512 + $0x20] sm:$0xff]
    %v6518 = vld [vmem:[%s6512 + $0x28] sm:$0xff]
    %v6519 = vld [vmem:[%s6512 + $0x30] sm:$0xff]
    %v6520 = vld [vmem:[%s6512 + $0x38] sm:$0xff]
    %v6521 = vld [vmem:[%s6512 + $0x40] sm:$0xff]
    %v6522 = vld [vmem:[%s6512 + $0x48] sm:$0xff]
    %v6523 = vld [vmem:[%s6512 + $0x50] sm:$0xff]
    %v6524 = vld [vmem:[%s6512 + $0x58] sm:$0xff]
    %v6525 = vld [vmem:[%s6512 + $0x60] sm:$0xff]
    %v6526 = vld [vmem:[%s6512 + $0x68] sm:$0xff]
    %v6527 = vld [vmem:[%s6512 + $0x70] sm:$0xff]
    %v6528 = vld [vmem:[%s6512 + $0x78] sm:$0xff]
    %v6529 = vld [vmem:[%s6512 + $0x80] sm:$0xff]
    %v6530 = vld [vmem:[%s6512 + $0x88] sm:$0xff]
    %v6531 = vld [vmem:[%s6512 + $0x90] sm:$0xff]
    %v6532 = vld [vmem:[%s6512 + $0x98] sm:$0xff]
    %v6533 = vld [vmem:[%s6512 + $0xa0] sm:$0xff]
    %v6534 = vld [vmem:[%s6512 + $0xa8] sm:$0xff]
    %v6535 = vld [vmem:[%s6512 + $0xb0] sm:$0xff]
    %v6536 = vld [vmem:[%s6512 + $0xb8] sm:$0xff]
    %v6537 = vld [vmem:[%s6512 + $0xc0] sm:$0xff]
    %v6538 = vld [vmem:[%s6512 + $0xc8] sm:$0xff]
    %v6539 = vld [vmem:[%s6512 + $0xd0] sm:$0xff]
    %v6540 = vld [vmem:[%s6512 + $0xd8] sm:$0xff]
    %v6541 = vld [vmem:[%s6512 + $0xe0] sm:$0xff]
    %v6542 = vld [vmem:[%s6512 + $0xe8] sm:$0xff]
    %v6543 = vld [vmem:[%s6512 + $0xf0] sm:$0xff]
    %v6544 = vld [vmem:[%s6512 + $0xf8] sm:$0xff]
    %v6547 = vrot.slane %v6511, 7
    %v6548 = vsel %vm363, %v6547, %v6510
    %6550 = vmatprep.subr.mxu0 %v6514
    %6551 = vmatpush1.msra.mxu0 %v6513
    %6552 = vmatprep.subr.mxu0 %v6516
    %6553 = vmatpush1.msra.mxu0 %v6515
    %6554 = vmatprep.subr.mxu0 %v6518
    %6555 = vmatpush1.msra.mxu0 %v6517
    %6556 = vmatprep.subr.mxu0 %v6520
    %6557 = vmatpush1.msra.mxu0 %v6519
    %6558 = vmatprep.subr.mxu0 %v6522
    %6559 = vmatpush1.msra.mxu0 %v6521
    %6560 = vmatprep.subr.mxu0 %v6524
    %6561 = vmatpush1.msra.mxu0 %v6523
    %6562 = vmatprep.subr.mxu0 %v6526
    %6563 = vmatpush1.msra.mxu0 %v6525
    %6564 = vmatprep.subr.mxu0 %v6528
    %6565 = vmatpush1.msra.mxu0 %v6527
    %6566 = vmatprep.subr.mxu0 %v6530
    %6567 = vmatpush1.msra.mxu0 %v6529
    %6568 = vmatprep.subr.mxu0 %v6532
    %6569 = vmatpush1.msra.mxu0 %v6531
    %6570 = vmatprep.subr.mxu0 %v6534
    %6571 = vmatpush1.msra.mxu0 %v6533
    %6572 = vmatprep.subr.mxu0 %v6536
    %6573 = vmatpush1.msra.mxu0 %v6535
    %6574 = vmatprep.subr.mxu0 %v6538
    %6575 = vmatpush1.msra.mxu0 %v6537
    %6576 = vmatprep.subr.mxu0 %v6540
    %6577 = vmatpush1.msra.mxu0 %v6539
    %6578 = vmatprep.subr.mxu0 %v6542
    %6579 = vmatpush1.msra.mxu0 %v6541
    %6580 = vmatprep.subr.mxu0 %v6544
    %6581 = vmatpush1.msra.mxu0 %v6543
    %6582 = vmatprep.subr.mxu0 0.0
    %6583 = vmatpush1.msra.mxu0 0.0
    %6584 = vmatprep.subr.mxu0 0.0
    %6585 = vmatpush1.msra.mxu0 0.0
    %6586 = vmatprep.subr.mxu0 0.0
    %6587 = vmatpush1.msra.mxu0 0.0
    %6588 = vmatprep.subr.mxu0 0.0
    %6589 = vmatpush1.msra.mxu0 0.0
    %6590 = vmatprep.subr.mxu0 0.0
    %6591 = vmatpush1.msra.mxu0 0.0
    %6592 = vmatprep.subr.mxu0 0.0
    %6593 = vmatpush1.msra.mxu0 0.0
    %6594 = vmatprep.subr.mxu0 0.0
    %6595 = vmatpush1.msra.mxu0 0.0
    %6596 = vmatprep.subr.mxu0 0.0
    %6597 = vmatpush1.msra.mxu0 0.0
    %6598 = vmatprep.subr.mxu0 0.0
    %6599 = vmatpush1.msra.mxu0 0.0
    %6600 = vmatprep.subr.mxu0 0.0
    %6601 = vmatpush1.msra.mxu0 0.0
    %6602 = vmatprep.subr.mxu0 0.0
    %6603 = vmatpush1.msra.mxu0 0.0
    %6604 = vmatprep.subr.mxu0 0.0
    %6605 = vmatpush1.msra.mxu0 0.0
    %6606 = vmatprep.subr.mxu0 0.0
    %6607 = vmatpush1.msra.mxu0 0.0
    %6608 = vmatprep.subr.mxu0 0.0
    %6609 = vmatpush1.msra.mxu0 0.0
    %6610 = vmatprep.subr.mxu0 0.0
    %6611 = vmatpush1.msra.mxu0 0.0
    %6612 = vmatprep.subr.mxu0 0.0
    %6613 = vmatpush1.msra.mxu0 0.0
    %6614 = vmatprep.mubr.f32.mxu0 0.0
    %6615 = vmatmul.mubr.f32.gmra.mrb[0].mxu0 %v6548
    %v6616 = vpop.f32.mrb[0].mxu0
    %v6617 = vadd.f32 0.0, %v6616
    %v6618 = vpop.f32.mrb[0].mxu0
    %v6619 = vadd.f32 0.0, %v6618
    %6620 = vdwg.mxu0
    %v6621 = vadd.f32 %v6508, %v6617
    %v6622 = vadd.f32 %v6509, %v6619
    %v6623 = vld [vmem:[%s1780 + $0x1] sm:$0x1]
    %v6624 = vld [vmem:[%s1780 + $0x11] sm:$0x1]
    %s6625 = scalar_lea.vmem %s5, 1280
    %v6626 = vld [vmem:[%s6625] sm:$0xff]
    %v6627 = vld [vmem:[%s6625 + $0x8] sm:$0xff]
    %v6628 = vld [vmem:[%s6625 + $0x10] sm:$0xff]
    %v6629 = vld [vmem:[%s6625 + $0x18] sm:$0xff]
    %v6630 = vld [vmem:[%s6625 + $0x20] sm:$0xff]
    %v6631 = vld [vmem:[%s6625 + $0x28] sm:$0xff]
    %v6632 = vld [vmem:[%s6625 + $0x30] sm:$0xff]
    %v6633 = vld [vmem:[%s6625 + $0x38] sm:$0xff]
    %v6634 = vld [vmem:[%s6625 + $0x40] sm:$0xff]
    %v6635 = vld [vmem:[%s6625 + $0x48] sm:$0xff]
    %v6636 = vld [vmem:[%s6625 + $0x50] sm:$0xff]
    %v6637 = vld [vmem:[%s6625 + $0x58] sm:$0xff]
    %v6638 = vld [vmem:[%s6625 + $0x60] sm:$0xff]
    %v6639 = vld [vmem:[%s6625 + $0x68] sm:$0xff]
    %v6640 = vld [vmem:[%s6625 + $0x70] sm:$0xff]
    %v6641 = vld [vmem:[%s6625 + $0x78] sm:$0xff]
    %v6642 = vld [vmem:[%s6625 + $0x80] sm:$0xff]
    %v6643 = vld [vmem:[%s6625 + $0x88] sm:$0xff]
    %v6644 = vld [vmem:[%s6625 + $0x90] sm:$0xff]
    %v6645 = vld [vmem:[%s6625 + $0x98] sm:$0xff]
    %v6646 = vld [vmem:[%s6625 + $0xa0] sm:$0xff]
    %v6647 = vld [vmem:[%s6625 + $0xa8] sm:$0xff]
    %v6648 = vld [vmem:[%s6625 + $0xb0] sm:$0xff]
    %v6649 = vld [vmem:[%s6625 + $0xb8] sm:$0xff]
    %v6650 = vld [vmem:[%s6625 + $0xc0] sm:$0xff]
    %v6651 = vld [vmem:[%s6625 + $0xc8] sm:$0xff]
    %v6652 = vld [vmem:[%s6625 + $0xd0] sm:$0xff]
    %v6653 = vld [vmem:[%s6625 + $0xd8] sm:$0xff]
    %v6654 = vld [vmem:[%s6625 + $0xe0] sm:$0xff]
    %v6655 = vld [vmem:[%s6625 + $0xe8] sm:$0xff]
    %v6656 = vld [vmem:[%s6625 + $0xf0] sm:$0xff]
    %v6657 = vld [vmem:[%s6625 + $0xf8] sm:$0xff]
    %v6660 = vrot.slane %v6624, 7
    %v6661 = vsel %vm363, %v6660, %v6623
    %6663 = vmatprep.subr.mxu0 %v6627
    %6664 = vmatpush1.msra.mxu0 %v6626
    %6665 = vmatprep.subr.mxu0 %v6629
    %6666 = vmatpush1.msra.mxu0 %v6628
    %6667 = vmatprep.subr.mxu0 %v6631
    %6668 = vmatpush1.msra.mxu0 %v6630
    %6669 = vmatprep.subr.mxu0 %v6633
    %6670 = vmatpush1.msra.mxu0 %v6632
    %6671 = vmatprep.subr.mxu0 %v6635
    %6672 = vmatpush1.msra.mxu0 %v6634
    %6673 = vmatprep.subr.mxu0 %v6637
    %6674 = vmatpush1.msra.mxu0 %v6636
    %6675 = vmatprep.subr.mxu0 %v6639
    %6676 = vmatpush1.msra.mxu0 %v6638
    %6677 = vmatprep.subr.mxu0 %v6641
    %6678 = vmatpush1.msra.mxu0 %v6640
    %6679 = vmatprep.subr.mxu0 %v6643
    %6680 = vmatpush1.msra.mxu0 %v6642
    %6681 = vmatprep.subr.mxu0 %v6645
    %6682 = vmatpush1.msra.mxu0 %v6644
    %6683 = vmatprep.subr.mxu0 %v6647
    %6684 = vmatpush1.msra.mxu0 %v6646
    %6685 = vmatprep.subr.mxu0 %v6649
    %6686 = vmatpush1.msra.mxu0 %v6648
    %6687 = vmatprep.subr.mxu0 %v6651
    %6688 = vmatpush1.msra.mxu0 %v6650
    %6689 = vmatprep.subr.mxu0 %v6653
    %6690 = vmatpush1.msra.mxu0 %v6652
    %6691 = vmatprep.subr.mxu0 %v6655
    %6692 = vmatpush1.msra.mxu0 %v6654
    %6693 = vmatprep.subr.mxu0 %v6657
    %6694 = vmatpush1.msra.mxu0 %v6656
    %6695 = vmatprep.subr.mxu0 0.0
    %6696 = vmatpush1.msra.mxu0 0.0
    %6697 = vmatprep.subr.mxu0 0.0
    %6698 = vmatpush1.msra.mxu0 0.0
    %6699 = vmatprep.subr.mxu0 0.0
    %6700 = vmatpush1.msra.mxu0 0.0
    %6701 = vmatprep.subr.mxu0 0.0
    %6702 = vmatpush1.msra.mxu0 0.0
    %6703 = vmatprep.subr.mxu0 0.0
    %6704 = vmatpush1.msra.mxu0 0.0
    %6705 = vmatprep.subr.mxu0 0.0
    %6706 = vmatpush1.msra.mxu0 0.0
    %6707 = vmatprep.subr.mxu0 0.0
    %6708 = vmatpush1.msra.mxu0 0.0
    %6709 = vmatprep.subr.mxu0 0.0
    %6710 = vmatpush1.msra.mxu0 0.0
    %6711 = vmatprep.subr.mxu0 0.0
    %6712 = vmatpush1.msra.mxu0 0.0
    %6713 = vmatprep.subr.mxu0 0.0
    %6714 = vmatpush1.msra.mxu0 0.0
    %6715 = vmatprep.subr.mxu0 0.0
    %6716 = vmatpush1.msra.mxu0 0.0
    %6717 = vmatprep.subr.mxu0 0.0
    %6718 = vmatpush1.msra.mxu0 0.0
    %6719 = vmatprep.subr.mxu0 0.0
    %6720 = vmatpush1.msra.mxu0 0.0
    %6721 = vmatprep.subr.mxu0 0.0
    %6722 = vmatpush1.msra.mxu0 0.0
    %6723 = vmatprep.subr.mxu0 0.0
    %6724 = vmatpush1.msra.mxu0 0.0
    %6725 = vmatprep.subr.mxu0 0.0
    %6726 = vmatpush1.msra.mxu0 0.0
    %6727 = vmatprep.mubr.f32.mxu0 0.0
    %6728 = vmatmul.mubr.f32.gmra.mrb[0].mxu0 %v6661
    %v6729 = vpop.f32.mrb[0].mxu0
    %v6730 = vadd.f32 0.0, %v6729
    %v6731 = vpop.f32.mrb[0].mxu0
    %v6732 = vadd.f32 0.0, %v6731
    %6733 = vdwg.mxu0
    %v6734 = vadd.f32 %v6621, %v6730
    %v6735 = vadd.f32 %v6622, %v6732
    %v6736 = vld [vmem:[%s1780 + $0x2] sm:$0x1]
    %v6737 = vld [vmem:[%s1780 + $0x12] sm:$0x1]
    %s6738 = scalar_lea.vmem %s5, 1536
    %v6739 = vld [vmem:[%s6738] sm:$0xff]
    %v6740 = vld [vmem:[%s6738 + $0x8] sm:$0xff]
    %v6741 = vld [vmem:[%s6738 + $0x10] sm:$0xff]
    %v6742 = vld [vmem:[%s6738 + $0x18] sm:$0xff]
    %v6743 = vld [vmem:[%s6738 + $0x20] sm:$0xff]
    %v6744 = vld [vmem:[%s6738 + $0x28] sm:$0xff]
    %v6745 = vld [vmem:[%s6738 + $0x30] sm:$0xff]
    %v6746 = vld [vmem:[%s6738 + $0x38] sm:$0xff]
    %v6747 = vld [vmem:[%s6738 + $0x40] sm:$0xff]
    %v6748 = vld [vmem:[%s6738 + $0x48] sm:$0xff]
    %v6749 = vld [vmem:[%s6738 + $0x50] sm:$0xff]
    %v6750 = vld [vmem:[%s6738 + $0x58] sm:$0xff]
    %v6751 = vld [vmem:[%s6738 + $0x60] sm:$0xff]
    %v6752 = vld [vmem:[%s6738 + $0x68] sm:$0xff]
    %v6753 = vld [vmem:[%s6738 + $0x70] sm:$0xff]
    %v6754 = vld [vmem:[%s6738 + $0x78] sm:$0xff]
    %v6755 = vld [vmem:[%s6738 + $0x80] sm:$0xff]
    %v6756 = vld [vmem:[%s6738 + $0x88] sm:$0xff]
    %v6757 = vld [vmem:[%s6738 + $0x90] sm:$0xff]
    %v6758 = vld [vmem:[%s6738 + $0x98] sm:$0xff]
    %v6759 = vld [vmem:[%s6738 + $0xa0] sm:$0xff]
    %v6760 = vld [vmem:[%s6738 + $0xa8] sm:$0xff]
    %v6761 = vld [vmem:[%s6738 + $0xb0] sm:$0xff]
    %v6762 = vld [vmem:[%s6738 + $0xb8] sm:$0xff]
    %v6763 = vld [vmem:[%s6738 + $0xc0] sm:$0xff]
    %v6764 = vld [vmem:[%s6738 + $0xc8] sm:$0xff]
    %v6765 = vld [vmem:[%s6738 + $0xd0] sm:$0xff]
    %v6766 = vld [vmem:[%s6738 + $0xd8] sm:$0xff]
    %v6767 = vld [vmem:[%s6738 + $0xe0] sm:$0xff]
    %v6768 = vld [vmem:[%s6738 + $0xe8] sm:$0xff]
    %v6769 = vld [vmem:[%s6738 + $0xf0] sm:$0xff]
    %v6770 = vld [vmem:[%s6738 + $0xf8] sm:$0xff]
    %v6773 = vrot.slane %v6737, 7
    %v6774 = vsel %vm363, %v6773, %v6736
    %6776 = vmatprep.subr.mxu0 %v6740
    %6777 = vmatpush1.msra.mxu0 %v6739
    %6778 = vmatprep.subr.mxu0 %v6742
    %6779 = vmatpush1.msra.mxu0 %v6741
    %6780 = vmatprep.subr.mxu0 %v6744
    %6781 = vmatpush1.msra.mxu0 %v6743
    %6782 = vmatprep.subr.mxu0 %v6746
    %6783 = vmatpush1.msra.mxu0 %v6745
    %6784 = vmatprep.subr.mxu0 %v6748
    %6785 = vmatpush1.msra.mxu0 %v6747
    %6786 = vmatprep.subr.mxu0 %v6750
    %6787 = vmatpush1.msra.mxu0 %v6749
    %6788 = vmatprep.subr.mxu0 %v6752
    %6789 = vmatpush1.msra.mxu0 %v6751
    %6790 = vmatprep.subr.mxu0 %v6754
    %6791 = vmatpush1.msra.mxu0 %v6753
    %6792 = vmatprep.subr.mxu0 %v6756
    %6793 = vmatpush1.msra.mxu0 %v6755
    %6794 = vmatprep.subr.mxu0 %v6758
    %6795 = vmatpush1.msra.mxu0 %v6757
    %6796 = vmatprep.subr.mxu0 %v6760
    %6797 = vmatpush1.msra.mxu0 %v6759
    %6798 = vmatprep.subr.mxu0 %v6762
    %6799 = vmatpush1.msra.mxu0 %v6761
    %6800 = vmatprep.subr.mxu0 %v6764
    %6801 = vmatpush1.msra.mxu0 %v6763
    %6802 = vmatprep.subr.mxu0 %v6766
    %6803 = vmatpush1.msra.mxu0 %v6765
    %6804 = vmatprep.subr.mxu0 %v6768
    %6805 = vmatpush1.msra.mxu0 %v6767
    %6806 = vmatprep.subr.mxu0 %v6770
    %6807 = vmatpush1.msra.mxu0 %v6769
    %6808 = vmatprep.subr.mxu0 0.0
    %6809 = vmatpush1.msra.mxu0 0.0
    %6810 = vmatprep.subr.mxu0 0.0
    %6811 = vmatpush1.msra.mxu0 0.0
    %6812 = vmatprep.subr.mxu0 0.0
    %6813 = vmatpush1.msra.mxu0 0.0
    %6814 = vmatprep.subr.mxu0 0.0
    %6815 = vmatpush1.msra.mxu0 0.0
    %6816 = vmatprep.subr.mxu0 0.0
    %6817 = vmatpush1.msra.mxu0 0.0
    %6818 = vmatprep.subr.mxu0 0.0
    %6819 = vmatpush1.msra.mxu0 0.0
    %6820 = vmatprep.subr.mxu0 0.0
    %6821 = vmatpush1.msra.mxu0 0.0
    %6822 = vmatprep.subr.mxu0 0.0
    %6823 = vmatpush1.msra.mxu0 0.0
    %6824 = vmatprep.subr.mxu0 0.0
    %6825 = vmatpush1.msra.mxu0 0.0
    %6826 = vmatprep.subr.mxu0 0.0
    %6827 = vmatpush1.msra.mxu0 0.0
    %6828 = vmatprep.subr.mxu0 0.0
    %6829 = vmatpush1.msra.mxu0 0.0
    %6830 = vmatprep.subr.mxu0 0.0
    %6831 = vmatpush1.msra.mxu0 0.0
    %6832 = vmatprep.subr.mxu0 0.0
    %6833 = vmatpush1.msra.mxu0 0.0
    %6834 = vmatprep.subr.mxu0 0.0
    %6835 = vmatpush1.msra.mxu0 0.0
    %6836 = vmatprep.subr.mxu0 0.0
    %6837 = vmatpush1.msra.mxu0 0.0
    %6838 = vmatprep.subr.mxu0 0.0
    %6839 = vmatpush1.msra.mxu0 0.0
    %6840 = vmatprep.mubr.f32.mxu0 0.0
    %6841 = vmatmul.mubr.f32.gmra.mrb[0].mxu0 %v6774
    %v6842 = vpop.f32.mrb[0].mxu0
    %v6843 = vadd.f32 0.0, %v6842
    %v6844 = vpop.f32.mrb[0].mxu0
    %v6845 = vadd.f32 0.0, %v6844
    %6846 = vdwg.mxu0
    %v6847 = vadd.f32 %v6734, %v6843
    %v6848 = vadd.f32 %v6735, %v6845
    %v6849 = vld [vmem:[%s1780 + $0x3] sm:$0x1]
    %v6850 = vld [vmem:[%s1780 + $0x13] sm:$0x1]
    %s6851 = scalar_lea.vmem %s5, 1792
    %v6852 = vld [vmem:[%s6851] sm:$0xff]
    %v6853 = vld [vmem:[%s6851 + $0x8] sm:$0xff]
    %v6854 = vld [vmem:[%s6851 + $0x10] sm:$0xff]
    %v6855 = vld [vmem:[%s6851 + $0x18] sm:$0xff]
    %v6856 = vld [vmem:[%s6851 + $0x20] sm:$0xff]
    %v6857 = vld [vmem:[%s6851 + $0x28] sm:$0xff]
    %v6858 = vld [vmem:[%s6851 + $0x30] sm:$0xff]
    %v6859 = vld [vmem:[%s6851 + $0x38] sm:$0xff]
    %v6860 = vld [vmem:[%s6851 + $0x40] sm:$0xff]
    %v6861 = vld [vmem:[%s6851 + $0x48] sm:$0xff]
    %v6862 = vld [vmem:[%s6851 + $0x50] sm:$0xff]
    %v6863 = vld [vmem:[%s6851 + $0x58] sm:$0xff]
    %v6864 = vld [vmem:[%s6851 + $0x60] sm:$0xff]
    %v6865 = vld [vmem:[%s6851 + $0x68] sm:$0xff]
    %v6866 = vld [vmem:[%s6851 + $0x70] sm:$0xff]
    %v6867 = vld [vmem:[%s6851 + $0x78] sm:$0xff]
    %v6868 = vld [vmem:[%s6851 + $0x80] sm:$0xff]
    %v6869 = vld [vmem:[%s6851 + $0x88] sm:$0xff]
    %v6870 = vld [vmem:[%s6851 + $0x90] sm:$0xff]
    %v6871 = vld [vmem:[%s6851 + $0x98] sm:$0xff]
    %v6872 = vld [vmem:[%s6851 + $0xa0] sm:$0xff]
    %v6873 = vld [vmem:[%s6851 + $0xa8] sm:$0xff]
    %v6874 = vld [vmem:[%s6851 + $0xb0] sm:$0xff]
    %v6875 = vld [vmem:[%s6851 + $0xb8] sm:$0xff]
    %v6876 = vld [vmem:[%s6851 + $0xc0] sm:$0xff]
    %v6877 = vld [vmem:[%s6851 + $0xc8] sm:$0xff]
    %v6878 = vld [vmem:[%s6851 + $0xd0] sm:$0xff]
    %v6879 = vld [vmem:[%s6851 + $0xd8] sm:$0xff]
    %v6880 = vld [vmem:[%s6851 + $0xe0] sm:$0xff]
    %v6881 = vld [vmem:[%s6851 + $0xe8] sm:$0xff]
    %v6882 = vld [vmem:[%s6851 + $0xf0] sm:$0xff]
    %v6883 = vld [vmem:[%s6851 + $0xf8] sm:$0xff]
    %v6886 = vrot.slane %v6850, 7
    %v6887 = vsel %vm363, %v6886, %v6849
    %6889 = vmatprep.subr.mxu0 %v6853
    %6890 = vmatpush1.msra.mxu0 %v6852
    %6891 = vmatprep.subr.mxu0 %v6855
    %6892 = vmatpush1.msra.mxu0 %v6854
    %6893 = vmatprep.subr.mxu0 %v6857
    %6894 = vmatpush1.msra.mxu0 %v6856
    %6895 = vmatprep.subr.mxu0 %v6859
    %6896 = vmatpush1.msra.mxu0 %v6858
    %6897 = vmatprep.subr.mxu0 %v6861
    %6898 = vmatpush1.msra.mxu0 %v6860
    %6899 = vmatprep.subr.mxu0 %v6863
    %6900 = vmatpush1.msra.mxu0 %v6862
    %6901 = vmatprep.subr.mxu0 %v6865
    %6902 = vmatpush1.msra.mxu0 %v6864
    %6903 = vmatprep.subr.mxu0 %v6867
    %6904 = vmatpush1.msra.mxu0 %v6866
    %6905 = vmatprep.subr.mxu0 %v6869
    %6906 = vmatpush1.msra.mxu0 %v6868
    %6907 = vmatprep.subr.mxu0 %v6871
    %6908 = vmatpush1.msra.mxu0 %v6870
    %6909 = vmatprep.subr.mxu0 %v6873
    %6910 = vmatpush1.msra.mxu0 %v6872
    %6911 = vmatprep.subr.mxu0 %v6875
    %6912 = vmatpush1.msra.mxu0 %v6874
    %6913 = vmatprep.subr.mxu0 %v6877
    %6914 = vmatpush1.msra.mxu0 %v6876
    %6915 = vmatprep.subr.mxu0 %v6879
    %6916 = vmatpush1.msra.mxu0 %v6878
    %6917 = vmatprep.subr.mxu0 %v6881
    %6918 = vmatpush1.msra.mxu0 %v6880
    %6919 = vmatprep.subr.mxu0 %v6883
    %6920 = vmatpush1.msra.mxu0 %v6882
    %6921 = vmatprep.subr.mxu0 0.0
    %6922 = vmatpush1.msra.mxu0 0.0
    %6923 = vmatprep.subr.mxu0 0.0
    %6924 = vmatpush1.msra.mxu0 0.0
    %6925 = vmatprep.subr.mxu0 0.0
    %6926 = vmatpush1.msra.mxu0 0.0
    %6927 = vmatprep.subr.mxu0 0.0
    %6928 = vmatpush1.msra.mxu0 0.0
    %6929 = vmatprep.subr.mxu0 0.0
    %6930 = vmatpush1.msra.mxu0 0.0
    %6931 = vmatprep.subr.mxu0 0.0
    %6932 = vmatpush1.msra.mxu0 0.0
    %6933 = vmatprep.subr.mxu0 0.0
    %6934 = vmatpush1.msra.mxu0 0.0
    %6935 = vmatprep.subr.mxu0 0.0
    %6936 = vmatpush1.msra.mxu0 0.0
    %6937 = vmatprep.subr.mxu0 0.0
    %6938 = vmatpush1.msra.mxu0 0.0
    %6939 = vmatprep.subr.mxu0 0.0
    %6940 = vmatpush1.msra.mxu0 0.0
    %6941 = vmatprep.subr.mxu0 0.0
    %6942 = vmatpush1.msra.mxu0 0.0
    %6943 = vmatprep.subr.mxu0 0.0
    %6944 = vmatpush1.msra.mxu0 0.0
    %6945 = vmatprep.subr.mxu0 0.0
    %6946 = vmatpush1.msra.mxu0 0.0
    %6947 = vmatprep.subr.mxu0 0.0
    %6948 = vmatpush1.msra.mxu0 0.0
    %6949 = vmatprep.subr.mxu0 0.0
    %6950 = vmatpush1.msra.mxu0 0.0
    %6951 = vmatprep.subr.mxu0 0.0
    %6952 = vmatpush1.msra.mxu0 0.0
    %6953 = vmatprep.mubr.f32.mxu0 0.0
    %6954 = vmatmul.mubr.f32.gmra.mrb[0].mxu0 %v6887
    %v6955 = vpop.f32.mrb[0].mxu0
    %v6956 = vadd.f32 0.0, %v6955
    %v6957 = vpop.f32.mrb[0].mxu0
    %v6958 = vadd.f32 0.0, %v6957
    %6959 = vdwg.mxu0
    %v6960 = vadd.f32 %v6847, %v6956
    %v6961 = vadd.f32 %v6848, %v6958
    %v6962 = vld [vmem:[%s4634] sm:$0x1]
    %v6963 = vld [vmem:[%s4634 + $0x10] sm:$0x1]
    %s6964 = scalar_lea.vmem %s5, 2048
    %v6965 = vld [vmem:[%s6964] sm:$0xff]
    %v6966 = vld [vmem:[%s6964 + $0x8] sm:$0xff]
    %v6967 = vld [vmem:[%s6964 + $0x10] sm:$0xff]
    %v6968 = vld [vmem:[%s6964 + $0x18] sm:$0xff]
    %v6969 = vld [vmem:[%s6964 + $0x20] sm:$0xff]
    %v6970 = vld [vmem:[%s6964 + $0x28] sm:$0xff]
    %v6971 = vld [vmem:[%s6964 + $0x30] sm:$0xff]
    %v6972 = vld [vmem:[%s6964 + $0x38] sm:$0xff]
    %v6973 = vld [vmem:[%s6964 + $0x40] sm:$0xff]
    %v6974 = vld [vmem:[%s6964 + $0x48] sm:$0xff]
    %v6975 = vld [vmem:[%s6964 + $0x50] sm:$0xff]
    %v6976 = vld [vmem:[%s6964 + $0x58] sm:$0xff]
    %v6977 = vld [vmem:[%s6964 + $0x60] sm:$0xff]
    %v6978 = vld [vmem:[%s6964 + $0x68] sm:$0xff]
    %v6979 = vld [vmem:[%s6964 + $0x70] sm:$0xff]
    %v6980 = vld [vmem:[%s6964 + $0x78] sm:$0xff]
    %v6981 = vld [vmem:[%s6964 + $0x80] sm:$0xff]
    %v6982 = vld [vmem:[%s6964 + $0x88] sm:$0xff]
    %v6983 = vld [vmem:[%s6964 + $0x90] sm:$0xff]
    %v6984 = vld [vmem:[%s6964 + $0x98] sm:$0xff]
    %v6985 = vld [vmem:[%s6964 + $0xa0] sm:$0xff]
    %v6986 = vld [vmem:[%s6964 + $0xa8] sm:$0xff]
    %v6987 = vld [vmem:[%s6964 + $0xb0] sm:$0xff]
    %v6988 = vld [vmem:[%s6964 + $0xb8] sm:$0xff]
    %v6989 = vld [vmem:[%s6964 + $0xc0] sm:$0xff]
    %v6990 = vld [vmem:[%s6964 + $0xc8] sm:$0xff]
    %v6991 = vld [vmem:[%s6964 + $0xd0] sm:$0xff]
    %v6992 = vld [vmem:[%s6964 + $0xd8] sm:$0xff]
    %v6993 = vld [vmem:[%s6964 + $0xe0] sm:$0xff]
    %v6994 = vld [vmem:[%s6964 + $0xe8] sm:$0xff]
    %v6995 = vld [vmem:[%s6964 + $0xf0] sm:$0xff]
    %v6996 = vld [vmem:[%s6964 + $0xf8] sm:$0xff]
    %v6999 = vrot.slane %v6963, 7
    %v7000 = vsel %vm363, %v6999, %v6962
    %7002 = vmatprep.subr.mxu0 %v6966
    %7003 = vmatpush1.msra.mxu0 %v6965
    %7004 = vmatprep.subr.mxu0 %v6968
    %7005 = vmatpush1.msra.mxu0 %v6967
    %7006 = vmatprep.subr.mxu0 %v6970
    %7007 = vmatpush1.msra.mxu0 %v6969
    %7008 = vmatprep.subr.mxu0 %v6972
    %7009 = vmatpush1.msra.mxu0 %v6971
    %7010 = vmatprep.subr.mxu0 %v6974
    %7011 = vmatpush1.msra.mxu0 %v6973
    %7012 = vmatprep.subr.mxu0 %v6976
    %7013 = vmatpush1.msra.mxu0 %v6975
    %7014 = vmatprep.subr.mxu0 %v6978
    %7015 = vmatpush1.msra.mxu0 %v6977
    %7016 = vmatprep.subr.mxu0 %v6980
    %7017 = vmatpush1.msra.mxu0 %v6979
    %7018 = vmatprep.subr.mxu0 %v6982
    %7019 = vmatpush1.msra.mxu0 %v6981
    %7020 = vmatprep.subr.mxu0 %v6984
    %7021 = vmatpush1.msra.mxu0 %v6983
    %7022 = vmatprep.subr.mxu0 %v6986
    %7023 = vmatpush1.msra.mxu0 %v6985
    %7024 = vmatprep.subr.mxu0 %v6988
    %7025 = vmatpush1.msra.mxu0 %v6987
    %7026 = vmatprep.subr.mxu0 %v6990
    %7027 = vmatpush1.msra.mxu0 %v6989
    %7028 = vmatprep.subr.mxu0 %v6992
    %7029 = vmatpush1.msra.mxu0 %v6991
    %7030 = vmatprep.subr.mxu0 %v6994
    %7031 = vmatpush1.msra.mxu0 %v6993
    %7032 = vmatprep.subr.mxu0 %v6996
    %7033 = vmatpush1.msra.mxu0 %v6995
    %7034 = vmatprep.subr.mxu0 0.0
    %7035 = vmatpush1.msra.mxu0 0.0
    %7036 = vmatprep.subr.mxu0 0.0
    %7037 = vmatpush1.msra.mxu0 0.0
    %7038 = vmatprep.subr.mxu0 0.0
    %7039 = vmatpush1.msra.mxu0 0.0
    %7040 = vmatprep.subr.mxu0 0.0
    %7041 = vmatpush1.msra.mxu0 0.0
    %7042 = vmatprep.subr.mxu0 0.0
    %7043 = vmatpush1.msra.mxu0 0.0
    %7044 = vmatprep.subr.mxu0 0.0
    %7045 = vmatpush1.msra.mxu0 0.0
    %7046 = vmatprep.subr.mxu0 0.0
    %7047 = vmatpush1.msra.mxu0 0.0
    %7048 = vmatprep.subr.mxu0 0.0
    %7049 = vmatpush1.msra.mxu0 0.0
    %7050 = vmatprep.subr.mxu0 0.0
    %7051 = vmatpush1.msra.mxu0 0.0
    %7052 = vmatprep.subr.mxu0 0.0
    %7053 = vmatpush1.msra.mxu0 0.0
    %7054 = vmatprep.subr.mxu0 0.0
    %7055 = vmatpush1.msra.mxu0 0.0
    %7056 = vmatprep.subr.mxu0 0.0
    %7057 = vmatpush1.msra.mxu0 0.0
    %7058 = vmatprep.subr.mxu0 0.0
    %7059 = vmatpush1.msra.mxu0 0.0
    %7060 = vmatprep.subr.mxu0 0.0
    %7061 = vmatpush1.msra.mxu0 0.0
    %7062 = vmatprep.subr.mxu0 0.0
    %7063 = vmatpush1.msra.mxu0 0.0
    %7064 = vmatprep.subr.mxu0 0.0
    %7065 = vmatpush1.msra.mxu0 0.0
    %7066 = vmatprep.mubr.f32.mxu0 0.0
    %7067 = vmatmul.mubr.f32.gmra.mrb[0].mxu0 %v7000
    %v7068 = vpop.f32.mrb[0].mxu0
    %v7069 = vadd.f32 0.0, %v7068
    %v7070 = vpop.f32.mrb[0].mxu0
    %v7071 = vadd.f32 0.0, %v7070
    %7072 = vdwg.mxu0
    %v7073 = vadd.f32 %v6960, %v7069
    %v7074 = vadd.f32 %v6961, %v7071
    %v7075 = vld [vmem:[%s4634 + $0x1] sm:$0x1]
    %v7076 = vld [vmem:[%s4634 + $0x11] sm:$0x1]
    %s7077 = scalar_lea.vmem %s5, 2304
    %v7078 = vld [vmem:[%s7077] sm:$0xff]
    %v7079 = vld [vmem:[%s7077 + $0x8] sm:$0xff]
    %v7080 = vld [vmem:[%s7077 + $0x10] sm:$0xff]
    %v7081 = vld [vmem:[%s7077 + $0x18] sm:$0xff]
    %v7082 = vld [vmem:[%s7077 + $0x20] sm:$0xff]
    %v7083 = vld [vmem:[%s7077 + $0x28] sm:$0xff]
    %v7084 = vld [vmem:[%s7077 + $0x30] sm:$0xff]
    %v7085 = vld [vmem:[%s7077 + $0x38] sm:$0xff]
    %v7086 = vld [vmem:[%s7077 + $0x40] sm:$0xff]
    %v7087 = vld [vmem:[%s7077 + $0x48] sm:$0xff]
    %v7088 = vld [vmem:[%s7077 + $0x50] sm:$0xff]
    %v7089 = vld [vmem:[%s7077 + $0x58] sm:$0xff]
    %v7090 = vld [vmem:[%s7077 + $0x60] sm:$0xff]
    %v7091 = vld [vmem:[%s7077 + $0x68] sm:$0xff]
    %v7092 = vld [vmem:[%s7077 + $0x70] sm:$0xff]
    %v7093 = vld [vmem:[%s7077 + $0x78] sm:$0xff]
    %v7094 = vld [vmem:[%s7077 + $0x80] sm:$0xff]
    %v7095 = vld [vmem:[%s7077 + $0x88] sm:$0xff]
    %v7096 = vld [vmem:[%s7077 + $0x90] sm:$0xff]
    %v7097 = vld [vmem:[%s7077 + $0x98] sm:$0xff]
    %v7098 = vld [vmem:[%s7077 + $0xa0] sm:$0xff]
    %v7099 = vld [vmem:[%s7077 + $0xa8] sm:$0xff]
    %v7100 = vld [vmem:[%s7077 + $0xb0] sm:$0xff]
    %v7101 = vld [vmem:[%s7077 + $0xb8] sm:$0xff]
    %v7102 = vld [vmem:[%s7077 + $0xc0] sm:$0xff]
    %v7103 = vld [vmem:[%s7077 + $0xc8] sm:$0xff]
    %v7104 = vld [vmem:[%s7077 + $0xd0] sm:$0xff]
    %v7105 = vld [vmem:[%s7077 + $0xd8] sm:$0xff]
    %v7106 = vld [vmem:[%s7077 + $0xe0] sm:$0xff]
    %v7107 = vld [vmem:[%s7077 + $0xe8] sm:$0xff]
    %v7108 = vld [vmem:[%s7077 + $0xf0] sm:$0xff]
    %v7109 = vld [vmem:[%s7077 + $0xf8] sm:$0xff]
    %v7112 = vrot.slane %v7076, 7
    %v7113 = vsel %vm363, %v7112, %v7075
    %7115 = vmatprep.subr.mxu0 %v7079
    %7116 = vmatpush1.msra.mxu0 %v7078
    %7117 = vmatprep.subr.mxu0 %v7081
    %7118 = vmatpush1.msra.mxu0 %v7080
    %7119 = vmatprep.subr.mxu0 %v7083
    %7120 = vmatpush1.msra.mxu0 %v7082
    %7121 = vmatprep.subr.mxu0 %v7085
    %7122 = vmatpush1.msra.mxu0 %v7084
    %7123 = vmatprep.subr.mxu0 %v7087
    %7124 = vmatpush1.msra.mxu0 %v7086
    %7125 = vmatprep.subr.mxu0 %v7089
    %7126 = vmatpush1.msra.mxu0 %v7088
    %7127 = vmatprep.subr.mxu0 %v7091
    %7128 = vmatpush1.msra.mxu0 %v7090
    %7129 = vmatprep.subr.mxu0 %v7093
    %7130 = vmatpush1.msra.mxu0 %v7092
    %7131 = vmatprep.subr.mxu0 %v7095
    %7132 = vmatpush1.msra.mxu0 %v7094
    %7133 = vmatprep.subr.mxu0 %v7097
    %7134 = vmatpush1.msra.mxu0 %v7096
    %7135 = vmatprep.subr.mxu0 %v7099
    %7136 = vmatpush1.msra.mxu0 %v7098
    %7137 = vmatprep.subr.mxu0 %v7101
    %7138 = vmatpush1.msra.mxu0 %v7100
    %7139 = vmatprep.subr.mxu0 %v7103
    %7140 = vmatpush1.msra.mxu0 %v7102
    %7141 = vmatprep.subr.mxu0 %v7105
    %7142 = vmatpush1.msra.mxu0 %v7104
    %7143 = vmatprep.subr.mxu0 %v7107
    %7144 = vmatpush1.msra.mxu0 %v7106
    %7145 = vmatprep.subr.mxu0 %v7109
    %7146 = vmatpush1.msra.mxu0 %v7108
    %7147 = vmatprep.subr.mxu0 0.0
    %7148 = vmatpush1.msra.mxu0 0.0
    %7149 = vmatprep.subr.mxu0 0.0
    %7150 = vmatpush1.msra.mxu0 0.0
    %7151 = vmatprep.subr.mxu0 0.0
    %7152 = vmatpush1.msra.mxu0 0.0
    %7153 = vmatprep.subr.mxu0 0.0
    %7154 = vmatpush1.msra.mxu0 0.0
    %7155 = vmatprep.subr.mxu0 0.0
    %7156 = vmatpush1.msra.mxu0 0.0
    %7157 = vmatprep.subr.mxu0 0.0
    %7158 = vmatpush1.msra.mxu0 0.0
    %7159 = vmatprep.subr.mxu0 0.0
    %7160 = vmatpush1.msra.mxu0 0.0
    %7161 = vmatprep.subr.mxu0 0.0
    %7162 = vmatpush1.msra.mxu0 0.0
    %7163 = vmatprep.subr.mxu0 0.0
    %7164 = vmatpush1.msra.mxu0 0.0
    %7165 = vmatprep.subr.mxu0 0.0
    %7166 = vmatpush1.msra.mxu0 0.0
    %7167 = vmatprep.subr.mxu0 0.0
    %7168 = vmatpush1.msra.mxu0 0.0
    %7169 = vmatprep.subr.mxu0 0.0
    %7170 = vmatpush1.msra.mxu0 0.0
    %7171 = vmatprep.subr.mxu0 0.0
    %7172 = vmatpush1.msra.mxu0 0.0
    %7173 = vmatprep.subr.mxu0 0.0
    %7174 = vmatpush1.msra.mxu0 0.0
    %7175 = vmatprep.subr.mxu0 0.0
    %7176 = vmatpush1.msra.mxu0 0.0
    %7177 = vmatprep.subr.mxu0 0.0
    %7178 = vmatpush1.msra.mxu0 0.0
    %7179 = vmatprep.mubr.f32.mxu0 0.0
    %7180 = vmatmul.mubr.f32.gmra.mrb[0].mxu0 %v7113
    %v7181 = vpop.f32.mrb[0].mxu0
    %v7182 = vadd.f32 0.0, %v7181
    %v7183 = vpop.f32.mrb[0].mxu0
    %v7184 = vadd.f32 0.0, %v7183
    %7185 = vdwg.mxu0
    %v7186 = vadd.f32 %v7073, %v7182
    %v7187 = vadd.f32 %v7074, %v7184
    %v7188 = vld [vmem:[%s4634 + $0x2] sm:$0x1]
    %v7189 = vld [vmem:[%s4634 + $0x12] sm:$0x1]
    %s7190 = scalar_lea.vmem %s5, 2560
    %v7191 = vld [vmem:[%s7190] sm:$0xff]
    %v7192 = vld [vmem:[%s7190 + $0x8] sm:$0xff]
    %v7193 = vld [vmem:[%s7190 + $0x10] sm:$0xff]
    %v7194 = vld [vmem:[%s7190 + $0x18] sm:$0xff]
    %v7195 = vld [vmem:[%s7190 + $0x20] sm:$0xff]
    %v7196 = vld [vmem:[%s7190 + $0x28] sm:$0xff]
    %v7197 = vld [vmem:[%s7190 + $0x30] sm:$0xff]
    %v7198 = vld [vmem:[%s7190 + $0x38] sm:$0xff]
    %v7199 = vld [vmem:[%s7190 + $0x40] sm:$0xff]
    %v7200 = vld [vmem:[%s7190 + $0x48] sm:$0xff]
    %v7201 = vld [vmem:[%s7190 + $0x50] sm:$0xff]
    %v7202 = vld [vmem:[%s7190 + $0x58] sm:$0xff]
    %v7203 = vld [vmem:[%s7190 + $0x60] sm:$0xff]
    %v7204 = vld [vmem:[%s7190 + $0x68] sm:$0xff]
    %v7205 = vld [vmem:[%s7190 + $0x70] sm:$0xff]
    %v7206 = vld [vmem:[%s7190 + $0x78] sm:$0xff]
    %v7207 = vld [vmem:[%s7190 + $0x80] sm:$0xff]
    %v7208 = vld [vmem:[%s7190 + $0x88] sm:$0xff]
    %v7209 = vld [vmem:[%s7190 + $0x90] sm:$0xff]
    %v7210 = vld [vmem:[%s7190 + $0x98] sm:$0xff]
    %v7211 = vld [vmem:[%s7190 + $0xa0] sm:$0xff]
    %v7212 = vld [vmem:[%s7190 + $0xa8] sm:$0xff]
    %v7213 = vld [vmem:[%s7190 + $0xb0] sm:$0xff]
    %v7214 = vld [vmem:[%s7190 + $0xb8] sm:$0xff]
    %v7215 = vld [vmem:[%s7190 + $0xc0] sm:$0xff]
    %v7216 = vld [vmem:[%s7190 + $0xc8] sm:$0xff]
    %v7217 = vld [vmem:[%s7190 + $0xd0] sm:$0xff]
    %v7218 = vld [vmem:[%s7190 + $0xd8] sm:$0xff]
    %v7219 = vld [vmem:[%s7190 + $0xe0] sm:$0xff]
    %v7220 = vld [vmem:[%s7190 + $0xe8] sm:$0xff]
    %v7221 = vld [vmem:[%s7190 + $0xf0] sm:$0xff]
    %v7222 = vld [vmem:[%s7190 + $0xf8] sm:$0xff]
    %v7225 = vrot.slane %v7189, 7
    %v7226 = vsel %vm363, %v7225, %v7188
    %7228 = vmatprep.subr.mxu0 %v7192
    %7229 = vmatpush1.msra.mxu0 %v7191
    %7230 = vmatprep.subr.mxu0 %v7194
    %7231 = vmatpush1.msra.mxu0 %v7193
    %7232 = vmatprep.subr.mxu0 %v7196
    %7233 = vmatpush1.msra.mxu0 %v7195
    %7234 = vmatprep.subr.mxu0 %v7198
    %7235 = vmatpush1.msra.mxu0 %v7197
    %7236 = vmatprep.subr.mxu0 %v7200
    %7237 = vmatpush1.msra.mxu0 %v7199
    %7238 = vmatprep.subr.mxu0 %v7202
    %7239 = vmatpush1.msra.mxu0 %v7201
    %7240 = vmatprep.subr.mxu0 %v7204
    %7241 = vmatpush1.msra.mxu0 %v7203
    %7242 = vmatprep.subr.mxu0 %v7206
    %7243 = vmatpush1.msra.mxu0 %v7205
    %7244 = vmatprep.subr.mxu0 %v7208
    %7245 = vmatpush1.msra.mxu0 %v7207
    %7246 = vmatprep.subr.mxu0 %v7210
    %7247 = vmatpush1.msra.mxu0 %v7209
    %7248 = vmatprep.subr.mxu0 %v7212
    %7249 = vmatpush1.msra.mxu0 %v7211
    %7250 = vmatprep.subr.mxu0 %v7214
    %7251 = vmatpush1.msra.mxu0 %v7213
    %7252 = vmatprep.subr.mxu0 %v7216
    %7253 = vmatpush1.msra.mxu0 %v7215
    %7254 = vmatprep.subr.mxu0 %v7218
    %7255 = vmatpush1.msra.mxu0 %v7217
    %7256 = vmatprep.subr.mxu0 %v7220
    %7257 = vmatpush1.msra.mxu0 %v7219
    %7258 = vmatprep.subr.mxu0 %v7222
    %7259 = vmatpush1.msra.mxu0 %v7221
    %7260 = vmatprep.subr.mxu0 0.0
    %7261 = vmatpush1.msra.mxu0 0.0
    %7262 = vmatprep.subr.mxu0 0.0
    %7263 = vmatpush1.msra.mxu0 0.0
    %7264 = vmatprep.subr.mxu0 0.0
    %7265 = vmatpush1.msra.mxu0 0.0
    %7266 = vmatprep.subr.mxu0 0.0
    %7267 = vmatpush1.msra.mxu0 0.0
    %7268 = vmatprep.subr.mxu0 0.0
    %7269 = vmatpush1.msra.mxu0 0.0
    %7270 = vmatprep.subr.mxu0 0.0
    %7271 = vmatpush1.msra.mxu0 0.0
    %7272 = vmatprep.subr.mxu0 0.0
    %7273 = vmatpush1.msra.mxu0 0.0
    %7274 = vmatprep.subr.mxu0 0.0
    %7275 = vmatpush1.msra.mxu0 0.0
    %7276 = vmatprep.subr.mxu0 0.0
    %7277 = vmatpush1.msra.mxu0 0.0
    %7278 = vmatprep.subr.mxu0 0.0
    %7279 = vmatpush1.msra.mxu0 0.0
    %7280 = vmatprep.subr.mxu0 0.0
    %7281 = vmatpush1.msra.mxu0 0.0
    %7282 = vmatprep.subr.mxu0 0.0
    %7283 = vmatpush1.msra.mxu0 0.0
    %7284 = vmatprep.subr.mxu0 0.0
    %7285 = vmatpush1.msra.mxu0 0.0
    %7286 = vmatprep.subr.mxu0 0.0
    %7287 = vmatpush1.msra.mxu0 0.0
    %7288 = vmatprep.subr.mxu0 0.0
    %7289 = vmatpush1.msra.mxu0 0.0
    %7290 = vmatprep.subr.mxu0 0.0
    %7291 = vmatpush1.msra.mxu0 0.0
    %7292 = vmatprep.mubr.f32.mxu0 0.0
    %7293 = vmatmul.mubr.f32.gmra.mrb[0].mxu0 %v7226
    %v7294 = vpop.f32.mrb[0].mxu0
    %v7295 = vadd.f32 0.0, %v7294
    %v7296 = vpop.f32.mrb[0].mxu0
    %v7297 = vadd.f32 0.0, %v7296
    %7298 = vdwg.mxu0
    %v7299 = vadd.f32 %v7186, %v7295
    %v7300 = vadd.f32 %v7187, %v7297
    %v7301 = vld [vmem:[%s4634 + $0x3] sm:$0x1]
    %v7302 = vld [vmem:[%s4634 + $0x13] sm:$0x1]
    %s7303 = scalar_lea.vmem %s5, 2816
    %v7304 = vld [vmem:[%s7303] sm:$0xff]
    %v7305 = vld [vmem:[%s7303 + $0x8] sm:$0xff]
    %v7306 = vld [vmem:[%s7303 + $0x10] sm:$0xff]
    %v7307 = vld [vmem:[%s7303 + $0x18] sm:$0xff]
    %v7308 = vld [vmem:[%s7303 + $0x20] sm:$0xff]
    %v7309 = vld [vmem:[%s7303 + $0x28] sm:$0xff]
    %v7310 = vld [vmem:[%s7303 + $0x30] sm:$0xff]
    %v7311 = vld [vmem:[%s7303 + $0x38] sm:$0xff]
    %v7312 = vld [vmem:[%s7303 + $0x40] sm:$0xff]
    %v7313 = vld [vmem:[%s7303 + $0x48] sm:$0xff]
    %v7314 = vld [vmem:[%s7303 + $0x50] sm:$0xff]
    %v7315 = vld [vmem:[%s7303 + $0x58] sm:$0xff]
    %v7316 = vld [vmem:[%s7303 + $0x60] sm:$0xff]
    %v7317 = vld [vmem:[%s7303 + $0x68] sm:$0xff]
    %v7318 = vld [vmem:[%s7303 + $0x70] sm:$0xff]
    %v7319 = vld [vmem:[%s7303 + $0x78] sm:$0xff]
    %v7320 = vld [vmem:[%s7303 + $0x80] sm:$0xff]
    %v7321 = vld [vmem:[%s7303 + $0x88] sm:$0xff]
    %v7322 = vld [vmem:[%s7303 + $0x90] sm:$0xff]
    %v7323 = vld [vmem:[%s7303 + $0x98] sm:$0xff]
    %v7324 = vld [vmem:[%s7303 + $0xa0] sm:$0xff]
    %v7325 = vld [vmem:[%s7303 + $0xa8] sm:$0xff]
    %v7326 = vld [vmem:[%s7303 + $0xb0] sm:$0xff]
    %v7327 = vld [vmem:[%s7303 + $0xb8] sm:$0xff]
    %v7328 = vld [vmem:[%s7303 + $0xc0] sm:$0xff]
    %v7329 = vld [vmem:[%s7303 + $0xc8] sm:$0xff]
    %v7330 = vld [vmem:[%s7303 + $0xd0] sm:$0xff]
    %v7331 = vld [vmem:[%s7303 + $0xd8] sm:$0xff]
    %v7332 = vld [vmem:[%s7303 + $0xe0] sm:$0xff]
    %v7333 = vld [vmem:[%s7303 + $0xe8] sm:$0xff]
    %v7334 = vld [vmem:[%s7303 + $0xf0] sm:$0xff]
    %v7335 = vld [vmem:[%s7303 + $0xf8] sm:$0xff]
    %v7338 = vrot.slane %v7302, 7
    %v7339 = vsel %vm363, %v7338, %v7301
    %7341 = vmatprep.subr.mxu0 %v7305
    %7342 = vmatpush1.msra.mxu0 %v7304
    %7343 = vmatprep.subr.mxu0 %v7307
    %7344 = vmatpush1.msra.mxu0 %v7306
    %7345 = vmatprep.subr.mxu0 %v7309
    %7346 = vmatpush1.msra.mxu0 %v7308
    %7347 = vmatprep.subr.mxu0 %v7311
    %7348 = vmatpush1.msra.mxu0 %v7310
    %7349 = vmatprep.subr.mxu0 %v7313
    %7350 = vmatpush1.msra.mxu0 %v7312
    %7351 = vmatprep.subr.mxu0 %v7315
    %7352 = vmatpush1.msra.mxu0 %v7314
    %7353 = vmatprep.subr.mxu0 %v7317
    %7354 = vmatpush1.msra.mxu0 %v7316
    %7355 = vmatprep.subr.mxu0 %v7319
    %7356 = vmatpush1.msra.mxu0 %v7318
    %7357 = vmatprep.subr.mxu0 %v7321
    %7358 = vmatpush1.msra.mxu0 %v7320
    %7359 = vmatprep.subr.mxu0 %v7323
    %7360 = vmatpush1.msra.mxu0 %v7322
    %7361 = vmatprep.subr.mxu0 %v7325
    %7362 = vmatpush1.msra.mxu0 %v7324
    %7363 = vmatprep.subr.mxu0 %v7327
    %7364 = vmatpush1.msra.mxu0 %v7326
    %7365 = vmatprep.subr.mxu0 %v7329
    %7366 = vmatpush1.msra.mxu0 %v7328
    %7367 = vmatprep.subr.mxu0 %v7331
    %7368 = vmatpush1.msra.mxu0 %v7330
    %7369 = vmatprep.subr.mxu0 %v7333
    %7370 = vmatpush1.msra.mxu0 %v7332
    %7371 = vmatprep.subr.mxu0 %v7335
    %7372 = vmatpush1.msra.mxu0 %v7334
    %7373 = vmatprep.subr.mxu0 0.0
    %7374 = vmatpush1.msra.mxu0 0.0
    %7375 = vmatprep.subr.mxu0 0.0
    %7376 = vmatpush1.msra.mxu0 0.0
    %7377 = vmatprep.subr.mxu0 0.0
    %7378 = vmatpush1.msra.mxu0 0.0
    %7379 = vmatprep.subr.mxu0 0.0
    %7380 = vmatpush1.msra.mxu0 0.0
    %7381 = vmatprep.subr.mxu0 0.0
    %7382 = vmatpush1.msra.mxu0 0.0
    %7383 = vmatprep.subr.mxu0 0.0
    %7384 = vmatpush1.msra.mxu0 0.0
    %7385 = vmatprep.subr.mxu0 0.0
    %7386 = vmatpush1.msra.mxu0 0.0
    %7387 = vmatprep.subr.mxu0 0.0
    %7388 = vmatpush1.msra.mxu0 0.0
    %7389 = vmatprep.subr.mxu0 0.0
    %7390 = vmatpush1.msra.mxu0 0.0
    %7391 = vmatprep.subr.mxu0 0.0
    %7392 = vmatpush1.msra.mxu0 0.0
    %7393 = vmatprep.subr.mxu0 0.0
    %7394 = vmatpush1.msra.mxu0 0.0
    %7395 = vmatprep.subr.mxu0 0.0
    %7396 = vmatpush1.msra.mxu0 0.0
    %7397 = vmatprep.subr.mxu0 0.0
    %7398 = vmatpush1.msra.mxu0 0.0
    %7399 = vmatprep.subr.mxu0 0.0
    %7400 = vmatpush1.msra.mxu0 0.0
    %7401 = vmatprep.subr.mxu0 0.0
    %7402 = vmatpush1.msra.mxu0 0.0
    %7403 = vmatprep.subr.mxu0 0.0
    %7404 = vmatpush1.msra.mxu0 0.0
    %7405 = vmatprep.mubr.f32.mxu0 0.0
    %7406 = vmatmul.mubr.f32.gmra.mrb[0].mxu0 %v7339
    %v7407 = vpop.f32.mrb[0].mxu0
    %v7408 = vadd.f32 0.0, %v7407
    %v7409 = vpop.f32.mrb[0].mxu0
    %v7410 = vadd.f32 0.0, %v7409
    %7411 = vdwg.mxu0
    %v7412 = vadd.f32 %v7299, %v7408
    %v7413 = vadd.f32 %v7300, %v7410
    %s7414 = scalar_lea.vmem [#allocation3], 12
    %v7415 = vld [vmem:[%s7414] sm:$0x1]
    %v7416 = vld [vmem:[%s7414 + $0x10] sm:$0x1]
    %s7417 = scalar_lea.vmem %s5, 3072
    %v7418 = vld [vmem:[%s7417] sm:$0xff]
    %v7419 = vld [vmem:[%s7417 + $0x8] sm:$0xff]
    %v7420 = vld [vmem:[%s7417 + $0x10] sm:$0xff]
    %v7421 = vld [vmem:[%s7417 + $0x18] sm:$0xff]
    %v7422 = vld [vmem:[%s7417 + $0x20] sm:$0xff]
    %v7423 = vld [vmem:[%s7417 + $0x28] sm:$0xff]
    %v7424 = vld [vmem:[%s7417 + $0x30] sm:$0xff]
    %v7425 = vld [vmem:[%s7417 + $0x38] sm:$0xff]
    %v7426 = vld [vmem:[%s7417 + $0x40] sm:$0xff]
    %v7427 = vld [vmem:[%s7417 + $0x48] sm:$0xff]
    %v7428 = vld [vmem:[%s7417 + $0x50] sm:$0xff]
    %v7429 = vld [vmem:[%s7417 + $0x58] sm:$0xff]
    %v7430 = vld [vmem:[%s7417 + $0x60] sm:$0xff]
    %v7431 = vld [vmem:[%s7417 + $0x68] sm:$0xff]
    %v7432 = vld [vmem:[%s7417 + $0x70] sm:$0xff]
    %v7433 = vld [vmem:[%s7417 + $0x78] sm:$0xff]
    %v7434 = vld [vmem:[%s7417 + $0x80] sm:$0xff]
    %v7435 = vld [vmem:[%s7417 + $0x88] sm:$0xff]
    %v7436 = vld [vmem:[%s7417 + $0x90] sm:$0xff]
    %v7437 = vld [vmem:[%s7417 + $0x98] sm:$0xff]
    %v7438 = vld [vmem:[%s7417 + $0xa0] sm:$0xff]
    %v7439 = vld [vmem:[%s7417 + $0xa8] sm:$0xff]
    %v7440 = vld [vmem:[%s7417 + $0xb0] sm:$0xff]
    %v7441 = vld [vmem:[%s7417 + $0xb8] sm:$0xff]
    %v7442 = vld [vmem:[%s7417 + $0xc0] sm:$0xff]
    %v7443 = vld [vmem:[%s7417 + $0xc8] sm:$0xff]
    %v7444 = vld [vmem:[%s7417 + $0xd0] sm:$0xff]
    %v7445 = vld [vmem:[%s7417 + $0xd8] sm:$0xff]
    %v7446 = vld [vmem:[%s7417 + $0xe0] sm:$0xff]
    %v7447 = vld [vmem:[%s7417 + $0xe8] sm:$0xff]
    %v7448 = vld [vmem:[%s7417 + $0xf0] sm:$0xff]
    %v7449 = vld [vmem:[%s7417 + $0xf8] sm:$0xff]
    %v7452 = vrot.slane %v7416, 7
    %v7453 = vsel %vm363, %v7452, %v7415
    %7455 = vmatprep.subr.mxu0 %v7419
    %7456 = vmatpush1.msra.mxu0 %v7418
    %7457 = vmatprep.subr.mxu0 %v7421
    %7458 = vmatpush1.msra.mxu0 %v7420
    %7459 = vmatprep.subr.mxu0 %v7423
    %7460 = vmatpush1.msra.mxu0 %v7422
    %7461 = vmatprep.subr.mxu0 %v7425
    %7462 = vmatpush1.msra.mxu0 %v7424
    %7463 = vmatprep.subr.mxu0 %v7427
    %7464 = vmatpush1.msra.mxu0 %v7426
    %7465 = vmatprep.subr.mxu0 %v7429
    %7466 = vmatpush1.msra.mxu0 %v7428
    %7467 = vmatprep.subr.mxu0 %v7431
    %7468 = vmatpush1.msra.mxu0 %v7430
    %7469 = vmatprep.subr.mxu0 %v7433
    %7470 = vmatpush1.msra.mxu0 %v7432
    %7471 = vmatprep.subr.mxu0 %v7435
    %7472 = vmatpush1.msra.mxu0 %v7434
    %7473 = vmatprep.subr.mxu0 %v7437
    %7474 = vmatpush1.msra.mxu0 %v7436
    %7475 = vmatprep.subr.mxu0 %v7439
    %7476 = vmatpush1.msra.mxu0 %v7438
    %7477 = vmatprep.subr.mxu0 %v7441
    %7478 = vmatpush1.msra.mxu0 %v7440
    %7479 = vmatprep.subr.mxu0 %v7443
    %7480 = vmatpush1.msra.mxu0 %v7442
    %7481 = vmatprep.subr.mxu0 %v7445
    %7482 = vmatpush1.msra.mxu0 %v7444
    %7483 = vmatprep.subr.mxu0 %v7447
    %7484 = vmatpush1.msra.mxu0 %v7446
    %7485 = vmatprep.subr.mxu0 %v7449
    %7486 = vmatpush1.msra.mxu0 %v7448
    %7487 = vmatprep.subr.mxu0 0.0
    %7488 = vmatpush1.msra.mxu0 0.0
    %7489 = vmatprep.subr.mxu0 0.0
    %7490 = vmatpush1.msra.mxu0 0.0
    %7491 = vmatprep.subr.mxu0 0.0
    %7492 = vmatpush1.msra.mxu0 0.0
    %7493 = vmatprep.subr.mxu0 0.0
    %7494 = vmatpush1.msra.mxu0 0.0
    %7495 = vmatprep.subr.mxu0 0.0
    %7496 = vmatpush1.msra.mxu0 0.0
    %7497 = vmatprep.subr.mxu0 0.0
    %7498 = vmatpush1.msra.mxu0 0.0
    %7499 = vmatprep.subr.mxu0 0.0
    %7500 = vmatpush1.msra.mxu0 0.0
    %7501 = vmatprep.subr.mxu0 0.0
    %7502 = vmatpush1.msra.mxu0 0.0
    %7503 = vmatprep.subr.mxu0 0.0
    %7504 = vmatpush1.msra.mxu0 0.0
    %7505 = vmatprep.subr.mxu0 0.0
    %7506 = vmatpush1.msra.mxu0 0.0
    %7507 = vmatprep.subr.mxu0 0.0
    %7508 = vmatpush1.msra.mxu0 0.0
    %7509 = vmatprep.subr.mxu0 0.0
    %7510 = vmatpush1.msra.mxu0 0.0
    %7511 = vmatprep.subr.mxu0 0.0
    %7512 = vmatpush1.msra.mxu0 0.0
    %7513 = vmatprep.subr.mxu0 0.0
    %7514 = vmatpush1.msra.mxu0 0.0
    %7515 = vmatprep.subr.mxu0 0.0
    %7516 = vmatpush1.msra.mxu0 0.0
    %7517 = vmatprep.subr.mxu0 0.0
    %7518 = vmatpush1.msra.mxu0 0.0
    %7519 = vmatprep.mubr.f32.mxu0 0.0
    %7520 = vmatmul.mubr.f32.gmra.mrb[0].mxu0 %v7453
    %v7521 = vpop.f32.mrb[0].mxu0
    %v7522 = vadd.f32 0.0, %v7521
    %v7523 = vpop.f32.mrb[0].mxu0
    %v7524 = vadd.f32 0.0, %v7523
    %7525 = vdwg.mxu0
    %v7526 = vadd.f32 %v7412, %v7522
    %v7527 = vadd.f32 %v7413, %v7524
    %v7528 = vld [vmem:[%s7414 + $0x1] sm:$0x1]
    %v7529 = vld [vmem:[%s7414 + $0x11] sm:$0x1]
    %s7530 = scalar_lea.vmem %s5, 3328
    %v7531 = vld [vmem:[%s7530] sm:$0xff]
    %v7532 = vld [vmem:[%s7530 + $0x8] sm:$0xff]
    %v7533 = vld [vmem:[%s7530 + $0x10] sm:$0xff]
    %v7534 = vld [vmem:[%s7530 + $0x18] sm:$0xff]
    %v7535 = vld [vmem:[%s7530 + $0x20] sm:$0xff]
    %v7536 = vld [vmem:[%s7530 + $0x28] sm:$0xff]
    %v7537 = vld [vmem:[%s7530 + $0x30] sm:$0xff]
    %v7538 = vld [vmem:[%s7530 + $0x38] sm:$0xff]
    %v7539 = vld [vmem:[%s7530 + $0x40] sm:$0xff]
    %v7540 = vld [vmem:[%s7530 + $0x48] sm:$0xff]
    %v7541 = vld [vmem:[%s7530 + $0x50] sm:$0xff]
    %v7542 = vld [vmem:[%s7530 + $0x58] sm:$0xff]
    %v7543 = vld [vmem:[%s7530 + $0x60] sm:$0xff]
    %v7544 = vld [vmem:[%s7530 + $0x68] sm:$0xff]
    %v7545 = vld [vmem:[%s7530 + $0x70] sm:$0xff]
    %v7546 = vld [vmem:[%s7530 + $0x78] sm:$0xff]
    %v7547 = vld [vmem:[%s7530 + $0x80] sm:$0xff]
    %v7548 = vld [vmem:[%s7530 + $0x88] sm:$0xff]
    %v7549 = vld [vmem:[%s7530 + $0x90] sm:$0xff]
    %v7550 = vld [vmem:[%s7530 + $0x98] sm:$0xff]
    %v7551 = vld [vmem:[%s7530 + $0xa0] sm:$0xff]
    %v7552 = vld [vmem:[%s7530 + $0xa8] sm:$0xff]
    %v7553 = vld [vmem:[%s7530 + $0xb0] sm:$0xff]
    %v7554 = vld [vmem:[%s7530 + $0xb8] sm:$0xff]
    %v7555 = vld [vmem:[%s7530 + $0xc0] sm:$0xff]
    %v7556 = vld [vmem:[%s7530 + $0xc8] sm:$0xff]
    %v7557 = vld [vmem:[%s7530 + $0xd0] sm:$0xff]
    %v7558 = vld [vmem:[%s7530 + $0xd8] sm:$0xff]
    %v7559 = vld [vmem:[%s7530 + $0xe0] sm:$0xff]
    %v7560 = vld [vmem:[%s7530 + $0xe8] sm:$0xff]
    %v7561 = vld [vmem:[%s7530 + $0xf0] sm:$0xff]
    %v7562 = vld [vmem:[%s7530 + $0xf8] sm:$0xff]
    %v7565 = vrot.slane %v7529, 7
    %v7566 = vsel %vm363, %v7565, %v7528
    %7568 = vmatprep.subr.mxu0 %v7532
    %7569 = vmatpush1.msra.mxu0 %v7531
    %7570 = vmatprep.subr.mxu0 %v7534
    %7571 = vmatpush1.msra.mxu0 %v7533
    %7572 = vmatprep.subr.mxu0 %v7536
    %7573 = vmatpush1.msra.mxu0 %v7535
    %7574 = vmatprep.subr.mxu0 %v7538
    %7575 = vmatpush1.msra.mxu0 %v7537
    %7576 = vmatprep.subr.mxu0 %v7540
    %7577 = vmatpush1.msra.mxu0 %v7539
    %7578 = vmatprep.subr.mxu0 %v7542
    %7579 = vmatpush1.msra.mxu0 %v7541
    %7580 = vmatprep.subr.mxu0 %v7544
    %7581 = vmatpush1.msra.mxu0 %v7543
    %7582 = vmatprep.subr.mxu0 %v7546
    %7583 = vmatpush1.msra.mxu0 %v7545
    %7584 = vmatprep.subr.mxu0 %v7548
    %7585 = vmatpush1.msra.mxu0 %v7547
    %7586 = vmatprep.subr.mxu0 %v7550
    %7587 = vmatpush1.msra.mxu0 %v7549
    %7588 = vmatprep.subr.mxu0 %v7552
    %7589 = vmatpush1.msra.mxu0 %v7551
    %7590 = vmatprep.subr.mxu0 %v7554
    %7591 = vmatpush1.msra.mxu0 %v7553
    %7592 = vmatprep.subr.mxu0 %v7556
    %7593 = vmatpush1.msra.mxu0 %v7555
    %7594 = vmatprep.subr.mxu0 %v7558
    %7595 = vmatpush1.msra.mxu0 %v7557
    %7596 = vmatprep.subr.mxu0 %v7560
    %7597 = vmatpush1.msra.mxu0 %v7559
    %7598 = vmatprep.subr.mxu0 %v7562
    %7599 = vmatpush1.msra.mxu0 %v7561
    %7600 = vmatprep.subr.mxu0 0.0
    %7601 = vmatpush1.msra.mxu0 0.0
    %7602 = vmatprep.subr.mxu0 0.0
    %7603 = vmatpush1.msra.mxu0 0.0
    %7604 = vmatprep.subr.mxu0 0.0
    %7605 = vmatpush1.msra.mxu0 0.0
    %7606 = vmatprep.subr.mxu0 0.0
    %7607 = vmatpush1.msra.mxu0 0.0
    %7608 = vmatprep.subr.mxu0 0.0
    %7609 = vmatpush1.msra.mxu0 0.0
    %7610 = vmatprep.subr.mxu0 0.0
    %7611 = vmatpush1.msra.mxu0 0.0
    %7612 = vmatprep.subr.mxu0 0.0
    %7613 = vmatpush1.msra.mxu0 0.0
    %7614 = vmatprep.subr.mxu0 0.0
    %7615 = vmatpush1.msra.mxu0 0.0
    %7616 = vmatprep.subr.mxu0 0.0
    %7617 = vmatpush1.msra.mxu0 0.0
    %7618 = vmatprep.subr.mxu0 0.0
    %7619 = vmatpush1.msra.mxu0 0.0
    %7620 = vmatprep.subr.mxu0 0.0
    %7621 = vmatpush1.msra.mxu0 0.0
    %7622 = vmatprep.subr.mxu0 0.0
    %7623 = vmatpush1.msra.mxu0 0.0
    %7624 = vmatprep.subr.mxu0 0.0
    %7625 = vmatpush1.msra.mxu0 0.0
    %7626 = vmatprep.subr.mxu0 0.0
    %7627 = vmatpush1.msra.mxu0 0.0
    %7628 = vmatprep.subr.mxu0 0.0
    %7629 = vmatpush1.msra.mxu0 0.0
    %7630 = vmatprep.subr.mxu0 0.0
    %7631 = vmatpush1.msra.mxu0 0.0
    %7632 = vmatprep.mubr.f32.mxu0 0.0
    %7633 = vmatmul.mubr.f32.gmra.mrb[0].mxu0 %v7566
    %v7634 = vpop.f32.mrb[0].mxu0
    %v7635 = vadd.f32 0.0, %v7634
    %v7636 = vpop.f32.mrb[0].mxu0
    %v7637 = vadd.f32 0.0, %v7636
    %7638 = vdwg.mxu0
    %v7639 = vadd.f32 %v7526, %v7635
    %v7640 = vadd.f32 %v7527, %v7637
    %v7641 = vld [vmem:[%s7414 + $0x2] sm:$0x1]
    %v7642 = vld [vmem:[%s7414 + $0x12] sm:$0x1]
    %s7643 = scalar_lea.vmem %s5, 3584
    %v7644 = vld [vmem:[%s7643] sm:$0xff]
    %v7645 = vld [vmem:[%s7643 + $0x8] sm:$0xff]
    %v7646 = vld [vmem:[%s7643 + $0x10] sm:$0xff]
    %v7647 = vld [vmem:[%s7643 + $0x18] sm:$0xff]
    %v7648 = vld [vmem:[%s7643 + $0x20] sm:$0xff]
    %v7649 = vld [vmem:[%s7643 + $0x28] sm:$0xff]
    %v7650 = vld [vmem:[%s7643 + $0x30] sm:$0xff]
    %v7651 = vld [vmem:[%s7643 + $0x38] sm:$0xff]
    %v7652 = vld [vmem:[%s7643 + $0x40] sm:$0xff]
    %v7653 = vld [vmem:[%s7643 + $0x48] sm:$0xff]
    %v7654 = vld [vmem:[%s7643 + $0x50] sm:$0xff]
    %v7655 = vld [vmem:[%s7643 + $0x58] sm:$0xff]
    %v7656 = vld [vmem:[%s7643 + $0x60] sm:$0xff]
    %v7657 = vld [vmem:[%s7643 + $0x68] sm:$0xff]
    %v7658 = vld [vmem:[%s7643 + $0x70] sm:$0xff]
    %v7659 = vld [vmem:[%s7643 + $0x78] sm:$0xff]
    %v7660 = vld [vmem:[%s7643 + $0x80] sm:$0xff]
    %v7661 = vld [vmem:[%s7643 + $0x88] sm:$0xff]
    %v7662 = vld [vmem:[%s7643 + $0x90] sm:$0xff]
    %v7663 = vld [vmem:[%s7643 + $0x98] sm:$0xff]
    %v7664 = vld [vmem:[%s7643 + $0xa0] sm:$0xff]
    %v7665 = vld [vmem:[%s7643 + $0xa8] sm:$0xff]
    %v7666 = vld [vmem:[%s7643 + $0xb0] sm:$0xff]
    %v7667 = vld [vmem:[%s7643 + $0xb8] sm:$0xff]
    %v7668 = vld [vmem:[%s7643 + $0xc0] sm:$0xff]
    %v7669 = vld [vmem:[%s7643 + $0xc8] sm:$0xff]
    %v7670 = vld [vmem:[%s7643 + $0xd0] sm:$0xff]
    %v7671 = vld [vmem:[%s7643 + $0xd8] sm:$0xff]
    %v7672 = vld [vmem:[%s7643 + $0xe0] sm:$0xff]
    %v7673 = vld [vmem:[%s7643 + $0xe8] sm:$0xff]
    %v7674 = vld [vmem:[%s7643 + $0xf0] sm:$0xff]
    %v7675 = vld [vmem:[%s7643 + $0xf8] sm:$0xff]
    %v7678 = vrot.slane %v7642, 7
    %v7679 = vsel %vm363, %v7678, %v7641
    %7681 = vmatprep.subr.mxu0 %v7645
    %7682 = vmatpush1.msra.mxu0 %v7644
    %7683 = vmatprep.subr.mxu0 %v7647
    %7684 = vmatpush1.msra.mxu0 %v7646
    %7685 = vmatprep.subr.mxu0 %v7649
    %7686 = vmatpush1.msra.mxu0 %v7648
    %7687 = vmatprep.subr.mxu0 %v7651
    %7688 = vmatpush1.msra.mxu0 %v7650
    %7689 = vmatprep.subr.mxu0 %v7653
    %7690 = vmatpush1.msra.mxu0 %v7652
    %7691 = vmatprep.subr.mxu0 %v7655
    %7692 = vmatpush1.msra.mxu0 %v7654
    %7693 = vmatprep.subr.mxu0 %v7657
    %7694 = vmatpush1.msra.mxu0 %v7656
    %7695 = vmatprep.subr.mxu0 %v7659
    %7696 = vmatpush1.msra.mxu0 %v7658
    %7697 = vmatprep.subr.mxu0 %v7661
    %7698 = vmatpush1.msra.mxu0 %v7660
    %7699 = vmatprep.subr.mxu0 %v7663
    %7700 = vmatpush1.msra.mxu0 %v7662
    %7701 = vmatprep.subr.mxu0 %v7665
    %7702 = vmatpush1.msra.mxu0 %v7664
    %7703 = vmatprep.subr.mxu0 %v7667
    %7704 = vmatpush1.msra.mxu0 %v7666
    %7705 = vmatprep.subr.mxu0 %v7669
    %7706 = vmatpush1.msra.mxu0 %v7668
    %7707 = vmatprep.subr.mxu0 %v7671
    %7708 = vmatpush1.msra.mxu0 %v7670
    %7709 = vmatprep.subr.mxu0 %v7673
    %7710 = vmatpush1.msra.mxu0 %v7672
    %7711 = vmatprep.subr.mxu0 %v7675
    %7712 = vmatpush1.msra.mxu0 %v7674
    %7713 = vmatprep.subr.mxu0 0.0
    %7714 = vmatpush1.msra.mxu0 0.0
    %7715 = vmatprep.subr.mxu0 0.0
    %7716 = vmatpush1.msra.mxu0 0.0
    %7717 = vmatprep.subr.mxu0 0.0
    %7718 = vmatpush1.msra.mxu0 0.0
    %7719 = vmatprep.subr.mxu0 0.0
    %7720 = vmatpush1.msra.mxu0 0.0
    %7721 = vmatprep.subr.mxu0 0.0
    %7722 = vmatpush1.msra.mxu0 0.0
    %7723 = vmatprep.subr.mxu0 0.0
    %7724 = vmatpush1.msra.mxu0 0.0
    %7725 = vmatprep.subr.mxu0 0.0
    %7726 = vmatpush1.msra.mxu0 0.0
    %7727 = vmatprep.subr.mxu0 0.0
    %7728 = vmatpush1.msra.mxu0 0.0
    %7729 = vmatprep.subr.mxu0 0.0
    %7730 = vmatpush1.msra.mxu0 0.0
    %7731 = vmatprep.subr.mxu0 0.0
    %7732 = vmatpush1.msra.mxu0 0.0
    %7733 = vmatprep.subr.mxu0 0.0
    %7734 = vmatpush1.msra.mxu0 0.0
    %7735 = vmatprep.subr.mxu0 0.0
    %7736 = vmatpush1.msra.mxu0 0.0
    %7737 = vmatprep.subr.mxu0 0.0
    %7738 = vmatpush1.msra.mxu0 0.0
    %7739 = vmatprep.subr.mxu0 0.0
    %7740 = vmatpush1.msra.mxu0 0.0
    %7741 = vmatprep.subr.mxu0 0.0
    %7742 = vmatpush1.msra.mxu0 0.0
    %7743 = vmatprep.subr.mxu0 0.0
    %7744 = vmatpush1.msra.mxu0 0.0
    %7745 = vmatprep.mubr.f32.mxu0 0.0
    %7746 = vmatmul.mubr.f32.gmra.mrb[0].mxu0 %v7679
    %v7747 = vpop.f32.mrb[0].mxu0
    %v7748 = vadd.f32 0.0, %v7747
    %v7749 = vpop.f32.mrb[0].mxu0
    %v7750 = vadd.f32 0.0, %v7749
    %7751 = vdwg.mxu0
    %v7752 = vadd.f32 %v7639, %v7748
    %v7753 = vadd.f32 %v7640, %v7750
    %v7754 = vld [vmem:[%s7414 + $0x3] sm:$0x1]
    %v7755 = vld [vmem:[%s7414 + $0x13] sm:$0x1]
    %s7756 = scalar_lea.vmem %s5, 3840
    %v7757 = vld [vmem:[%s7756] sm:$0xff]
    %v7758 = vld [vmem:[%s7756 + $0x8] sm:$0xff]
    %v7759 = vld [vmem:[%s7756 + $0x10] sm:$0xff]
    %v7760 = vld [vmem:[%s7756 + $0x18] sm:$0xff]
    %v7761 = vld [vmem:[%s7756 + $0x20] sm:$0xff]
    %v7762 = vld [vmem:[%s7756 + $0x28] sm:$0xff]
    %v7763 = vld [vmem:[%s7756 + $0x30] sm:$0xff]
    %v7764 = vld [vmem:[%s7756 + $0x38] sm:$0xff]
    %v7765 = vld [vmem:[%s7756 + $0x40] sm:$0xff]
    %v7766 = vld [vmem:[%s7756 + $0x48] sm:$0xff]
    %v7767 = vld [vmem:[%s7756 + $0x50] sm:$0xff]
    %v7768 = vld [vmem:[%s7756 + $0x58] sm:$0xff]
    %v7769 = vld [vmem:[%s7756 + $0x60] sm:$0xff]
    %v7770 = vld [vmem:[%s7756 + $0x68] sm:$0xff]
    %v7771 = vld [vmem:[%s7756 + $0x70] sm:$0xff]
    %v7772 = vld [vmem:[%s7756 + $0x78] sm:$0xff]
    %v7773 = vld [vmem:[%s7756 + $0x80] sm:$0xff]
    %v7774 = vld [vmem:[%s7756 + $0x88] sm:$0xff]
    %v7775 = vld [vmem:[%s7756 + $0x90] sm:$0xff]
    %v7776 = vld [vmem:[%s7756 + $0x98] sm:$0xff]
    %v7777 = vld [vmem:[%s7756 + $0xa0] sm:$0xff]
    %v7778 = vld [vmem:[%s7756 + $0xa8] sm:$0xff]
    %v7779 = vld [vmem:[%s7756 + $0xb0] sm:$0xff]
    %v7780 = vld [vmem:[%s7756 + $0xb8] sm:$0xff]
    %v7781 = vld [vmem:[%s7756 + $0xc0] sm:$0xff]
    %v7782 = vld [vmem:[%s7756 + $0xc8] sm:$0xff]
    %v7783 = vld [vmem:[%s7756 + $0xd0] sm:$0xff]
    %v7784 = vld [vmem:[%s7756 + $0xd8] sm:$0xff]
    %v7785 = vld [vmem:[%s7756 + $0xe0] sm:$0xff]
    %v7786 = vld [vmem:[%s7756 + $0xe8] sm:$0xff]
    %v7787 = vld [vmem:[%s7756 + $0xf0] sm:$0xff]
    %v7788 = vld [vmem:[%s7756 + $0xf8] sm:$0xff]
    %v7791 = vrot.slane %v7755, 7
    %v7792 = vsel %vm363, %v7791, %v7754
    %7794 = vmatprep.subr.mxu0 %v7758
    %7795 = vmatpush1.msra.mxu0 %v7757
    %7796 = vmatprep.subr.mxu0 %v7760
    %7797 = vmatpush1.msra.mxu0 %v7759
    %7798 = vmatprep.subr.mxu0 %v7762
    %7799 = vmatpush1.msra.mxu0 %v7761
    %7800 = vmatprep.subr.mxu0 %v7764
    %7801 = vmatpush1.msra.mxu0 %v7763
    %7802 = vmatprep.subr.mxu0 %v7766
    %7803 = vmatpush1.msra.mxu0 %v7765
    %7804 = vmatprep.subr.mxu0 %v7768
    %7805 = vmatpush1.msra.mxu0 %v7767
    %7806 = vmatprep.subr.mxu0 %v7770
    %7807 = vmatpush1.msra.mxu0 %v7769
    %7808 = vmatprep.subr.mxu0 %v7772
    %7809 = vmatpush1.msra.mxu0 %v7771
    %7810 = vmatprep.subr.mxu0 %v7774
    %7811 = vmatpush1.msra.mxu0 %v7773
    %7812 = vmatprep.subr.mxu0 %v7776
    %7813 = vmatpush1.msra.mxu0 %v7775
    %7814 = vmatprep.subr.mxu0 %v7778
    %7815 = vmatpush1.msra.mxu0 %v7777
    %7816 = vmatprep.subr.mxu0 %v7780
    %7817 = vmatpush1.msra.mxu0 %v7779
    %7818 = vmatprep.subr.mxu0 %v7782
    %7819 = vmatpush1.msra.mxu0 %v7781
    %7820 = vmatprep.subr.mxu0 %v7784
    %7821 = vmatpush1.msra.mxu0 %v7783
    %7822 = vmatprep.subr.mxu0 %v7786
    %7823 = vmatpush1.msra.mxu0 %v7785
    %7824 = vmatprep.subr.mxu0 %v7788
    %7825 = vmatpush1.msra.mxu0 %v7787
    %7826 = vmatprep.subr.mxu0 0.0
    %7827 = vmatpush1.msra.mxu0 0.0
    %7828 = vmatprep.subr.mxu0 0.0
    %7829 = vmatpush1.msra.mxu0 0.0
    %7830 = vmatprep.subr.mxu0 0.0
    %7831 = vmatpush1.msra.mxu0 0.0
    %7832 = vmatprep.subr.mxu0 0.0
    %7833 = vmatpush1.msra.mxu0 0.0
    %7834 = vmatprep.subr.mxu0 0.0
    %7835 = vmatpush1.msra.mxu0 0.0
    %7836 = vmatprep.subr.mxu0 0.0
    %7837 = vmatpush1.msra.mxu0 0.0
    %7838 = vmatprep.subr.mxu0 0.0
    %7839 = vmatpush1.msra.mxu0 0.0
    %7840 = vmatprep.subr.mxu0 0.0
    %7841 = vmatpush1.msra.mxu0 0.0
    %7842 = vmatprep.subr.mxu0 0.0
    %7843 = vmatpush1.msra.mxu0 0.0
    %7844 = vmatprep.subr.mxu0 0.0
    %7845 = vmatpush1.msra.mxu0 0.0
    %7846 = vmatprep.subr.mxu0 0.0
    %7847 = vmatpush1.msra.mxu0 0.0
    %7848 = vmatprep.subr.mxu0 0.0
    %7849 = vmatpush1.msra.mxu0 0.0
    %7850 = vmatprep.subr.mxu0 0.0
    %7851 = vmatpush1.msra.mxu0 0.0
    %7852 = vmatprep.subr.mxu0 0.0
    %7853 = vmatpush1.msra.mxu0 0.0
    %7854 = vmatprep.subr.mxu0 0.0
    %7855 = vmatpush1.msra.mxu0 0.0
    %7856 = vmatprep.subr.mxu0 0.0
    %7857 = vmatpush1.msra.mxu0 0.0
    %7858 = vmatprep.mubr.f32.mxu0 0.0
    %7859 = vmatmul.mubr.f32.gmra.mrb[0].mxu0 %v7792
    %v7860 = vpop.f32.mrb[0].mxu0
    %v7861 = vadd.f32 0.0, %v7860
    %v7862 = vpop.f32.mrb[0].mxu0
    %v7863 = vadd.f32 0.0, %v7862
    %7864 = vdwg.mxu0
    %v7865 = vadd.f32 %v7752, %v7861
    %v7866 = vadd.f32 %v7753, %v7863
    %v7867 = vld [vmem:[%s6] sm:$0x3]
    %v7869 = vlaneseq
    %v7870 = vshrl.u32 %v7869, 7
    %v7871 = vsub.s32 0, %v7870
    %v7872 = vrot.slane %v7867, %v7871
    %v7873 = vlaneseq
    %v7874 = vshrl.u32 %v7873, 7
    %v7875 = vsub.s32 1, %v7874
    %v7876 = vrot.slane %v7867, %v7875
    %v7879 = vadd.f32 %v7865, %v7872
    %v7880 = vadd.f32 %v7866, %v7876
    %v7881 = vmax.f32 %v7879, 0.0
    %v7882 = vmax.f32 %v7880, 0.0
    %v7885 = vcombine.low %v7881, %v7882
    %v7887 = vunpack.c.l.s4 1983009808
    %v7888 = vunpack.c.0.s8 %v7887
    %v7889 = vlaneseq
    %v7890 = vshrl.u32 %v7889, 7
    %v7891 = vsub.s32 %v7888, %v7890
    %v7892 = vrot.slane %v7885, %v7891
    %7894 = vst [vmem:[#allocation4] sm:$0xf] %v7892
    %v7895 = vld [vmem:[#allocation4] sm:$0xf]
    %v7896 = vld [vmem:[%s7] sm:$0xff]
    %v7897 = vld [vmem:[%s7 + $0x8] sm:$0xff]
    %v7898 = vld [vmem:[%s7 + $0x10] sm:$0xff]
    %v7899 = vld [vmem:[%s7 + $0x18] sm:$0xff]
    %v7900 = vld [vmem:[%s7 + $0x20] sm:$0xff]
    %v7901 = vld [vmem:[%s7 + $0x28] sm:$0xff]
    %v7902 = vld [vmem:[%s7 + $0x30] sm:$0xff]
    %v7903 = vld [vmem:[%s7 + $0x38] sm:$0xff]
    %v7904 = vld [vmem:[%s7 + $0x40] sm:$0xff]
    %v7905 = vld [vmem:[%s7 + $0x48] sm:$0xff]
    %v7906 = vld [vmem:[%s7 + $0x50] sm:$0xff]
    %v7907 = vld [vmem:[%s7 + $0x58] sm:$0xff]
    %v7908 = vld [vmem:[%s7 + $0x60] sm:$0xff]
    %v7909 = vld [vmem:[%s7 + $0x68] sm:$0xff]
    %v7910 = vld [vmem:[%s7 + $0x70] sm:$0xff]
    %v7911 = vld [vmem:[%s7 + $0x78] sm:$0xff]
    %v7912 = vld [vmem:[%s7 + $0x80] sm:$0xff]
    %v7913 = vld [vmem:[%s7 + $0x88] sm:$0xff]
    %v7914 = vld [vmem:[%s7 + $0x90] sm:$0xff]
    %v7915 = vld [vmem:[%s7 + $0x98] sm:$0xff]
    %v7916 = vld [vmem:[%s7 + $0xa0] sm:$0xff]
    %v7917 = vld [vmem:[%s7 + $0xa8] sm:$0xff]
    %v7918 = vld [vmem:[%s7 + $0xb0] sm:$0xff]
    %v7919 = vld [vmem:[%s7 + $0xb8] sm:$0xff]
    %v7920 = vld [vmem:[%s7 + $0xc0] sm:$0xff]
    %v7921 = vld [vmem:[%s7 + $0xc8] sm:$0xff]
    %v7922 = vld [vmem:[%s7 + $0xd0] sm:$0xff]
    %v7923 = vld [vmem:[%s7 + $0xd8] sm:$0xff]
    %v7924 = vld [vmem:[%s7 + $0xe0] sm:$0xff]
    %v7925 = vld [vmem:[%s7 + $0xe8] sm:$0xff]
    %v7926 = vld [vmem:[%s7 + $0xf0] sm:$0xff]
    %v7927 = vld [vmem:[%s7 + $0xf8] sm:$0xff]
    %v7928 = vld [vmem:[%s8] sm:$0x1]
    %v7930 = vlaneseq
    %v7931 = vshrl.u32 %v7930, 7
    %v7932 = vsub.s32 0, %v7931
    %v7933 = vrot.slane %v7928, %v7932
    %v7937 = vunpack.c.l.s4 1983009808
    %v7938 = vunpack.c.0.s8 %v7937
    %v7939 = vlaneseq
    %v7940 = vshrl.u32 %v7939, 7
    %v7941 = vsub.s32 %v7938, %v7940
    %v7942 = vrot.slane %v7895, %v7941
    %v7943 = vcombine.high %v7942, %v7942
    %7946 = vmatprep.subr.mxu0 0.0
    %7947 = vmatpush1.msra.mxu0 %v7896
    %7948 = vmatprep.subr.mxu0 0.0
    %7949 = vmatpush1.msra.mxu0 %v7897
    %7950 = vmatprep.subr.mxu0 0.0
    %7951 = vmatpush1.msra.mxu0 %v7898
    %7952 = vmatprep.subr.mxu0 0.0
    %7953 = vmatpush1.msra.mxu0 %v7899
    %7954 = vmatprep.subr.mxu0 0.0
    %7955 = vmatpush1.msra.mxu0 %v7900
    %7956 = vmatprep.subr.mxu0 0.0
    %7957 = vmatpush1.msra.mxu0 %v7901
    %7958 = vmatprep.subr.mxu0 0.0
    %7959 = vmatpush1.msra.mxu0 %v7902
    %7960 = vmatprep.subr.mxu0 0.0
    %7961 = vmatpush1.msra.mxu0 %v7903
    %7962 = vmatprep.subr.mxu0 0.0
    %7963 = vmatpush1.msra.mxu0 %v7904
    %7964 = vmatprep.subr.mxu0 0.0
    %7965 = vmatpush1.msra.mxu0 %v7905
    %7966 = vmatprep.subr.mxu0 0.0
    %7967 = vmatpush1.msra.mxu0 %v7906
    %7968 = vmatprep.subr.mxu0 0.0
    %7969 = vmatpush1.msra.mxu0 %v7907
    %7970 = vmatprep.subr.mxu0 0.0
    %7971 = vmatpush1.msra.mxu0 %v7908
    %7972 = vmatprep.subr.mxu0 0.0
    %7973 = vmatpush1.msra.mxu0 %v7909
    %7974 = vmatprep.subr.mxu0 0.0
    %7975 = vmatpush1.msra.mxu0 %v7910
    %7976 = vmatprep.subr.mxu0 0.0
    %7977 = vmatpush1.msra.mxu0 %v7911
    %7978 = vmatprep.subr.mxu0 0.0
    %7979 = vmatpush1.msra.mxu0 %v7912
    %7980 = vmatprep.subr.mxu0 0.0
    %7981 = vmatpush1.msra.mxu0 %v7913
    %7982 = vmatprep.subr.mxu0 0.0
    %7983 = vmatpush1.msra.mxu0 %v7914
    %7984 = vmatprep.subr.mxu0 0.0
    %7985 = vmatpush1.msra.mxu0 %v7915
    %7986 = vmatprep.subr.mxu0 0.0
    %7987 = vmatpush1.msra.mxu0 %v7916
    %7988 = vmatprep.subr.mxu0 0.0
    %7989 = vmatpush1.msra.mxu0 %v7917
    %7990 = vmatprep.subr.mxu0 0.0
    %7991 = vmatpush1.msra.mxu0 %v7918
    %7992 = vmatprep.subr.mxu0 0.0
    %7993 = vmatpush1.msra.mxu0 %v7919
    %7994 = vmatprep.subr.mxu0 0.0
    %7995 = vmatpush1.msra.mxu0 %v7920
    %7996 = vmatprep.subr.mxu0 0.0
    %7997 = vmatpush1.msra.mxu0 %v7921
    %7998 = vmatprep.subr.mxu0 0.0
    %7999 = vmatpush1.msra.mxu0 %v7922
    %8000 = vmatprep.subr.mxu0 0.0
    %8001 = vmatpush1.msra.mxu0 %v7923
    %8002 = vmatprep.subr.mxu0 0.0
    %8003 = vmatpush1.msra.mxu0 %v7924
    %8004 = vmatprep.subr.mxu0 0.0
    %8005 = vmatpush1.msra.mxu0 %v7925
    %8006 = vmatprep.subr.mxu0 0.0
    %8007 = vmatpush1.msra.mxu0 %v7926
    %8008 = vmatprep.subr.mxu0 0.0
    %8009 = vmatpush1.msra.mxu0 %v7927
    %8010 = vmatprep.mubr.f32.mxu0 %v7943
    %8011 = vmatmul.mubr.f32.gmra.mrb[0].mxu0 %v7942
    %v8012 = vpop.f32.mrb[0].mxu0
    %v8013 = vadd.f32 %v7933, %v8012
    %v8014 = vpop.f32.mrb[0].mxu0
    %8015 = vdwg.mxu0
    %v8016 = vld [vmem:[%s9] sm:$0xff]
    %v8017 = vld [vmem:[%s9 + $0x8] sm:$0xff]
    %v8018 = vld [vmem:[%s9 + $0x10] sm:$0xff]
    %v8019 = vld [vmem:[%s9 + $0x18] sm:$0xff]
    %v8020 = vld [vmem:[%s9 + $0x20] sm:$0xff]
    %v8021 = vld [vmem:[%s9 + $0x28] sm:$0xff]
    %v8022 = vld [vmem:[%s9 + $0x30] sm:$0xff]
    %v8023 = vld [vmem:[%s9 + $0x38] sm:$0xff]
    %v8024 = vld [vmem:[%s9 + $0x40] sm:$0xff]
    %v8025 = vld [vmem:[%s9 + $0x48] sm:$0xff]
    %v8026 = vld [vmem:[%s9 + $0x50] sm:$0xff]
    %v8027 = vld [vmem:[%s9 + $0x58] sm:$0xff]
    %v8028 = vld [vmem:[%s9 + $0x60] sm:$0xff]
    %v8029 = vld [vmem:[%s9 + $0x68] sm:$0xff]
    %v8030 = vld [vmem:[%s9 + $0x70] sm:$0xff]
    %v8031 = vld [vmem:[%s9 + $0x78] sm:$0xff]
    %v8032 = vld [vmem:[%s10] sm:$0x1]
    %v8034 = vlaneseq
    %v8035 = vshrl.u32 %v8034, 7
    %v8036 = vsub.s32 0, %v8035
    %v8037 = vrot.slane %v8032, %v8036
    %8039 = vmatprep.subr.mxu0 0.0
    %8040 = vmatpush1.msra.mxu0 %v8016
    %8041 = vmatprep.subr.mxu0 0.0
    %8042 = vmatpush1.msra.mxu0 %v8017
    %8043 = vmatprep.subr.mxu0 0.0
    %8044 = vmatpush1.msra.mxu0 %v8018
    %8045 = vmatprep.subr.mxu0 0.0
    %8046 = vmatpush1.msra.mxu0 %v8019
    %8047 = vmatprep.subr.mxu0 0.0
    %8048 = vmatpush1.msra.mxu0 %v8020
    %8049 = vmatprep.subr.mxu0 0.0
    %8050 = vmatpush1.msra.mxu0 %v8021
    %8051 = vmatprep.subr.mxu0 0.0
    %8052 = vmatpush1.msra.mxu0 %v8022
    %8053 = vmatprep.subr.mxu0 0.0
    %8054 = vmatpush1.msra.mxu0 %v8023
    %8055 = vmatprep.subr.mxu0 0.0
    %8056 = vmatpush1.msra.mxu0 %v8024
    %8057 = vmatprep.subr.mxu0 0.0
    %8058 = vmatpush1.msra.mxu0 %v8025
    %8059 = vmatprep.subr.mxu0 0.0
    %8060 = vmatpush1.msra.mxu0 %v8026
    %8061 = vmatprep.subr.mxu0 0.0
    %8062 = vmatpush1.msra.mxu0 %v8027
    %8063 = vmatprep.subr.mxu0 0.0
    %8064 = vmatpush1.msra.mxu0 %v8028
    %8065 = vmatprep.subr.mxu0 0.0
    %8066 = vmatpush1.msra.mxu0 %v8029
    %8067 = vmatprep.subr.mxu0 0.0
    %8068 = vmatpush1.msra.mxu0 %v8030
    %8069 = vmatprep.subr.mxu0 0.0
    %8070 = vmatpush1.msra.mxu0 %v8031
    %8071 = vmatprep.subr.mxu0 0.0
    %8072 = vmatpush1.msra.mxu0 0.0
    %8073 = vmatprep.subr.mxu0 0.0
    %8074 = vmatpush1.msra.mxu0 0.0
    %8075 = vmatprep.subr.mxu0 0.0
    %8076 = vmatpush1.msra.mxu0 0.0
    %8077 = vmatprep.subr.mxu0 0.0
    %8078 = vmatpush1.msra.mxu0 0.0
    %8079 = vmatprep.subr.mxu0 0.0
    %8080 = vmatpush1.msra.mxu0 0.0
    %8081 = vmatprep.subr.mxu0 0.0
    %8082 = vmatpush1.msra.mxu0 0.0
    %8083 = vmatprep.subr.mxu0 0.0
    %8084 = vmatpush1.msra.mxu0 0.0
    %8085 = vmatprep.subr.mxu0 0.0
    %8086 = vmatpush1.msra.mxu0 0.0
    %8087 = vmatprep.subr.mxu0 0.0
    %8088 = vmatpush1.msra.mxu0 0.0
    %8089 = vmatprep.subr.mxu0 0.0
    %8090 = vmatpush1.msra.mxu0 0.0
    %8091 = vmatprep.subr.mxu0 0.0
    %8092 = vmatpush1.msra.mxu0 0.0
    %8093 = vmatprep.subr.mxu0 0.0
    %8094 = vmatpush1.msra.mxu0 0.0
    %8095 = vmatprep.subr.mxu0 0.0
    %8096 = vmatpush1.msra.mxu0 0.0
    %8097 = vmatprep.subr.mxu0 0.0
    %8098 = vmatpush1.msra.mxu0 0.0
    %8099 = vmatprep.subr.mxu0 0.0
    %8100 = vmatpush1.msra.mxu0 0.0
    %8101 = vmatprep.subr.mxu0 0.0
    %8102 = vmatpush1.msra.mxu0 0.0
    %8103 = vmatprep.mubr.f32.mxu0 0.0
    %8104 = vmatmul.mubr.f32.gmra.mrb[0].mxu0 %v8013
    %v8105 = vpop.f32.mrb[0].mxu0
    %v8106 = vadd.f32 %v8037, %v8105
    %v8107 = vpop.f32.mrb[0].mxu0
    %8108 = vdwg.mxu0
    %vm8109 = vcmask 254976
    %8110 = vst.msk [vmem:[#allocation5] sm:$0x3] %vm8109, %v8106
    // Predicated region
    $region46: #{encoder_forward.3} parent=1 // pred_check
      _
    $region47: #{encoder_forward.3} parent=1 // pred_check_branch
      %8112 = sbr.rel (0) target = $region49
    $region48: #{encoder_forward.3} parent=1 // pred_region
      %s8114 = ssub.s32 32, 32
      %8115 = vsyncadd [#allocation6], %s8114
      %s8117 = sshll.u32 [#allocation5], 4
      %s8118 = int_to_ptr.vmem [resolvable:$true] %s8117
      %8120 = dma.vmem_to_hbm [thread:$0]  %s8118, 32, %s11, [#allocation6]
    $region49: #{encoder_forward.3} parent=1 // pred_fallthru
      _
    // Predicated region
    $region50: #{encoder_forward.3} parent=1 // pred_check
      _
    $region51: #{encoder_forward.3} parent=1 // pred_check_branch
      %8122 = sbr.rel (0) target = $region53
    $region52: #{encoder_forward.3} parent=1 // pred_region
      %8123 = dma.done [#allocation6], 32
    $region53: #{encoder_forward.3} parent=1 // pred_fallthru
      _
    %8124 = vsyncpa [#allocation6], 1

</llo_original>
